<compile_context>
chip_gen: v6e
topology: v6e:2x2x1
jax: 0.10.0
libtpu: 0.0.40
codegen_flags: <defaults>
</compile_context>

<pallas_src>
import functools

import jax
import jax.numpy as jnp
from jax.experimental import pallas as pl
from jax.experimental.pallas import tpu as pltpu

# Max kernel size per conv layer across the three branches (3/5/7, 3/5/7, 3, 3).
K_MAX_PER_LAYER = (7, 7, 3, 3)
NUM_BRANCHES = 3


# ----------------------------------------------------------------------------
# Pallas kernels
# ----------------------------------------------------------------------------
def conv_bn_relu_pool_kernel(p_ref, w_ref, scale_ref, shift_ref, o_ref):
    """Fused conv (tap-folded GEMM) + 2x2 max-pool + BN(eval) + ReLU.

    p_ref:     (1, 4, TR, TC) bf16  im2col patches; 4 = pool quadrants,
                                    TR = row tile of flat (n, ho, wo) pixels,
                                    TC = K*K*Cin (per branch for layers 2-4).
    w_ref:     (1, TC, Cout)  bf16  per-branch (or layer-1 combined) weights.
    scale_ref: (1, 1, Cout)   f32   folded BN scale = gamma / sqrt(var + eps)
    shift_ref: (1, 1, Cout)   f32   folded BN shift = beta + (bias - mean)*scale
    o_ref:     (1, TR, Cout)  bf16  pooled output tile.
    """
    _, _, tr, tc = p_ref.shape
    cout = w_ref.shape[-1]
    # One tall GEMM over all 4 pool quadrants: fills the MXU M-tiles ~4x better
    # than 4 small matmuls and pushes the weights through the MXU only once.
    lhs = p_ref[...].reshape(4 * tr, tc)
    acc = jnp.dot(lhs, w_ref[0], preferred_element_type=jnp.float32)
    # 2x2 max-pool via quadrant max.  Folded BN scale >= 0 (gamma = 1), so the
    # BN affine + ReLU commute with the max and are applied once, after it.
    acc4 = acc.reshape(4, tr, cout)
    pooled = jnp.maximum(jnp.maximum(acc4[0], acc4[1]),
                         jnp.maximum(acc4[2], acc4[3]))
    y = jnp.maximum(pooled * scale_ref[0] + shift_ref[0], 0.0)
    o_ref[...] = y.reshape(1, tr, cout).astype(o_ref.dtype)


def mlp_kernel(x_ref, w1_ref, b1_ref, w2_ref, b2_ref, o_ref):
    """fc1 + ReLU + fc2 (dropout = identity in eval mode); lane-padded output."""
    h = jnp.dot(x_ref[...], w1_ref[...], preferred_element_type=jnp.float32)
    h = jnp.maximum(h + b1_ref[...], 0.0)
    o = jnp.dot(h.astype(w2_ref.dtype), w2_ref[...],
                preferred_element_type=jnp.float32) + b2_ref[...]
    o_ref[...] = o


# ----------------------------------------------------------------------------
# Tiling helpers
# ----------------------------------------------------------------------------
@functools.lru_cache(maxsize=1)
def _chip_budget():
    """(max row tile, vmem limit) tuned per TPU generation; conservative fallback."""
    try:
        vmem = int(getattr(pltpu.get_tpu_info(), "vmem_capacity_bytes", 0))
    except Exception:  # unknown backend / API shape: stay conservative
        vmem = 0
    if vmem >= 96 * 1024 * 1024:          # v5e / v6e: 128 MiB VMEM, single TC
        return 512, 64 * 1024 * 1024
    return 256, 32 * 1024 * 1024           # v7x (64 MiB physical) or unknown


def _row_tiling(r, max_tile):
    """Pick the row tile first, then pad R up to a multiple of it.

    Rows are aligned to 16 (fully packed bf16 sublanes); when there is enough
    work we force >= 2 grid steps so both v7x TensorCores are fed.
    """
    a = 16
    ra = -(-r // a) * a
    if ra <= 2 * a:
        return ra, ra
    if ra <= 2 * max_tile:
        tile = -(-(ra // 2) // a) * a
    else:
        tile = max_tile
    r_pad = -(-ra // tile) * tile
    return tile, r_pad


# ----------------------------------------------------------------------------
# Glue (plain JAX): patch extraction, parameter setup, layer chaining
# ----------------------------------------------------------------------------
def build_patches(x, k, max_tile):
    """im2col in (branch, quadrant, flat-pixel, tap*channel) layout.

    x: (nb, N, H, W, C).  Returns bf16 patches (nb, 4, R_pad, K*K*C) plus
    shape info; R = N*Ho*Wo is padded so every kernel store is an unmasked,
    fully packed bf16 tile.

    TODO(synk): at realistic N/H/W this XLA-side patch tensor inflates
    activation HBM traffic by K^2; move im2col into the kernel (halo DMA +
    K^2 tap-GEMM accumulation) before scaling up.
    """
    nb, n, h, w, c = x.shape
    p = (k - 1) // 2
    ho, wo = h // 2, w // 2
    xp = jnp.pad(x, ((0, 0), (0, 0), (p, p), (p, p), (0, 0)))
    taps = [xp[:, :, kh:kh + 2 * ho, kw:kw + 2 * wo, :]
            for kh in range(k) for kw in range(k)]           # (nb, N, 2Ho, 2Wo, C)
    t = jnp.stack(taps, axis=0)                              # (T, nb, N, 2Ho, 2Wo, C)
    t = t.reshape(k * k, nb, n, ho, 2, wo, 2, c)             # (T, nb, n, ho, dh, wo, dw, c)
    t = jnp.transpose(t, (1, 4, 6, 2, 3, 5, 0, 7))           # (nb, dh, dw, n, ho, wo, T, c)
    t = t.reshape(nb, 4, n * ho * wo, k * k * c)
    r = n * ho * wo
    tr, r_pad = _row_tiling(r, max_tile)
    if r_pad != r:
        t = jnp.pad(t, ((0, 0), (0, 0), (0, r_pad - r), (0, 0)))
    return t.astype(jnp.bfloat16), (n, ho, wo, r, r_pad, tr)


def conv_bn_relu_pool(patches, w, scale, shift, tr):
    """One fused conv block; grid = (branch, row tiles)."""
    nb_w, _, r_pad, tc = patches.shape
    cout = w.shape[-1]
    _, vmem_limit = _chip_budget()
    flops = 2 * nb_w * 4 * r_pad * tc * cout
    bytes_accessed = (patches.size * 2 + w.size * 2
                      + (scale.size + shift.size) * 4 + nb_w * r_pad * cout * 2)
    return pl.pallas_call(
        conv_bn_relu_pool_kernel,
        out_shape=jax.ShapeDtypeStruct((nb_w, r_pad, cout), jnp.bfloat16),
        grid_spec=pltpu.PrefetchScalarGridSpec(
            num_scalar_prefetch=0,
            grid=(nb_w, r_pad // tr),
            in_specs=[
                pl.BlockSpec((1, 4, tr, tc), lambda b, i: (b, 0, i, 0)),
                pl.BlockSpec((1, tc, cout), lambda b, i: (b, 0, 0)),
                pl.BlockSpec((1, 1, cout), lambda b, i: (b, 0, 0)),
                pl.BlockSpec((1, 1, cout), lambda b, i: (b, 0, 0)),
            ],
            out_specs=pl.BlockSpec((1, tr, cout), lambda b, i: (b, i, 0)),
        ),
        compiler_params=pltpu.CompilerParams(
            dimension_semantics=("parallel", "parallel"),
            vmem_limit_bytes=vmem_limit),
        cost_estimate=pl.CostEstimate(
            flops=flops, transcendentals=0, bytes_accessed=bytes_accessed),
    )(patches, w, scale, shift)


def mlp_head(feats, fc_params, num_classes):
    """fc1 + ReLU + fc2 with lane-padded (128) output columns; sliced outside."""
    w1, b1, w2, b2 = fc_params
    n, d_in = feats.shape
    d_h = w1.shape[1]
    c_pad = w2.shape[1]
    max_tile, vmem_limit = _chip_budget()
    tn, n_pad = _row_tiling(n, max_tile)
    x = jnp.pad(feats.astype(jnp.bfloat16), ((0, n_pad - n), (0, 0)))
    out = pl.pallas_call(
        mlp_kernel,
        out_shape=jax.ShapeDtypeStruct((n_pad, c_pad), jnp.float32),
        grid_spec=pltpu.PrefetchScalarGridSpec(
            num_scalar_prefetch=0,
            grid=(n_pad // tn,),
            in_specs=[
                pl.BlockSpec((tn, d_in), lambda i: (i, 0)),
                pl.BlockSpec((d_in, d_h), lambda i: (0, 0)),
                pl.BlockSpec((1, d_h), lambda i: (0, 0)),
                pl.BlockSpec((d_h, c_pad), lambda i: (0, 0)),
                pl.BlockSpec((1, c_pad), lambda i: (0, 0)),
            ],
            out_specs=pl.BlockSpec((tn, c_pad), lambda i: (i, 0)),
        ),
        compiler_params=pltpu.CompilerParams(
            dimension_semantics=("parallel",),
            vmem_limit_bytes=vmem_limit),
        cost_estimate=pl.CostEstimate(
            flops=2 * n_pad * (d_in * d_h + d_h * c_pad),
            transcendentals=0,
            bytes_accessed=(x.size * 2 + w1.size * 2 + w2.size * 2
                            + (b1.size + b2.size) * 4 + n_pad * c_pad * 4)),
    )(x, w1, b1, w2, b2)
    return out[:n, :num_classes]


def init_params(in_channels=3, num_classes=3, key=jax.random.PRNGKey(0)):
    """Deterministic params.  Layer 1: branch-combined weights, Cout padded to
    128.  Layers 2-4: per-branch stacked weights (no block-diagonal zeros);
    smaller kernels sit in the centered taps of the layer's max kernel.
    Eval-mode BatchNorm is folded into per-channel scale/shift."""
    branch_ks = ((3, 5, 7), (3, 5, 7), (3, 3, 3), (3, 3, 3))  # per layer, per branch
    ch = (in_channels, 32, 64, 128, 256)
    nb = NUM_BRANCHES
    eps = 1e-5
    keys = jax.random.split(key, 4 * nb * 2 + 2)

    def conv_branch(kw_key, kb_key, kb, cin, cout):
        fan_in = cin * kb * kb
        w = jax.random.normal(kw_key, (kb, kb, cin, cout),
                              jnp.float32) / jnp.sqrt(jnp.float32(fan_in))
        bias = jax.random.normal(kb_key, (cout,), jnp.float32) * 0.01
        # PyTorch BatchNorm2d eval defaults: gamma=1, beta=0, mean=0, var=1.
        gamma = jnp.ones((cout,), jnp.float32)
        beta = jnp.zeros((cout,), jnp.float32)
        mean = jnp.zeros((cout,), jnp.float32)
        var = jnp.ones((cout,), jnp.float32)
        s = gamma / jnp.sqrt(var + eps)        # >= 0: required for BN-after-max
        sh = beta + (bias - mean) * s
        return w, s, sh

    conv_params = []
    key_idx = 0
    for li in range(4):
        k_max = K_MAX_PER_LAYER[li]
        cin_b, cout_b = ch[li], ch[li + 1]
        if li == 0:
            # Branch-combined (shared 3-channel input); Cout 96 -> 128 lane pad.
            cout_pad = 128
            w4 = jnp.zeros((k_max, k_max, cin_b, cout_pad), jnp.float32)
            scale = jnp.zeros((cout_pad,), jnp.float32)
            shift = jnp.zeros((cout_pad,), jnp.float32)
            for b in range(nb):
                kb = branch_ks[li][b]
                w, s, sh = conv_branch(keys[key_idx], keys[key_idx + 1],
                                       kb, cin_b, cout_b)
                key_idx += 2
                o = (k_max - kb) // 2
                w4 = w4.at[o:o + kb, o:o + kb, :,
                           b * cout_b:(b + 1) * cout_b].set(w)
                scale = scale.at[b * cout_b:(b + 1) * cout_b].set(s)
                shift = shift.at[b * cout_b:(b + 1) * cout_b].set(sh)
            conv_params.append(
                (w4.reshape(1, k_max * k_max * cin_b, cout_pad).astype(jnp.bfloat16),
                 scale.reshape(1, 1, cout_pad), shift.reshape(1, 1, cout_pad)))
        else:
            # Per-branch weights stacked over a branch axis (block-diag removed).
            ws, ss, shs = [], [], []
            for b in range(nb):
                kb = branch_ks[li][b]
                w, s, sh = conv_branch(keys[key_idx], keys[key_idx + 1],
                                       kb, cin_b, cout_b)
                key_idx += 2
                o = (k_max - kb) // 2
                w_full = jnp.zeros((k_max, k_max, cin_b, cout_b), jnp.float32)
                w_full = w_full.at[o:o + kb, o:o + kb].set(w)
                ws.append(w_full.reshape(k_max * k_max * cin_b, cout_b))
                ss.append(s)
                shs.append(sh)
            conv_params.append(
                (jnp.stack(ws, 0).astype(jnp.bfloat16),
                 jnp.stack(ss, 0).reshape(nb, 1, cout_b),
                 jnp.stack(shs, 0).reshape(nb, 1, cout_b)))

    k1, k2 = keys[key_idx], keys[key_idx + 1]
    d_in, d_h = nb * ch[-1], 512
    c_pad = max(128, -(-num_classes // 128) * 128)
    w1 = (jax.random.normal(k1, (d_in, d_h), jnp.float32)
          / jnp.sqrt(jnp.float32(d_in))).astype(jnp.bfloat16)
    b1 = jnp.zeros((1, d_h), jnp.float32)
    w2f = jax.random.normal(k2, (d_h, num_classes), jnp.float32) / jnp.sqrt(
        jnp.float32(d_h))
    w2 = jnp.zeros((d_h, c_pad), jnp.float32).at[:, :num_classes].set(
        w2f).astype(jnp.bfloat16)
    b2 = jnp.zeros((1, c_pad), jnp.float32)
    return tuple(conv_params), (w1, b1, w2, b2)


def model_forward(x_nchw, conv_params, fc_params, num_classes=3):
    max_tile, _ = _chip_budget()
    nb = NUM_BRANCHES
    x = jnp.transpose(x_nchw, (0, 2, 3, 1))          # NCHW -> NHWC
    h = x[None]                                       # pseudo branch axis (shared input)
    for li, (w, scale, shift) in enumerate(conv_params):
        k_max = K_MAX_PER_LAYER[li]
        patches, (n, ho, wo, r, r_pad, tr) = build_patches(h, k_max, max_tile)
        out = conv_bn_relu_pool(patches, w, scale, shift, tr)[:, :r, :]
        if li == 0:
            # Layer-1 output is channel-concatenated [b1|b2|b3|zero-pad]; peel
            # the lane padding and switch to the branch-major layout used by
            # the per-branch grids of layers 2-4.
            cb = conv_params[1][0].shape[1] // (K_MAX_PER_LAYER[1] ** 2)
            out = out[0, :, :nb * cb].reshape(n, ho, wo, nb, cb)
            h = jnp.transpose(out, (3, 0, 1, 2, 4))   # (nb, N, Ho, Wo, Cb)
        else:
            h = out.reshape(out.shape[0], n, ho, wo, out.shape[-1])
    # AdaptiveAvgPool2d((1,1)) + flatten + branch concat ([b1|b2|b3] order).
    nbh, n, ho, wo, c = h.shape
    feats = h.astype(jnp.float32).reshape(nbh, n, ho * wo, c).mean(axis=2)
    feats = jnp.transpose(feats, (1, 0, 2)).reshape(n, nbh * c)
    # TODO(synk): Dropout layers omitted (eval-mode identity); train-mode RNG not modeled.
    return mlp_head(feats, fc_params, num_classes)


if __name__ == "__main__":
    in_channels, num_classes = 3, 3
    conv_params, fc_params = init_params(in_channels, num_classes)

    x = jax.random.normal(jax.random.PRNGKey(0), (2, in_channels, 16, 16),
                          jnp.float32)

    fwd = jax.jit(model_forward, static_argnames=("num_classes",))
    out = fwd(x, conv_params, fc_params, num_classes=num_classes)
    out = jax.block_until_ready(out)
    assert out.shape == (2, num_classes), out.shape
    print("KERNEL_OK")
</pallas_src>

<mosaic_0001>
module attributes {stable_mosaic.version = 11 : i64} {
  func.func @conv_bn_relu_pool_kernel(%arg0: i32, %arg1: i32, %arg2: memref<1x4x64x147xbf16, #tpu.memory_space<vmem>>, %arg3: memref<1x147x128xbf16, #tpu.memory_space<vmem>>, %arg4: memref<1x1x128xf32, #tpu.memory_space<vmem>>, %arg5: memref<1x1x128xf32, #tpu.memory_space<vmem>>, %arg6: memref<1x64x128xbf16, #tpu.memory_space<vmem>>) attributes {dimension_semantics = [#tpu.dimension_semantics<parallel>, #tpu.dimension_semantics<parallel>], iteration_bounds = array<i64: 1, 2>, scalar_prefetch = 0 : i64, scratch_operands = 0 : i64, tpu.core_type = #tpu.core_type<tc>, window_params = [{transform_indices = @transform_0, window_bounds = array<i64: 1, 4, 64, 147>}, {transform_indices = @transform_1, window_bounds = array<i64: 1, 147, 128>}, {transform_indices = @transform_2, window_bounds = array<i64: 1, 1, 128>}, {transform_indices = @transform_3, window_bounds = array<i64: 1, 1, 128>}, {transform_indices = @transform_4, window_bounds = array<i64: 1, 64, 128>}]} {
    %c0 = arith.constant 0 : index
    %c0_0 = arith.constant 0 : index
    %c0_1 = arith.constant 0 : index
    %c0_2 = arith.constant 0 : index
    %0 = vector.load %arg2[%c0, %c0_0, %c0_1, %c0_2] : memref<1x4x64x147xbf16, #tpu.memory_space<vmem>>, vector<1x4x64x147xbf16>
    %1 = vector.shape_cast %0 : vector<1x4x64x147xbf16> to vector<256x147xbf16>
    %c0_3 = arith.constant 0 : index
    %c0_4 = arith.constant 0 : index
    %c0_5 = arith.constant 0 : index
    %2 = vector.load %arg3[%c0_3, %c0_4, %c0_5] : memref<1x147x128xbf16, #tpu.memory_space<vmem>>, vector<1x147x128xbf16>
    %3 = vector.shape_cast %2 : vector<1x147x128xbf16> to vector<147x128xbf16>
    %cst = arith.constant dense<0.000000e+00> : vector<256x128xf32>
    %4 = tpu.matmul %1, %3, %cst {dimension_numbers = #tpu.dot_dimension_numbers<[1], [0], [0], [1], [0, 0, 1, 1], [], []>} : vector<256x147xbf16>, vector<147x128xbf16>, vector<256x128xf32> -> vector<256x128xf32>
    %5 = vector.shape_cast %4 : vector<256x128xf32> to vector<4x64x128xf32>
    %6 = vector.extract_strided_slice %5 {offsets = [0, 0, 0], sizes = [1, 64, 128], strides = [1, 1, 1]} : vector<4x64x128xf32> to vector<1x64x128xf32>
    %7 = vector.shape_cast %6 : vector<1x64x128xf32> to vector<64x128xf32>
    %8 = vector.extract_strided_slice %5 {offsets = [1, 0, 0], sizes = [1, 64, 128], strides = [1, 1, 1]} : vector<4x64x128xf32> to vector<1x64x128xf32>
    %9 = vector.shape_cast %8 : vector<1x64x128xf32> to vector<64x128xf32>
    %10 = arith.maximumf %7, %9 : vector<64x128xf32>
    %11 = vector.extract_strided_slice %5 {offsets = [2, 0, 0], sizes = [1, 64, 128], strides = [1, 1, 1]} : vector<4x64x128xf32> to vector<1x64x128xf32>
    %12 = vector.shape_cast %11 : vector<1x64x128xf32> to vector<64x128xf32>
    %13 = vector.extract_strided_slice %5 {offsets = [3, 0, 0], sizes = [1, 64, 128], strides = [1, 1, 1]} : vector<4x64x128xf32> to vector<1x64x128xf32>
    %14 = vector.shape_cast %13 : vector<1x64x128xf32> to vector<64x128xf32>
    %15 = arith.maximumf %12, %14 : vector<64x128xf32>
    %16 = arith.maximumf %10, %15 : vector<64x128xf32>
    %c0_6 = arith.constant 0 : index
    %c0_7 = arith.constant 0 : index
    %c0_8 = arith.constant 0 : index
    %17 = vector.load %arg4[%c0_6, %c0_7, %c0_8] : memref<1x1x128xf32, #tpu.memory_space<vmem>>, vector<1x1x128xf32>
    %18 = vector.shape_cast %17 : vector<1x1x128xf32> to vector<1x128xf32>
    %19 = vector.broadcast %18 : vector<1x128xf32> to vector<64x128xf32>
    %20 = arith.mulf %16, %19 : vector<64x128xf32>
    %c0_9 = arith.constant 0 : index
    %c0_10 = arith.constant 0 : index
    %c0_11 = arith.constant 0 : index
    %21 = vector.load %arg5[%c0_9, %c0_10, %c0_11] : memref<1x1x128xf32, #tpu.memory_space<vmem>>, vector<1x1x128xf32>
    %22 = vector.shape_cast %21 : vector<1x1x128xf32> to vector<1x128xf32>
    %23 = vector.broadcast %22 : vector<1x128xf32> to vector<64x128xf32>
    %24 = arith.addf %20, %23 : vector<64x128xf32>
    %cst_12 = arith.constant 0.000000e+00 : f32
    %25 = vector.broadcast %cst_12 : f32 to vector<64x128xf32>
    %26 = arith.maximumf %24, %25 : vector<64x128xf32>
    %27 = vector.shape_cast %26 : vector<64x128xf32> to vector<1x64x128xf32>
    %28 = arith.truncf %27 : vector<1x64x128xf32> to vector<1x64x128xbf16>
    %c0_13 = arith.constant 0 : index
    %c0_14 = arith.constant 0 : index
    %c0_15 = arith.constant 0 : index
    %29 = vector.load %arg6[%c0_13, %c0_14, %c0_15] : memref<1x64x128xbf16, #tpu.memory_space<vmem>>, vector<1x64x128xbf16>
    tpu.vector_store %arg6[%c0_13, %c0_14, %c0_15], %28 {strides = array<i32>} : memref<1x64x128xbf16, #tpu.memory_space<vmem>>, vector<1x64x128xbf16>,
    return
  }
  func.func @transform_0(%arg0: i32, %arg1: i32) -> (i32, i32, i32, i32) {
    %c0_i32 = arith.constant 0 : i32
    %c0_i32_0 = arith.constant 0 : i32
    %c0_i32_1 = arith.constant 0 : i32
    return %arg0, %c0_i32, %arg1, %c0_i32_0 : i32, i32, i32, i32
  }
  func.func @transform_1(%arg0: i32, %arg1: i32) -> (i32, i32, i32) {
    %c0_i32 = arith.constant 0 : i32
    %c0_i32_0 = arith.constant 0 : i32
    %c0_i32_1 = arith.constant 0 : i32
    return %arg0, %c0_i32, %c0_i32_0 : i32, i32, i32
  }
  func.func @transform_2(%arg0: i32, %arg1: i32) -> (i32, i32, i32) {
    %c0_i32 = arith.constant 0 : i32
    %c0_i32_0 = arith.constant 0 : i32
    %c0_i32_1 = arith.constant 0 : i32
    return %arg0, %c0_i32, %c0_i32_0 : i32, i32, i32
  }
  func.func @transform_3(%arg0: i32, %arg1: i32) -> (i32, i32, i32) {
    %c0_i32 = arith.constant 0 : i32
    %c0_i32_0 = arith.constant 0 : i32
    %c0_i32_1 = arith.constant 0 : i32
    return %arg0, %c0_i32, %c0_i32_0 : i32, i32, i32
  }
  func.func @transform_4(%arg0: i32, %arg1: i32) -> (i32, i32, i32) {
    %c0_i32 = arith.constant 0 : i32
    %c0_i32_0 = arith.constant 0 : i32
    return %arg0, %arg1, %c0_i32 : i32, i32, i32
  }
}

module attributes {stable_mosaic.version = 11 : i64} {
  func.func @conv_bn_relu_pool_kernel(%arg0: i32, %arg1: i32, %arg2: memref<1x4x32x1568xbf16, #tpu.memory_space<vmem>>, %arg3: memref<1x1568x64xbf16, #tpu.memory_space<vmem>>, %arg4: memref<1x1x64xf32, #tpu.memory_space<vmem>>, %arg5: memref<1x1x64xf32, #tpu.memory_space<vmem>>, %arg6: memref<1x32x64xbf16, #tpu.memory_space<vmem>>) attributes {dimension_semantics = [#tpu.dimension_semantics<parallel>, #tpu.dimension_semantics<parallel>], iteration_bounds = array<i64: 3, 1>, scalar_prefetch = 0 : i64, scratch_operands = 0 : i64, tpu.core_type = #tpu.core_type<tc>, window_params = [{transform_indices = @transform_0, window_bounds = array<i64: 1, 4, 32, 1568>}, {transform_indices = @transform_1, window_bounds = array<i64: 1, 1568, 64>}, {transform_indices = @transform_2, window_bounds = array<i64: 1, 1, 64>}, {transform_indices = @transform_3, window_bounds = array<i64: 1, 1, 64>}, {transform_indices = @transform_4, window_bounds = array<i64: 1, 32, 64>}]} {
    %c0 = arith.constant 0 : index
    %c0_0 = arith.constant 0 : index
    %c0_1 = arith.constant 0 : index
    %c0_2 = arith.constant 0 : index
    %0 = vector.load %arg2[%c0, %c0_0, %c0_1, %c0_2] : memref<1x4x32x1568xbf16, #tpu.memory_space<vmem>>, vector<1x4x32x1568xbf16>
    %1 = vector.shape_cast %0 : vector<1x4x32x1568xbf16> to vector<128x1568xbf16>
    %c0_3 = arith.constant 0 : index
    %c0_4 = arith.constant 0 : index
    %c0_5 = arith.constant 0 : index
    %2 = vector.load %arg3[%c0_3, %c0_4, %c0_5] : memref<1x1568x64xbf16, #tpu.memory_space<vmem>>, vector<1x1568x64xbf16>
    %3 = vector.shape_cast %2 : vector<1x1568x64xbf16> to vector<1568x64xbf16>
    %cst = arith.constant dense<0.000000e+00> : vector<128x64xf32>
    %4 = tpu.matmul %1, %3, %cst {dimension_numbers = #tpu.dot_dimension_numbers<[1], [0], [0], [1], [0, 0, 1, 1], [], []>} : vector<128x1568xbf16>, vector<1568x64xbf16>, vector<128x64xf32> -> vector<128x64xf32>
    %5 = vector.shape_cast %4 : vector<128x64xf32> to vector<4x32x64xf32>
    %6 = vector.extract_strided_slice %5 {offsets = [0, 0, 0], sizes = [1, 32, 64], strides = [1, 1, 1]} : vector<4x32x64xf32> to vector<1x32x64xf32>
    %7 = vector.shape_cast %6 : vector<1x32x64xf32> to vector<32x64xf32>
    %8 = vector.extract_strided_slice %5 {offsets = [1, 0, 0], sizes = [1, 32, 64], strides = [1, 1, 1]} : vector<4x32x64xf32> to vector<1x32x64xf32>
    %9 = vector.shape_cast %8 : vector<1x32x64xf32> to vector<32x64xf32>
    %10 = arith.maximumf %7, %9 : vector<32x64xf32>
    %11 = vector.extract_strided_slice %5 {offsets = [2, 0, 0], sizes = [1, 32, 64], strides = [1, 1, 1]} : vector<4x32x64xf32> to vector<1x32x64xf32>
    %12 = vector.shape_cast %11 : vector<1x32x64xf32> to vector<32x64xf32>
    %13 = vector.extract_strided_slice %5 {offsets = [3, 0, 0], sizes = [1, 32, 64], strides = [1, 1, 1]} : vector<4x32x64xf32> to vector<1x32x64xf32>
    %14 = vector.shape_cast %13 : vector<1x32x64xf32> to vector<32x64xf32>
    %15 = arith.maximumf %12, %14 : vector<32x64xf32>
    %16 = arith.maximumf %10, %15 : vector<32x64xf32>
    %c0_6 = arith.constant 0 : index
    %c0_7 = arith.constant 0 : index
    %c0_8 = arith.constant 0 : index
    %17 = vector.load %arg4[%c0_6, %c0_7, %c0_8] : memref<1x1x64xf32, #tpu.memory_space<vmem>>, vector<1x1x64xf32>
    %18 = vector.shape_cast %17 : vector<1x1x64xf32> to vector<1x64xf32>
    %19 = vector.broadcast %18 : vector<1x64xf32> to vector<32x64xf32>
    %20 = arith.mulf %16, %19 : vector<32x64xf32>
    %c0_9 = arith.constant 0 : index
    %c0_10 = arith.constant 0 : index
    %c0_11 = arith.constant 0 : index
    %21 = vector.load %arg5[%c0_9, %c0_10, %c0_11] : memref<1x1x64xf32, #tpu.memory_space<vmem>>, vector<1x1x64xf32>
    %22 = vector.shape_cast %21 : vector<1x1x64xf32> to vector<1x64xf32>
    %23 = vector.broadcast %22 : vector<1x64xf32> to vector<32x64xf32>
    %24 = arith.addf %20, %23 : vector<32x64xf32>
    %cst_12 = arith.constant 0.000000e+00 : f32
    %25 = vector.broadcast %cst_12 : f32 to vector<32x64xf32>
    %26 = arith.maximumf %24, %25 : vector<32x64xf32>
    %27 = vector.shape_cast %26 : vector<32x64xf32> to vector<1x32x64xf32>
    %28 = arith.truncf %27 : vector<1x32x64xf32> to vector<1x32x64xbf16>
    %c0_13 = arith.constant 0 : index
    %c0_14 = arith.constant 0 : index
    %c0_15 = arith.constant 0 : index
    %29 = vector.load %arg6[%c0_13, %c0_14, %c0_15] : memref<1x32x64xbf16, #tpu.memory_space<vmem>>, vector<1x32x64xbf16>
    tpu.vector_store %arg6[%c0_13, %c0_14, %c0_15], %28 {strides = array<i32>} : memref<1x32x64xbf16, #tpu.memory_space<vmem>>, vector<1x32x64xbf16>,
    return
  }
  func.func @transform_0(%arg0: i32, %arg1: i32) -> (i32, i32, i32, i32) {
    %c0_i32 = arith.constant 0 : i32
    %c0_i32_0 = arith.constant 0 : i32
    %c0_i32_1 = arith.constant 0 : i32
    return %arg0, %c0_i32, %arg1, %c0_i32_0 : i32, i32, i32, i32
  }
  func.func @transform_1(%arg0: i32, %arg1: i32) -> (i32, i32, i32) {
    %c0_i32 = arith.constant 0 : i32
    %c0_i32_0 = arith.constant 0 : i32
    %c0_i32_1 = arith.constant 0 : i32
    return %arg0, %c0_i32, %c0_i32_0 : i32, i32, i32
  }
  func.func @transform_2(%arg0: i32, %arg1: i32) -> (i32, i32, i32) {
    %c0_i32 = arith.constant 0 : i32
    %c0_i32_0 = arith.constant 0 : i32
    %c0_i32_1 = arith.constant 0 : i32
    return %arg0, %c0_i32, %c0_i32_0 : i32, i32, i32
  }
  func.func @transform_3(%arg0: i32, %arg1: i32) -> (i32, i32, i32) {
    %c0_i32 = arith.constant 0 : i32
    %c0_i32_0 = arith.constant 0 : i32
    %c0_i32_1 = arith.constant 0 : i32
    return %arg0, %c0_i32, %c0_i32_0 : i32, i32, i32
  }
  func.func @transform_4(%arg0: i32, %arg1: i32) -> (i32, i32, i32) {
    %c0_i32 = arith.constant 0 : i32
    %c0_i32_0 = arith.constant 0 : i32
    return %arg0, %arg1, %c0_i32 : i32, i32, i32
  }
}

module attributes {stable_mosaic.version = 11 : i64} {
  func.func @conv_bn_relu_pool_kernel(%arg0: i32, %arg1: i32, %arg2: memref<1x4x16x576xbf16, #tpu.memory_space<vmem>>, %arg3: memref<1x576x128xbf16, #tpu.memory_space<vmem>>, %arg4: memref<1x1x128xf32, #tpu.memory_space<vmem>>, %arg5: memref<1x1x128xf32, #tpu.memory_space<vmem>>, %arg6: memref<1x16x128xbf16, #tpu.memory_space<vmem>>) attributes {dimension_semantics = [#tpu.dimension_semantics<parallel>, #tpu.dimension_semantics<parallel>], iteration_bounds = array<i64: 3, 1>, scalar_prefetch = 0 : i64, scratch_operands = 0 : i64, tpu.core_type = #tpu.core_type<tc>, window_params = [{transform_indices = @transform_0, window_bounds = array<i64: 1, 4, 16, 576>}, {transform_indices = @transform_1, window_bounds = array<i64: 1, 576, 128>}, {transform_indices = @transform_2, window_bounds = array<i64: 1, 1, 128>}, {transform_indices = @transform_3, window_bounds = array<i64: 1, 1, 128>}, {transform_indices = @transform_4, window_bounds = array<i64: 1, 16, 128>}]} {
    %c0 = arith.constant 0 : index
    %c0_0 = arith.constant 0 : index
    %c0_1 = arith.constant 0 : index
    %c0_2 = arith.constant 0 : index
    %0 = vector.load %arg2[%c0, %c0_0, %c0_1, %c0_2] : memref<1x4x16x576xbf16, #tpu.memory_space<vmem>>, vector<1x4x16x576xbf16>
    %1 = vector.shape_cast %0 : vector<1x4x16x576xbf16> to vector<64x576xbf16>
    %c0_3 = arith.constant 0 : index
    %c0_4 = arith.constant 0 : index
    %c0_5 = arith.constant 0 : index
    %2 = vector.load %arg3[%c0_3, %c0_4, %c0_5] : memref<1x576x128xbf16, #tpu.memory_space<vmem>>, vector<1x576x128xbf16>
    %3 = vector.shape_cast %2 : vector<1x576x128xbf16> to vector<576x128xbf16>
    %cst = arith.constant dense<0.000000e+00> : vector<64x128xf32>
    %4 = tpu.matmul %1, %3, %cst {dimension_numbers = #tpu.dot_dimension_numbers<[1], [0], [0], [1], [0, 0, 1, 1], [], []>} : vector<64x576xbf16>, vector<576x128xbf16>, vector<64x128xf32> -> vector<64x128xf32>
    %5 = vector.shape_cast %4 : vector<64x128xf32> to vector<4x16x128xf32>
    %6 = vector.extract_strided_slice %5 {offsets = [0, 0, 0], sizes = [1, 16, 128], strides = [1, 1, 1]} : vector<4x16x128xf32> to vector<1x16x128xf32>
    %7 = vector.shape_cast %6 : vector<1x16x128xf32> to vector<16x128xf32>
    %8 = vector.extract_strided_slice %5 {offsets = [1, 0, 0], sizes = [1, 16, 128], strides = [1, 1, 1]} : vector<4x16x128xf32> to vector<1x16x128xf32>
    %9 = vector.shape_cast %8 : vector<1x16x128xf32> to vector<16x128xf32>
    %10 = arith.maximumf %7, %9 : vector<16x128xf32>
    %11 = vector.extract_strided_slice %5 {offsets = [2, 0, 0], sizes = [1, 16, 128], strides = [1, 1, 1]} : vector<4x16x128xf32> to vector<1x16x128xf32>
    %12 = vector.shape_cast %11 : vector<1x16x128xf32> to vector<16x128xf32>
    %13 = vector.extract_strided_slice %5 {offsets = [3, 0, 0], sizes = [1, 16, 128], strides = [1, 1, 1]} : vector<4x16x128xf32> to vector<1x16x128xf32>
    %14 = vector.shape_cast %13 : vector<1x16x128xf32> to vector<16x128xf32>
    %15 = arith.maximumf %12, %14 : vector<16x128xf32>
    %16 = arith.maximumf %10, %15 : vector<16x128xf32>
    %c0_6 = arith.constant 0 : index
    %c0_7 = arith.constant 0 : index
    %c0_8 = arith.constant 0 : index
    %17 = vector.load %arg4[%c0_6, %c0_7, %c0_8] : memref<1x1x128xf32, #tpu.memory_space<vmem>>, vector<1x1x128xf32>
    %18 = vector.shape_cast %17 : vector<1x1x128xf32> to vector<1x128xf32>
    %19 = vector.broadcast %18 : vector<1x128xf32> to vector<16x128xf32>
    %20 = arith.mulf %16, %19 : vector<16x128xf32>
    %c0_9 = arith.constant 0 : index
    %c0_10 = arith.constant 0 : index
    %c0_11 = arith.constant 0 : index
    %21 = vector.load %arg5[%c0_9, %c0_10, %c0_11] : memref<1x1x128xf32, #tpu.memory_space<vmem>>, vector<1x1x128xf32>
    %22 = vector.shape_cast %21 : vector<1x1x128xf32> to vector<1x128xf32>
    %23 = vector.broadcast %22 : vector<1x128xf32> to vector<16x128xf32>
    %24 = arith.addf %20, %23 : vector<16x128xf32>
    %cst_12 = arith.constant 0.000000e+00 : f32
    %25 = vector.broadcast %cst_12 : f32 to vector<16x128xf32>
    %26 = arith.maximumf %24, %25 : vector<16x128xf32>
    %27 = vector.shape_cast %26 : vector<16x128xf32> to vector<1x16x128xf32>
    %28 = arith.truncf %27 : vector<1x16x128xf32> to vector<1x16x128xbf16>
    %c0_13 = arith.constant 0 : index
    %c0_14 = arith.constant 0 : index
    %c0_15 = arith.constant 0 : index
    %29 = vector.load %arg6[%c0_13, %c0_14, %c0_15] : memref<1x16x128xbf16, #tpu.memory_space<vmem>>, vector<1x16x128xbf16>
    tpu.vector_store %arg6[%c0_13, %c0_14, %c0_15], %28 {strides = array<i32>} : memref<1x16x128xbf16, #tpu.memory_space<vmem>>, vector<1x16x128xbf16>,
    return
  }
  func.func @transform_0(%arg0: i32, %arg1: i32) -> (i32, i32, i32, i32) {
    %c0_i32 = arith.constant 0 : i32
    %c0_i32_0 = arith.constant 0 : i32
    %c0_i32_1 = arith.constant 0 : i32
    return %arg0, %c0_i32, %arg1, %c0_i32_0 : i32, i32, i32, i32
  }
  func.func @transform_1(%arg0: i32, %arg1: i32) -> (i32, i32, i32) {
    %c0_i32 = arith.constant 0 : i32
    %c0_i32_0 = arith.constant 0 : i32
    %c0_i32_1 = arith.constant 0 : i32
    return %arg0, %c0_i32, %c0_i32_0 : i32, i32, i32
  }
  func.func @transform_2(%arg0: i32, %arg1: i32) -> (i32, i32, i32) {
    %c0_i32 = arith.constant 0 : i32
    %c0_i32_0 = arith.constant 0 : i32
    %c0_i32_1 = arith.constant 0 : i32
    return %arg0, %c0_i32, %c0_i32_0 : i32, i32, i32
  }
  func.func @transform_3(%arg0: i32, %arg1: i32) -> (i32, i32, i32) {
    %c0_i32 = arith.constant 0 : i32
    %c0_i32_0 = arith.constant 0 : i32
    %c0_i32_1 = arith.constant 0 : i32
    return %arg0, %c0_i32, %c0_i32_0 : i32, i32, i32
  }
  func.func @transform_4(%arg0: i32, %arg1: i32) -> (i32, i32, i32) {
    %c0_i32 = arith.constant 0 : i32
    %c0_i32_0 = arith.constant 0 : i32
    return %arg0, %arg1, %c0_i32 : i32, i32, i32
  }
}

module attributes {stable_mosaic.version = 11 : i64} {
  func.func @conv_bn_relu_pool_kernel(%arg0: i32, %arg1: i32, %arg2: memref<1x4x16x1152xbf16, #tpu.memory_space<vmem>>, %arg3: memref<1x1152x256xbf16, #tpu.memory_space<vmem>>, %arg4: memref<1x1x256xf32, #tpu.memory_space<vmem>>, %arg5: memref<1x1x256xf32, #tpu.memory_space<vmem>>, %arg6: memref<1x16x256xbf16, #tpu.memory_space<vmem>>) attributes {dimension_semantics = [#tpu.dimension_semantics<parallel>, #tpu.dimension_semantics<parallel>], iteration_bounds = array<i64: 3, 1>, scalar_prefetch = 0 : i64, scratch_operands = 0 : i64, tpu.core_type = #tpu.core_type<tc>, window_params = [{transform_indices = @transform_0, window_bounds = array<i64: 1, 4, 16, 1152>}, {transform_indices = @transform_1, window_bounds = array<i64: 1, 1152, 256>}, {transform_indices = @transform_2, window_bounds = array<i64: 1, 1, 256>}, {transform_indices = @transform_3, window_bounds = array<i64: 1, 1, 256>}, {transform_indices = @transform_4, window_bounds = array<i64: 1, 16, 256>}]} {
    %c0 = arith.constant 0 : index
    %c0_0 = arith.constant 0 : index
    %c0_1 = arith.constant 0 : index
    %c0_2 = arith.constant 0 : index
    %0 = vector.load %arg2[%c0, %c0_0, %c0_1, %c0_2] : memref<1x4x16x1152xbf16, #tpu.memory_space<vmem>>, vector<1x4x16x1152xbf16>
    %1 = vector.shape_cast %0 : vector<1x4x16x1152xbf16> to vector<64x1152xbf16>
    %c0_3 = arith.constant 0 : index
    %c0_4 = arith.constant 0 : index
    %c0_5 = arith.constant 0 : index
    %2 = vector.load %arg3[%c0_3, %c0_4, %c0_5] : memref<1x1152x256xbf16, #tpu.memory_space<vmem>>, vector<1x1152x256xbf16>
    %3 = vector.shape_cast %2 : vector<1x1152x256xbf16> to vector<1152x256xbf16>
    %cst = arith.constant dense<0.000000e+00> : vector<64x256xf32>
    %4 = tpu.matmul %1, %3, %cst {dimension_numbers = #tpu.dot_dimension_numbers<[1], [0], [0], [1], [0, 0, 1, 1], [], []>} : vector<64x1152xbf16>, vector<1152x256xbf16>, vector<64x256xf32> -> vector<64x256xf32>
    %5 = vector.shape_cast %4 : vector<64x256xf32> to vector<4x16x256xf32>
    %6 = vector.extract_strided_slice %5 {offsets = [0, 0, 0], sizes = [1, 16, 256], strides = [1, 1, 1]} : vector<4x16x256xf32> to vector<1x16x256xf32>
    %7 = vector.shape_cast %6 : vector<1x16x256xf32> to vector<16x256xf32>
    %8 = vector.extract_strided_slice %5 {offsets = [1, 0, 0], sizes = [1, 16, 256], strides = [1, 1, 1]} : vector<4x16x256xf32> to vector<1x16x256xf32>
    %9 = vector.shape_cast %8 : vector<1x16x256xf32> to vector<16x256xf32>
    %10 = arith.maximumf %7, %9 : vector<16x256xf32>
    %11 = vector.extract_strided_slice %5 {offsets = [2, 0, 0], sizes = [1, 16, 256], strides = [1, 1, 1]} : vector<4x16x256xf32> to vector<1x16x256xf32>
    %12 = vector.shape_cast %11 : vector<1x16x256xf32> to vector<16x256xf32>
    %13 = vector.extract_strided_slice %5 {offsets = [3, 0, 0], sizes = [1, 16, 256], strides = [1, 1, 1]} : vector<4x16x256xf32> to vector<1x16x256xf32>
    %14 = vector.shape_cast %13 : vector<1x16x256xf32> to vector<16x256xf32>
    %15 = arith.maximumf %12, %14 : vector<16x256xf32>
    %16 = arith.maximumf %10, %15 : vector<16x256xf32>
    %c0_6 = arith.constant 0 : index
    %c0_7 = arith.constant 0 : index
    %c0_8 = arith.constant 0 : index
    %17 = vector.load %arg4[%c0_6, %c0_7, %c0_8] : memref<1x1x256xf32, #tpu.memory_space<vmem>>, vector<1x1x256xf32>
    %18 = vector.shape_cast %17 : vector<1x1x256xf32> to vector<1x256xf32>
    %19 = vector.broadcast %18 : vector<1x256xf32> to vector<16x256xf32>
    %20 = arith.mulf %16, %19 : vector<16x256xf32>
    %c0_9 = arith.constant 0 : index
    %c0_10 = arith.constant 0 : index
    %c0_11 = arith.constant 0 : index
    %21 = vector.load %arg5[%c0_9, %c0_10, %c0_11] : memref<1x1x256xf32, #tpu.memory_space<vmem>>, vector<1x1x256xf32>
    %22 = vector.shape_cast %21 : vector<1x1x256xf32> to vector<1x256xf32>
    %23 = vector.broadcast %22 : vector<1x256xf32> to vector<16x256xf32>
    %24 = arith.addf %20, %23 : vector<16x256xf32>
    %cst_12 = arith.constant 0.000000e+00 : f32
    %25 = vector.broadcast %cst_12 : f32 to vector<16x256xf32>
    %26 = arith.maximumf %24, %25 : vector<16x256xf32>
    %27 = vector.shape_cast %26 : vector<16x256xf32> to vector<1x16x256xf32>
    %28 = arith.truncf %27 : vector<1x16x256xf32> to vector<1x16x256xbf16>
    %c0_13 = arith.constant 0 : index
    %c0_14 = arith.constant 0 : index
    %c0_15 = arith.constant 0 : index
    %29 = vector.load %arg6[%c0_13, %c0_14, %c0_15] : memref<1x16x256xbf16, #tpu.memory_space<vmem>>, vector<1x16x256xbf16>
    tpu.vector_store %arg6[%c0_13, %c0_14, %c0_15], %28 {strides = array<i32>} : memref<1x16x256xbf16, #tpu.memory_space<vmem>>, vector<1x16x256xbf16>,
    return
  }
  func.func @transform_0(%arg0: i32, %arg1: i32) -> (i32, i32, i32, i32) {
    %c0_i32 = arith.constant 0 : i32
    %c0_i32_0 = arith.constant 0 : i32
    %c0_i32_1 = arith.constant 0 : i32
    return %arg0, %c0_i32, %arg1, %c0_i32_0 : i32, i32, i32, i32
  }
  func.func @transform_1(%arg0: i32, %arg1: i32) -> (i32, i32, i32) {
    %c0_i32 = arith.constant 0 : i32
    %c0_i32_0 = arith.constant 0 : i32
    %c0_i32_1 = arith.constant 0 : i32
    return %arg0, %c0_i32, %c0_i32_0 : i32, i32, i32
  }
  func.func @transform_2(%arg0: i32, %arg1: i32) -> (i32, i32, i32) {
    %c0_i32 = arith.constant 0 : i32
    %c0_i32_0 = arith.constant 0 : i32
    %c0_i32_1 = arith.constant 0 : i32
    return %arg0, %c0_i32, %c0_i32_0 : i32, i32, i32
  }
  func.func @transform_3(%arg0: i32, %arg1: i32) -> (i32, i32, i32) {
    %c0_i32 = arith.constant 0 : i32
    %c0_i32_0 = arith.constant 0 : i32
    %c0_i32_1 = arith.constant 0 : i32
    return %arg0, %c0_i32, %c0_i32_0 : i32, i32, i32
  }
  func.func @transform_4(%arg0: i32, %arg1: i32) -> (i32, i32, i32) {
    %c0_i32 = arith.constant 0 : i32
    %c0_i32_0 = arith.constant 0 : i32
    return %arg0, %arg1, %c0_i32 : i32, i32, i32
  }
}

module attributes {stable_mosaic.version = 11 : i64} {
  func.func @mlp_kernel(%arg0: i32, %arg1: memref<16x768xbf16, #tpu.memory_space<vmem>>, %arg2: memref<768x512xbf16, #tpu.memory_space<vmem>>, %arg3: memref<1x512xf32, #tpu.memory_space<vmem>>, %arg4: memref<512x128xbf16, #tpu.memory_space<vmem>>, %arg5: memref<1x128xf32, #tpu.memory_space<vmem>>, %arg6: memref<16x128xf32, #tpu.memory_space<vmem>>) attributes {dimension_semantics = [#tpu.dimension_semantics<parallel>], iteration_bounds = array<i64: 1>, scalar_prefetch = 0 : i64, scratch_operands = 0 : i64, tpu.core_type = #tpu.core_type<tc>, window_params = [{transform_indices = @transform_0, window_bounds = array<i64: 16, 768>}, {pipeline_mode = #tpu.pipeline_mode<synchronous>, transform_indices = @transform_1, window_bounds = array<i64: 768, 512>}, {pipeline_mode = #tpu.pipeline_mode<synchronous>, transform_indices = @transform_2, window_bounds = array<i64: 1, 512>}, {pipeline_mode = #tpu.pipeline_mode<synchronous>, transform_indices = @transform_3, window_bounds = array<i64: 512, 128>}, {pipeline_mode = #tpu.pipeline_mode<synchronous>, transform_indices = @transform_4, window_bounds = array<i64: 1, 128>}, {transform_indices = @transform_5, window_bounds = array<i64: 16, 128>}]} {
    %c0 = arith.constant 0 : index
    %c0_0 = arith.constant 0 : index
    %0 = vector.load %arg1[%c0, %c0_0] : memref<16x768xbf16, #tpu.memory_space<vmem>>, vector<16x768xbf16>
    %c0_1 = arith.constant 0 : index
    %c0_2 = arith.constant 0 : index
    %1 = vector.load %arg2[%c0_1, %c0_2] : memref<768x512xbf16, #tpu.memory_space<vmem>>, vector<768x512xbf16>
    %cst = arith.constant dense<0.000000e+00> : vector<16x512xf32>
    %2 = tpu.matmul %0, %1, %cst {dimension_numbers = #tpu.dot_dimension_numbers<[1], [0], [0], [1], [0, 0, 1, 1], [], []>} : vector<16x768xbf16>, vector<768x512xbf16>, vector<16x512xf32> -> vector<16x512xf32>
    %c0_3 = arith.constant 0 : index
    %c0_4 = arith.constant 0 : index
    %3 = vector.load %arg3[%c0_3, %c0_4] : memref<1x512xf32, #tpu.memory_space<vmem>>, vector<1x512xf32>
    %4 = vector.broadcast %3 : vector<1x512xf32> to vector<16x512xf32>
    %5 = arith.addf %2, %4 : vector<16x512xf32>
    %cst_5 = arith.constant 0.000000e+00 : f32
    %6 = vector.broadcast %cst_5 : f32 to vector<16x512xf32>
    %7 = arith.maximumf %5, %6 : vector<16x512xf32>
    %8 = arith.truncf %7 : vector<16x512xf32> to vector<16x512xbf16>
    %c0_6 = arith.constant 0 : index
    %c0_7 = arith.constant 0 : index
    %9 = vector.load %arg4[%c0_6, %c0_7] : memref<512x128xbf16, #tpu.memory_space<vmem>>, vector<512x128xbf16>
    %cst_8 = arith.constant dense<0.000000e+00> : vector<16x128xf32>
    %10 = tpu.matmul %8, %9, %cst_8 {dimension_numbers = #tpu.dot_dimension_numbers<[1], [0], [0], [1], [0, 0, 1, 1], [], []>} : vector<16x512xbf16>, vector<512x128xbf16>, vector<16x128xf32> -> vector<16x128xf32>
    %c0_9 = arith.constant 0 : index
    %c0_10 = arith.constant 0 : index
    %11 = vector.load %arg5[%c0_9, %c0_10] : memref<1x128xf32, #tpu.memory_space<vmem>>, vector<1x128xf32>
    %12 = vector.broadcast %11 : vector<1x128xf32> to vector<16x128xf32>
    %13 = arith.addf %10, %12 : vector<16x128xf32>
    %c0_11 = arith.constant 0 : index
    %c0_12 = arith.constant 0 : index
    %14 = vector.load %arg6[%c0_11, %c0_12] : memref<16x128xf32, #tpu.memory_space<vmem>>, vector<16x128xf32>
    tpu.vector_store %arg6[%c0_11, %c0_12], %13 {strides = array<i32>} : memref<16x128xf32, #tpu.memory_space<vmem>>, vector<16x128xf32>,
    return
  }
  func.func @transform_0(%arg0: i32) -> (i32, i32) {
    %c0_i32 = arith.constant 0 : i32
    %c0_i32_0 = arith.constant 0 : i32
    return %arg0, %c0_i32 : i32, i32
  }
  func.func @transform_1(%arg0: i32) -> (i32, i32) {
    %c0_i32 = arith.constant 0 : i32
    %c0_i32_0 = arith.constant 0 : i32
    %c0_i32_1 = arith.constant 0 : i32
    return %c0_i32, %c0_i32_0 : i32, i32
  }
  func.func @transform_2(%arg0: i32) -> (i32, i32) {
    %c0_i32 = arith.constant 0 : i32
    %c0_i32_0 = arith.constant 0 : i32
    %c0_i32_1 = arith.constant 0 : i32
    return %c0_i32, %c0_i32_0 : i32, i32
  }
  func.func @transform_3(%arg0: i32) -> (i32, i32) {
    %c0_i32 = arith.constant 0 : i32
    %c0_i32_0 = arith.constant 0 : i32
    %c0_i32_1 = arith.constant 0 : i32
    return %c0_i32, %c0_i32_0 : i32, i32
  }
  func.func @transform_4(%arg0: i32) -> (i32, i32) {
    %c0_i32 = arith.constant 0 : i32
    %c0_i32_0 = arith.constant 0 : i32
    %c0_i32_1 = arith.constant 0 : i32
    return %c0_i32, %c0_i32_0 : i32, i32
  }
  func.func @transform_5(%arg0: i32) -> (i32, i32) {
    %c0_i32 = arith.constant 0 : i32
    %c0_i32_0 = arith.constant 0 : i32
    return %arg0, %c0_i32 : i32, i32
  }
}

</mosaic_0001>

<llo_original>
// kernel: model_forward.5
$region0: #{model_forward.5}
  #allocation0 [shape = 'u32[]', space=smem, size = 0x4, offset = 0x4, fixed_abs, tag = 'smem constant byte address 0x4 - core index']
  #allocation1 [shape = 'u32[144,128]{1,0:T(1,128)}', space=vmem, size = 0x12000, scoped, tag = 'internal scratch']
  %s0 = inlined_call_operand.vmem [shape: bf16[1,4,128,147], index: 0, kind: input, shape index: {}]
  %s1 = inlined_call_operand.vmem [shape: bf16[1,147,128], index: 1, kind: input, shape index: {}]
  %s2 = inlined_call_operand.vmem [shape: f32[1,1,128], index: 2, kind: input, shape index: {}]
  %s3 = inlined_call_operand.vmem [shape: f32[1,1,128], index: 3, kind: input, shape index: {}]
  %s4 = inlined_call_operand.vmem [shape: bf16[1,128,128], index: 4, kind: output, shape index: {}]
  %s5 = sld [smem:[#allocation0]]
  $region87: #{model_forward.5} parent=0
    _
  %s7 = ssub.s32 1, %s5
  %s8 = scalar_select 0, %s7, %s5
  $region1: #{model_forward.5} parent=0
    #allocation2 [shape = 'u8[262144]{0}', space=vmem, size = 0x40000, scoped, tag = 'input window, operand 0']
    loop: start=0, step=1, limit=4
    $region2: #{model_forward.5} parent=1 // loop_pre_header
      _
    $region3: #{model_forward.5} parent=1 // loop_header
      %s10 = sphi 0, %s14
      %p11 = scmp.ge.s32.totalorder %s10, 4
      %s17 = sphi 0, %s29
      %s18 = sphi 0, %s25
      %s19 = sphi 0, %s17
      %s20 = sphi 0, %s18
      %s21 = sphi 0, %s19
      %s22 = sphi 0, %s20
      %s34 = sphi 0, %s36
      %s37 = sphi 0, %s34
      %s38 = sphi 0, %s37
      %s54 = sphi 0, %s38
      %s60 = sphi 0, %s62
      %s63 = sphi 0, %s60
      %s64 = sphi 0, %s63
      %s80 = sphi 0, %s64
      %s86 = sphi 0, %s88
      %s89 = sphi 0, %s86
      %s90 = sphi 0, %s89
      %s106 = sphi 0, %s90
      %s112 = sphi 0, %s114
      %s115 = sphi 0, %s112
      %s116 = sphi 0, %s115
      %s132 = sphi 0, %s116
      %s140 = sphi 0, %s142
      %s143 = sphi 0, %s140
      %s144 = sphi 0, %s143
      %s160 = sphi 0, %s144
    $region4: #{model_forward.5} parent=1 // loop_header_branch
      %13 = sbr.rel (%p11) target = $region8
    $region5: #{model_forward.5} parent=1 // loop_body
      %s15 = ssub.s32 %s10, 1
      %s16 = ssub.s32 %s10, 2
      %s23 = sadd.s32 1, %s18
      %p24 = scmp.ge.s32.totalorder %s23, 2
      %s25 = scalar_select %p24, 0, %s23
      %s26 = sadd.s32 1, %s17
      %s27 = scalar_select %p24, %s26, %s17
      %p28 = scmp.ge.s32.totalorder %s27, 1
      %s29 = scalar_select %p28, 0, %s27
      %s30 = ssub.s32 %s17, %s29
      %s31 = ssub.s32 %s18, %s25
      %s32 = sor.u32 %s30, %s31
      %p33 = scmp.eq.s32.totalorder %s32, 0
      %s35 = sadd.s32 %s34, 1
      %s36 = scalar_select %p33, %s34, %s35
      %p39 = pneg %p33
      %p40 = scmp.eq.s32.totalorder %s10, 1
      %p41 = por %p39, %p40
      %p42 = scmp.ne.s32.totalorder %s34, %s37
      %p43 = scmp.eq.s32.totalorder %s10, 0
      %p44 = por %p42, %p43
      %p45 = scmp.ne.s32.totalorder %s34, %s37
      %p46 = scmp.eq.s32.totalorder %s15, 1
      %p47 = por %p45, %p46
      %p48 = scmp.ne.s32.totalorder %s37, %s38
      %p49 = scmp.eq.s32.totalorder %s15, 0
      %p50 = por %p48, %p49
      %p51 = scmp.ne.s32.totalorder %s37, %s38
      %p52 = scmp.eq.s32.totalorder %s16, 1
      %p53 = por %p51, %p52
      %p55 = scmp.ne.s32.totalorder %s38, %s54
      %p56 = scmp.eq.s32.totalorder %s16, 0
      %p57 = por %p55, %p56
      %s58 = ssub.s32 %s17, %s29
      %p59 = scmp.eq.s32.totalorder %s58, 0
      %s61 = sadd.s32 %s60, 1
      %s62 = scalar_select %p59, %s60, %s61
      %p65 = pneg %p59
      %p66 = scmp.eq.s32.totalorder %s10, 1
      %p67 = por %p65, %p66
      %p68 = scmp.ne.s32.totalorder %s60, %s63
      %p69 = scmp.eq.s32.totalorder %s10, 0
      %p70 = por %p68, %p69
      %p71 = scmp.ne.s32.totalorder %s60, %s63
      %p72 = scmp.eq.s32.totalorder %s15, 1
      %p73 = por %p71, %p72
      %p74 = scmp.ne.s32.totalorder %s63, %s64
      %p75 = scmp.eq.s32.totalorder %s15, 0
      %p76 = por %p74, %p75
      %p77 = scmp.ne.s32.totalorder %s63, %s64
      %p78 = scmp.eq.s32.totalorder %s16, 1
      %p79 = por %p77, %p78
      %p81 = scmp.ne.s32.totalorder %s64, %s80
      %p82 = scmp.eq.s32.totalorder %s16, 0
      %p83 = por %p81, %p82
      %s84 = ssub.s32 %s17, %s29
      %p85 = scmp.eq.s32.totalorder %s84, 0
      %s87 = sadd.s32 %s86, 1
      %s88 = scalar_select %p85, %s86, %s87
      %p91 = pneg %p85
      %p92 = scmp.eq.s32.totalorder %s10, 1
      %p93 = por %p91, %p92
      %p94 = scmp.ne.s32.totalorder %s86, %s89
      %p95 = scmp.eq.s32.totalorder %s10, 0
      %p96 = por %p94, %p95
      %p97 = scmp.ne.s32.totalorder %s86, %s89
      %p98 = scmp.eq.s32.totalorder %s15, 1
      %p99 = por %p97, %p98
      %p100 = scmp.ne.s32.totalorder %s89, %s90
      %p101 = scmp.eq.s32.totalorder %s15, 0
      %p102 = por %p100, %p101
      %p103 = scmp.ne.s32.totalorder %s89, %s90
      %p104 = scmp.eq.s32.totalorder %s16, 1
      %p105 = por %p103, %p104
      %p107 = scmp.ne.s32.totalorder %s90, %s106
      %p108 = scmp.eq.s32.totalorder %s16, 0
      %p109 = por %p107, %p108
      %s110 = ssub.s32 %s17, %s29
      %p111 = scmp.eq.s32.totalorder %s110, 0
      %s113 = sadd.s32 %s112, 1
      %s114 = scalar_select %p111, %s112, %s113
      %p117 = pneg %p111
      %p118 = scmp.eq.s32.totalorder %s10, 1
      %p119 = por %p117, %p118
      %p120 = scmp.ne.s32.totalorder %s112, %s115
      %p121 = scmp.eq.s32.totalorder %s10, 0
      %p122 = por %p120, %p121
      %p123 = scmp.ne.s32.totalorder %s112, %s115
      %p124 = scmp.eq.s32.totalorder %s15, 1
      %p125 = por %p123, %p124
      %p126 = scmp.ne.s32.totalorder %s115, %s116
      %p127 = scmp.eq.s32.totalorder %s15, 0
      %p128 = por %p126, %p127
      %p129 = scmp.ne.s32.totalorder %s115, %s116
      %p130 = scmp.eq.s32.totalorder %s16, 1
      %p131 = por %p129, %p130
      %p133 = scmp.ne.s32.totalorder %s116, %s132
      %p134 = scmp.eq.s32.totalorder %s16, 0
      %p135 = por %p133, %p134
      %s136 = ssub.s32 %s17, %s29
      %s137 = ssub.s32 %s18, %s25
      %s138 = sor.u32 %s136, %s137
      %p139 = scmp.eq.s32.totalorder %s138, 0
      %s141 = sadd.s32 %s140, 1
      %s142 = scalar_select %p139, %s140, %s141
      %p145 = pneg %p139
      %p146 = scmp.eq.s32.totalorder %s10, 1
      %p147 = por %p145, %p146
      %p148 = scmp.ne.s32.totalorder %s140, %s143
      %p149 = scmp.eq.s32.totalorder %s10, 0
      %p150 = por %p148, %p149
      %p151 = scmp.ne.s32.totalorder %s140, %s143
      %p152 = scmp.eq.s32.totalorder %s15, 1
      %p153 = por %p151, %p152
      %p154 = scmp.ne.s32.totalorder %s143, %s144
      %p155 = scmp.eq.s32.totalorder %s15, 0
      %p156 = por %p154, %p155
      %p157 = scmp.ne.s32.totalorder %s143, %s144
      %p158 = scmp.eq.s32.totalorder %s16, 1
      %p159 = por %p157, %p158
      %p161 = scmp.ne.s32.totalorder %s144, %s160
      %p162 = scmp.eq.s32.totalorder %s16, 0
      %p163 = por %p161, %p162
      %p164 = scmp.le.s32.totalorder 1, %s10
      %p165 = scmp.lt.s32.totalorder %s10, 3
      %p166 = pnand %p164, %p165
      %p167 = pneg %p166
      // Predicated region
      $region9: #{model_forward.5} parent=5 // pred_check
        _
      $region10: #{model_forward.5} parent=5 // pred_check_branch
        %169 = sbr.rel (%p166) target = $region12
      $region11: #{model_forward.5} parent=5 // pred_region
        %s170 = ssub.s32 %s10, 1
        // Predicated region
        $region13: #{model_forward.5} parent=11 // pred_check
          %p171 = pneg %p76
        $region14: #{model_forward.5} parent=11 // pred_check_branch
          %173 = sbr.rel (%p171) target = $region16
        $region15: #{model_forward.5} parent=11 // pred_region
          %p174 = scmp.lt.s32.totalorder %s19, 0
          %s175 = scalar_select %p174, %s19, 0
          %s176 = smul.addr %s175, 19
          %s177 = smul.addr %s176, 4
          %s178 = scalar_lea.vmem %s1, %s177
        $region16: #{model_forward.5} parent=11 // pred_fallthru
          _
        // Predicated region
        $region17: #{model_forward.5} parent=11 // pred_check
          %p179 = pneg %p102
        $region18: #{model_forward.5} parent=11 // pred_check_branch
          %181 = sbr.rel (%p179) target = $region20
        $region19: #{model_forward.5} parent=11 // pred_region
          %p182 = scmp.lt.s32.totalorder %s19, 0
          %s183 = scalar_select %p182, %s19, 0
          %s184 = scalar_lea.vmem %s2, %s183
        $region20: #{model_forward.5} parent=11 // pred_fallthru
          _
        // Predicated region
        $region21: #{model_forward.5} parent=11 // pred_check
          %p185 = pneg %p128
        $region22: #{model_forward.5} parent=11 // pred_check_branch
          %187 = sbr.rel (%p185) target = $region24
        $region23: #{model_forward.5} parent=11 // pred_region
          %p188 = scmp.lt.s32.totalorder %s19, 0
          %s189 = scalar_select %p188, %s19, 0
          %s190 = scalar_lea.vmem %s3, %s189
        $region24: #{model_forward.5} parent=11 // pred_fallthru
          _
      $region12: #{model_forward.5} parent=5 // pred_fallthru
        _
      %p191 = scmp.lt.s32.totalorder %s10, 2
      // Predicated region
      $region25: #{model_forward.5} parent=5 // pred_check
        %p192 = pneg %p191
      $region26: #{model_forward.5} parent=5 // pred_check_branch
        %194 = sbr.rel (%p192) target = $region28
      $region27: #{model_forward.5} parent=5 // pred_region
        // Predicated region
        $region29: #{model_forward.5} parent=27 // pred_check
          %p195 = pneg %p44
        $region30: #{model_forward.5} parent=27 // pred_check_branch
          %197 = sbr.rel (%p195) target = $region32
        $region31: #{model_forward.5} parent=27 // pred_region
          %s198 = sand.u32 %s34, 1
          %s199 = sand.u32 %s34, 1
          %s200 = smul.addr %s199, 256
          %s201 = scalar_lea.vmem [#allocation2], %s200
          %s202 = smul.u32 8, %s18
          %s203 = smul.addr %s202, 2
          %s204 = smul.addr %s17, 128
          %s205 = sadd.s32 %s203, %s204
          %s206 = smul.addr %s205, 4
          %s207 = scalar_lea.vmem %s0, %s206
          // Predicated region
          $region33: #{model_forward.5} parent=31 // pred_check
            _
          $region34: #{model_forward.5} parent=31 // pred_check_branch
            %209 = sbr.rel (0) target = $region36
          $region35: #{model_forward.5} parent=31 // pred_region
            // Predicated region
            $region37: #{model_forward.5} parent=35 // pred_check
              _
            $region38: #{model_forward.5} parent=35 // pred_check_branch
              %211 = sbr.rel (0) target = $region40
            $region39: #{model_forward.5} parent=35 // pred_region
              // Predicated region
              $region52: #{model_forward.5} parent=39 // pred_check
                _
              $region53: #{model_forward.5} parent=39 // pred_check_branch
                %289 = sbr.rel (0) target = $region55
              $region54: #{model_forward.5} parent=39 // pred_region
                loop: start=0, step=1, limit=1
                $region56: #{model_forward.5} parent=54 // loop_pre_header
                  _
                $region57: #{model_forward.5} parent=54 // loop_header
                  %s291 = sphi 0, %s295
                  %p292 = scmp.ge.s32.totalorder %s291, 1
                  %s296 = sphi %s207, %s207
                  %s297 = sphi %s201, %s201
                $region58: #{model_forward.5} parent=54 // loop_header_branch
                  %294 = sbr.rel (%p292) target = $region62
                $region59: #{model_forward.5} parent=54 // loop_body
                  %v298 = vld [vmem:[%s296] sm:$0xff]
                  %299 = vst [vmem:[%s297] sm:$0xff] %v298
                  %v300 = vld [vmem:[%s296 + $0x8] sm:$0xff]
                  %301 = vst [vmem:[%s297 + $0x8] sm:$0xff] %v300
                  %v302 = vld [vmem:[%s296 + $0x10] sm:$0xff]
                  %303 = vst [vmem:[%s297 + $0x10] sm:$0xff] %v302
                  %v304 = vld [vmem:[%s296 + $0x18] sm:$0xff]
                  %305 = vst [vmem:[%s297 + $0x18] sm:$0xff] %v304
                  %v306 = vld [vmem:[%s296 + $0x20] sm:$0xff]
                  %307 = vst [vmem:[%s297 + $0x20] sm:$0xff] %v306
                  %v308 = vld [vmem:[%s296 + $0x28] sm:$0xff]
                  %309 = vst [vmem:[%s297 + $0x28] sm:$0xff] %v308
                  %v310 = vld [vmem:[%s296 + $0x30] sm:$0xff]
                  %311 = vst [vmem:[%s297 + $0x30] sm:$0xff] %v310
                  %v312 = vld [vmem:[%s296 + $0x38] sm:$0xff]
                  %313 = vst [vmem:[%s297 + $0x38] sm:$0xff] %v312
                  %v314 = vld [vmem:[%s296 + $0x80] sm:$0xff]
                  %315 = vst [vmem:[%s297 + $0x40] sm:$0xff] %v314
                  %v316 = vld [vmem:[%s296 + $0x88] sm:$0xff]
                  %317 = vst [vmem:[%s297 + $0x48] sm:$0xff] %v316
                  %v318 = vld [vmem:[%s296 + $0x90] sm:$0xff]
                  %319 = vst [vmem:[%s297 + $0x50] sm:$0xff] %v318
                  %v320 = vld [vmem:[%s296 + $0x98] sm:$0xff]
                  %321 = vst [vmem:[%s297 + $0x58] sm:$0xff] %v320
                  %v322 = vld [vmem:[%s296 + $0xa0] sm:$0xff]
                  %323 = vst [vmem:[%s297 + $0x60] sm:$0xff] %v322
                  %v324 = vld [vmem:[%s296 + $0xa8] sm:$0xff]
                  %325 = vst [vmem:[%s297 + $0x68] sm:$0xff] %v324
                  %v326 = vld [vmem:[%s296 + $0xb0] sm:$0xff]
                  %327 = vst [vmem:[%s297 + $0x70] sm:$0xff] %v326
                  %v328 = vld [vmem:[%s296 + $0xb8] sm:$0xff]
                  %329 = vst [vmem:[%s297 + $0x78] sm:$0xff] %v328
                  %v330 = vld [vmem:[%s296 + $0x100] sm:$0xff]
                  %331 = vst [vmem:[%s297 + $0x80] sm:$0xff] %v330
                  %v332 = vld [vmem:[%s296 + $0x108] sm:$0xff]
                  %333 = vst [vmem:[%s297 + $0x88] sm:$0xff] %v332
                  %v334 = vld [vmem:[%s296 + $0x110] sm:$0xff]
                  %335 = vst [vmem:[%s297 + $0x90] sm:$0xff] %v334
                  %v336 = vld [vmem:[%s296 + $0x118] sm:$0xff]
                  %337 = vst [vmem:[%s297 + $0x98] sm:$0xff] %v336
                  %v338 = vld [vmem:[%s296 + $0x120] sm:$0xff]
                  %339 = vst [vmem:[%s297 + $0xa0] sm:$0xff] %v338
                  %v340 = vld [vmem:[%s296 + $0x128] sm:$0xff]
                  %341 = vst [vmem:[%s297 + $0xa8] sm:$0xff] %v340
                  %v342 = vld [vmem:[%s296 + $0x130] sm:$0xff]
                  %343 = vst [vmem:[%s297 + $0xb0] sm:$0xff] %v342
                  %v344 = vld [vmem:[%s296 + $0x138] sm:$0xff]
                  %345 = vst [vmem:[%s297 + $0xb8] sm:$0xff] %v344
                  %v346 = vld [vmem:[%s296 + $0x180] sm:$0xff]
                  %347 = vst [vmem:[%s297 + $0xc0] sm:$0xff] %v346
                  %v348 = vld [vmem:[%s296 + $0x188] sm:$0xff]
                  %349 = vst [vmem:[%s297 + $0xc8] sm:$0xff] %v348
                  %v350 = vld [vmem:[%s296 + $0x190] sm:$0xff]
                  %351 = vst [vmem:[%s297 + $0xd0] sm:$0xff] %v350
                  %v352 = vld [vmem:[%s296 + $0x198] sm:$0xff]
                  %353 = vst [vmem:[%s297 + $0xd8] sm:$0xff] %v352
                  %v354 = vld [vmem:[%s296 + $0x1a0] sm:$0xff]
                  %355 = vst [vmem:[%s297 + $0xe0] sm:$0xff] %v354
                  %v356 = vld [vmem:[%s296 + $0x1a8] sm:$0xff]
                  %357 = vst [vmem:[%s297 + $0xe8] sm:$0xff] %v356
                  %v358 = vld [vmem:[%s296 + $0x1b0] sm:$0xff]
                  %359 = vst [vmem:[%s297 + $0xf0] sm:$0xff] %v358
                  %v360 = vld [vmem:[%s296 + $0x1b8] sm:$0xff]
                  %361 = vst [vmem:[%s297 + $0xf8] sm:$0xff] %v360
                $region60: #{model_forward.5} parent=54 // loop_footer
                  %s295 = sadd.s32 1, %s291
                $region61: #{model_forward.5} parent=54 // loop_footer_branch
                  %290 = sbr.rel target = $region57
                $region62: #{model_forward.5} parent=54 // loop_exit
                  _
              $region55: #{model_forward.5} parent=39 // pred_fallthru
                _
              // Predicated region
              $region63: #{model_forward.5} parent=39 // pred_check
                _
              $region64: #{model_forward.5} parent=39 // pred_check_branch
                %363 = sbr.rel target = $region66
              $region65: #{model_forward.5} parent=39 // pred_region
                _
              $region66: #{model_forward.5} parent=39 // pred_fallthru
                _
            $region40: #{model_forward.5} parent=35 // pred_fallthru
              _
            // Predicated region
            $region41: #{model_forward.5} parent=35 // pred_check
              _
            $region42: #{model_forward.5} parent=35 // pred_check_branch
              %213 = sbr.rel target = $region44
            $region43: #{model_forward.5} parent=35 // pred_region
              %s215 = ssub.s32 256, 1
              loop: start=0, step=1, limit=1
              $region45: #{model_forward.5} parent=43 // loop_pre_header
                _
              $region46: #{model_forward.5} parent=43 // loop_header
                %s217 = sphi 0, %s221
                %p218 = scmp.ge.s32.totalorder %s217, 1
                %s222 = sphi %s207, %s207
                %s223 = sphi %s201, %s201
              $region47: #{model_forward.5} parent=43 // loop_header_branch
                %220 = sbr.rel (%p218) target = $region51
              $region48: #{model_forward.5} parent=43 // loop_body
                %v224 = vld [vmem:[%s222] sm:%s215]
                %225 = vst [vmem:[%s223] sm:%s215] %v224
                %v226 = vld [vmem:[%s222 + $0x8] sm:%s215]
                %227 = vst [vmem:[%s223 + $0x8] sm:%s215] %v226
                %v228 = vld [vmem:[%s222 + $0x10] sm:%s215]
                %229 = vst [vmem:[%s223 + $0x10] sm:%s215] %v228
                %v230 = vld [vmem:[%s222 + $0x18] sm:%s215]
                %231 = vst [vmem:[%s223 + $0x18] sm:%s215] %v230
                %v232 = vld [vmem:[%s222 + $0x20] sm:%s215]
                %233 = vst [vmem:[%s223 + $0x20] sm:%s215] %v232
                %v234 = vld [vmem:[%s222 + $0x28] sm:%s215]
                %235 = vst [vmem:[%s223 + $0x28] sm:%s215] %v234
                %v236 = vld [vmem:[%s222 + $0x30] sm:%s215]
                %237 = vst [vmem:[%s223 + $0x30] sm:%s215] %v236
                %v238 = vld [vmem:[%s222 + $0x38] sm:%s215]
                %239 = vst [vmem:[%s223 + $0x38] sm:%s215] %v238
                %v240 = vld [vmem:[%s222 + $0x80] sm:%s215]
                %241 = vst [vmem:[%s223 + $0x40] sm:%s215] %v240
                %v242 = vld [vmem:[%s222 + $0x88] sm:%s215]
                %243 = vst [vmem:[%s223 + $0x48] sm:%s215] %v242
                %v244 = vld [vmem:[%s222 + $0x90] sm:%s215]
                %245 = vst [vmem:[%s223 + $0x50] sm:%s215] %v244
                %v246 = vld [vmem:[%s222 + $0x98] sm:%s215]
                %247 = vst [vmem:[%s223 + $0x58] sm:%s215] %v246
                %v248 = vld [vmem:[%s222 + $0xa0] sm:%s215]
                %249 = vst [vmem:[%s223 + $0x60] sm:%s215] %v248
                %v250 = vld [vmem:[%s222 + $0xa8] sm:%s215]
                %251 = vst [vmem:[%s223 + $0x68] sm:%s215] %v250
                %v252 = vld [vmem:[%s222 + $0xb0] sm:%s215]
                %253 = vst [vmem:[%s223 + $0x70] sm:%s215] %v252
                %v254 = vld [vmem:[%s222 + $0xb8] sm:%s215]
                %255 = vst [vmem:[%s223 + $0x78] sm:%s215] %v254
                %v256 = vld [vmem:[%s222 + $0x100] sm:%s215]
                %257 = vst [vmem:[%s223 + $0x80] sm:%s215] %v256
                %v258 = vld [vmem:[%s222 + $0x108] sm:%s215]
                %259 = vst [vmem:[%s223 + $0x88] sm:%s215] %v258
                %v260 = vld [vmem:[%s222 + $0x110] sm:%s215]
                %261 = vst [vmem:[%s223 + $0x90] sm:%s215] %v260
                %v262 = vld [vmem:[%s222 + $0x118] sm:%s215]
                %263 = vst [vmem:[%s223 + $0x98] sm:%s215] %v262
                %v264 = vld [vmem:[%s222 + $0x120] sm:%s215]
                %265 = vst [vmem:[%s223 + $0xa0] sm:%s215] %v264
                %v266 = vld [vmem:[%s222 + $0x128] sm:%s215]
                %267 = vst [vmem:[%s223 + $0xa8] sm:%s215] %v266
                %v268 = vld [vmem:[%s222 + $0x130] sm:%s215]
                %269 = vst [vmem:[%s223 + $0xb0] sm:%s215] %v268
                %v270 = vld [vmem:[%s222 + $0x138] sm:%s215]
                %271 = vst [vmem:[%s223 + $0xb8] sm:%s215] %v270
                %v272 = vld [vmem:[%s222 + $0x180] sm:%s215]
                %273 = vst [vmem:[%s223 + $0xc0] sm:%s215] %v272
                %v274 = vld [vmem:[%s222 + $0x188] sm:%s215]
                %275 = vst [vmem:[%s223 + $0xc8] sm:%s215] %v274
                %v276 = vld [vmem:[%s222 + $0x190] sm:%s215]
                %277 = vst [vmem:[%s223 + $0xd0] sm:%s215] %v276
                %v278 = vld [vmem:[%s222 + $0x198] sm:%s215]
                %279 = vst [vmem:[%s223 + $0xd8] sm:%s215] %v278
                %v280 = vld [vmem:[%s222 + $0x1a0] sm:%s215]
                %281 = vst [vmem:[%s223 + $0xe0] sm:%s215] %v280
                %v282 = vld [vmem:[%s222 + $0x1a8] sm:%s215]
                %283 = vst [vmem:[%s223 + $0xe8] sm:%s215] %v282
                %v284 = vld [vmem:[%s222 + $0x1b0] sm:%s215]
                %285 = vst [vmem:[%s223 + $0xf0] sm:%s215] %v284
                %v286 = vld [vmem:[%s222 + $0x1b8] sm:%s215]
                %287 = vst [vmem:[%s223 + $0xf8] sm:%s215] %v286
              $region49: #{model_forward.5} parent=43 // loop_footer
                %s221 = sadd.s32 1, %s217
              $region50: #{model_forward.5} parent=43 // loop_footer_branch
                %216 = sbr.rel target = $region46
              $region51: #{model_forward.5} parent=43 // loop_exit
                _
            $region44: #{model_forward.5} parent=35 // pred_fallthru
              _
          $region36: #{model_forward.5} parent=31 // pred_fallthru
            _
          %364 = vnop
        $region32: #{model_forward.5} parent=27 // pred_fallthru
          _
      $region28: #{model_forward.5} parent=5 // pred_fallthru
        _
      %p365 = scmp.le.s32.totalorder 1, %s10
      %p366 = scmp.lt.s32.totalorder %s10, 3
      %p367 = pnand %p365, %p366
      %p368 = pneg %p367
      // Predicated region
      $region67: #{model_forward.5} parent=5 // pred_check
        _
      $region68: #{model_forward.5} parent=5 // pred_check_branch
        %370 = sbr.rel (%p367) target = $region70
      $region69: #{model_forward.5} parent=5 // pred_region
        %s371 = ssub.s32 %s10, 1
        %s372 = sand.u32 %s37, 1
        %s373 = sand.u32 %s37, 1
        %s374 = smul.addr %s373, 256
        %s375 = scalar_lea.vmem [#allocation2], %s374
        // Predicated region
        $region71: #{model_forward.5} parent=69 // pred_check
          %p376 = pneg %p50
        $region72: #{model_forward.5} parent=69 // pred_check_branch
          %378 = sbr.rel (%p376) target = $region74
        $region73: #{model_forward.5} parent=69 // pred_region
          _
        $region74: #{model_forward.5} parent=69 // pred_fallthru
          _
        %s379 = sand.u32 %s37, 1
        %s380 = sand.u32 %s37, 1
        %s381 = smul.addr %s380, 256
        %s382 = scalar_lea.vmem [#allocation2], %s381
        %p383 = pneg %p50
        %p384 = pneg %p47
        %p385 = scmp.lt.s32.totalorder %s19, 0
        %s386 = scalar_select %p385, %s19, 0
        %s387 = smul.addr %s386, 19
        %s388 = smul.addr %s387, 4
        %s389 = scalar_lea.vmem %s1, %s388
        %p390 = pneg %p76
        %p391 = pneg %p73
        %p392 = scmp.lt.s32.totalorder %s19, 0
        %s393 = scalar_select %p392, %s19, 0
        %s394 = scalar_lea.vmem %s2, %s393
        %p395 = pneg %p102
        %p396 = pneg %p99
        %p397 = scmp.lt.s32.totalorder %s19, 0
        %s398 = scalar_select %p397, %s19, 0
        %s399 = scalar_lea.vmem %s3, %s398
        %p400 = pneg %p128
        %p401 = pneg %p125
        %p402 = pneg %p156
        %p403 = pneg %p153
        %s404 = smul.u32 8, %s20
        %p405 = scmp.lt.s32.totalorder %s19, 0
        %s406 = scalar_select %p405, %s19, 0
        %p407 = scmp.lt.s32.totalorder %s404, 15
        %s408 = scalar_select %p407, %s404, 15
        %s409 = smul.addr %s406, 16
        %s410 = sadd.s32 %s408, %s409
        %s411 = smul.addr %s410, 4
        %s412 = scalar_lea.vmem %s4, %s411
        %s413 = smul.u32 8, %s20
        %p414 = scmp.lt.s32.totalorder %s19, 0
        %s415 = scalar_select %p414, %s19, 0
        %s416 = smul.addr %s415, 19
        %s417 = smul.addr %s416, 4
        %s418 = scalar_lea.vmem %s1, %s417
        %p419 = scmp.lt.s32.totalorder %s19, 0
        %s420 = scalar_select %p419, %s19, 0
        %s421 = scalar_lea.vmem %s2, %s420
        %p422 = scmp.lt.s32.totalorder %s19, 0
        %s423 = scalar_select %p422, %s19, 0
        %s424 = scalar_lea.vmem %s3, %s423
        %s425 = smul.u32 8, %s20
        %p426 = scmp.lt.s32.totalorder %s19, 0
        %s427 = scalar_select %p426, %s19, 0
        %p428 = scmp.lt.s32.totalorder %s425, 15
        %s429 = scalar_select %p428, %s425, 15
        %s430 = smul.addr %s427, 16
        %s431 = sadd.s32 %s429, %s430
        %s432 = smul.addr %s431, 4
        %s433 = scalar_lea.vmem %s4, %s432
        %s434 = smul.u32 8, %s20
        %v436 = vld [vmem:[%s375] sm:$0xff]
        %v437 = vld [vmem:[%s375 + $0x8] sm:$0xff]
        %v438 = vld [vmem:[%s375 + $0x10] sm:$0xff]
        %v439 = vld [vmem:[%s375 + $0x18] sm:$0xff]
        %v440 = vld [vmem:[%s375 + $0x20] sm:$0xff]
        %v441 = vld [vmem:[%s375 + $0x28] sm:$0xff]
        %v442 = vld [vmem:[%s375 + $0x30] sm:$0xff]
        %v443 = vld [vmem:[%s375 + $0x38] sm:$0xff]
        %v444 = vld [vmem:[%s375 + $0x40] sm:$0xff]
        %v445 = vld [vmem:[%s375 + $0x48] sm:$0xff]
        %v446 = vld [vmem:[%s375 + $0x50] sm:$0xff]
        %v447 = vld [vmem:[%s375 + $0x58] sm:$0xff]
        %v448 = vld [vmem:[%s375 + $0x60] sm:$0xff]
        %v449 = vld [vmem:[%s375 + $0x68] sm:$0xff]
        %v450 = vld [vmem:[%s375 + $0x70] sm:$0xff]
        %v451 = vld [vmem:[%s375 + $0x78] sm:$0xff]
        %v452 = vld [vmem:[%s375 + $0x80] sm:$0xff]
        %v453 = vld [vmem:[%s375 + $0x88] sm:$0xff]
        %v454 = vld [vmem:[%s375 + $0x90] sm:$0xff]
        %v455 = vld [vmem:[%s375 + $0x98] sm:$0xff]
        %v456 = vld [vmem:[%s375 + $0xa0] sm:$0xff]
        %v457 = vld [vmem:[%s375 + $0xa8] sm:$0xff]
        %v458 = vld [vmem:[%s375 + $0xb0] sm:$0xff]
        %v459 = vld [vmem:[%s375 + $0xb8] sm:$0xff]
        %v460 = vld [vmem:[%s375 + $0xc0] sm:$0xff]
        %v461 = vld [vmem:[%s375 + $0xc8] sm:$0xff]
        %v462 = vld [vmem:[%s375 + $0xd0] sm:$0xff]
        %v463 = vld [vmem:[%s375 + $0xd8] sm:$0xff]
        %v464 = vld [vmem:[%s375 + $0xe0] sm:$0xff]
        %v465 = vld [vmem:[%s375 + $0xe8] sm:$0xff]
        %v466 = vld [vmem:[%s375 + $0xf0] sm:$0xff]
        %v467 = vld [vmem:[%s375 + $0xf8] sm:$0xff]
        %v468 = vld [vmem:[%s418] sm:$0xf]
        %v469 = vld [vmem:[%s418 + $0x4] sm:$0xf]
        %v470 = vld [vmem:[%s418 + $0x8] sm:$0xf]
        %v471 = vld [vmem:[%s418 + $0xc] sm:$0xf]
        %v472 = vld [vmem:[%s418 + $0x10] sm:$0xf]
        %v473 = vld [vmem:[%s418 + $0x14] sm:$0xf]
        %v474 = vld [vmem:[%s418 + $0x18] sm:$0xf]
        %v475 = vld [vmem:[%s418 + $0x1c] sm:$0xf]
        %v476 = vld [vmem:[%s418 + $0x20] sm:$0xf]
        %v477 = vld [vmem:[%s418 + $0x24] sm:$0xf]
        %v478 = vld [vmem:[%s418 + $0x28] sm:$0xf]
        %v479 = vld [vmem:[%s418 + $0x2c] sm:$0xf]
        %v480 = vld [vmem:[%s418 + $0x30] sm:$0xf]
        %v481 = vld [vmem:[%s418 + $0x34] sm:$0xf]
        %v482 = vld [vmem:[%s418 + $0x38] sm:$0xf]
        %v483 = vld [vmem:[%s418 + $0x3c] sm:$0xf]
        %v484 = vld [vmem:[%s418 + $0x40] sm:$0xf]
        %v485 = vld [vmem:[%s418 + $0x44] sm:$0xf]
        %v486 = vld [vmem:[%s418 + $0x48] sm:$0x3]
        %v519 = vunpack.c.l.b16 %v436
        %v520 = vunpack.c.h.b16 %v436
        %v521 = vunpack.c.l.b16 %v437
        %v522 = vunpack.c.h.b16 %v437
        %v523 = vunpack.c.l.b16 %v438
        %v524 = vunpack.c.h.b16 %v438
        %v525 = vunpack.c.l.b16 %v439
        %v526 = vunpack.c.h.b16 %v439
        %v527 = vunpack.c.l.b16 %v440
        %v528 = vunpack.c.h.b16 %v440
        %v529 = vunpack.c.l.b16 %v441
        %v530 = vunpack.c.h.b16 %v441
        %v531 = vunpack.c.l.b16 %v442
        %v532 = vunpack.c.h.b16 %v442
        %v533 = vunpack.c.l.b16 %v443
        %v534 = vunpack.c.h.b16 %v443
        %v535 = vunpack.c.l.b16 %v444
        %v536 = vunpack.c.h.b16 %v444
        %v537 = vunpack.c.l.b16 %v445
        %v538 = vunpack.c.h.b16 %v445
        %v539 = vunpack.c.l.b16 %v446
        %v540 = vunpack.c.h.b16 %v446
        %v541 = vunpack.c.l.b16 %v447
        %v542 = vunpack.c.h.b16 %v447
        %v543 = vunpack.c.l.b16 %v448
        %v544 = vunpack.c.h.b16 %v448
        %v545 = vunpack.c.l.b16 %v449
        %v546 = vunpack.c.h.b16 %v449
        %v547 = vunpack.c.l.b16 %v450
        %v548 = vunpack.c.h.b16 %v450
        %v549 = vunpack.c.l.b16 %v451
        %v550 = vunpack.c.h.b16 %v451
        %v551 = vunpack.c.l.b16 %v452
        %v552 = vunpack.c.h.b16 %v452
        %v553 = vunpack.c.l.b16 %v453
        %v554 = vunpack.c.h.b16 %v453
        %v555 = vunpack.c.l.b16 %v454
        %v556 = vunpack.c.h.b16 %v454
        %v557 = vunpack.c.l.b16 %v455
        %v558 = vunpack.c.h.b16 %v455
        %v559 = vunpack.c.l.b16 %v456
        %v560 = vunpack.c.h.b16 %v456
        %v561 = vunpack.c.l.b16 %v457
        %v562 = vunpack.c.h.b16 %v457
        %v563 = vunpack.c.l.b16 %v458
        %v564 = vunpack.c.h.b16 %v458
        %v565 = vunpack.c.l.b16 %v459
        %v566 = vunpack.c.h.b16 %v459
        %v567 = vunpack.c.l.b16 %v460
        %v568 = vunpack.c.h.b16 %v460
        %v569 = vunpack.c.l.b16 %v461
        %v570 = vunpack.c.h.b16 %v461
        %v571 = vunpack.c.l.b16 %v462
        %v572 = vunpack.c.h.b16 %v462
        %v573 = vunpack.c.l.b16 %v463
        %v574 = vunpack.c.h.b16 %v463
        %v575 = vunpack.c.l.b16 %v464
        %v576 = vunpack.c.h.b16 %v464
        %v577 = vunpack.c.l.b16 %v465
        %v578 = vunpack.c.h.b16 %v465
        %v579 = vunpack.c.l.b16 %v466
        %v580 = vunpack.c.h.b16 %v466
        %v581 = vunpack.c.l.b16 %v467
        %v582 = vunpack.c.h.b16 %v467
        %v583 = vpack.c.b16 %v521, %v519
        %v584 = vpack.c.b16 %v522, %v520
        %v585 = vpack.c.b16 %v525, %v523
        %v586 = vpack.c.b16 %v526, %v524
        %v587 = vpack.c.b16 %v529, %v527
        %v588 = vpack.c.b16 %v530, %v528
        %v589 = vpack.c.b16 %v533, %v531
        %v590 = vpack.c.b16 %v534, %v532
        %v591 = vpack.c.b16 %v537, %v535
        %v592 = vpack.c.b16 %v538, %v536
        %v593 = vpack.c.b16 %v541, %v539
        %v594 = vpack.c.b16 %v542, %v540
        %v595 = vpack.c.b16 %v545, %v543
        %v596 = vpack.c.b16 %v546, %v544
        %v597 = vpack.c.b16 %v549, %v547
        %v598 = vpack.c.b16 %v550, %v548
        %v599 = vpack.c.b16 %v553, %v551
        %v600 = vpack.c.b16 %v554, %v552
        %v601 = vpack.c.b16 %v557, %v555
        %v602 = vpack.c.b16 %v558, %v556
        %v603 = vpack.c.b16 %v561, %v559
        %v604 = vpack.c.b16 %v562, %v560
        %v605 = vpack.c.b16 %v565, %v563
        %v606 = vpack.c.b16 %v566, %v564
        %v607 = vpack.c.b16 %v569, %v567
        %v608 = vpack.c.b16 %v570, %v568
        %v609 = vpack.c.b16 %v573, %v571
        %v610 = vpack.c.b16 %v574, %v572
        %v611 = vpack.c.b16 %v577, %v575
        %v612 = vpack.c.b16 %v578, %v576
        %v613 = vpack.c.b16 %v581, %v579
        %v614 = vpack.c.b16 %v582, %v580
        %v650 = vunpack.c.l.b16 %v468
        %v651 = vunpack.c.l.b16 %v469
        %v652 = vunpack.c.l.b16 %v470
        %v653 = vunpack.c.l.b16 %v471
        %v654 = vunpack.c.l.b16 %v472
        %v655 = vunpack.c.l.b16 %v473
        %v656 = vunpack.c.l.b16 %v474
        %v657 = vunpack.c.l.b16 %v475
        %v658 = vunpack.c.l.b16 %v476
        %v659 = vunpack.c.l.b16 %v477
        %v660 = vunpack.c.l.b16 %v478
        %v661 = vunpack.c.l.b16 %v479
        %v662 = vunpack.c.l.b16 %v480
        %v663 = vunpack.c.l.b16 %v481
        %v664 = vunpack.c.l.b16 %v482
        %v665 = vunpack.c.l.b16 %v483
        %v666 = vunpack.c.l.b16 %v484
        %v667 = vunpack.c.l.b16 %v485
        %v668 = vunpack.c.l.b16 %v486
        %v669 = vpack.c.b16 %v651, %v650
        %v670 = vpack.c.b16 %v653, %v652
        %v671 = vpack.c.b16 %v655, %v654
        %v672 = vpack.c.b16 %v657, %v656
        %v673 = vpack.c.b16 %v659, %v658
        %v674 = vpack.c.b16 %v661, %v660
        %v675 = vpack.c.b16 %v663, %v662
        %v676 = vpack.c.b16 %v665, %v664
        %v677 = vpack.c.b16 %v667, %v666
        %v678 = vpack.c.b16 %v668, %v668
        %vm688 = vcmask 154624
        %v690 = vsel %vm688, %v584, 0
        %v693 = vsel %vm688, %v586, 0
        %v696 = vsel %vm688, %v588, 0
        %v699 = vsel %vm688, %v590, 0
        %v702 = vsel %vm688, %v592, 0
        %v705 = vsel %vm688, %v594, 0
        %v708 = vsel %vm688, %v596, 0
        %v711 = vsel %vm688, %v598, 0
        %v714 = vsel %vm688, %v600, 0
        %v717 = vsel %vm688, %v602, 0
        %v720 = vsel %vm688, %v604, 0
        %v723 = vsel %vm688, %v606, 0
        %v726 = vsel %vm688, %v608, 0
        %v729 = vsel %vm688, %v610, 0
        %v732 = vsel %vm688, %v612, 0
        %v735 = vsel %vm688, %v614, 0
        %vm737 = vcmask 1040384
        %vm738 = vcmask 1041408
        %v739 = vsel %vm737, 4294967295, 65535
        %v740 = vsel %vm738, %v739, 0
        %v742 = vand.u32 %v678, %v740
        %744 = vmatprep.subr.bf16.mxu0 0
        %745 = vmatpush1.bf16.msra.mxu0 %v676
        %746 = vmatprep.subr.bf16.mxu0 0
        %747 = vmatpush1.bf16.msra.mxu0 %v675
        %748 = vmatprep.subr.bf16.mxu0 0
        %749 = vmatpush1.bf16.msra.mxu0 %v674
        %750 = vmatprep.subr.bf16.mxu0 0
        %751 = vmatpush1.bf16.msra.mxu0 %v673
        %752 = vmatprep.subr.bf16.mxu0 0
        %753 = vmatpush1.bf16.msra.mxu0 %v672
        %754 = vmatprep.subr.bf16.mxu0 0
        %755 = vmatpush1.bf16.msra.mxu0 %v671
        %756 = vmatprep.subr.bf16.mxu0 0
        %757 = vmatpush1.bf16.msra.mxu0 %v670
        %758 = vmatprep.subr.bf16.mxu0 0
        %759 = vmatpush1.bf16.msra.mxu0 %v669
        %760 = vmatprep.subr.bf16.mxu0 0
        %761 = vmatpush2.bf16.msra.mxu0 0
        %762 = vmatprep.subr.bf16.mxu0 0
        %763 = vmatpush2.bf16.msra.mxu0 0
        %764 = vmatprep.subr.bf16.mxu0 0
        %765 = vmatpush2.bf16.msra.mxu0 0
        %766 = vmatprep.subr.bf16.mxu0 0
        %767 = vmatpush2.bf16.msra.mxu0 0
        %768 = vmatprep.subr.bf16.mxu0 0
        %769 = vmatpush2.bf16.msra.mxu0 0
        %770 = vmatprep.subr.bf16.mxu0 0
        %771 = vmatpush2.bf16.msra.mxu0 0
        %772 = vmatprep.subr.bf16.mxu0 0
        %773 = vmatpush2.bf16.msra.mxu0 %v742
        %774 = vmatprep.subr.bf16.mxu0 0
        %775 = vmatpush2.bf16.msra.mxu0 %v677
        %776 = vmatprep.mubr.bf16.mxu0 %v690
        %777 = vmatmul.mubr.bf16.gmra.mxu0 %v583
        %v778 = vpop.f32.mrf.mxu0
        %v779 = vadd.f32 0.0, %v778
        %v780 = vpop.f32.mrf.mxu0
        %v781 = vpop.f32.mrf.mxu0
        %v782 = vadd.f32 0.0, %v781
        %v783 = vpop.f32.mrf.mxu0
        %784 = vmatprep.mubr.bf16.mxu0 %v693
        %785 = vmatmul.mubr.bf16.gmra.mxu0 %v585
        %v786 = vpop.f32.mrf.mxu0
        %v787 = vadd.f32 0.0, %v786
        %v788 = vpop.f32.mrf.mxu0
        %v789 = vpop.f32.mrf.mxu0
        %v790 = vadd.f32 0.0, %v789
        %v791 = vpop.f32.mrf.mxu0
        %792 = vmatprep.mubr.bf16.mxu0 %v696
        %793 = vmatmul.mubr.bf16.gmra.mxu0 %v587
        %v794 = vpop.f32.mrf.mxu0
        %v795 = vadd.f32 0.0, %v794
        %v796 = vpop.f32.mrf.mxu0
        %v797 = vpop.f32.mrf.mxu0
        %v798 = vadd.f32 0.0, %v797
        %v799 = vpop.f32.mrf.mxu0
        %800 = vmatprep.mubr.bf16.mxu0 %v699
        %801 = vmatmul.mubr.bf16.gmra.mxu0 %v589
        %v802 = vpop.f32.mrf.mxu0
        %v803 = vadd.f32 0.0, %v802
        %v804 = vpop.f32.mrf.mxu0
        %v805 = vpop.f32.mrf.mxu0
        %v806 = vadd.f32 0.0, %v805
        %v807 = vpop.f32.mrf.mxu0
        %808 = vmatprep.mubr.bf16.mxu0 %v702
        %809 = vmatmul.mubr.bf16.gmra.mxu0 %v591
        %v810 = vpop.f32.mrf.mxu0
        %v811 = vadd.f32 0.0, %v810
        %v812 = vpop.f32.mrf.mxu0
        %v813 = vpop.f32.mrf.mxu0
        %v814 = vadd.f32 0.0, %v813
        %v815 = vpop.f32.mrf.mxu0
        %816 = vmatprep.mubr.bf16.mxu0 %v705
        %817 = vmatmul.mubr.bf16.gmra.mxu0 %v593
        %v818 = vpop.f32.mrf.mxu0
        %v819 = vadd.f32 0.0, %v818
        %v820 = vpop.f32.mrf.mxu0
        %v821 = vpop.f32.mrf.mxu0
        %v822 = vadd.f32 0.0, %v821
        %v823 = vpop.f32.mrf.mxu0
        %824 = vmatprep.mubr.bf16.mxu0 %v708
        %825 = vmatmul.mubr.bf16.gmra.mxu0 %v595
        %v826 = vpop.f32.mrf.mxu0
        %v827 = vadd.f32 0.0, %v826
        %v828 = vpop.f32.mrf.mxu0
        %v829 = vpop.f32.mrf.mxu0
        %v830 = vadd.f32 0.0, %v829
        %v831 = vpop.f32.mrf.mxu0
        %832 = vmatprep.mubr.bf16.mxu0 %v711
        %833 = vmatmul.mubr.bf16.gmra.mxu0 %v597
        %v834 = vpop.f32.mrf.mxu0
        %v835 = vadd.f32 0.0, %v834
        %v836 = vpop.f32.mrf.mxu0
        %v837 = vpop.f32.mrf.mxu0
        %v838 = vadd.f32 0.0, %v837
        %v839 = vpop.f32.mrf.mxu0
        %840 = vmatprep.mubr.bf16.mxu0 %v714
        %841 = vmatmul.mubr.bf16.gmra.mxu0 %v599
        %v842 = vpop.f32.mrf.mxu0
        %v843 = vadd.f32 0.0, %v842
        %v844 = vpop.f32.mrf.mxu0
        %v845 = vpop.f32.mrf.mxu0
        %v846 = vadd.f32 0.0, %v845
        %v847 = vpop.f32.mrf.mxu0
        %848 = vmatprep.mubr.bf16.mxu0 %v717
        %849 = vmatmul.mubr.bf16.gmra.mxu0 %v601
        %v850 = vpop.f32.mrf.mxu0
        %v851 = vadd.f32 0.0, %v850
        %v852 = vpop.f32.mrf.mxu0
        %v853 = vpop.f32.mrf.mxu0
        %v854 = vadd.f32 0.0, %v853
        %v855 = vpop.f32.mrf.mxu0
        %856 = vmatprep.mubr.bf16.mxu0 %v720
        %857 = vmatmul.mubr.bf16.gmra.mxu0 %v603
        %v858 = vpop.f32.mrf.mxu0
        %v859 = vadd.f32 0.0, %v858
        %v860 = vpop.f32.mrf.mxu0
        %v861 = vpop.f32.mrf.mxu0
        %v862 = vadd.f32 0.0, %v861
        %v863 = vpop.f32.mrf.mxu0
        %864 = vmatprep.mubr.bf16.mxu0 %v723
        %865 = vmatmul.mubr.bf16.gmra.mxu0 %v605
        %v866 = vpop.f32.mrf.mxu0
        %v867 = vadd.f32 0.0, %v866
        %v868 = vpop.f32.mrf.mxu0
        %v869 = vpop.f32.mrf.mxu0
        %v870 = vadd.f32 0.0, %v869
        %v871 = vpop.f32.mrf.mxu0
        %872 = vmatprep.mubr.bf16.mxu0 %v726
        %873 = vmatmul.mubr.bf16.gmra.mxu0 %v607
        %v874 = vpop.f32.mrf.mxu0
        %v875 = vadd.f32 0.0, %v874
        %v876 = vpop.f32.mrf.mxu0
        %v877 = vpop.f32.mrf.mxu0
        %v878 = vadd.f32 0.0, %v877
        %v879 = vpop.f32.mrf.mxu0
        %880 = vmatprep.mubr.bf16.mxu0 %v729
        %881 = vmatmul.mubr.bf16.gmra.mxu0 %v609
        %v882 = vpop.f32.mrf.mxu0
        %v883 = vadd.f32 0.0, %v882
        %v884 = vpop.f32.mrf.mxu0
        %v885 = vpop.f32.mrf.mxu0
        %v886 = vadd.f32 0.0, %v885
        %v887 = vpop.f32.mrf.mxu0
        %888 = vmatprep.mubr.bf16.mxu0 %v732
        %889 = vmatmul.mubr.bf16.gmra.mxu0 %v611
        %v890 = vpop.f32.mrf.mxu0
        %v891 = vadd.f32 0.0, %v890
        %v892 = vpop.f32.mrf.mxu0
        %v893 = vpop.f32.mrf.mxu0
        %v894 = vadd.f32 0.0, %v893
        %v895 = vpop.f32.mrf.mxu0
        %896 = vmatprep.mubr.bf16.mxu0 %v735
        %897 = vmatmul.mubr.bf16.gmra.mxu0 %v613
        %v898 = vpop.f32.mrf.mxu0
        %v899 = vadd.f32 0.0, %v898
        %v900 = vpop.f32.mrf.mxu0
        %v901 = vpop.f32.mrf.mxu0
        %v902 = vadd.f32 0.0, %v901
        %v903 = vpop.f32.mrf.mxu0
        %904 = vdwg.mxu0
        %v905 = vmax.f32 %v779, %v811
        %v906 = vmax.f32 %v782, %v814
        %v907 = vmax.f32 %v787, %v819
        %v908 = vmax.f32 %v790, %v822
        %v909 = vmax.f32 %v795, %v827
        %v910 = vmax.f32 %v798, %v830
        %v911 = vmax.f32 %v803, %v835
        %v912 = vmax.f32 %v806, %v838
        %v913 = vmax.f32 %v843, %v875
        %v914 = vmax.f32 %v846, %v878
        %v915 = vmax.f32 %v851, %v883
        %v916 = vmax.f32 %v854, %v886
        %v917 = vmax.f32 %v859, %v891
        %v918 = vmax.f32 %v862, %v894
        %v919 = vmax.f32 %v867, %v899
        %v920 = vmax.f32 %v870, %v902
        %v921 = vmax.f32 %v905, %v913
        %v922 = vmax.f32 %v906, %v914
        %v923 = vmax.f32 %v907, %v915
        %v924 = vmax.f32 %v908, %v916
        %v925 = vmax.f32 %v909, %v917
        %v926 = vmax.f32 %v910, %v918
        %v927 = vmax.f32 %v911, %v919
        %v928 = vmax.f32 %v912, %v920
        %v929 = vld [vmem:[%s421] sm:$0x1]
        %v931 = vlaneseq
        %v932 = vshrl.u32 %v931, 7
        %v933 = vsub.s32 0, %v932
        %v934 = vrot.slane %v929, %v933
        %v936 = vmul.f32 %v921, %v934
        %v937 = vmul.f32 %v922, %v934
        %v938 = vmul.f32 %v923, %v934
        %v939 = vmul.f32 %v924, %v934
        %v940 = vmul.f32 %v925, %v934
        %v941 = vmul.f32 %v926, %v934
        %v942 = vmul.f32 %v927, %v934
        %v943 = vmul.f32 %v928, %v934
        %v944 = vld [vmem:[%s424] sm:$0x1]
        %v946 = vlaneseq
        %v947 = vshrl.u32 %v946, 7
        %v948 = vsub.s32 0, %v947
        %v949 = vrot.slane %v944, %v948
        %v951 = vadd.f32 %v936, %v949
        %v952 = vadd.f32 %v937, %v949
        %v953 = vadd.f32 %v938, %v949
        %v954 = vadd.f32 %v939, %v949
        %v955 = vadd.f32 %v940, %v949
        %v956 = vadd.f32 %v941, %v949
        %v957 = vadd.f32 %v942, %v949
        %v958 = vadd.f32 %v943, %v949
        %v959 = vmax.f32 %v951, 0.0
        %v960 = vmax.f32 %v952, 0.0
        %v961 = vmax.f32 %v953, 0.0
        %v962 = vmax.f32 %v954, 0.0
        %v963 = vmax.f32 %v955, 0.0
        %v964 = vmax.f32 %v956, 0.0
        %v965 = vmax.f32 %v957, 0.0
        %v966 = vmax.f32 %v958, 0.0
        %v967 = vpack.c.bf16 %v960, %v959
        %v968 = vpack.c.bf16 %v962, %v961
        %v969 = vpack.c.bf16 %v964, %v963
        %v970 = vpack.c.bf16 %v966, %v965
        %v975 = vunpack.c.l.b16 %v967
        %v976 = vunpack.c.h.b16 %v967
        %v977 = vunpack.c.l.b16 %v968
        %v978 = vunpack.c.h.b16 %v968
        %v979 = vunpack.c.l.b16 %v969
        %v980 = vunpack.c.h.b16 %v969
        %v981 = vunpack.c.l.b16 %v970
        %v982 = vunpack.c.h.b16 %v970
        %v983 = vpack.c.b16 %v975, %v975
        %v984 = vpack.c.b16 %v976, %v976
        %v985 = vpack.c.b16 %v977, %v977
        %v986 = vpack.c.b16 %v978, %v978
        %v987 = vpack.c.b16 %v979, %v979
        %v988 = vpack.c.b16 %v980, %v980
        %v989 = vpack.c.b16 %v981, %v981
        %v990 = vpack.c.b16 %v982, %v982
        %999 = vst [vmem:[%s433] sm:$0xf] %v983
        %1000 = vst [vmem:[%s433 + $0x4] sm:$0xf] %v984
        %1001 = vst [vmem:[%s433 + $0x8] sm:$0xf] %v985
        %1002 = vst [vmem:[%s433 + $0xc] sm:$0xf] %v986
        %1003 = vst [vmem:[%s433 + $0x10] sm:$0xf] %v987
        %1004 = vst [vmem:[%s433 + $0x14] sm:$0xf] %v988
        %1005 = vst [vmem:[%s433 + $0x18] sm:$0xf] %v989
        %1006 = vst [vmem:[%s433 + $0x1c] sm:$0xf] %v990
        %s1007 = smul.u32 8, %s20
        %p1008 = scmp.lt.s32.totalorder %s19, 0
        %s1009 = scalar_select %p1008, %s19, 0
        %p1010 = scmp.lt.s32.totalorder %s1007, 15
        %s1011 = scalar_select %p1010, %s1007, 15
        %s1012 = smul.addr %s1009, 16
        %s1013 = sadd.s32 %s1011, %s1012
        %s1014 = smul.addr %s1013, 4
        %s1015 = scalar_lea.vmem %s4, %s1014
        // Predicated region
        $region75: #{model_forward.5} parent=69 // pred_check
          %p1016 = pneg %p153
        $region76: #{model_forward.5} parent=69 // pred_check_branch
          %1018 = sbr.rel (%p1016) target = $region78
        $region77: #{model_forward.5} parent=69 // pred_region
          %s1019 = smul.u32 8, %s20
        $region78: #{model_forward.5} parent=69 // pred_fallthru
          _
      $region70: #{model_forward.5} parent=5 // pred_fallthru
        _
      %p1020 = scmp.le.s32.totalorder 2, %s10
      // Predicated region
      $region79: #{model_forward.5} parent=5 // pred_check
        %p1021 = pneg %p1020
      $region80: #{model_forward.5} parent=5 // pred_check_branch
        %1023 = sbr.rel (%p1021) target = $region82
      $region81: #{model_forward.5} parent=5 // pred_region
        %s1024 = ssub.s32 %s10, 2
        // Predicated region
        $region83: #{model_forward.5} parent=81 // pred_check
          %p1025 = pneg %p159
        $region84: #{model_forward.5} parent=81 // pred_check_branch
          %1027 = sbr.rel (%p1025) target = $region86
        $region85: #{model_forward.5} parent=81 // pred_region
          %s1028 = smul.u32 8, %s22
          %p1029 = scmp.lt.s32.totalorder %s21, 0
          %s1030 = scalar_select %p1029, %s21, 0
          %p1031 = scmp.lt.s32.totalorder %s1028, 15
          %s1032 = scalar_select %p1031, %s1028, 15
          %s1033 = smul.addr %s1030, 16
          %s1034 = sadd.s32 %s1032, %s1033
          %s1035 = smul.addr %s1034, 4
          %s1036 = scalar_lea.vmem %s4, %s1035
        $region86: #{model_forward.5} parent=81 // pred_fallthru
          _
      $region82: #{model_forward.5} parent=5 // pred_fallthru
        _
    $region6: #{model_forward.5} parent=1 // loop_footer
      %s14 = sadd.s32 1, %s10
    $region7: #{model_forward.5} parent=1 // loop_footer_branch
      %9 = sbr.rel target = $region3
    $region8: #{model_forward.5} parent=1 // loop_exit
      _

// kernel: squeeze.1
$region0: #{squeeze.1}
  %s0 = inlined_call_operand.vmem [shape: bf16[1,128,96], index: 0, kind: input, shape index: {}]
  %s1 = inlined_call_operand.vmem [shape: bf16[2,8,8,3,32], index: 1, kind: output, shape index: {}]
  $region1: #{squeeze.1} parent=0
    #allocation0 [shape = 'u8[524288]{0}', space=vmem, size = 0x80000, scoped, tag = 'scoped mem for output reshape']
    #allocation1 [shape = 'u8[65536]{0}', space=vmem, size = 0x10000, scoped, tag = 'scoped mem for input reshape']
    %s3 = smul.u32 4, 2
    %s4 = sshll.u32 1, %s3
    %s5 = ssub.s32 %s4, 1
    %s6 = smul.addr 4, 15
    %s7 = scalar_lea.vmem %s0, %s6
    %s8 = sshrl.u32 %s5, 1
    %s9 = sor.u32 %s5, %s8
    %s10 = sand.u32 %s9, 85
    %s11 = sshrl.u32 %s10, 1
    %s12 = sor.u32 %s10, %s11
    %s13 = sand.u32 51, %s12
    %s14 = sshrl.u32 %s13, 2
    %s15 = sor.u32 %s13, %s14
    %s16 = sand.u32 15, %s15
    %v17 = vld [vmem:[%s7] sm:%s16]
    %v18 = vunpack.c.l.bf16 %v17
    %v19 = vunpack.c.h.bf16 %v17
    %s20 = scalar_lea.vmem [#allocation1], 120
    %21 = vst [vmem:[%s20] sm:%s5] %v18
    %s22 = smul.addr 4, 14
    %s23 = scalar_lea.vmem %s0, %s22
    %s24 = sshrl.u32 %s5, 1
    %s25 = sor.u32 %s5, %s24
    %s26 = sand.u32 %s25, 85
    %s27 = sshrl.u32 %s26, 1
    %s28 = sor.u32 %s26, %s27
    %s29 = sand.u32 51, %s28
    %s30 = sshrl.u32 %s29, 2
    %s31 = sor.u32 %s29, %s30
    %s32 = sand.u32 15, %s31
    %v33 = vld [vmem:[%s23] sm:%s32]
    %v34 = vunpack.c.l.bf16 %v33
    %v35 = vunpack.c.h.bf16 %v33
    %s36 = scalar_lea.vmem [#allocation1], 112
    %37 = vst [vmem:[%s36] sm:%s5] %v34
    %s38 = smul.addr 4, 13
    %s39 = scalar_lea.vmem %s0, %s38
    %s40 = sshrl.u32 %s5, 1
    %s41 = sor.u32 %s5, %s40
    %s42 = sand.u32 %s41, 85
    %s43 = sshrl.u32 %s42, 1
    %s44 = sor.u32 %s42, %s43
    %s45 = sand.u32 51, %s44
    %s46 = sshrl.u32 %s45, 2
    %s47 = sor.u32 %s45, %s46
    %s48 = sand.u32 15, %s47
    %v49 = vld [vmem:[%s39] sm:%s48]
    %v50 = vunpack.c.l.bf16 %v49
    %v51 = vunpack.c.h.bf16 %v49
    %s52 = scalar_lea.vmem [#allocation1], 104
    %53 = vst [vmem:[%s52] sm:%s5] %v50
    %s54 = smul.addr 4, 12
    %s55 = scalar_lea.vmem %s0, %s54
    %s56 = sshrl.u32 %s5, 1
    %s57 = sor.u32 %s5, %s56
    %s58 = sand.u32 %s57, 85
    %s59 = sshrl.u32 %s58, 1
    %s60 = sor.u32 %s58, %s59
    %s61 = sand.u32 51, %s60
    %s62 = sshrl.u32 %s61, 2
    %s63 = sor.u32 %s61, %s62
    %s64 = sand.u32 15, %s63
    %v65 = vld [vmem:[%s55] sm:%s64]
    %v66 = vunpack.c.l.bf16 %v65
    %v67 = vunpack.c.h.bf16 %v65
    %s68 = scalar_lea.vmem [#allocation1], 96
    %69 = vst [vmem:[%s68] sm:%s5] %v66
    %s70 = smul.addr 4, 11
    %s71 = scalar_lea.vmem %s0, %s70
    %s72 = sshrl.u32 %s5, 1
    %s73 = sor.u32 %s5, %s72
    %s74 = sand.u32 %s73, 85
    %s75 = sshrl.u32 %s74, 1
    %s76 = sor.u32 %s74, %s75
    %s77 = sand.u32 51, %s76
    %s78 = sshrl.u32 %s77, 2
    %s79 = sor.u32 %s77, %s78
    %s80 = sand.u32 15, %s79
    %v81 = vld [vmem:[%s71] sm:%s80]
    %v82 = vunpack.c.l.bf16 %v81
    %v83 = vunpack.c.h.bf16 %v81
    %s84 = scalar_lea.vmem [#allocation1], 88
    %85 = vst [vmem:[%s84] sm:%s5] %v82
    %s86 = smul.addr 4, 10
    %s87 = scalar_lea.vmem %s0, %s86
    %s88 = sshrl.u32 %s5, 1
    %s89 = sor.u32 %s5, %s88
    %s90 = sand.u32 %s89, 85
    %s91 = sshrl.u32 %s90, 1
    %s92 = sor.u32 %s90, %s91
    %s93 = sand.u32 51, %s92
    %s94 = sshrl.u32 %s93, 2
    %s95 = sor.u32 %s93, %s94
    %s96 = sand.u32 15, %s95
    %v97 = vld [vmem:[%s87] sm:%s96]
    %v98 = vunpack.c.l.bf16 %v97
    %v99 = vunpack.c.h.bf16 %v97
    %s100 = scalar_lea.vmem [#allocation1], 80
    %101 = vst [vmem:[%s100] sm:%s5] %v98
    %s102 = smul.addr 4, 9
    %s103 = scalar_lea.vmem %s0, %s102
    %s104 = sshrl.u32 %s5, 1
    %s105 = sor.u32 %s5, %s104
    %s106 = sand.u32 %s105, 85
    %s107 = sshrl.u32 %s106, 1
    %s108 = sor.u32 %s106, %s107
    %s109 = sand.u32 51, %s108
    %s110 = sshrl.u32 %s109, 2
    %s111 = sor.u32 %s109, %s110
    %s112 = sand.u32 15, %s111
    %v113 = vld [vmem:[%s103] sm:%s112]
    %v114 = vunpack.c.l.bf16 %v113
    %v115 = vunpack.c.h.bf16 %v113
    %s116 = scalar_lea.vmem [#allocation1], 72
    %117 = vst [vmem:[%s116] sm:%s5] %v114
    %s118 = smul.addr 4, 8
    %s119 = scalar_lea.vmem %s0, %s118
    %s120 = sshrl.u32 %s5, 1
    %s121 = sor.u32 %s5, %s120
    %s122 = sand.u32 %s121, 85
    %s123 = sshrl.u32 %s122, 1
    %s124 = sor.u32 %s122, %s123
    %s125 = sand.u32 51, %s124
    %s126 = sshrl.u32 %s125, 2
    %s127 = sor.u32 %s125, %s126
    %s128 = sand.u32 15, %s127
    %v129 = vld [vmem:[%s119] sm:%s128]
    %v130 = vunpack.c.l.bf16 %v129
    %v131 = vunpack.c.h.bf16 %v129
    %s132 = scalar_lea.vmem [#allocation1], 64
    %133 = vst [vmem:[%s132] sm:%s5] %v130
    %s134 = smul.addr 4, 7
    %s135 = scalar_lea.vmem %s0, %s134
    %s136 = sshrl.u32 %s5, 1
    %s137 = sor.u32 %s5, %s136
    %s138 = sand.u32 %s137, 85
    %s139 = sshrl.u32 %s138, 1
    %s140 = sor.u32 %s138, %s139
    %s141 = sand.u32 51, %s140
    %s142 = sshrl.u32 %s141, 2
    %s143 = sor.u32 %s141, %s142
    %s144 = sand.u32 15, %s143
    %v145 = vld [vmem:[%s135] sm:%s144]
    %v146 = vunpack.c.l.bf16 %v145
    %v147 = vunpack.c.h.bf16 %v145
    %s148 = scalar_lea.vmem [#allocation1], 56
    %149 = vst [vmem:[%s148] sm:%s5] %v146
    %s150 = smul.addr 4, 6
    %s151 = scalar_lea.vmem %s0, %s150
    %s152 = sshrl.u32 %s5, 1
    %s153 = sor.u32 %s5, %s152
    %s154 = sand.u32 %s153, 85
    %s155 = sshrl.u32 %s154, 1
    %s156 = sor.u32 %s154, %s155
    %s157 = sand.u32 51, %s156
    %s158 = sshrl.u32 %s157, 2
    %s159 = sor.u32 %s157, %s158
    %s160 = sand.u32 15, %s159
    %v161 = vld [vmem:[%s151] sm:%s160]
    %v162 = vunpack.c.l.bf16 %v161
    %v163 = vunpack.c.h.bf16 %v161
    %s164 = scalar_lea.vmem [#allocation1], 48
    %165 = vst [vmem:[%s164] sm:%s5] %v162
    %s166 = smul.addr 4, 5
    %s167 = scalar_lea.vmem %s0, %s166
    %s168 = sshrl.u32 %s5, 1
    %s169 = sor.u32 %s5, %s168
    %s170 = sand.u32 %s169, 85
    %s171 = sshrl.u32 %s170, 1
    %s172 = sor.u32 %s170, %s171
    %s173 = sand.u32 51, %s172
    %s174 = sshrl.u32 %s173, 2
    %s175 = sor.u32 %s173, %s174
    %s176 = sand.u32 15, %s175
    %v177 = vld [vmem:[%s167] sm:%s176]
    %v178 = vunpack.c.l.bf16 %v177
    %v179 = vunpack.c.h.bf16 %v177
    %s180 = scalar_lea.vmem [#allocation1], 40
    %181 = vst [vmem:[%s180] sm:%s5] %v178
    %s182 = smul.addr 4, 4
    %s183 = scalar_lea.vmem %s0, %s182
    %s184 = sshrl.u32 %s5, 1
    %s185 = sor.u32 %s5, %s184
    %s186 = sand.u32 %s185, 85
    %s187 = sshrl.u32 %s186, 1
    %s188 = sor.u32 %s186, %s187
    %s189 = sand.u32 51, %s188
    %s190 = sshrl.u32 %s189, 2
    %s191 = sor.u32 %s189, %s190
    %s192 = sand.u32 15, %s191
    %v193 = vld [vmem:[%s183] sm:%s192]
    %v194 = vunpack.c.l.bf16 %v193
    %v195 = vunpack.c.h.bf16 %v193
    %s196 = scalar_lea.vmem [#allocation1], 32
    %197 = vst [vmem:[%s196] sm:%s5] %v194
    %s198 = smul.addr 4, 3
    %s199 = scalar_lea.vmem %s0, %s198
    %s200 = sshrl.u32 %s5, 1
    %s201 = sor.u32 %s5, %s200
    %s202 = sand.u32 %s201, 85
    %s203 = sshrl.u32 %s202, 1
    %s204 = sor.u32 %s202, %s203
    %s205 = sand.u32 51, %s204
    %s206 = sshrl.u32 %s205, 2
    %s207 = sor.u32 %s205, %s206
    %s208 = sand.u32 15, %s207
    %v209 = vld [vmem:[%s199] sm:%s208]
    %v210 = vunpack.c.l.bf16 %v209
    %v211 = vunpack.c.h.bf16 %v209
    %s212 = scalar_lea.vmem [#allocation1], 24
    %213 = vst [vmem:[%s212] sm:%s5] %v210
    %s214 = smul.addr 4, 2
    %s215 = scalar_lea.vmem %s0, %s214
    %s216 = sshrl.u32 %s5, 1
    %s217 = sor.u32 %s5, %s216
    %s218 = sand.u32 %s217, 85
    %s219 = sshrl.u32 %s218, 1
    %s220 = sor.u32 %s218, %s219
    %s221 = sand.u32 51, %s220
    %s222 = sshrl.u32 %s221, 2
    %s223 = sor.u32 %s221, %s222
    %s224 = sand.u32 15, %s223
    %v225 = vld [vmem:[%s215] sm:%s224]
    %v226 = vunpack.c.l.bf16 %v225
    %v227 = vunpack.c.h.bf16 %v225
    %s228 = scalar_lea.vmem [#allocation1], 16
    %229 = vst [vmem:[%s228] sm:%s5] %v226
    %s230 = scalar_lea.vmem %s0, 4
    %s231 = sshrl.u32 %s5, 1
    %s232 = sor.u32 %s5, %s231
    %s233 = sand.u32 %s232, 85
    %s234 = sshrl.u32 %s233, 1
    %s235 = sor.u32 %s233, %s234
    %s236 = sand.u32 51, %s235
    %s237 = sshrl.u32 %s236, 2
    %s238 = sor.u32 %s236, %s237
    %s239 = sand.u32 15, %s238
    %v240 = vld [vmem:[%s230] sm:%s239]
    %v241 = vunpack.c.l.bf16 %v240
    %v242 = vunpack.c.h.bf16 %v240
    %s243 = scalar_lea.vmem [#allocation1], 8
    %244 = vst [vmem:[%s243] sm:%s5] %v241
    %s245 = sshrl.u32 %s5, 1
    %s246 = sor.u32 %s5, %s245
    %s247 = sand.u32 %s246, 85
    %s248 = sshrl.u32 %s247, 1
    %s249 = sor.u32 %s247, %s248
    %s250 = sand.u32 51, %s249
    %s251 = sshrl.u32 %s250, 2
    %s252 = sor.u32 %s250, %s251
    %s253 = sand.u32 15, %s252
    %v254 = vld [vmem:[%s0] sm:%s253]
    %v255 = vunpack.c.l.bf16 %v254
    %v256 = vunpack.c.h.bf16 %v254
    %257 = vst [vmem:[#allocation1] sm:%s5] %v255
    %v258 = vld [vmem:[#allocation1] sm:$0xff]
    %vm259 = vcmask 261120
    %260 = vst.msk [vmem:[#allocation0] ss:$8 sm:$0xf] %vm259, %v258
    %261 = vst.msk [vmem:[#allocation0] ss:$8 sm:$0xf0] %vm259, %v258
    %s262 = scalar_lea.vmem [#allocation1], 8
    %v263 = vld [vmem:[%s262] sm:$0xff]
    %vm264 = vcmask 261120
    %s265 = scalar_lea.vmem [#allocation0], 64
    %266 = vst.msk [vmem:[%s265] ss:$8 sm:$0xf] %vm264, %v263
    %s267 = scalar_lea.vmem [#allocation0], 64
    %268 = vst.msk [vmem:[%s267] ss:$8 sm:$0xf0] %vm264, %v263
    %s269 = scalar_lea.vmem [#allocation1], 16
    %v270 = vld [vmem:[%s269] sm:$0xff]
    %vm271 = vcmask 261120
    %s272 = scalar_lea.vmem [#allocation0], 128
    %273 = vst.msk [vmem:[%s272] ss:$8 sm:$0xf] %vm271, %v270
    %s274 = scalar_lea.vmem [#allocation0], 128
    %275 = vst.msk [vmem:[%s274] ss:$8 sm:$0xf0] %vm271, %v270
    %s276 = scalar_lea.vmem [#allocation1], 24
    %v277 = vld [vmem:[%s276] sm:$0xff]
    %vm278 = vcmask 261120
    %s279 = scalar_lea.vmem [#allocation0], 192
    %280 = vst.msk [vmem:[%s279] ss:$8 sm:$0xf] %vm278, %v277
    %s281 = scalar_lea.vmem [#allocation0], 192
    %282 = vst.msk [vmem:[%s281] ss:$8 sm:$0xf0] %vm278, %v277
    %s283 = scalar_lea.vmem [#allocation1], 32
    %v284 = vld [vmem:[%s283] sm:$0xff]
    %vm285 = vcmask 261120
    %s286 = scalar_lea.vmem [#allocation0], 256
    %287 = vst.msk [vmem:[%s286] ss:$8 sm:$0xf] %vm285, %v284
    %s288 = scalar_lea.vmem [#allocation0], 256
    %289 = vst.msk [vmem:[%s288] ss:$8 sm:$0xf0] %vm285, %v284
    %s290 = scalar_lea.vmem [#allocation1], 40
    %v291 = vld [vmem:[%s290] sm:$0xff]
    %vm292 = vcmask 261120
    %s293 = scalar_lea.vmem [#allocation0], 320
    %294 = vst.msk [vmem:[%s293] ss:$8 sm:$0xf] %vm292, %v291
    %s295 = scalar_lea.vmem [#allocation0], 320
    %296 = vst.msk [vmem:[%s295] ss:$8 sm:$0xf0] %vm292, %v291
    %s297 = scalar_lea.vmem [#allocation1], 48
    %v298 = vld [vmem:[%s297] sm:$0xff]
    %vm299 = vcmask 261120
    %s300 = scalar_lea.vmem [#allocation0], 384
    %301 = vst.msk [vmem:[%s300] ss:$8 sm:$0xf] %vm299, %v298
    %s302 = scalar_lea.vmem [#allocation0], 384
    %303 = vst.msk [vmem:[%s302] ss:$8 sm:$0xf0] %vm299, %v298
    %s304 = scalar_lea.vmem [#allocation1], 56
    %v305 = vld [vmem:[%s304] sm:$0xff]
    %vm306 = vcmask 261120
    %s307 = scalar_lea.vmem [#allocation0], 448
    %308 = vst.msk [vmem:[%s307] ss:$8 sm:$0xf] %vm306, %v305
    %s309 = scalar_lea.vmem [#allocation0], 448
    %310 = vst.msk [vmem:[%s309] ss:$8 sm:$0xf0] %vm306, %v305
    %s311 = scalar_lea.vmem [#allocation1], 64
    %v312 = vld [vmem:[%s311] sm:$0xff]
    %vm313 = vcmask 261120
    %s314 = scalar_lea.vmem [#allocation0], 512
    %315 = vst.msk [vmem:[%s314] ss:$8 sm:$0xf] %vm313, %v312
    %s316 = scalar_lea.vmem [#allocation0], 512
    %317 = vst.msk [vmem:[%s316] ss:$8 sm:$0xf0] %vm313, %v312
    %s318 = scalar_lea.vmem [#allocation1], 72
    %v319 = vld [vmem:[%s318] sm:$0xff]
    %vm320 = vcmask 261120
    %s321 = scalar_lea.vmem [#allocation0], 576
    %322 = vst.msk [vmem:[%s321] ss:$8 sm:$0xf] %vm320, %v319
    %s323 = scalar_lea.vmem [#allocation0], 576
    %324 = vst.msk [vmem:[%s323] ss:$8 sm:$0xf0] %vm320, %v319
    %s325 = scalar_lea.vmem [#allocation1], 80
    %v326 = vld [vmem:[%s325] sm:$0xff]
    %vm327 = vcmask 261120
    %s328 = scalar_lea.vmem [#allocation0], 640
    %329 = vst.msk [vmem:[%s328] ss:$8 sm:$0xf] %vm327, %v326
    %s330 = scalar_lea.vmem [#allocation0], 640
    %331 = vst.msk [vmem:[%s330] ss:$8 sm:$0xf0] %vm327, %v326
    %s332 = scalar_lea.vmem [#allocation1], 88
    %v333 = vld [vmem:[%s332] sm:$0xff]
    %vm334 = vcmask 261120
    %s335 = scalar_lea.vmem [#allocation0], 704
    %336 = vst.msk [vmem:[%s335] ss:$8 sm:$0xf] %vm334, %v333
    %s337 = scalar_lea.vmem [#allocation0], 704
    %338 = vst.msk [vmem:[%s337] ss:$8 sm:$0xf0] %vm334, %v333
    %s339 = scalar_lea.vmem [#allocation1], 96
    %v340 = vld [vmem:[%s339] sm:$0xff]
    %vm341 = vcmask 261120
    %s342 = scalar_lea.vmem [#allocation0], 768
    %343 = vst.msk [vmem:[%s342] ss:$8 sm:$0xf] %vm341, %v340
    %s344 = scalar_lea.vmem [#allocation0], 768
    %345 = vst.msk [vmem:[%s344] ss:$8 sm:$0xf0] %vm341, %v340
    %s346 = scalar_lea.vmem [#allocation1], 104
    %v347 = vld [vmem:[%s346] sm:$0xff]
    %vm348 = vcmask 261120
    %s349 = scalar_lea.vmem [#allocation0], 832
    %350 = vst.msk [vmem:[%s349] ss:$8 sm:$0xf] %vm348, %v347
    %s351 = scalar_lea.vmem [#allocation0], 832
    %352 = vst.msk [vmem:[%s351] ss:$8 sm:$0xf0] %vm348, %v347
    %s353 = scalar_lea.vmem [#allocation1], 112
    %v354 = vld [vmem:[%s353] sm:$0xff]
    %vm355 = vcmask 261120
    %s356 = scalar_lea.vmem [#allocation0], 896
    %357 = vst.msk [vmem:[%s356] ss:$8 sm:$0xf] %vm355, %v354
    %s358 = scalar_lea.vmem [#allocation0], 896
    %359 = vst.msk [vmem:[%s358] ss:$8 sm:$0xf0] %vm355, %v354
    %s360 = scalar_lea.vmem [#allocation1], 120
    %v361 = vld [vmem:[%s360] sm:$0xff]
    %vm362 = vcmask 261120
    %s363 = scalar_lea.vmem [#allocation0], 960
    %364 = vst.msk [vmem:[%s363] ss:$8 sm:$0xf] %vm362, %v361
    %s365 = scalar_lea.vmem [#allocation0], 960
    %366 = vst.msk [vmem:[%s365] ss:$8 sm:$0xf0] %vm362, %v361
    %v367 = vld [vmem:[#allocation1] sm:$0xff]
    %368 = vrot.lane.b32.xlu0 %v367, 96
    %v369 = vpop.permute.xlu0 %368
    %vm370 = vcmask 261120
    %s371 = scalar_lea.vmem [#allocation0], 1
    %372 = vst.msk [vmem:[%s371] ss:$8 sm:$0xf] %vm370, %v369
    %s373 = scalar_lea.vmem [#allocation0], 1
    %374 = vst.msk [vmem:[%s373] ss:$8 sm:$0xf0] %vm370, %v369
    %s375 = scalar_lea.vmem [#allocation1], 8
    %v376 = vld [vmem:[%s375] sm:$0xff]
    %377 = vrot.lane.b32.xlu0 %v376, 96
    %v378 = vpop.permute.xlu0 %377
    %vm379 = vcmask 261120
    %s380 = scalar_lea.vmem [#allocation0], 65
    %381 = vst.msk [vmem:[%s380] ss:$8 sm:$0xf] %vm379, %v378
    %s382 = scalar_lea.vmem [#allocation0], 65
    %383 = vst.msk [vmem:[%s382] ss:$8 sm:$0xf0] %vm379, %v378
    %s384 = scalar_lea.vmem [#allocation1], 16
    %v385 = vld [vmem:[%s384] sm:$0xff]
    %386 = vrot.lane.b32.xlu0 %v385, 96
    %v387 = vpop.permute.xlu0 %386
    %vm388 = vcmask 261120
    %s389 = scalar_lea.vmem [#allocation0], 129
    %390 = vst.msk [vmem:[%s389] ss:$8 sm:$0xf] %vm388, %v387
    %s391 = scalar_lea.vmem [#allocation0], 129
    %392 = vst.msk [vmem:[%s391] ss:$8 sm:$0xf0] %vm388, %v387
    %s393 = scalar_lea.vmem [#allocation1], 24
    %v394 = vld [vmem:[%s393] sm:$0xff]
    %395 = vrot.lane.b32.xlu0 %v394, 96
    %v396 = vpop.permute.xlu0 %395
    %vm397 = vcmask 261120
    %s398 = scalar_lea.vmem [#allocation0], 193
    %399 = vst.msk [vmem:[%s398] ss:$8 sm:$0xf] %vm397, %v396
    %s400 = scalar_lea.vmem [#allocation0], 193
    %401 = vst.msk [vmem:[%s400] ss:$8 sm:$0xf0] %vm397, %v396
    %s402 = scalar_lea.vmem [#allocation1], 32
    %v403 = vld [vmem:[%s402] sm:$0xff]
    %404 = vrot.lane.b32.xlu0 %v403, 96
    %v405 = vpop.permute.xlu0 %404
    %vm406 = vcmask 261120
    %s407 = scalar_lea.vmem [#allocation0], 257
    %408 = vst.msk [vmem:[%s407] ss:$8 sm:$0xf] %vm406, %v405
    %s409 = scalar_lea.vmem [#allocation0], 257
    %410 = vst.msk [vmem:[%s409] ss:$8 sm:$0xf0] %vm406, %v405
    %s411 = scalar_lea.vmem [#allocation1], 40
    %v412 = vld [vmem:[%s411] sm:$0xff]
    %413 = vrot.lane.b32.xlu0 %v412, 96
    %v414 = vpop.permute.xlu0 %413
    %vm415 = vcmask 261120
    %s416 = scalar_lea.vmem [#allocation0], 321
    %417 = vst.msk [vmem:[%s416] ss:$8 sm:$0xf] %vm415, %v414
    %s418 = scalar_lea.vmem [#allocation0], 321
    %419 = vst.msk [vmem:[%s418] ss:$8 sm:$0xf0] %vm415, %v414
    %s420 = scalar_lea.vmem [#allocation1], 48
    %v421 = vld [vmem:[%s420] sm:$0xff]
    %422 = vrot.lane.b32.xlu0 %v421, 96
    %v423 = vpop.permute.xlu0 %422
    %vm424 = vcmask 261120
    %s425 = scalar_lea.vmem [#allocation0], 385
    %426 = vst.msk [vmem:[%s425] ss:$8 sm:$0xf] %vm424, %v423
    %s427 = scalar_lea.vmem [#allocation0], 385
    %428 = vst.msk [vmem:[%s427] ss:$8 sm:$0xf0] %vm424, %v423
    %s429 = scalar_lea.vmem [#allocation1], 56
    %v430 = vld [vmem:[%s429] sm:$0xff]
    %431 = vrot.lane.b32.xlu0 %v430, 96
    %v432 = vpop.permute.xlu0 %431
    %vm433 = vcmask 261120
    %s434 = scalar_lea.vmem [#allocation0], 449
    %435 = vst.msk [vmem:[%s434] ss:$8 sm:$0xf] %vm433, %v432
    %s436 = scalar_lea.vmem [#allocation0], 449
    %437 = vst.msk [vmem:[%s436] ss:$8 sm:$0xf0] %vm433, %v432
    %s438 = scalar_lea.vmem [#allocation1], 64
    %v439 = vld [vmem:[%s438] sm:$0xff]
    %440 = vrot.lane.b32.xlu0 %v439, 96
    %v441 = vpop.permute.xlu0 %440
    %vm442 = vcmask 261120
    %s443 = scalar_lea.vmem [#allocation0], 513
    %444 = vst.msk [vmem:[%s443] ss:$8 sm:$0xf] %vm442, %v441
    %s445 = scalar_lea.vmem [#allocation0], 513
    %446 = vst.msk [vmem:[%s445] ss:$8 sm:$0xf0] %vm442, %v441
    %s447 = scalar_lea.vmem [#allocation1], 72
    %v448 = vld [vmem:[%s447] sm:$0xff]
    %449 = vrot.lane.b32.xlu0 %v448, 96
    %v450 = vpop.permute.xlu0 %449
    %vm451 = vcmask 261120
    %s452 = scalar_lea.vmem [#allocation0], 577
    %453 = vst.msk [vmem:[%s452] ss:$8 sm:$0xf] %vm451, %v450
    %s454 = scalar_lea.vmem [#allocation0], 577
    %455 = vst.msk [vmem:[%s454] ss:$8 sm:$0xf0] %vm451, %v450
    %s456 = scalar_lea.vmem [#allocation1], 80
    %v457 = vld [vmem:[%s456] sm:$0xff]
    %458 = vrot.lane.b32.xlu0 %v457, 96
    %v459 = vpop.permute.xlu0 %458
    %vm460 = vcmask 261120
    %s461 = scalar_lea.vmem [#allocation0], 641
    %462 = vst.msk [vmem:[%s461] ss:$8 sm:$0xf] %vm460, %v459
    %s463 = scalar_lea.vmem [#allocation0], 641
    %464 = vst.msk [vmem:[%s463] ss:$8 sm:$0xf0] %vm460, %v459
    %s465 = scalar_lea.vmem [#allocation1], 88
    %v466 = vld [vmem:[%s465] sm:$0xff]
    %467 = vrot.lane.b32.xlu0 %v466, 96
    %v468 = vpop.permute.xlu0 %467
    %vm469 = vcmask 261120
    %s470 = scalar_lea.vmem [#allocation0], 705
    %471 = vst.msk [vmem:[%s470] ss:$8 sm:$0xf] %vm469, %v468
    %s472 = scalar_lea.vmem [#allocation0], 705
    %473 = vst.msk [vmem:[%s472] ss:$8 sm:$0xf0] %vm469, %v468
    %s474 = scalar_lea.vmem [#allocation1], 96
    %v475 = vld [vmem:[%s474] sm:$0xff]
    %476 = vrot.lane.b32.xlu0 %v475, 96
    %v477 = vpop.permute.xlu0 %476
    %vm478 = vcmask 261120
    %s479 = scalar_lea.vmem [#allocation0], 769
    %480 = vst.msk [vmem:[%s479] ss:$8 sm:$0xf] %vm478, %v477
    %s481 = scalar_lea.vmem [#allocation0], 769
    %482 = vst.msk [vmem:[%s481] ss:$8 sm:$0xf0] %vm478, %v477
    %s483 = scalar_lea.vmem [#allocation1], 104
    %v484 = vld [vmem:[%s483] sm:$0xff]
    %485 = vrot.lane.b32.xlu0 %v484, 96
    %v486 = vpop.permute.xlu0 %485
    %vm487 = vcmask 261120
    %s488 = scalar_lea.vmem [#allocation0], 833
    %489 = vst.msk [vmem:[%s488] ss:$8 sm:$0xf] %vm487, %v486
    %s490 = scalar_lea.vmem [#allocation0], 833
    %491 = vst.msk [vmem:[%s490] ss:$8 sm:$0xf0] %vm487, %v486
    %s492 = scalar_lea.vmem [#allocation1], 112
    %v493 = vld [vmem:[%s492] sm:$0xff]
    %494 = vrot.lane.b32.xlu0 %v493, 96
    %v495 = vpop.permute.xlu0 %494
    %vm496 = vcmask 261120
    %s497 = scalar_lea.vmem [#allocation0], 897
    %498 = vst.msk [vmem:[%s497] ss:$8 sm:$0xf] %vm496, %v495
    %s499 = scalar_lea.vmem [#allocation0], 897
    %500 = vst.msk [vmem:[%s499] ss:$8 sm:$0xf0] %vm496, %v495
    %s501 = scalar_lea.vmem [#allocation1], 120
    %v502 = vld [vmem:[%s501] sm:$0xff]
    %503 = vrot.lane.b32.xlu0 %v502, 96
    %v504 = vpop.permute.xlu0 %503
    %vm505 = vcmask 261120
    %s506 = scalar_lea.vmem [#allocation0], 961
    %507 = vst.msk [vmem:[%s506] ss:$8 sm:$0xf] %vm505, %v504
    %s508 = scalar_lea.vmem [#allocation0], 961
    %509 = vst.msk [vmem:[%s508] ss:$8 sm:$0xf0] %vm505, %v504
    %v510 = vld [vmem:[#allocation1] sm:$0xff]
    %511 = vrot.lane.b32.xlu0 %v510, 64
    %v512 = vpop.permute.xlu0 %511
    %vm513 = vcmask 261120
    %s514 = scalar_lea.vmem [#allocation0], 2
    %515 = vst.msk [vmem:[%s514] ss:$8 sm:$0xf] %vm513, %v512
    %s516 = scalar_lea.vmem [#allocation0], 2
    %517 = vst.msk [vmem:[%s516] ss:$8 sm:$0xf0] %vm513, %v512
    %s518 = scalar_lea.vmem [#allocation1], 8
    %v519 = vld [vmem:[%s518] sm:$0xff]
    %520 = vrot.lane.b32.xlu0 %v519, 64
    %v521 = vpop.permute.xlu0 %520
    %vm522 = vcmask 261120
    %s523 = scalar_lea.vmem [#allocation0], 66
    %524 = vst.msk [vmem:[%s523] ss:$8 sm:$0xf] %vm522, %v521
    %s525 = scalar_lea.vmem [#allocation0], 66
    %526 = vst.msk [vmem:[%s525] ss:$8 sm:$0xf0] %vm522, %v521
    %s527 = scalar_lea.vmem [#allocation1], 16
    %v528 = vld [vmem:[%s527] sm:$0xff]
    %529 = vrot.lane.b32.xlu0 %v528, 64
    %v530 = vpop.permute.xlu0 %529
    %vm531 = vcmask 261120
    %s532 = scalar_lea.vmem [#allocation0], 130
    %533 = vst.msk [vmem:[%s532] ss:$8 sm:$0xf] %vm531, %v530
    %s534 = scalar_lea.vmem [#allocation0], 130
    %535 = vst.msk [vmem:[%s534] ss:$8 sm:$0xf0] %vm531, %v530
    %s536 = scalar_lea.vmem [#allocation1], 24
    %v537 = vld [vmem:[%s536] sm:$0xff]
    %538 = vrot.lane.b32.xlu0 %v537, 64
    %v539 = vpop.permute.xlu0 %538
    %vm540 = vcmask 261120
    %s541 = scalar_lea.vmem [#allocation0], 194
    %542 = vst.msk [vmem:[%s541] ss:$8 sm:$0xf] %vm540, %v539
    %s543 = scalar_lea.vmem [#allocation0], 194
    %544 = vst.msk [vmem:[%s543] ss:$8 sm:$0xf0] %vm540, %v539
    %s545 = scalar_lea.vmem [#allocation1], 32
    %v546 = vld [vmem:[%s545] sm:$0xff]
    %547 = vrot.lane.b32.xlu0 %v546, 64
    %v548 = vpop.permute.xlu0 %547
    %vm549 = vcmask 261120
    %s550 = scalar_lea.vmem [#allocation0], 258
    %551 = vst.msk [vmem:[%s550] ss:$8 sm:$0xf] %vm549, %v548
    %s552 = scalar_lea.vmem [#allocation0], 258
    %553 = vst.msk [vmem:[%s552] ss:$8 sm:$0xf0] %vm549, %v548
    %s554 = scalar_lea.vmem [#allocation1], 40
    %v555 = vld [vmem:[%s554] sm:$0xff]
    %556 = vrot.lane.b32.xlu0 %v555, 64
    %v557 = vpop.permute.xlu0 %556
    %vm558 = vcmask 261120
    %s559 = scalar_lea.vmem [#allocation0], 322
    %560 = vst.msk [vmem:[%s559] ss:$8 sm:$0xf] %vm558, %v557
    %s561 = scalar_lea.vmem [#allocation0], 322
    %562 = vst.msk [vmem:[%s561] ss:$8 sm:$0xf0] %vm558, %v557
    %s563 = scalar_lea.vmem [#allocation1], 48
    %v564 = vld [vmem:[%s563] sm:$0xff]
    %565 = vrot.lane.b32.xlu0 %v564, 64
    %v566 = vpop.permute.xlu0 %565
    %vm567 = vcmask 261120
    %s568 = scalar_lea.vmem [#allocation0], 386
    %569 = vst.msk [vmem:[%s568] ss:$8 sm:$0xf] %vm567, %v566
    %s570 = scalar_lea.vmem [#allocation0], 386
    %571 = vst.msk [vmem:[%s570] ss:$8 sm:$0xf0] %vm567, %v566
    %s572 = scalar_lea.vmem [#allocation1], 56
    %v573 = vld [vmem:[%s572] sm:$0xff]
    %574 = vrot.lane.b32.xlu0 %v573, 64
    %v575 = vpop.permute.xlu0 %574
    %vm576 = vcmask 261120
    %s577 = scalar_lea.vmem [#allocation0], 450
    %578 = vst.msk [vmem:[%s577] ss:$8 sm:$0xf] %vm576, %v575
    %s579 = scalar_lea.vmem [#allocation0], 450
    %580 = vst.msk [vmem:[%s579] ss:$8 sm:$0xf0] %vm576, %v575
    %s581 = scalar_lea.vmem [#allocation1], 64
    %v582 = vld [vmem:[%s581] sm:$0xff]
    %583 = vrot.lane.b32.xlu0 %v582, 64
    %v584 = vpop.permute.xlu0 %583
    %vm585 = vcmask 261120
    %s586 = scalar_lea.vmem [#allocation0], 514
    %587 = vst.msk [vmem:[%s586] ss:$8 sm:$0xf] %vm585, %v584
    %s588 = scalar_lea.vmem [#allocation0], 514
    %589 = vst.msk [vmem:[%s588] ss:$8 sm:$0xf0] %vm585, %v584
    %s590 = scalar_lea.vmem [#allocation1], 72
    %v591 = vld [vmem:[%s590] sm:$0xff]
    %592 = vrot.lane.b32.xlu0 %v591, 64
    %v593 = vpop.permute.xlu0 %592
    %vm594 = vcmask 261120
    %s595 = scalar_lea.vmem [#allocation0], 578
    %596 = vst.msk [vmem:[%s595] ss:$8 sm:$0xf] %vm594, %v593
    %s597 = scalar_lea.vmem [#allocation0], 578
    %598 = vst.msk [vmem:[%s597] ss:$8 sm:$0xf0] %vm594, %v593
    %s599 = scalar_lea.vmem [#allocation1], 80
    %v600 = vld [vmem:[%s599] sm:$0xff]
    %601 = vrot.lane.b32.xlu0 %v600, 64
    %v602 = vpop.permute.xlu0 %601
    %vm603 = vcmask 261120
    %s604 = scalar_lea.vmem [#allocation0], 642
    %605 = vst.msk [vmem:[%s604] ss:$8 sm:$0xf] %vm603, %v602
    %s606 = scalar_lea.vmem [#allocation0], 642
    %607 = vst.msk [vmem:[%s606] ss:$8 sm:$0xf0] %vm603, %v602
    %s608 = scalar_lea.vmem [#allocation1], 88
    %v609 = vld [vmem:[%s608] sm:$0xff]
    %610 = vrot.lane.b32.xlu0 %v609, 64
    %v611 = vpop.permute.xlu0 %610
    %vm612 = vcmask 261120
    %s613 = scalar_lea.vmem [#allocation0], 706
    %614 = vst.msk [vmem:[%s613] ss:$8 sm:$0xf] %vm612, %v611
    %s615 = scalar_lea.vmem [#allocation0], 706
    %616 = vst.msk [vmem:[%s615] ss:$8 sm:$0xf0] %vm612, %v611
    %s617 = scalar_lea.vmem [#allocation1], 96
    %v618 = vld [vmem:[%s617] sm:$0xff]
    %619 = vrot.lane.b32.xlu0 %v618, 64
    %v620 = vpop.permute.xlu0 %619
    %vm621 = vcmask 261120
    %s622 = scalar_lea.vmem [#allocation0], 770
    %623 = vst.msk [vmem:[%s622] ss:$8 sm:$0xf] %vm621, %v620
    %s624 = scalar_lea.vmem [#allocation0], 770
    %625 = vst.msk [vmem:[%s624] ss:$8 sm:$0xf0] %vm621, %v620
    %s626 = scalar_lea.vmem [#allocation1], 104
    %v627 = vld [vmem:[%s626] sm:$0xff]
    %628 = vrot.lane.b32.xlu0 %v627, 64
    %v629 = vpop.permute.xlu0 %628
    %vm630 = vcmask 261120
    %s631 = scalar_lea.vmem [#allocation0], 834
    %632 = vst.msk [vmem:[%s631] ss:$8 sm:$0xf] %vm630, %v629
    %s633 = scalar_lea.vmem [#allocation0], 834
    %634 = vst.msk [vmem:[%s633] ss:$8 sm:$0xf0] %vm630, %v629
    %s635 = scalar_lea.vmem [#allocation1], 112
    %v636 = vld [vmem:[%s635] sm:$0xff]
    %637 = vrot.lane.b32.xlu0 %v636, 64
    %v638 = vpop.permute.xlu0 %637
    %vm639 = vcmask 261120
    %s640 = scalar_lea.vmem [#allocation0], 898
    %641 = vst.msk [vmem:[%s640] ss:$8 sm:$0xf] %vm639, %v638
    %s642 = scalar_lea.vmem [#allocation0], 898
    %643 = vst.msk [vmem:[%s642] ss:$8 sm:$0xf0] %vm639, %v638
    %s644 = scalar_lea.vmem [#allocation1], 120
    %v645 = vld [vmem:[%s644] sm:$0xff]
    %646 = vrot.lane.b32.xlu0 %v645, 64
    %v647 = vpop.permute.xlu0 %646
    %vm648 = vcmask 261120
    %s649 = scalar_lea.vmem [#allocation0], 962
    %650 = vst.msk [vmem:[%s649] ss:$8 sm:$0xf] %vm648, %v647
    %s651 = scalar_lea.vmem [#allocation0], 962
    %652 = vst.msk [vmem:[%s651] ss:$8 sm:$0xf0] %vm648, %v647
    %s654 = smul.u32 2, 2
    %s655 = sshll.u32 1, %s654
    %s656 = ssub.s32 %s655, 1
    %s657 = sshrl.u32 %s654, 1
    %v658 = vld [vmem:[#allocation0] sm:%s656]
    %v659 = vpack.c.bf16 0.0, %v658
    %s660 = sshll.u32 1, %s657
    %s661 = ssub.s32 %s660, 1
    %662 = vst [vmem:[%s1] sm:%s661] %v659
    %s663 = scalar_lea.vmem [#allocation0], 8
    %v664 = vld [vmem:[%s663] sm:%s656]
    %v665 = vpack.c.bf16 0.0, %v664
    %s666 = sshll.u32 1, %s657
    %s667 = ssub.s32 %s666, 1
    %s668 = scalar_lea.vmem %s1, 2
    %669 = vst [vmem:[%s668] sm:%s667] %v665
    %s670 = scalar_lea.vmem [#allocation0], 16
    %v671 = vld [vmem:[%s670] sm:%s656]
    %v672 = vpack.c.bf16 0.0, %v671
    %s673 = sshll.u32 1, %s657
    %s674 = ssub.s32 %s673, 1
    %s675 = smul.addr 2, 2
    %s676 = scalar_lea.vmem %s1, %s675
    %677 = vst [vmem:[%s676] sm:%s674] %v672
    %s678 = scalar_lea.vmem [#allocation0], 24
    %v679 = vld [vmem:[%s678] sm:%s656]
    %v680 = vpack.c.bf16 0.0, %v679
    %s681 = sshll.u32 1, %s657
    %s682 = ssub.s32 %s681, 1
    %s683 = smul.addr 2, 3
    %s684 = scalar_lea.vmem %s1, %s683
    %685 = vst [vmem:[%s684] sm:%s682] %v680
    %s686 = scalar_lea.vmem [#allocation0], 32
    %v687 = vld [vmem:[%s686] sm:%s656]
    %v688 = vpack.c.bf16 0.0, %v687
    %s689 = sshll.u32 1, %s657
    %s690 = ssub.s32 %s689, 1
    %s691 = smul.addr 2, 4
    %s692 = scalar_lea.vmem %s1, %s691
    %693 = vst [vmem:[%s692] sm:%s690] %v688
    %s694 = scalar_lea.vmem [#allocation0], 40
    %v695 = vld [vmem:[%s694] sm:%s656]
    %v696 = vpack.c.bf16 0.0, %v695
    %s697 = sshll.u32 1, %s657
    %s698 = ssub.s32 %s697, 1
    %s699 = smul.addr 2, 5
    %s700 = scalar_lea.vmem %s1, %s699
    %701 = vst [vmem:[%s700] sm:%s698] %v696
    %s702 = scalar_lea.vmem [#allocation0], 48
    %v703 = vld [vmem:[%s702] sm:%s656]
    %v704 = vpack.c.bf16 0.0, %v703
    %s705 = sshll.u32 1, %s657
    %s706 = ssub.s32 %s705, 1
    %s707 = smul.addr 2, 6
    %s708 = scalar_lea.vmem %s1, %s707
    %709 = vst [vmem:[%s708] sm:%s706] %v704
    %s710 = scalar_lea.vmem [#allocation0], 56
    %v711 = vld [vmem:[%s710] sm:%s656]
    %v712 = vpack.c.bf16 0.0, %v711
    %s713 = sshll.u32 1, %s657
    %s714 = ssub.s32 %s713, 1
    %s715 = smul.addr 2, 7
    %s716 = scalar_lea.vmem %s1, %s715
    %717 = vst [vmem:[%s716] sm:%s714] %v712
    %s718 = scalar_lea.vmem [#allocation0], 64
    %v719 = vld [vmem:[%s718] sm:%s656]
    %v720 = vpack.c.bf16 0.0, %v719
    %s721 = sshll.u32 1, %s657
    %s722 = ssub.s32 %s721, 1
    %s723 = smul.addr 2, 8
    %s724 = scalar_lea.vmem %s1, %s723
    %725 = vst [vmem:[%s724] sm:%s722] %v720
    %s726 = scalar_lea.vmem [#allocation0], 72
    %v727 = vld [vmem:[%s726] sm:%s656]
    %v728 = vpack.c.bf16 0.0, %v727
    %s729 = sshll.u32 1, %s657
    %s730 = ssub.s32 %s729, 1
    %s731 = smul.addr 2, 9
    %s732 = scalar_lea.vmem %s1, %s731
    %733 = vst [vmem:[%s732] sm:%s730] %v728
    %s734 = scalar_lea.vmem [#allocation0], 80
    %v735 = vld [vmem:[%s734] sm:%s656]
    %v736 = vpack.c.bf16 0.0, %v735
    %s737 = sshll.u32 1, %s657
    %s738 = ssub.s32 %s737, 1
    %s739 = smul.addr 2, 10
    %s740 = scalar_lea.vmem %s1, %s739
    %741 = vst [vmem:[%s740] sm:%s738] %v736
    %s742 = scalar_lea.vmem [#allocation0], 88
    %v743 = vld [vmem:[%s742] sm:%s656]
    %v744 = vpack.c.bf16 0.0, %v743
    %s745 = sshll.u32 1, %s657
    %s746 = ssub.s32 %s745, 1
    %s747 = smul.addr 2, 11
    %s748 = scalar_lea.vmem %s1, %s747
    %749 = vst [vmem:[%s748] sm:%s746] %v744
    %s750 = scalar_lea.vmem [#allocation0], 96
    %v751 = vld [vmem:[%s750] sm:%s656]
    %v752 = vpack.c.bf16 0.0, %v751
    %s753 = sshll.u32 1, %s657
    %s754 = ssub.s32 %s753, 1
    %s755 = smul.addr 2, 12
    %s756 = scalar_lea.vmem %s1, %s755
    %757 = vst [vmem:[%s756] sm:%s754] %v752
    %s758 = scalar_lea.vmem [#allocation0], 104
    %v759 = vld [vmem:[%s758] sm:%s656]
    %v760 = vpack.c.bf16 0.0, %v759
    %s761 = sshll.u32 1, %s657
    %s762 = ssub.s32 %s761, 1
    %s763 = smul.addr 2, 13
    %s764 = scalar_lea.vmem %s1, %s763
    %765 = vst [vmem:[%s764] sm:%s762] %v760
    %s766 = scalar_lea.vmem [#allocation0], 112
    %v767 = vld [vmem:[%s766] sm:%s656]
    %v768 = vpack.c.bf16 0.0, %v767
    %s769 = sshll.u32 1, %s657
    %s770 = ssub.s32 %s769, 1
    %s771 = smul.addr 2, 14
    %s772 = scalar_lea.vmem %s1, %s771
    %773 = vst [vmem:[%s772] sm:%s770] %v768
    %s774 = scalar_lea.vmem [#allocation0], 120
    %v775 = vld [vmem:[%s774] sm:%s656]
    %v776 = vpack.c.bf16 0.0, %v775
    %s777 = sshll.u32 1, %s657
    %s778 = ssub.s32 %s777, 1
    %s779 = smul.addr 2, 15
    %s780 = scalar_lea.vmem %s1, %s779
    %781 = vst [vmem:[%s780] sm:%s778] %v776
    %s782 = scalar_lea.vmem [#allocation0], 128
    %v783 = vld [vmem:[%s782] sm:%s656]
    %v784 = vpack.c.bf16 0.0, %v783
    %s785 = sshll.u32 1, %s657
    %s786 = ssub.s32 %s785, 1
    %s787 = smul.addr 2, 16
    %s788 = scalar_lea.vmem %s1, %s787
    %789 = vst [vmem:[%s788] sm:%s786] %v784
    %s790 = scalar_lea.vmem [#allocation0], 136
    %v791 = vld [vmem:[%s790] sm:%s656]
    %v792 = vpack.c.bf16 0.0, %v791
    %s793 = sshll.u32 1, %s657
    %s794 = ssub.s32 %s793, 1
    %s795 = smul.addr 2, 17
    %s796 = scalar_lea.vmem %s1, %s795
    %797 = vst [vmem:[%s796] sm:%s794] %v792
    %s798 = scalar_lea.vmem [#allocation0], 144
    %v799 = vld [vmem:[%s798] sm:%s656]
    %v800 = vpack.c.bf16 0.0, %v799
    %s801 = sshll.u32 1, %s657
    %s802 = ssub.s32 %s801, 1
    %s803 = smul.addr 2, 18
    %s804 = scalar_lea.vmem %s1, %s803
    %805 = vst [vmem:[%s804] sm:%s802] %v800
    %s806 = scalar_lea.vmem [#allocation0], 152
    %v807 = vld [vmem:[%s806] sm:%s656]
    %v808 = vpack.c.bf16 0.0, %v807
    %s809 = sshll.u32 1, %s657
    %s810 = ssub.s32 %s809, 1
    %s811 = smul.addr 2, 19
    %s812 = scalar_lea.vmem %s1, %s811
    %813 = vst [vmem:[%s812] sm:%s810] %v808
    %s814 = scalar_lea.vmem [#allocation0], 160
    %v815 = vld [vmem:[%s814] sm:%s656]
    %v816 = vpack.c.bf16 0.0, %v815
    %s817 = sshll.u32 1, %s657
    %s818 = ssub.s32 %s817, 1
    %s819 = smul.addr 2, 20
    %s820 = scalar_lea.vmem %s1, %s819
    %821 = vst [vmem:[%s820] sm:%s818] %v816
    %s822 = scalar_lea.vmem [#allocation0], 168
    %v823 = vld [vmem:[%s822] sm:%s656]
    %v824 = vpack.c.bf16 0.0, %v823
    %s825 = sshll.u32 1, %s657
    %s826 = ssub.s32 %s825, 1
    %s827 = smul.addr 2, 21
    %s828 = scalar_lea.vmem %s1, %s827
    %829 = vst [vmem:[%s828] sm:%s826] %v824
    %s830 = scalar_lea.vmem [#allocation0], 176
    %v831 = vld [vmem:[%s830] sm:%s656]
    %v832 = vpack.c.bf16 0.0, %v831
    %s833 = sshll.u32 1, %s657
    %s834 = ssub.s32 %s833, 1
    %s835 = smul.addr 2, 22
    %s836 = scalar_lea.vmem %s1, %s835
    %837 = vst [vmem:[%s836] sm:%s834] %v832
    %s838 = scalar_lea.vmem [#allocation0], 184
    %v839 = vld [vmem:[%s838] sm:%s656]
    %v840 = vpack.c.bf16 0.0, %v839
    %s841 = sshll.u32 1, %s657
    %s842 = ssub.s32 %s841, 1
    %s843 = smul.addr 2, 23
    %s844 = scalar_lea.vmem %s1, %s843
    %845 = vst [vmem:[%s844] sm:%s842] %v840
    %s846 = scalar_lea.vmem [#allocation0], 192
    %v847 = vld [vmem:[%s846] sm:%s656]
    %v848 = vpack.c.bf16 0.0, %v847
    %s849 = sshll.u32 1, %s657
    %s850 = ssub.s32 %s849, 1
    %s851 = smul.addr 2, 24
    %s852 = scalar_lea.vmem %s1, %s851
    %853 = vst [vmem:[%s852] sm:%s850] %v848
    %s854 = scalar_lea.vmem [#allocation0], 200
    %v855 = vld [vmem:[%s854] sm:%s656]
    %v856 = vpack.c.bf16 0.0, %v855
    %s857 = sshll.u32 1, %s657
    %s858 = ssub.s32 %s857, 1
    %s859 = smul.addr 2, 25
    %s860 = scalar_lea.vmem %s1, %s859
    %861 = vst [vmem:[%s860] sm:%s858] %v856
    %s862 = scalar_lea.vmem [#allocation0], 208
    %v863 = vld [vmem:[%s862] sm:%s656]
    %v864 = vpack.c.bf16 0.0, %v863
    %s865 = sshll.u32 1, %s657
    %s866 = ssub.s32 %s865, 1
    %s867 = smul.addr 2, 26
    %s868 = scalar_lea.vmem %s1, %s867
    %869 = vst [vmem:[%s868] sm:%s866] %v864
    %s870 = scalar_lea.vmem [#allocation0], 216
    %v871 = vld [vmem:[%s870] sm:%s656]
    %v872 = vpack.c.bf16 0.0, %v871
    %s873 = sshll.u32 1, %s657
    %s874 = ssub.s32 %s873, 1
    %s875 = smul.addr 2, 27
    %s876 = scalar_lea.vmem %s1, %s875
    %877 = vst [vmem:[%s876] sm:%s874] %v872
    %s878 = scalar_lea.vmem [#allocation0], 224
    %v879 = vld [vmem:[%s878] sm:%s656]
    %v880 = vpack.c.bf16 0.0, %v879
    %s881 = sshll.u32 1, %s657
    %s882 = ssub.s32 %s881, 1
    %s883 = smul.addr 2, 28
    %s884 = scalar_lea.vmem %s1, %s883
    %885 = vst [vmem:[%s884] sm:%s882] %v880
    %s886 = scalar_lea.vmem [#allocation0], 232
    %v887 = vld [vmem:[%s886] sm:%s656]
    %v888 = vpack.c.bf16 0.0, %v887
    %s889 = sshll.u32 1, %s657
    %s890 = ssub.s32 %s889, 1
    %s891 = smul.addr 2, 29
    %s892 = scalar_lea.vmem %s1, %s891
    %893 = vst [vmem:[%s892] sm:%s890] %v888
    %s894 = scalar_lea.vmem [#allocation0], 240
    %v895 = vld [vmem:[%s894] sm:%s656]
    %v896 = vpack.c.bf16 0.0, %v895
    %s897 = sshll.u32 1, %s657
    %s898 = ssub.s32 %s897, 1
    %s899 = smul.addr 2, 30
    %s900 = scalar_lea.vmem %s1, %s899
    %901 = vst [vmem:[%s900] sm:%s898] %v896
    %s902 = scalar_lea.vmem [#allocation0], 248
    %v903 = vld [vmem:[%s902] sm:%s656]
    %v904 = vpack.c.bf16 0.0, %v903
    %s905 = sshll.u32 1, %s657
    %s906 = ssub.s32 %s905, 1
    %s907 = smul.addr 2, 31
    %s908 = scalar_lea.vmem %s1, %s907
    %909 = vst [vmem:[%s908] sm:%s906] %v904
    %s910 = scalar_lea.vmem [#allocation0], 256
    %v911 = vld [vmem:[%s910] sm:%s656]
    %v912 = vpack.c.bf16 0.0, %v911
    %s913 = sshll.u32 1, %s657
    %s914 = ssub.s32 %s913, 1
    %s915 = smul.addr 2, 32
    %s916 = scalar_lea.vmem %s1, %s915
    %917 = vst [vmem:[%s916] sm:%s914] %v912
    %s918 = scalar_lea.vmem [#allocation0], 264
    %v919 = vld [vmem:[%s918] sm:%s656]
    %v920 = vpack.c.bf16 0.0, %v919
    %s921 = sshll.u32 1, %s657
    %s922 = ssub.s32 %s921, 1
    %s923 = smul.addr 2, 33
    %s924 = scalar_lea.vmem %s1, %s923
    %925 = vst [vmem:[%s924] sm:%s922] %v920
    %s926 = scalar_lea.vmem [#allocation0], 272
    %v927 = vld [vmem:[%s926] sm:%s656]
    %v928 = vpack.c.bf16 0.0, %v927
    %s929 = sshll.u32 1, %s657
    %s930 = ssub.s32 %s929, 1
    %s931 = smul.addr 2, 34
    %s932 = scalar_lea.vmem %s1, %s931
    %933 = vst [vmem:[%s932] sm:%s930] %v928
    %s934 = scalar_lea.vmem [#allocation0], 280
    %v935 = vld [vmem:[%s934] sm:%s656]
    %v936 = vpack.c.bf16 0.0, %v935
    %s937 = sshll.u32 1, %s657
    %s938 = ssub.s32 %s937, 1
    %s939 = smul.addr 2, 35
    %s940 = scalar_lea.vmem %s1, %s939
    %941 = vst [vmem:[%s940] sm:%s938] %v936
    %s942 = scalar_lea.vmem [#allocation0], 288
    %v943 = vld [vmem:[%s942] sm:%s656]
    %v944 = vpack.c.bf16 0.0, %v943
    %s945 = sshll.u32 1, %s657
    %s946 = ssub.s32 %s945, 1
    %s947 = smul.addr 2, 36
    %s948 = scalar_lea.vmem %s1, %s947
    %949 = vst [vmem:[%s948] sm:%s946] %v944
    %s950 = scalar_lea.vmem [#allocation0], 296
    %v951 = vld [vmem:[%s950] sm:%s656]
    %v952 = vpack.c.bf16 0.0, %v951
    %s953 = sshll.u32 1, %s657
    %s954 = ssub.s32 %s953, 1
    %s955 = smul.addr 2, 37
    %s956 = scalar_lea.vmem %s1, %s955
    %957 = vst [vmem:[%s956] sm:%s954] %v952
    %s958 = scalar_lea.vmem [#allocation0], 304
    %v959 = vld [vmem:[%s958] sm:%s656]
    %v960 = vpack.c.bf16 0.0, %v959
    %s961 = sshll.u32 1, %s657
    %s962 = ssub.s32 %s961, 1
    %s963 = smul.addr 2, 38
    %s964 = scalar_lea.vmem %s1, %s963
    %965 = vst [vmem:[%s964] sm:%s962] %v960
    %s966 = scalar_lea.vmem [#allocation0], 312
    %v967 = vld [vmem:[%s966] sm:%s656]
    %v968 = vpack.c.bf16 0.0, %v967
    %s969 = sshll.u32 1, %s657
    %s970 = ssub.s32 %s969, 1
    %s971 = smul.addr 2, 39
    %s972 = scalar_lea.vmem %s1, %s971
    %973 = vst [vmem:[%s972] sm:%s970] %v968
    %s974 = scalar_lea.vmem [#allocation0], 320
    %v975 = vld [vmem:[%s974] sm:%s656]
    %v976 = vpack.c.bf16 0.0, %v975
    %s977 = sshll.u32 1, %s657
    %s978 = ssub.s32 %s977, 1
    %s979 = smul.addr 2, 40
    %s980 = scalar_lea.vmem %s1, %s979
    %981 = vst [vmem:[%s980] sm:%s978] %v976
    %s982 = scalar_lea.vmem [#allocation0], 328
    %v983 = vld [vmem:[%s982] sm:%s656]
    %v984 = vpack.c.bf16 0.0, %v983
    %s985 = sshll.u32 1, %s657
    %s986 = ssub.s32 %s985, 1
    %s987 = smul.addr 2, 41
    %s988 = scalar_lea.vmem %s1, %s987
    %989 = vst [vmem:[%s988] sm:%s986] %v984
    %s990 = scalar_lea.vmem [#allocation0], 336
    %v991 = vld [vmem:[%s990] sm:%s656]
    %v992 = vpack.c.bf16 0.0, %v991
    %s993 = sshll.u32 1, %s657
    %s994 = ssub.s32 %s993, 1
    %s995 = smul.addr 2, 42
    %s996 = scalar_lea.vmem %s1, %s995
    %997 = vst [vmem:[%s996] sm:%s994] %v992
    %s998 = scalar_lea.vmem [#allocation0], 344
    %v999 = vld [vmem:[%s998] sm:%s656]
    %v1000 = vpack.c.bf16 0.0, %v999
    %s1001 = sshll.u32 1, %s657
    %s1002 = ssub.s32 %s1001, 1
    %s1003 = smul.addr 2, 43
    %s1004 = scalar_lea.vmem %s1, %s1003
    %1005 = vst [vmem:[%s1004] sm:%s1002] %v1000
    %s1006 = scalar_lea.vmem [#allocation0], 352
    %v1007 = vld [vmem:[%s1006] sm:%s656]
    %v1008 = vpack.c.bf16 0.0, %v1007
    %s1009 = sshll.u32 1, %s657
    %s1010 = ssub.s32 %s1009, 1
    %s1011 = smul.addr 2, 44
    %s1012 = scalar_lea.vmem %s1, %s1011
    %1013 = vst [vmem:[%s1012] sm:%s1010] %v1008
    %s1014 = scalar_lea.vmem [#allocation0], 360
    %v1015 = vld [vmem:[%s1014] sm:%s656]
    %v1016 = vpack.c.bf16 0.0, %v1015
    %s1017 = sshll.u32 1, %s657
    %s1018 = ssub.s32 %s1017, 1
    %s1019 = smul.addr 2, 45
    %s1020 = scalar_lea.vmem %s1, %s1019
    %1021 = vst [vmem:[%s1020] sm:%s1018] %v1016
    %s1022 = scalar_lea.vmem [#allocation0], 368
    %v1023 = vld [vmem:[%s1022] sm:%s656]
    %v1024 = vpack.c.bf16 0.0, %v1023
    %s1025 = sshll.u32 1, %s657
    %s1026 = ssub.s32 %s1025, 1
    %s1027 = smul.addr 2, 46
    %s1028 = scalar_lea.vmem %s1, %s1027
    %1029 = vst [vmem:[%s1028] sm:%s1026] %v1024
    %s1030 = scalar_lea.vmem [#allocation0], 376
    %v1031 = vld [vmem:[%s1030] sm:%s656]
    %v1032 = vpack.c.bf16 0.0, %v1031
    %s1033 = sshll.u32 1, %s657
    %s1034 = ssub.s32 %s1033, 1
    %s1035 = smul.addr 2, 47
    %s1036 = scalar_lea.vmem %s1, %s1035
    %1037 = vst [vmem:[%s1036] sm:%s1034] %v1032
    %s1038 = scalar_lea.vmem [#allocation0], 384
    %v1039 = vld [vmem:[%s1038] sm:%s656]
    %v1040 = vpack.c.bf16 0.0, %v1039
    %s1041 = sshll.u32 1, %s657
    %s1042 = ssub.s32 %s1041, 1
    %s1043 = smul.addr 2, 48
    %s1044 = scalar_lea.vmem %s1, %s1043
    %1045 = vst [vmem:[%s1044] sm:%s1042] %v1040
    %s1046 = scalar_lea.vmem [#allocation0], 392
    %v1047 = vld [vmem:[%s1046] sm:%s656]
    %v1048 = vpack.c.bf16 0.0, %v1047
    %s1049 = sshll.u32 1, %s657
    %s1050 = ssub.s32 %s1049, 1
    %s1051 = smul.addr 2, 49
    %s1052 = scalar_lea.vmem %s1, %s1051
    %1053 = vst [vmem:[%s1052] sm:%s1050] %v1048
    %s1054 = scalar_lea.vmem [#allocation0], 400
    %v1055 = vld [vmem:[%s1054] sm:%s656]
    %v1056 = vpack.c.bf16 0.0, %v1055
    %s1057 = sshll.u32 1, %s657
    %s1058 = ssub.s32 %s1057, 1
    %s1059 = smul.addr 2, 50
    %s1060 = scalar_lea.vmem %s1, %s1059
    %1061 = vst [vmem:[%s1060] sm:%s1058] %v1056
    %s1062 = scalar_lea.vmem [#allocation0], 408
    %v1063 = vld [vmem:[%s1062] sm:%s656]
    %v1064 = vpack.c.bf16 0.0, %v1063
    %s1065 = sshll.u32 1, %s657
    %s1066 = ssub.s32 %s1065, 1
    %s1067 = smul.addr 2, 51
    %s1068 = scalar_lea.vmem %s1, %s1067
    %1069 = vst [vmem:[%s1068] sm:%s1066] %v1064
    %s1070 = scalar_lea.vmem [#allocation0], 416
    %v1071 = vld [vmem:[%s1070] sm:%s656]
    %v1072 = vpack.c.bf16 0.0, %v1071
    %s1073 = sshll.u32 1, %s657
    %s1074 = ssub.s32 %s1073, 1
    %s1075 = smul.addr 2, 52
    %s1076 = scalar_lea.vmem %s1, %s1075
    %1077 = vst [vmem:[%s1076] sm:%s1074] %v1072
    %s1078 = scalar_lea.vmem [#allocation0], 424
    %v1079 = vld [vmem:[%s1078] sm:%s656]
    %v1080 = vpack.c.bf16 0.0, %v1079
    %s1081 = sshll.u32 1, %s657
    %s1082 = ssub.s32 %s1081, 1
    %s1083 = smul.addr 2, 53
    %s1084 = scalar_lea.vmem %s1, %s1083
    %1085 = vst [vmem:[%s1084] sm:%s1082] %v1080
    %s1086 = scalar_lea.vmem [#allocation0], 432
    %v1087 = vld [vmem:[%s1086] sm:%s656]
    %v1088 = vpack.c.bf16 0.0, %v1087
    %s1089 = sshll.u32 1, %s657
    %s1090 = ssub.s32 %s1089, 1
    %s1091 = smul.addr 2, 54
    %s1092 = scalar_lea.vmem %s1, %s1091
    %1093 = vst [vmem:[%s1092] sm:%s1090] %v1088
    %s1094 = scalar_lea.vmem [#allocation0], 440
    %v1095 = vld [vmem:[%s1094] sm:%s656]
    %v1096 = vpack.c.bf16 0.0, %v1095
    %s1097 = sshll.u32 1, %s657
    %s1098 = ssub.s32 %s1097, 1
    %s1099 = smul.addr 2, 55
    %s1100 = scalar_lea.vmem %s1, %s1099
    %1101 = vst [vmem:[%s1100] sm:%s1098] %v1096
    %s1102 = scalar_lea.vmem [#allocation0], 448
    %v1103 = vld [vmem:[%s1102] sm:%s656]
    %v1104 = vpack.c.bf16 0.0, %v1103
    %s1105 = sshll.u32 1, %s657
    %s1106 = ssub.s32 %s1105, 1
    %s1107 = smul.addr 2, 56
    %s1108 = scalar_lea.vmem %s1, %s1107
    %1109 = vst [vmem:[%s1108] sm:%s1106] %v1104
    %s1110 = scalar_lea.vmem [#allocation0], 456
    %v1111 = vld [vmem:[%s1110] sm:%s656]
    %v1112 = vpack.c.bf16 0.0, %v1111
    %s1113 = sshll.u32 1, %s657
    %s1114 = ssub.s32 %s1113, 1
    %s1115 = smul.addr 2, 57
    %s1116 = scalar_lea.vmem %s1, %s1115
    %1117 = vst [vmem:[%s1116] sm:%s1114] %v1112
    %s1118 = scalar_lea.vmem [#allocation0], 464
    %v1119 = vld [vmem:[%s1118] sm:%s656]
    %v1120 = vpack.c.bf16 0.0, %v1119
    %s1121 = sshll.u32 1, %s657
    %s1122 = ssub.s32 %s1121, 1
    %s1123 = smul.addr 2, 58
    %s1124 = scalar_lea.vmem %s1, %s1123
    %1125 = vst [vmem:[%s1124] sm:%s1122] %v1120
    %s1126 = scalar_lea.vmem [#allocation0], 472
    %v1127 = vld [vmem:[%s1126] sm:%s656]
    %v1128 = vpack.c.bf16 0.0, %v1127
    %s1129 = sshll.u32 1, %s657
    %s1130 = ssub.s32 %s1129, 1
    %s1131 = smul.addr 2, 59
    %s1132 = scalar_lea.vmem %s1, %s1131
    %1133 = vst [vmem:[%s1132] sm:%s1130] %v1128
    %s1134 = scalar_lea.vmem [#allocation0], 480
    %v1135 = vld [vmem:[%s1134] sm:%s656]
    %v1136 = vpack.c.bf16 0.0, %v1135
    %s1137 = sshll.u32 1, %s657
    %s1138 = ssub.s32 %s1137, 1
    %s1139 = smul.addr 2, 60
    %s1140 = scalar_lea.vmem %s1, %s1139
    %1141 = vst [vmem:[%s1140] sm:%s1138] %v1136
    %s1142 = scalar_lea.vmem [#allocation0], 488
    %v1143 = vld [vmem:[%s1142] sm:%s656]
    %v1144 = vpack.c.bf16 0.0, %v1143
    %s1145 = sshll.u32 1, %s657
    %s1146 = ssub.s32 %s1145, 1
    %s1147 = smul.addr 2, 61
    %s1148 = scalar_lea.vmem %s1, %s1147
    %1149 = vst [vmem:[%s1148] sm:%s1146] %v1144
    %s1150 = scalar_lea.vmem [#allocation0], 496
    %v1151 = vld [vmem:[%s1150] sm:%s656]
    %v1152 = vpack.c.bf16 0.0, %v1151
    %s1153 = sshll.u32 1, %s657
    %s1154 = ssub.s32 %s1153, 1
    %s1155 = smul.addr 2, 62
    %s1156 = scalar_lea.vmem %s1, %s1155
    %1157 = vst [vmem:[%s1156] sm:%s1154] %v1152
    %s1158 = scalar_lea.vmem [#allocation0], 504
    %v1159 = vld [vmem:[%s1158] sm:%s656]
    %v1160 = vpack.c.bf16 0.0, %v1159
    %s1161 = sshll.u32 1, %s657
    %s1162 = ssub.s32 %s1161, 1
    %s1163 = smul.addr 2, 63
    %s1164 = scalar_lea.vmem %s1, %s1163
    %1165 = vst [vmem:[%s1164] sm:%s1162] %v1160
    %s1166 = scalar_lea.vmem [#allocation0], 512
    %v1167 = vld [vmem:[%s1166] sm:%s656]
    %v1168 = vpack.c.bf16 0.0, %v1167
    %s1169 = sshll.u32 1, %s657
    %s1170 = ssub.s32 %s1169, 1
    %s1171 = smul.addr 2, 64
    %s1172 = scalar_lea.vmem %s1, %s1171
    %1173 = vst [vmem:[%s1172] sm:%s1170] %v1168
    %s1174 = scalar_lea.vmem [#allocation0], 520
    %v1175 = vld [vmem:[%s1174] sm:%s656]
    %v1176 = vpack.c.bf16 0.0, %v1175
    %s1177 = sshll.u32 1, %s657
    %s1178 = ssub.s32 %s1177, 1
    %s1179 = smul.addr 2, 65
    %s1180 = scalar_lea.vmem %s1, %s1179
    %1181 = vst [vmem:[%s1180] sm:%s1178] %v1176
    %s1182 = scalar_lea.vmem [#allocation0], 528
    %v1183 = vld [vmem:[%s1182] sm:%s656]
    %v1184 = vpack.c.bf16 0.0, %v1183
    %s1185 = sshll.u32 1, %s657
    %s1186 = ssub.s32 %s1185, 1
    %s1187 = smul.addr 2, 66
    %s1188 = scalar_lea.vmem %s1, %s1187
    %1189 = vst [vmem:[%s1188] sm:%s1186] %v1184
    %s1190 = scalar_lea.vmem [#allocation0], 536
    %v1191 = vld [vmem:[%s1190] sm:%s656]
    %v1192 = vpack.c.bf16 0.0, %v1191
    %s1193 = sshll.u32 1, %s657
    %s1194 = ssub.s32 %s1193, 1
    %s1195 = smul.addr 2, 67
    %s1196 = scalar_lea.vmem %s1, %s1195
    %1197 = vst [vmem:[%s1196] sm:%s1194] %v1192
    %s1198 = scalar_lea.vmem [#allocation0], 544
    %v1199 = vld [vmem:[%s1198] sm:%s656]
    %v1200 = vpack.c.bf16 0.0, %v1199
    %s1201 = sshll.u32 1, %s657
    %s1202 = ssub.s32 %s1201, 1
    %s1203 = smul.addr 2, 68
    %s1204 = scalar_lea.vmem %s1, %s1203
    %1205 = vst [vmem:[%s1204] sm:%s1202] %v1200
    %s1206 = scalar_lea.vmem [#allocation0], 552
    %v1207 = vld [vmem:[%s1206] sm:%s656]
    %v1208 = vpack.c.bf16 0.0, %v1207
    %s1209 = sshll.u32 1, %s657
    %s1210 = ssub.s32 %s1209, 1
    %s1211 = smul.addr 2, 69
    %s1212 = scalar_lea.vmem %s1, %s1211
    %1213 = vst [vmem:[%s1212] sm:%s1210] %v1208
    %s1214 = scalar_lea.vmem [#allocation0], 560
    %v1215 = vld [vmem:[%s1214] sm:%s656]
    %v1216 = vpack.c.bf16 0.0, %v1215
    %s1217 = sshll.u32 1, %s657
    %s1218 = ssub.s32 %s1217, 1
    %s1219 = smul.addr 2, 70
    %s1220 = scalar_lea.vmem %s1, %s1219
    %1221 = vst [vmem:[%s1220] sm:%s1218] %v1216
    %s1222 = scalar_lea.vmem [#allocation0], 568
    %v1223 = vld [vmem:[%s1222] sm:%s656]
    %v1224 = vpack.c.bf16 0.0, %v1223
    %s1225 = sshll.u32 1, %s657
    %s1226 = ssub.s32 %s1225, 1
    %s1227 = smul.addr 2, 71
    %s1228 = scalar_lea.vmem %s1, %s1227
    %1229 = vst [vmem:[%s1228] sm:%s1226] %v1224
    %s1230 = scalar_lea.vmem [#allocation0], 576
    %v1231 = vld [vmem:[%s1230] sm:%s656]
    %v1232 = vpack.c.bf16 0.0, %v1231
    %s1233 = sshll.u32 1, %s657
    %s1234 = ssub.s32 %s1233, 1
    %s1235 = smul.addr 2, 72
    %s1236 = scalar_lea.vmem %s1, %s1235
    %1237 = vst [vmem:[%s1236] sm:%s1234] %v1232
    %s1238 = scalar_lea.vmem [#allocation0], 584
    %v1239 = vld [vmem:[%s1238] sm:%s656]
    %v1240 = vpack.c.bf16 0.0, %v1239
    %s1241 = sshll.u32 1, %s657
    %s1242 = ssub.s32 %s1241, 1
    %s1243 = smul.addr 2, 73
    %s1244 = scalar_lea.vmem %s1, %s1243
    %1245 = vst [vmem:[%s1244] sm:%s1242] %v1240
    %s1246 = scalar_lea.vmem [#allocation0], 592
    %v1247 = vld [vmem:[%s1246] sm:%s656]
    %v1248 = vpack.c.bf16 0.0, %v1247
    %s1249 = sshll.u32 1, %s657
    %s1250 = ssub.s32 %s1249, 1
    %s1251 = smul.addr 2, 74
    %s1252 = scalar_lea.vmem %s1, %s1251
    %1253 = vst [vmem:[%s1252] sm:%s1250] %v1248
    %s1254 = scalar_lea.vmem [#allocation0], 600
    %v1255 = vld [vmem:[%s1254] sm:%s656]
    %v1256 = vpack.c.bf16 0.0, %v1255
    %s1257 = sshll.u32 1, %s657
    %s1258 = ssub.s32 %s1257, 1
    %s1259 = smul.addr 2, 75
    %s1260 = scalar_lea.vmem %s1, %s1259
    %1261 = vst [vmem:[%s1260] sm:%s1258] %v1256
    %s1262 = scalar_lea.vmem [#allocation0], 608
    %v1263 = vld [vmem:[%s1262] sm:%s656]
    %v1264 = vpack.c.bf16 0.0, %v1263
    %s1265 = sshll.u32 1, %s657
    %s1266 = ssub.s32 %s1265, 1
    %s1267 = smul.addr 2, 76
    %s1268 = scalar_lea.vmem %s1, %s1267
    %1269 = vst [vmem:[%s1268] sm:%s1266] %v1264
    %s1270 = scalar_lea.vmem [#allocation0], 616
    %v1271 = vld [vmem:[%s1270] sm:%s656]
    %v1272 = vpack.c.bf16 0.0, %v1271
    %s1273 = sshll.u32 1, %s657
    %s1274 = ssub.s32 %s1273, 1
    %s1275 = smul.addr 2, 77
    %s1276 = scalar_lea.vmem %s1, %s1275
    %1277 = vst [vmem:[%s1276] sm:%s1274] %v1272
    %s1278 = scalar_lea.vmem [#allocation0], 624
    %v1279 = vld [vmem:[%s1278] sm:%s656]
    %v1280 = vpack.c.bf16 0.0, %v1279
    %s1281 = sshll.u32 1, %s657
    %s1282 = ssub.s32 %s1281, 1
    %s1283 = smul.addr 2, 78
    %s1284 = scalar_lea.vmem %s1, %s1283
    %1285 = vst [vmem:[%s1284] sm:%s1282] %v1280
    %s1286 = scalar_lea.vmem [#allocation0], 632
    %v1287 = vld [vmem:[%s1286] sm:%s656]
    %v1288 = vpack.c.bf16 0.0, %v1287
    %s1289 = sshll.u32 1, %s657
    %s1290 = ssub.s32 %s1289, 1
    %s1291 = smul.addr 2, 79
    %s1292 = scalar_lea.vmem %s1, %s1291
    %1293 = vst [vmem:[%s1292] sm:%s1290] %v1288
    %s1294 = scalar_lea.vmem [#allocation0], 640
    %v1295 = vld [vmem:[%s1294] sm:%s656]
    %v1296 = vpack.c.bf16 0.0, %v1295
    %s1297 = sshll.u32 1, %s657
    %s1298 = ssub.s32 %s1297, 1
    %s1299 = smul.addr 2, 80
    %s1300 = scalar_lea.vmem %s1, %s1299
    %1301 = vst [vmem:[%s1300] sm:%s1298] %v1296
    %s1302 = scalar_lea.vmem [#allocation0], 648
    %v1303 = vld [vmem:[%s1302] sm:%s656]
    %v1304 = vpack.c.bf16 0.0, %v1303
    %s1305 = sshll.u32 1, %s657
    %s1306 = ssub.s32 %s1305, 1
    %s1307 = smul.addr 2, 81
    %s1308 = scalar_lea.vmem %s1, %s1307
    %1309 = vst [vmem:[%s1308] sm:%s1306] %v1304
    %s1310 = scalar_lea.vmem [#allocation0], 656
    %v1311 = vld [vmem:[%s1310] sm:%s656]
    %v1312 = vpack.c.bf16 0.0, %v1311
    %s1313 = sshll.u32 1, %s657
    %s1314 = ssub.s32 %s1313, 1
    %s1315 = smul.addr 2, 82
    %s1316 = scalar_lea.vmem %s1, %s1315
    %1317 = vst [vmem:[%s1316] sm:%s1314] %v1312
    %s1318 = scalar_lea.vmem [#allocation0], 664
    %v1319 = vld [vmem:[%s1318] sm:%s656]
    %v1320 = vpack.c.bf16 0.0, %v1319
    %s1321 = sshll.u32 1, %s657
    %s1322 = ssub.s32 %s1321, 1
    %s1323 = smul.addr 2, 83
    %s1324 = scalar_lea.vmem %s1, %s1323
    %1325 = vst [vmem:[%s1324] sm:%s1322] %v1320
    %s1326 = scalar_lea.vmem [#allocation0], 672
    %v1327 = vld [vmem:[%s1326] sm:%s656]
    %v1328 = vpack.c.bf16 0.0, %v1327
    %s1329 = sshll.u32 1, %s657
    %s1330 = ssub.s32 %s1329, 1
    %s1331 = smul.addr 2, 84
    %s1332 = scalar_lea.vmem %s1, %s1331
    %1333 = vst [vmem:[%s1332] sm:%s1330] %v1328
    %s1334 = scalar_lea.vmem [#allocation0], 680
    %v1335 = vld [vmem:[%s1334] sm:%s656]
    %v1336 = vpack.c.bf16 0.0, %v1335
    %s1337 = sshll.u32 1, %s657
    %s1338 = ssub.s32 %s1337, 1
    %s1339 = smul.addr 2, 85
    %s1340 = scalar_lea.vmem %s1, %s1339
    %1341 = vst [vmem:[%s1340] sm:%s1338] %v1336
    %s1342 = scalar_lea.vmem [#allocation0], 688
    %v1343 = vld [vmem:[%s1342] sm:%s656]
    %v1344 = vpack.c.bf16 0.0, %v1343
    %s1345 = sshll.u32 1, %s657
    %s1346 = ssub.s32 %s1345, 1
    %s1347 = smul.addr 2, 86
    %s1348 = scalar_lea.vmem %s1, %s1347
    %1349 = vst [vmem:[%s1348] sm:%s1346] %v1344
    %s1350 = scalar_lea.vmem [#allocation0], 696
    %v1351 = vld [vmem:[%s1350] sm:%s656]
    %v1352 = vpack.c.bf16 0.0, %v1351
    %s1353 = sshll.u32 1, %s657
    %s1354 = ssub.s32 %s1353, 1
    %s1355 = smul.addr 2, 87
    %s1356 = scalar_lea.vmem %s1, %s1355
    %1357 = vst [vmem:[%s1356] sm:%s1354] %v1352
    %s1358 = scalar_lea.vmem [#allocation0], 704
    %v1359 = vld [vmem:[%s1358] sm:%s656]
    %v1360 = vpack.c.bf16 0.0, %v1359
    %s1361 = sshll.u32 1, %s657
    %s1362 = ssub.s32 %s1361, 1
    %s1363 = smul.addr 2, 88
    %s1364 = scalar_lea.vmem %s1, %s1363
    %1365 = vst [vmem:[%s1364] sm:%s1362] %v1360
    %s1366 = scalar_lea.vmem [#allocation0], 712
    %v1367 = vld [vmem:[%s1366] sm:%s656]
    %v1368 = vpack.c.bf16 0.0, %v1367
    %s1369 = sshll.u32 1, %s657
    %s1370 = ssub.s32 %s1369, 1
    %s1371 = smul.addr 2, 89
    %s1372 = scalar_lea.vmem %s1, %s1371
    %1373 = vst [vmem:[%s1372] sm:%s1370] %v1368
    %s1374 = scalar_lea.vmem [#allocation0], 720
    %v1375 = vld [vmem:[%s1374] sm:%s656]
    %v1376 = vpack.c.bf16 0.0, %v1375
    %s1377 = sshll.u32 1, %s657
    %s1378 = ssub.s32 %s1377, 1
    %s1379 = smul.addr 2, 90
    %s1380 = scalar_lea.vmem %s1, %s1379
    %1381 = vst [vmem:[%s1380] sm:%s1378] %v1376
    %s1382 = scalar_lea.vmem [#allocation0], 728
    %v1383 = vld [vmem:[%s1382] sm:%s656]
    %v1384 = vpack.c.bf16 0.0, %v1383
    %s1385 = sshll.u32 1, %s657
    %s1386 = ssub.s32 %s1385, 1
    %s1387 = smul.addr 2, 91
    %s1388 = scalar_lea.vmem %s1, %s1387
    %1389 = vst [vmem:[%s1388] sm:%s1386] %v1384
    %s1390 = scalar_lea.vmem [#allocation0], 736
    %v1391 = vld [vmem:[%s1390] sm:%s656]
    %v1392 = vpack.c.bf16 0.0, %v1391
    %s1393 = sshll.u32 1, %s657
    %s1394 = ssub.s32 %s1393, 1
    %s1395 = smul.addr 2, 92
    %s1396 = scalar_lea.vmem %s1, %s1395
    %1397 = vst [vmem:[%s1396] sm:%s1394] %v1392
    %s1398 = scalar_lea.vmem [#allocation0], 744
    %v1399 = vld [vmem:[%s1398] sm:%s656]
    %v1400 = vpack.c.bf16 0.0, %v1399
    %s1401 = sshll.u32 1, %s657
    %s1402 = ssub.s32 %s1401, 1
    %s1403 = smul.addr 2, 93
    %s1404 = scalar_lea.vmem %s1, %s1403
    %1405 = vst [vmem:[%s1404] sm:%s1402] %v1400
    %s1406 = scalar_lea.vmem [#allocation0], 752
    %v1407 = vld [vmem:[%s1406] sm:%s656]
    %v1408 = vpack.c.bf16 0.0, %v1407
    %s1409 = sshll.u32 1, %s657
    %s1410 = ssub.s32 %s1409, 1
    %s1411 = smul.addr 2, 94
    %s1412 = scalar_lea.vmem %s1, %s1411
    %1413 = vst [vmem:[%s1412] sm:%s1410] %v1408
    %s1414 = scalar_lea.vmem [#allocation0], 760
    %v1415 = vld [vmem:[%s1414] sm:%s656]
    %v1416 = vpack.c.bf16 0.0, %v1415
    %s1417 = sshll.u32 1, %s657
    %s1418 = ssub.s32 %s1417, 1
    %s1419 = smul.addr 2, 95
    %s1420 = scalar_lea.vmem %s1, %s1419
    %1421 = vst [vmem:[%s1420] sm:%s1418] %v1416
    %s1422 = scalar_lea.vmem [#allocation0], 768
    %v1423 = vld [vmem:[%s1422] sm:%s656]
    %v1424 = vpack.c.bf16 0.0, %v1423
    %s1425 = sshll.u32 1, %s657
    %s1426 = ssub.s32 %s1425, 1
    %s1427 = smul.addr 2, 96
    %s1428 = scalar_lea.vmem %s1, %s1427
    %1429 = vst [vmem:[%s1428] sm:%s1426] %v1424
    %s1430 = scalar_lea.vmem [#allocation0], 776
    %v1431 = vld [vmem:[%s1430] sm:%s656]
    %v1432 = vpack.c.bf16 0.0, %v1431
    %s1433 = sshll.u32 1, %s657
    %s1434 = ssub.s32 %s1433, 1
    %s1435 = smul.addr 2, 97
    %s1436 = scalar_lea.vmem %s1, %s1435
    %1437 = vst [vmem:[%s1436] sm:%s1434] %v1432
    %s1438 = scalar_lea.vmem [#allocation0], 784
    %v1439 = vld [vmem:[%s1438] sm:%s656]
    %v1440 = vpack.c.bf16 0.0, %v1439
    %s1441 = sshll.u32 1, %s657
    %s1442 = ssub.s32 %s1441, 1
    %s1443 = smul.addr 2, 98
    %s1444 = scalar_lea.vmem %s1, %s1443
    %1445 = vst [vmem:[%s1444] sm:%s1442] %v1440
    %s1446 = scalar_lea.vmem [#allocation0], 792
    %v1447 = vld [vmem:[%s1446] sm:%s656]
    %v1448 = vpack.c.bf16 0.0, %v1447
    %s1449 = sshll.u32 1, %s657
    %s1450 = ssub.s32 %s1449, 1
    %s1451 = smul.addr 2, 99
    %s1452 = scalar_lea.vmem %s1, %s1451
    %1453 = vst [vmem:[%s1452] sm:%s1450] %v1448
    %s1454 = scalar_lea.vmem [#allocation0], 800
    %v1455 = vld [vmem:[%s1454] sm:%s656]
    %v1456 = vpack.c.bf16 0.0, %v1455
    %s1457 = sshll.u32 1, %s657
    %s1458 = ssub.s32 %s1457, 1
    %s1459 = smul.addr 2, 100
    %s1460 = scalar_lea.vmem %s1, %s1459
    %1461 = vst [vmem:[%s1460] sm:%s1458] %v1456
    %s1462 = scalar_lea.vmem [#allocation0], 808
    %v1463 = vld [vmem:[%s1462] sm:%s656]
    %v1464 = vpack.c.bf16 0.0, %v1463
    %s1465 = sshll.u32 1, %s657
    %s1466 = ssub.s32 %s1465, 1
    %s1467 = smul.addr 2, 101
    %s1468 = scalar_lea.vmem %s1, %s1467
    %1469 = vst [vmem:[%s1468] sm:%s1466] %v1464
    %s1470 = scalar_lea.vmem [#allocation0], 816
    %v1471 = vld [vmem:[%s1470] sm:%s656]
    %v1472 = vpack.c.bf16 0.0, %v1471
    %s1473 = sshll.u32 1, %s657
    %s1474 = ssub.s32 %s1473, 1
    %s1475 = smul.addr 2, 102
    %s1476 = scalar_lea.vmem %s1, %s1475
    %1477 = vst [vmem:[%s1476] sm:%s1474] %v1472
    %s1478 = scalar_lea.vmem [#allocation0], 824
    %v1479 = vld [vmem:[%s1478] sm:%s656]
    %v1480 = vpack.c.bf16 0.0, %v1479
    %s1481 = sshll.u32 1, %s657
    %s1482 = ssub.s32 %s1481, 1
    %s1483 = smul.addr 2, 103
    %s1484 = scalar_lea.vmem %s1, %s1483
    %1485 = vst [vmem:[%s1484] sm:%s1482] %v1480
    %s1486 = scalar_lea.vmem [#allocation0], 832
    %v1487 = vld [vmem:[%s1486] sm:%s656]
    %v1488 = vpack.c.bf16 0.0, %v1487
    %s1489 = sshll.u32 1, %s657
    %s1490 = ssub.s32 %s1489, 1
    %s1491 = smul.addr 2, 104
    %s1492 = scalar_lea.vmem %s1, %s1491
    %1493 = vst [vmem:[%s1492] sm:%s1490] %v1488
    %s1494 = scalar_lea.vmem [#allocation0], 840
    %v1495 = vld [vmem:[%s1494] sm:%s656]
    %v1496 = vpack.c.bf16 0.0, %v1495
    %s1497 = sshll.u32 1, %s657
    %s1498 = ssub.s32 %s1497, 1
    %s1499 = smul.addr 2, 105
    %s1500 = scalar_lea.vmem %s1, %s1499
    %1501 = vst [vmem:[%s1500] sm:%s1498] %v1496
    %s1502 = scalar_lea.vmem [#allocation0], 848
    %v1503 = vld [vmem:[%s1502] sm:%s656]
    %v1504 = vpack.c.bf16 0.0, %v1503
    %s1505 = sshll.u32 1, %s657
    %s1506 = ssub.s32 %s1505, 1
    %s1507 = smul.addr 2, 106
    %s1508 = scalar_lea.vmem %s1, %s1507
    %1509 = vst [vmem:[%s1508] sm:%s1506] %v1504
    %s1510 = scalar_lea.vmem [#allocation0], 856
    %v1511 = vld [vmem:[%s1510] sm:%s656]
    %v1512 = vpack.c.bf16 0.0, %v1511
    %s1513 = sshll.u32 1, %s657
    %s1514 = ssub.s32 %s1513, 1
    %s1515 = smul.addr 2, 107
    %s1516 = scalar_lea.vmem %s1, %s1515
    %1517 = vst [vmem:[%s1516] sm:%s1514] %v1512
    %s1518 = scalar_lea.vmem [#allocation0], 864
    %v1519 = vld [vmem:[%s1518] sm:%s656]
    %v1520 = vpack.c.bf16 0.0, %v1519
    %s1521 = sshll.u32 1, %s657
    %s1522 = ssub.s32 %s1521, 1
    %s1523 = smul.addr 2, 108
    %s1524 = scalar_lea.vmem %s1, %s1523
    %1525 = vst [vmem:[%s1524] sm:%s1522] %v1520
    %s1526 = scalar_lea.vmem [#allocation0], 872
    %v1527 = vld [vmem:[%s1526] sm:%s656]
    %v1528 = vpack.c.bf16 0.0, %v1527
    %s1529 = sshll.u32 1, %s657
    %s1530 = ssub.s32 %s1529, 1
    %s1531 = smul.addr 2, 109
    %s1532 = scalar_lea.vmem %s1, %s1531
    %1533 = vst [vmem:[%s1532] sm:%s1530] %v1528
    %s1534 = scalar_lea.vmem [#allocation0], 880
    %v1535 = vld [vmem:[%s1534] sm:%s656]
    %v1536 = vpack.c.bf16 0.0, %v1535
    %s1537 = sshll.u32 1, %s657
    %s1538 = ssub.s32 %s1537, 1
    %s1539 = smul.addr 2, 110
    %s1540 = scalar_lea.vmem %s1, %s1539
    %1541 = vst [vmem:[%s1540] sm:%s1538] %v1536
    %s1542 = scalar_lea.vmem [#allocation0], 888
    %v1543 = vld [vmem:[%s1542] sm:%s656]
    %v1544 = vpack.c.bf16 0.0, %v1543
    %s1545 = sshll.u32 1, %s657
    %s1546 = ssub.s32 %s1545, 1
    %s1547 = smul.addr 2, 111
    %s1548 = scalar_lea.vmem %s1, %s1547
    %1549 = vst [vmem:[%s1548] sm:%s1546] %v1544
    %s1550 = scalar_lea.vmem [#allocation0], 896
    %v1551 = vld [vmem:[%s1550] sm:%s656]
    %v1552 = vpack.c.bf16 0.0, %v1551
    %s1553 = sshll.u32 1, %s657
    %s1554 = ssub.s32 %s1553, 1
    %s1555 = smul.addr 2, 112
    %s1556 = scalar_lea.vmem %s1, %s1555
    %1557 = vst [vmem:[%s1556] sm:%s1554] %v1552
    %s1558 = scalar_lea.vmem [#allocation0], 904
    %v1559 = vld [vmem:[%s1558] sm:%s656]
    %v1560 = vpack.c.bf16 0.0, %v1559
    %s1561 = sshll.u32 1, %s657
    %s1562 = ssub.s32 %s1561, 1
    %s1563 = smul.addr 2, 113
    %s1564 = scalar_lea.vmem %s1, %s1563
    %1565 = vst [vmem:[%s1564] sm:%s1562] %v1560
    %s1566 = scalar_lea.vmem [#allocation0], 912
    %v1567 = vld [vmem:[%s1566] sm:%s656]
    %v1568 = vpack.c.bf16 0.0, %v1567
    %s1569 = sshll.u32 1, %s657
    %s1570 = ssub.s32 %s1569, 1
    %s1571 = smul.addr 2, 114
    %s1572 = scalar_lea.vmem %s1, %s1571
    %1573 = vst [vmem:[%s1572] sm:%s1570] %v1568
    %s1574 = scalar_lea.vmem [#allocation0], 920
    %v1575 = vld [vmem:[%s1574] sm:%s656]
    %v1576 = vpack.c.bf16 0.0, %v1575
    %s1577 = sshll.u32 1, %s657
    %s1578 = ssub.s32 %s1577, 1
    %s1579 = smul.addr 2, 115
    %s1580 = scalar_lea.vmem %s1, %s1579
    %1581 = vst [vmem:[%s1580] sm:%s1578] %v1576
    %s1582 = scalar_lea.vmem [#allocation0], 928
    %v1583 = vld [vmem:[%s1582] sm:%s656]
    %v1584 = vpack.c.bf16 0.0, %v1583
    %s1585 = sshll.u32 1, %s657
    %s1586 = ssub.s32 %s1585, 1
    %s1587 = smul.addr 2, 116
    %s1588 = scalar_lea.vmem %s1, %s1587
    %1589 = vst [vmem:[%s1588] sm:%s1586] %v1584
    %s1590 = scalar_lea.vmem [#allocation0], 936
    %v1591 = vld [vmem:[%s1590] sm:%s656]
    %v1592 = vpack.c.bf16 0.0, %v1591
    %s1593 = sshll.u32 1, %s657
    %s1594 = ssub.s32 %s1593, 1
    %s1595 = smul.addr 2, 117
    %s1596 = scalar_lea.vmem %s1, %s1595
    %1597 = vst [vmem:[%s1596] sm:%s1594] %v1592
    %s1598 = scalar_lea.vmem [#allocation0], 944
    %v1599 = vld [vmem:[%s1598] sm:%s656]
    %v1600 = vpack.c.bf16 0.0, %v1599
    %s1601 = sshll.u32 1, %s657
    %s1602 = ssub.s32 %s1601, 1
    %s1603 = smul.addr 2, 118
    %s1604 = scalar_lea.vmem %s1, %s1603
    %1605 = vst [vmem:[%s1604] sm:%s1602] %v1600
    %s1606 = scalar_lea.vmem [#allocation0], 952
    %v1607 = vld [vmem:[%s1606] sm:%s656]
    %v1608 = vpack.c.bf16 0.0, %v1607
    %s1609 = sshll.u32 1, %s657
    %s1610 = ssub.s32 %s1609, 1
    %s1611 = smul.addr 2, 119
    %s1612 = scalar_lea.vmem %s1, %s1611
    %1613 = vst [vmem:[%s1612] sm:%s1610] %v1608
    %s1614 = scalar_lea.vmem [#allocation0], 960
    %v1615 = vld [vmem:[%s1614] sm:%s656]
    %v1616 = vpack.c.bf16 0.0, %v1615
    %s1617 = sshll.u32 1, %s657
    %s1618 = ssub.s32 %s1617, 1
    %s1619 = smul.addr 2, 120
    %s1620 = scalar_lea.vmem %s1, %s1619
    %1621 = vst [vmem:[%s1620] sm:%s1618] %v1616
    %s1622 = scalar_lea.vmem [#allocation0], 968
    %v1623 = vld [vmem:[%s1622] sm:%s656]
    %v1624 = vpack.c.bf16 0.0, %v1623
    %s1625 = sshll.u32 1, %s657
    %s1626 = ssub.s32 %s1625, 1
    %s1627 = smul.addr 2, 121
    %s1628 = scalar_lea.vmem %s1, %s1627
    %1629 = vst [vmem:[%s1628] sm:%s1626] %v1624
    %s1630 = scalar_lea.vmem [#allocation0], 976
    %v1631 = vld [vmem:[%s1630] sm:%s656]
    %v1632 = vpack.c.bf16 0.0, %v1631
    %s1633 = sshll.u32 1, %s657
    %s1634 = ssub.s32 %s1633, 1
    %s1635 = smul.addr 2, 122
    %s1636 = scalar_lea.vmem %s1, %s1635
    %1637 = vst [vmem:[%s1636] sm:%s1634] %v1632
    %s1638 = scalar_lea.vmem [#allocation0], 984
    %v1639 = vld [vmem:[%s1638] sm:%s656]
    %v1640 = vpack.c.bf16 0.0, %v1639
    %s1641 = sshll.u32 1, %s657
    %s1642 = ssub.s32 %s1641, 1
    %s1643 = smul.addr 2, 123
    %s1644 = scalar_lea.vmem %s1, %s1643
    %1645 = vst [vmem:[%s1644] sm:%s1642] %v1640
    %s1646 = scalar_lea.vmem [#allocation0], 992
    %v1647 = vld [vmem:[%s1646] sm:%s656]
    %v1648 = vpack.c.bf16 0.0, %v1647
    %s1649 = sshll.u32 1, %s657
    %s1650 = ssub.s32 %s1649, 1
    %s1651 = smul.addr 2, 124
    %s1652 = scalar_lea.vmem %s1, %s1651
    %1653 = vst [vmem:[%s1652] sm:%s1650] %v1648
    %s1654 = scalar_lea.vmem [#allocation0], 1000
    %v1655 = vld [vmem:[%s1654] sm:%s656]
    %v1656 = vpack.c.bf16 0.0, %v1655
    %s1657 = sshll.u32 1, %s657
    %s1658 = ssub.s32 %s1657, 1
    %s1659 = smul.addr 2, 125
    %s1660 = scalar_lea.vmem %s1, %s1659
    %1661 = vst [vmem:[%s1660] sm:%s1658] %v1656
    %s1662 = scalar_lea.vmem [#allocation0], 1008
    %v1663 = vld [vmem:[%s1662] sm:%s656]
    %v1664 = vpack.c.bf16 0.0, %v1663
    %s1665 = sshll.u32 1, %s657
    %s1666 = ssub.s32 %s1665, 1
    %s1667 = smul.addr 2, 126
    %s1668 = scalar_lea.vmem %s1, %s1667
    %1669 = vst [vmem:[%s1668] sm:%s1666] %v1664
    %s1670 = scalar_lea.vmem [#allocation0], 1016
    %v1671 = vld [vmem:[%s1670] sm:%s656]
    %v1672 = vpack.c.bf16 0.0, %v1671
    %s1673 = sshll.u32 1, %s657
    %s1674 = ssub.s32 %s1673, 1
    %s1675 = smul.addr 2, 127
    %s1676 = scalar_lea.vmem %s1, %s1675
    %1677 = vst [vmem:[%s1676] sm:%s1674] %v1672

// kernel: model_forward.6
$region0: #{model_forward.6}
  #allocation0 [shape = 'u32[]', space=smem, size = 0x4, offset = 0x4, fixed_abs, tag = 'smem constant byte address 0x4 - core index']
  #allocation1 [shape = 'u32[144,128]{1,0:T(1,128)}', space=vmem, size = 0x12000, scoped, tag = 'internal scratch']
  %s0 = inlined_call_operand.vmem [shape: bf16[3,4,32,1568], index: 0, kind: input, shape index: {}]
  %s1 = inlined_call_operand.vmem [shape: bf16[3,1568,64], index: 1, kind: input, shape index: {}]
  %s2 = inlined_call_operand.vmem [shape: f32[3,1,64], index: 2, kind: input, shape index: {}]
  %s3 = inlined_call_operand.vmem [shape: f32[3,1,64], index: 3, kind: input, shape index: {}]
  %s4 = inlined_call_operand.vmem [shape: bf16[3,32,64], index: 4, kind: output, shape index: {}]
  %s5 = sld [smem:[#allocation0]]
  $region49: #{model_forward.6} parent=0
    _
  %s7 = ssub.s32 1, %s5
  %s8 = scalar_select 0, %s7, %s5
  loop: start=0, step=1, limit=5
  $region2: #{model_forward.6} parent=0 // loop_pre_header
    _
  $region3: #{model_forward.6} parent=0 // loop_header
    %s10 = sphi 0, %s14
    %p11 = scmp.ge.s32.totalorder %s10, 5
    %s17 = sphi 0, %s29
    %s18 = sphi 0, %s25
    %s19 = sphi 0, %s17
    %s20 = sphi 0, %s18
    %s21 = sphi 0, %s19
    %s22 = sphi 0, %s20
    %s34 = sphi 0, %s36
    %s37 = sphi 0, %s34
    %s38 = sphi 0, %s37
    %s54 = sphi 0, %s38
    %s60 = sphi 0, %s62
    %s63 = sphi 0, %s60
    %s64 = sphi 0, %s63
    %s80 = sphi 0, %s64
    %s86 = sphi 0, %s88
    %s89 = sphi 0, %s86
    %s90 = sphi 0, %s89
    %s106 = sphi 0, %s90
    %s112 = sphi 0, %s114
    %s115 = sphi 0, %s112
    %s116 = sphi 0, %s115
    %s132 = sphi 0, %s116
    %s140 = sphi 0, %s142
    %s143 = sphi 0, %s140
    %s144 = sphi 0, %s143
    %s160 = sphi 0, %s144
  $region4: #{model_forward.6} parent=0 // loop_header_branch
    %13 = sbr.rel (%p11) target = $region8
  $region5: #{model_forward.6} parent=0 // loop_body
    %s15 = ssub.s32 %s10, 1
    %s16 = ssub.s32 %s10, 2
    %s23 = sadd.s32 1, %s18
    %p24 = scmp.ge.s32.totalorder %s23, 1
    %s25 = scalar_select %p24, 0, %s23
    %s26 = sadd.s32 1, %s17
    %s27 = scalar_select %p24, %s26, %s17
    %p28 = scmp.ge.s32.totalorder %s27, 3
    %s29 = scalar_select %p28, 0, %s27
    %s30 = ssub.s32 %s17, %s29
    %s31 = ssub.s32 %s18, %s25
    %s32 = sor.u32 %s30, %s31
    %p33 = scmp.eq.s32.totalorder %s32, 0
    %s35 = sadd.s32 %s34, 1
    %s36 = scalar_select %p33, %s34, %s35
    %p39 = pneg %p33
    %p40 = scmp.eq.s32.totalorder %s10, 2
    %p41 = por %p39, %p40
    %p42 = scmp.ne.s32.totalorder %s34, %s37
    %p43 = scmp.eq.s32.totalorder %s10, 0
    %p44 = por %p42, %p43
    %p45 = scmp.ne.s32.totalorder %s34, %s37
    %p46 = scmp.eq.s32.totalorder %s15, 2
    %p47 = por %p45, %p46
    %p48 = scmp.ne.s32.totalorder %s37, %s38
    %p49 = scmp.eq.s32.totalorder %s15, 0
    %p50 = por %p48, %p49
    %p51 = scmp.ne.s32.totalorder %s37, %s38
    %p52 = scmp.eq.s32.totalorder %s16, 2
    %p53 = por %p51, %p52
    %p55 = scmp.ne.s32.totalorder %s38, %s54
    %p56 = scmp.eq.s32.totalorder %s16, 0
    %p57 = por %p55, %p56
    %s58 = ssub.s32 %s17, %s29
    %p59 = scmp.eq.s32.totalorder %s58, 0
    %s61 = sadd.s32 %s60, 1
    %s62 = scalar_select %p59, %s60, %s61
    %p65 = pneg %p59
    %p66 = scmp.eq.s32.totalorder %s10, 2
    %p67 = por %p65, %p66
    %p68 = scmp.ne.s32.totalorder %s60, %s63
    %p69 = scmp.eq.s32.totalorder %s10, 0
    %p70 = por %p68, %p69
    %p71 = scmp.ne.s32.totalorder %s60, %s63
    %p72 = scmp.eq.s32.totalorder %s15, 2
    %p73 = por %p71, %p72
    %p74 = scmp.ne.s32.totalorder %s63, %s64
    %p75 = scmp.eq.s32.totalorder %s15, 0
    %p76 = por %p74, %p75
    %p77 = scmp.ne.s32.totalorder %s63, %s64
    %p78 = scmp.eq.s32.totalorder %s16, 2
    %p79 = por %p77, %p78
    %p81 = scmp.ne.s32.totalorder %s64, %s80
    %p82 = scmp.eq.s32.totalorder %s16, 0
    %p83 = por %p81, %p82
    %s84 = ssub.s32 %s17, %s29
    %p85 = scmp.eq.s32.totalorder %s84, 0
    %s87 = sadd.s32 %s86, 1
    %s88 = scalar_select %p85, %s86, %s87
    %p91 = pneg %p85
    %p92 = scmp.eq.s32.totalorder %s10, 2
    %p93 = por %p91, %p92
    %p94 = scmp.ne.s32.totalorder %s86, %s89
    %p95 = scmp.eq.s32.totalorder %s10, 0
    %p96 = por %p94, %p95
    %p97 = scmp.ne.s32.totalorder %s86, %s89
    %p98 = scmp.eq.s32.totalorder %s15, 2
    %p99 = por %p97, %p98
    %p100 = scmp.ne.s32.totalorder %s89, %s90
    %p101 = scmp.eq.s32.totalorder %s15, 0
    %p102 = por %p100, %p101
    %p103 = scmp.ne.s32.totalorder %s89, %s90
    %p104 = scmp.eq.s32.totalorder %s16, 2
    %p105 = por %p103, %p104
    %p107 = scmp.ne.s32.totalorder %s90, %s106
    %p108 = scmp.eq.s32.totalorder %s16, 0
    %p109 = por %p107, %p108
    %s110 = ssub.s32 %s17, %s29
    %p111 = scmp.eq.s32.totalorder %s110, 0
    %s113 = sadd.s32 %s112, 1
    %s114 = scalar_select %p111, %s112, %s113
    %p117 = pneg %p111
    %p118 = scmp.eq.s32.totalorder %s10, 2
    %p119 = por %p117, %p118
    %p120 = scmp.ne.s32.totalorder %s112, %s115
    %p121 = scmp.eq.s32.totalorder %s10, 0
    %p122 = por %p120, %p121
    %p123 = scmp.ne.s32.totalorder %s112, %s115
    %p124 = scmp.eq.s32.totalorder %s15, 2
    %p125 = por %p123, %p124
    %p126 = scmp.ne.s32.totalorder %s115, %s116
    %p127 = scmp.eq.s32.totalorder %s15, 0
    %p128 = por %p126, %p127
    %p129 = scmp.ne.s32.totalorder %s115, %s116
    %p130 = scmp.eq.s32.totalorder %s16, 2
    %p131 = por %p129, %p130
    %p133 = scmp.ne.s32.totalorder %s116, %s132
    %p134 = scmp.eq.s32.totalorder %s16, 0
    %p135 = por %p133, %p134
    %s136 = ssub.s32 %s17, %s29
    %s137 = ssub.s32 %s18, %s25
    %s138 = sor.u32 %s136, %s137
    %p139 = scmp.eq.s32.totalorder %s138, 0
    %s141 = sadd.s32 %s140, 1
    %s142 = scalar_select %p139, %s140, %s141
    %p145 = pneg %p139
    %p146 = scmp.eq.s32.totalorder %s10, 2
    %p147 = por %p145, %p146
    %p148 = scmp.ne.s32.totalorder %s140, %s143
    %p149 = scmp.eq.s32.totalorder %s10, 0
    %p150 = por %p148, %p149
    %p151 = scmp.ne.s32.totalorder %s140, %s143
    %p152 = scmp.eq.s32.totalorder %s15, 2
    %p153 = por %p151, %p152
    %p154 = scmp.ne.s32.totalorder %s143, %s144
    %p155 = scmp.eq.s32.totalorder %s15, 0
    %p156 = por %p154, %p155
    %p157 = scmp.ne.s32.totalorder %s143, %s144
    %p158 = scmp.eq.s32.totalorder %s16, 2
    %p159 = por %p157, %p158
    %p161 = scmp.ne.s32.totalorder %s144, %s160
    %p162 = scmp.eq.s32.totalorder %s16, 0
    %p163 = por %p161, %p162
    %p164 = scmp.le.s32.totalorder 1, %s10
    %p165 = scmp.lt.s32.totalorder %s10, 4
    %p166 = pnand %p164, %p165
    %p167 = pneg %p166
    // Predicated region
    $region9: #{model_forward.6} parent=5 // pred_check
      _
    $region10: #{model_forward.6} parent=5 // pred_check_branch
      %169 = sbr.rel (%p166) target = $region12
    $region11: #{model_forward.6} parent=5 // pred_region
      %s170 = ssub.s32 %s10, 1
    $region12: #{model_forward.6} parent=5 // pred_fallthru
      _
    %p171 = scmp.lt.s32.totalorder %s10, 3
    // Predicated region
    $region13: #{model_forward.6} parent=5 // pred_check
      %p172 = pneg %p171
    $region14: #{model_forward.6} parent=5 // pred_check_branch
      %174 = sbr.rel (%p172) target = $region16
    $region15: #{model_forward.6} parent=5 // pred_region
      // Predicated region
      $region17: #{model_forward.6} parent=15 // pred_check
        %p175 = pneg %p44
      $region18: #{model_forward.6} parent=15 // pred_check_branch
        %177 = sbr.rel (%p175) target = $region20
      $region19: #{model_forward.6} parent=15 // pred_region
        %s178 = smul.u32 4, %s18
        %p179 = scmp.lt.s32.totalorder %s17, 2
        %s180 = scalar_select %p179, %s17, 2
        %p181 = scmp.lt.s32.totalorder %s178, 3
        %s182 = scalar_select %p181, %s178, 3
        %s183 = smul.addr %s182, 13
        %s184 = smul.addr %s180, 208
        %s185 = sadd.s32 %s183, %s184
        %s186 = smul.addr %s185, 4
        %s187 = scalar_lea.vmem %s0, %s186
        %s188 = smul.u32 4, %s18
      $region20: #{model_forward.6} parent=15 // pred_fallthru
        _
      // Predicated region
      $region21: #{model_forward.6} parent=15 // pred_check
        %p189 = pneg %p70
      $region22: #{model_forward.6} parent=15 // pred_check_branch
        %191 = sbr.rel (%p189) target = $region24
      $region23: #{model_forward.6} parent=15 // pred_region
        %p192 = scmp.lt.s32.totalorder %s17, 2
        %s193 = scalar_select %p192, %s17, 2
        %s194 = smul.addr %s193, 196
        %s195 = smul.addr %s194, 4
        %s196 = scalar_lea.vmem %s1, %s195
      $region24: #{model_forward.6} parent=15 // pred_fallthru
        _
      // Predicated region
      $region25: #{model_forward.6} parent=15 // pred_check
        %p197 = pneg %p96
      $region26: #{model_forward.6} parent=15 // pred_check_branch
        %199 = sbr.rel (%p197) target = $region28
      $region27: #{model_forward.6} parent=15 // pred_region
        %p200 = scmp.lt.s32.totalorder %s17, 2
        %s201 = scalar_select %p200, %s17, 2
        %s202 = scalar_lea.vmem %s2, %s201
      $region28: #{model_forward.6} parent=15 // pred_fallthru
        _
      // Predicated region
      $region29: #{model_forward.6} parent=15 // pred_check
        %p203 = pneg %p122
      $region30: #{model_forward.6} parent=15 // pred_check_branch
        %205 = sbr.rel (%p203) target = $region32
      $region31: #{model_forward.6} parent=15 // pred_region
        %p206 = scmp.lt.s32.totalorder %s17, 2
        %s207 = scalar_select %p206, %s17, 2
        %s208 = scalar_lea.vmem %s3, %s207
      $region32: #{model_forward.6} parent=15 // pred_fallthru
        _
    $region16: #{model_forward.6} parent=5 // pred_fallthru
      _
    %p209 = scmp.le.s32.totalorder 1, %s10
    %p210 = scmp.lt.s32.totalorder %s10, 4
    %p211 = pnand %p209, %p210
    %p212 = pneg %p211
    // Predicated region
    $region33: #{model_forward.6} parent=5 // pred_check
      _
    $region34: #{model_forward.6} parent=5 // pred_check_branch
      %214 = sbr.rel (%p211) target = $region36
    $region35: #{model_forward.6} parent=5 // pred_region
      %s215 = ssub.s32 %s10, 1
      %s216 = smul.u32 4, %s20
      %p217 = scmp.lt.s32.totalorder %s19, 2
      %s218 = scalar_select %p217, %s19, 2
      %p219 = scmp.lt.s32.totalorder %s216, 3
      %s220 = scalar_select %p219, %s216, 3
      %s221 = smul.addr %s220, 13
      %s222 = smul.addr %s218, 208
      %s223 = sadd.s32 %s221, %s222
      %s224 = smul.addr %s223, 4
      %s225 = scalar_lea.vmem %s0, %s224
      %p226 = pneg %p50
      %p227 = pneg %p47
      %p228 = scmp.lt.s32.totalorder %s19, 2
      %s229 = scalar_select %p228, %s19, 2
      %s230 = smul.addr %s229, 196
      %s231 = smul.addr %s230, 4
      %s232 = scalar_lea.vmem %s1, %s231
      %p233 = pneg %p76
      %p234 = pneg %p73
      %p235 = scmp.lt.s32.totalorder %s19, 2
      %s236 = scalar_select %p235, %s19, 2
      %s237 = scalar_lea.vmem %s2, %s236
      %p238 = pneg %p102
      %p239 = pneg %p99
      %p240 = scmp.lt.s32.totalorder %s19, 2
      %s241 = scalar_select %p240, %s19, 2
      %s242 = scalar_lea.vmem %s3, %s241
      %p243 = pneg %p128
      %p244 = pneg %p125
      %p245 = pneg %p156
      %p246 = pneg %p153
      %s247 = smul.u32 4, %s20
      %p248 = scmp.lt.s32.totalorder %s19, 2
      %s249 = scalar_select %p248, %s19, 2
      %p250 = scmp.lt.s32.totalorder %s247, 3
      %s251 = scalar_select %p250, %s247, 3
      %s252 = smul.addr %s249, 4
      %s253 = sadd.s32 %s251, %s252
      %s254 = smul.addr %s253, 4
      %s255 = scalar_lea.vmem %s4, %s254
      %s256 = smul.u32 4, %s20
      %p257 = scmp.lt.s32.totalorder %s19, 2
      %s258 = scalar_select %p257, %s19, 2
      %p259 = scmp.lt.s32.totalorder %s256, 3
      %s260 = scalar_select %p259, %s256, 3
      %s261 = smul.addr %s260, 13
      %s262 = smul.addr %s258, 208
      %s263 = sadd.s32 %s261, %s262
      %s264 = smul.addr %s263, 4
      %s265 = scalar_lea.vmem %s0, %s264
      %s266 = smul.u32 4, %s20
      %p267 = scmp.lt.s32.totalorder %s19, 2
      %s268 = scalar_select %p267, %s19, 2
      %s269 = smul.addr %s268, 196
      %s270 = smul.addr %s269, 4
      %s271 = scalar_lea.vmem %s1, %s270
      %p272 = scmp.lt.s32.totalorder %s19, 2
      %s273 = scalar_select %p272, %s19, 2
      %s274 = scalar_lea.vmem %s2, %s273
      %p275 = scmp.lt.s32.totalorder %s19, 2
      %s276 = scalar_select %p275, %s19, 2
      %s277 = scalar_lea.vmem %s3, %s276
      %s278 = smul.u32 4, %s20
      %p279 = scmp.lt.s32.totalorder %s19, 2
      %s280 = scalar_select %p279, %s19, 2
      %p281 = scmp.lt.s32.totalorder %s278, 3
      %s282 = scalar_select %p281, %s278, 3
      %s283 = smul.addr %s280, 4
      %s284 = sadd.s32 %s282, %s283
      %s285 = smul.addr %s284, 4
      %s286 = scalar_lea.vmem %s4, %s285
      %s287 = smul.u32 4, %s20
      %v289 = vld [vmem:[%s265] sm:$0xff]
      %v290 = vld [vmem:[%s265 + $0x8] sm:$0xff]
      %v291 = vld [vmem:[%s265 + $0x10] sm:$0xff]
      %v292 = vld [vmem:[%s265 + $0x18] sm:$0xff]
      %v293 = vld [vmem:[%s265 + $0x20] sm:$0xff]
      %v294 = vld [vmem:[%s265 + $0x28] sm:$0xff]
      %v295 = vld [vmem:[%s265 + $0x30] sm:$0xf]
      %v296 = vld [vmem:[%s265 + $0x34] sm:$0xff]
      %v297 = vld [vmem:[%s265 + $0x3c] sm:$0xff]
      %v298 = vld [vmem:[%s265 + $0x44] sm:$0xff]
      %v299 = vld [vmem:[%s265 + $0x4c] sm:$0xff]
      %v300 = vld [vmem:[%s265 + $0x54] sm:$0xff]
      %v301 = vld [vmem:[%s265 + $0x5c] sm:$0xff]
      %v302 = vld [vmem:[%s265 + $0x64] sm:$0xf]
      %v303 = vld [vmem:[%s265 + $0x68] sm:$0xff]
      %v304 = vld [vmem:[%s265 + $0x70] sm:$0xff]
      %v305 = vld [vmem:[%s265 + $0x78] sm:$0xff]
      %v306 = vld [vmem:[%s265 + $0x80] sm:$0xff]
      %v307 = vld [vmem:[%s265 + $0x88] sm:$0xff]
      %v308 = vld [vmem:[%s265 + $0x90] sm:$0xff]
      %v309 = vld [vmem:[%s265 + $0x98] sm:$0xf]
      %v310 = vld [vmem:[%s265 + $0x9c] sm:$0xff]
      %v311 = vld [vmem:[%s265 + $0xa4] sm:$0xff]
      %v312 = vld [vmem:[%s265 + $0xac] sm:$0xff]
      %v313 = vld [vmem:[%s265 + $0xb4] sm:$0xff]
      %v314 = vld [vmem:[%s265 + $0xbc] sm:$0xff]
      %v315 = vld [vmem:[%s265 + $0xc4] sm:$0xff]
      %v316 = vld [vmem:[%s265 + $0xcc] sm:$0xf]
      %v317 = vld [vmem:[%s265 + $0xd0] sm:$0xff]
      %v318 = vld [vmem:[%s265 + $0xd8] sm:$0xff]
      %v319 = vld [vmem:[%s265 + $0xe0] sm:$0xff]
      %v320 = vld [vmem:[%s265 + $0xe8] sm:$0xff]
      %v321 = vld [vmem:[%s265 + $0xf0] sm:$0xff]
      %v322 = vld [vmem:[%s265 + $0xf8] sm:$0xff]
      %v323 = vld [vmem:[%s265 + $0x100] sm:$0xf]
      %v324 = vld [vmem:[%s265 + $0x104] sm:$0xff]
      %v325 = vld [vmem:[%s265 + $0x10c] sm:$0xff]
      %v326 = vld [vmem:[%s265 + $0x114] sm:$0xff]
      %v327 = vld [vmem:[%s265 + $0x11c] sm:$0xff]
      %v328 = vld [vmem:[%s265 + $0x124] sm:$0xff]
      %v329 = vld [vmem:[%s265 + $0x12c] sm:$0xff]
      %v330 = vld [vmem:[%s265 + $0x134] sm:$0xf]
      %v331 = vld [vmem:[%s265 + $0x138] sm:$0xff]
      %v332 = vld [vmem:[%s265 + $0x140] sm:$0xff]
      %v333 = vld [vmem:[%s265 + $0x148] sm:$0xff]
      %v334 = vld [vmem:[%s265 + $0x150] sm:$0xff]
      %v335 = vld [vmem:[%s265 + $0x158] sm:$0xff]
      %v336 = vld [vmem:[%s265 + $0x160] sm:$0xff]
      %v337 = vld [vmem:[%s265 + $0x168] sm:$0xf]
      %v338 = vld [vmem:[%s265 + $0x16c] sm:$0xff]
      %v339 = vld [vmem:[%s265 + $0x174] sm:$0xff]
      %v340 = vld [vmem:[%s265 + $0x17c] sm:$0xff]
      %v341 = vld [vmem:[%s265 + $0x184] sm:$0xff]
      %v342 = vld [vmem:[%s265 + $0x18c] sm:$0xff]
      %v343 = vld [vmem:[%s265 + $0x194] sm:$0xff]
      %v344 = vld [vmem:[%s265 + $0x19c] sm:$0xf]
      %v345 = vld [vmem:[%s265 + $0x1a0] sm:$0xff]
      %v346 = vld [vmem:[%s265 + $0x1a8] sm:$0xff]
      %v347 = vld [vmem:[%s265 + $0x1b0] sm:$0xff]
      %v348 = vld [vmem:[%s265 + $0x1b8] sm:$0xff]
      %v349 = vld [vmem:[%s265 + $0x1c0] sm:$0xff]
      %v350 = vld [vmem:[%s265 + $0x1c8] sm:$0xff]
      %v351 = vld [vmem:[%s265 + $0x1d0] sm:$0xf]
      %v352 = vld [vmem:[%s265 + $0x1d4] sm:$0xff]
      %v353 = vld [vmem:[%s265 + $0x1dc] sm:$0xff]
      %v354 = vld [vmem:[%s265 + $0x1e4] sm:$0xff]
      %v355 = vld [vmem:[%s265 + $0x1ec] sm:$0xff]
      %v356 = vld [vmem:[%s265 + $0x1f4] sm:$0xff]
      %v357 = vld [vmem:[%s265 + $0x1fc] sm:$0xff]
      %v358 = vld [vmem:[%s265 + $0x204] sm:$0xf]
      %v359 = vld [vmem:[%s265 + $0x208] sm:$0xff]
      %v360 = vld [vmem:[%s265 + $0x210] sm:$0xff]
      %v361 = vld [vmem:[%s265 + $0x218] sm:$0xff]
      %v362 = vld [vmem:[%s265 + $0x220] sm:$0xff]
      %v363 = vld [vmem:[%s265 + $0x228] sm:$0xff]
      %v364 = vld [vmem:[%s265 + $0x230] sm:$0xff]
      %v365 = vld [vmem:[%s265 + $0x238] sm:$0xf]
      %v366 = vld [vmem:[%s265 + $0x23c] sm:$0xff]
      %v367 = vld [vmem:[%s265 + $0x244] sm:$0xff]
      %v368 = vld [vmem:[%s265 + $0x24c] sm:$0xff]
      %v369 = vld [vmem:[%s265 + $0x254] sm:$0xff]
      %v370 = vld [vmem:[%s265 + $0x25c] sm:$0xff]
      %v371 = vld [vmem:[%s265 + $0x264] sm:$0xff]
      %v372 = vld [vmem:[%s265 + $0x26c] sm:$0xf]
      %v373 = vld [vmem:[%s265 + $0x270] sm:$0xff]
      %v374 = vld [vmem:[%s265 + $0x278] sm:$0xff]
      %v375 = vld [vmem:[%s265 + $0x280] sm:$0xff]
      %v376 = vld [vmem:[%s265 + $0x288] sm:$0xff]
      %v377 = vld [vmem:[%s265 + $0x290] sm:$0xff]
      %v378 = vld [vmem:[%s265 + $0x298] sm:$0xff]
      %v379 = vld [vmem:[%s265 + $0x2a0] sm:$0xf]
      %v380 = vld [vmem:[%s265 + $0x2a4] sm:$0xff]
      %v381 = vld [vmem:[%s265 + $0x2ac] sm:$0xff]
      %v382 = vld [vmem:[%s265 + $0x2b4] sm:$0xff]
      %v383 = vld [vmem:[%s265 + $0x2bc] sm:$0xff]
      %v384 = vld [vmem:[%s265 + $0x2c4] sm:$0xff]
      %v385 = vld [vmem:[%s265 + $0x2cc] sm:$0xff]
      %v386 = vld [vmem:[%s265 + $0x2d4] sm:$0xf]
      %v387 = vld [vmem:[%s265 + $0x2d8] sm:$0xff]
      %v388 = vld [vmem:[%s265 + $0x2e0] sm:$0xff]
      %v389 = vld [vmem:[%s265 + $0x2e8] sm:$0xff]
      %v390 = vld [vmem:[%s265 + $0x2f0] sm:$0xff]
      %v391 = vld [vmem:[%s265 + $0x2f8] sm:$0xff]
      %v392 = vld [vmem:[%s265 + $0x300] sm:$0xff]
      %v393 = vld [vmem:[%s265 + $0x308] sm:$0xf]
      %v394 = vld [vmem:[%s265 + $0x30c] sm:$0xff]
      %v395 = vld [vmem:[%s265 + $0x314] sm:$0xff]
      %v396 = vld [vmem:[%s265 + $0x31c] sm:$0xff]
      %v397 = vld [vmem:[%s265 + $0x324] sm:$0xff]
      %v398 = vld [vmem:[%s265 + $0x32c] sm:$0xff]
      %v399 = vld [vmem:[%s265 + $0x334] sm:$0xff]
      %v400 = vld [vmem:[%s265 + $0x33c] sm:$0xf]
      %v401 = vld [vmem:[%s271] sm:$0xf]
      %v402 = vld [vmem:[%s271 + $0x4] sm:$0xf]
      %v403 = vld [vmem:[%s271 + $0x8] sm:$0xf]
      %v404 = vld [vmem:[%s271 + $0xc] sm:$0xf]
      %v405 = vld [vmem:[%s271 + $0x10] sm:$0xf]
      %v406 = vld [vmem:[%s271 + $0x14] sm:$0xf]
      %v407 = vld [vmem:[%s271 + $0x18] sm:$0xf]
      %v408 = vld [vmem:[%s271 + $0x1c] sm:$0xf]
      %v409 = vld [vmem:[%s271 + $0x20] sm:$0xf]
      %v410 = vld [vmem:[%s271 + $0x24] sm:$0xf]
      %v411 = vld [vmem:[%s271 + $0x28] sm:$0xf]
      %v412 = vld [vmem:[%s271 + $0x2c] sm:$0xf]
      %v413 = vld [vmem:[%s271 + $0x30] sm:$0xf]
      %v414 = vld [vmem:[%s271 + $0x34] sm:$0xf]
      %v415 = vld [vmem:[%s271 + $0x38] sm:$0xf]
      %v416 = vld [vmem:[%s271 + $0x3c] sm:$0xf]
      %v417 = vld [vmem:[%s271 + $0x40] sm:$0xf]
      %v418 = vld [vmem:[%s271 + $0x44] sm:$0xf]
      %v419 = vld [vmem:[%s271 + $0x48] sm:$0xf]
      %v420 = vld [vmem:[%s271 + $0x4c] sm:$0xf]
      %v421 = vld [vmem:[%s271 + $0x50] sm:$0xf]
      %v422 = vld [vmem:[%s271 + $0x54] sm:$0xf]
      %v423 = vld [vmem:[%s271 + $0x58] sm:$0xf]
      %v424 = vld [vmem:[%s271 + $0x5c] sm:$0xf]
      %v425 = vld [vmem:[%s271 + $0x60] sm:$0xf]
      %v426 = vld [vmem:[%s271 + $0x64] sm:$0xf]
      %v427 = vld [vmem:[%s271 + $0x68] sm:$0xf]
      %v428 = vld [vmem:[%s271 + $0x6c] sm:$0xf]
      %v429 = vld [vmem:[%s271 + $0x70] sm:$0xf]
      %v430 = vld [vmem:[%s271 + $0x74] sm:$0xf]
      %v431 = vld [vmem:[%s271 + $0x78] sm:$0xf]
      %v432 = vld [vmem:[%s271 + $0x7c] sm:$0xf]
      %v433 = vld [vmem:[%s271 + $0x80] sm:$0xf]
      %v434 = vld [vmem:[%s271 + $0x84] sm:$0xf]
      %v435 = vld [vmem:[%s271 + $0x88] sm:$0xf]
      %v436 = vld [vmem:[%s271 + $0x8c] sm:$0xf]
      %v437 = vld [vmem:[%s271 + $0x90] sm:$0xf]
      %v438 = vld [vmem:[%s271 + $0x94] sm:$0xf]
      %v439 = vld [vmem:[%s271 + $0x98] sm:$0xf]
      %v440 = vld [vmem:[%s271 + $0x9c] sm:$0xf]
      %v441 = vld [vmem:[%s271 + $0xa0] sm:$0xf]
      %v442 = vld [vmem:[%s271 + $0xa4] sm:$0xf]
      %v443 = vld [vmem:[%s271 + $0xa8] sm:$0xf]
      %v444 = vld [vmem:[%s271 + $0xac] sm:$0xf]
      %v445 = vld [vmem:[%s271 + $0xb0] sm:$0xf]
      %v446 = vld [vmem:[%s271 + $0xb4] sm:$0xf]
      %v447 = vld [vmem:[%s271 + $0xb8] sm:$0xf]
      %v448 = vld [vmem:[%s271 + $0xbc] sm:$0xf]
      %v449 = vld [vmem:[%s271 + $0xc0] sm:$0xf]
      %v450 = vld [vmem:[%s271 + $0xc4] sm:$0xf]
      %v451 = vld [vmem:[%s271 + $0xc8] sm:$0xf]
      %v452 = vld [vmem:[%s271 + $0xcc] sm:$0xf]
      %v453 = vld [vmem:[%s271 + $0xd0] sm:$0xf]
      %v454 = vld [vmem:[%s271 + $0xd4] sm:$0xf]
      %v455 = vld [vmem:[%s271 + $0xd8] sm:$0xf]
      %v456 = vld [vmem:[%s271 + $0xdc] sm:$0xf]
      %v457 = vld [vmem:[%s271 + $0xe0] sm:$0xf]
      %v458 = vld [vmem:[%s271 + $0xe4] sm:$0xf]
      %v459 = vld [vmem:[%s271 + $0xe8] sm:$0xf]
      %v460 = vld [vmem:[%s271 + $0xec] sm:$0xf]
      %v461 = vld [vmem:[%s271 + $0xf0] sm:$0xf]
      %v462 = vld [vmem:[%s271 + $0xf4] sm:$0xf]
      %v463 = vld [vmem:[%s271 + $0xf8] sm:$0xf]
      %v464 = vld [vmem:[%s271 + $0xfc] sm:$0xf]
      %v465 = vld [vmem:[%s271 + $0x100] sm:$0xf]
      %v466 = vld [vmem:[%s271 + $0x104] sm:$0xf]
      %v467 = vld [vmem:[%s271 + $0x108] sm:$0xf]
      %v468 = vld [vmem:[%s271 + $0x10c] sm:$0xf]
      %v469 = vld [vmem:[%s271 + $0x110] sm:$0xf]
      %v470 = vld [vmem:[%s271 + $0x114] sm:$0xf]
      %v471 = vld [vmem:[%s271 + $0x118] sm:$0xf]
      %v472 = vld [vmem:[%s271 + $0x11c] sm:$0xf]
      %v473 = vld [vmem:[%s271 + $0x120] sm:$0xf]
      %v474 = vld [vmem:[%s271 + $0x124] sm:$0xf]
      %v475 = vld [vmem:[%s271 + $0x128] sm:$0xf]
      %v476 = vld [vmem:[%s271 + $0x12c] sm:$0xf]
      %v477 = vld [vmem:[%s271 + $0x130] sm:$0xf]
      %v478 = vld [vmem:[%s271 + $0x134] sm:$0xf]
      %v479 = vld [vmem:[%s271 + $0x138] sm:$0xf]
      %v480 = vld [vmem:[%s271 + $0x13c] sm:$0xf]
      %v481 = vld [vmem:[%s271 + $0x140] sm:$0xf]
      %v482 = vld [vmem:[%s271 + $0x144] sm:$0xf]
      %v483 = vld [vmem:[%s271 + $0x148] sm:$0xf]
      %v484 = vld [vmem:[%s271 + $0x14c] sm:$0xf]
      %v485 = vld [vmem:[%s271 + $0x150] sm:$0xf]
      %v486 = vld [vmem:[%s271 + $0x154] sm:$0xf]
      %v487 = vld [vmem:[%s271 + $0x158] sm:$0xf]
      %v488 = vld [vmem:[%s271 + $0x15c] sm:$0xf]
      %v489 = vld [vmem:[%s271 + $0x160] sm:$0xf]
      %v490 = vld [vmem:[%s271 + $0x164] sm:$0xf]
      %v491 = vld [vmem:[%s271 + $0x168] sm:$0xf]
      %v492 = vld [vmem:[%s271 + $0x16c] sm:$0xf]
      %v493 = vld [vmem:[%s271 + $0x170] sm:$0xf]
      %v494 = vld [vmem:[%s271 + $0x174] sm:$0xf]
      %v495 = vld [vmem:[%s271 + $0x178] sm:$0xf]
      %v496 = vld [vmem:[%s271 + $0x17c] sm:$0xf]
      %v497 = vld [vmem:[%s271 + $0x180] sm:$0xf]
      %v498 = vld [vmem:[%s271 + $0x184] sm:$0xf]
      %v499 = vld [vmem:[%s271 + $0x188] sm:$0xf]
      %v500 = vld [vmem:[%s271 + $0x18c] sm:$0xf]
      %v501 = vld [vmem:[%s271 + $0x190] sm:$0xf]
      %v502 = vld [vmem:[%s271 + $0x194] sm:$0xf]
      %v503 = vld [vmem:[%s271 + $0x198] sm:$0xf]
      %v504 = vld [vmem:[%s271 + $0x19c] sm:$0xf]
      %v505 = vld [vmem:[%s271 + $0x1a0] sm:$0xf]
      %v506 = vld [vmem:[%s271 + $0x1a4] sm:$0xf]
      %v507 = vld [vmem:[%s271 + $0x1a8] sm:$0xf]
      %v508 = vld [vmem:[%s271 + $0x1ac] sm:$0xf]
      %v509 = vld [vmem:[%s271 + $0x1b0] sm:$0xf]
      %v510 = vld [vmem:[%s271 + $0x1b4] sm:$0xf]
      %v511 = vld [vmem:[%s271 + $0x1b8] sm:$0xf]
      %v512 = vld [vmem:[%s271 + $0x1bc] sm:$0xf]
      %v513 = vld [vmem:[%s271 + $0x1c0] sm:$0xf]
      %v514 = vld [vmem:[%s271 + $0x1c4] sm:$0xf]
      %v515 = vld [vmem:[%s271 + $0x1c8] sm:$0xf]
      %v516 = vld [vmem:[%s271 + $0x1cc] sm:$0xf]
      %v517 = vld [vmem:[%s271 + $0x1d0] sm:$0xf]
      %v518 = vld [vmem:[%s271 + $0x1d4] sm:$0xf]
      %v519 = vld [vmem:[%s271 + $0x1d8] sm:$0xf]
      %v520 = vld [vmem:[%s271 + $0x1dc] sm:$0xf]
      %v521 = vld [vmem:[%s271 + $0x1e0] sm:$0xf]
      %v522 = vld [vmem:[%s271 + $0x1e4] sm:$0xf]
      %v523 = vld [vmem:[%s271 + $0x1e8] sm:$0xf]
      %v524 = vld [vmem:[%s271 + $0x1ec] sm:$0xf]
      %v525 = vld [vmem:[%s271 + $0x1f0] sm:$0xf]
      %v526 = vld [vmem:[%s271 + $0x1f4] sm:$0xf]
      %v527 = vld [vmem:[%s271 + $0x1f8] sm:$0xf]
      %v528 = vld [vmem:[%s271 + $0x1fc] sm:$0xf]
      %v529 = vld [vmem:[%s271 + $0x200] sm:$0xf]
      %v530 = vld [vmem:[%s271 + $0x204] sm:$0xf]
      %v531 = vld [vmem:[%s271 + $0x208] sm:$0xf]
      %v532 = vld [vmem:[%s271 + $0x20c] sm:$0xf]
      %v533 = vld [vmem:[%s271 + $0x210] sm:$0xf]
      %v534 = vld [vmem:[%s271 + $0x214] sm:$0xf]
      %v535 = vld [vmem:[%s271 + $0x218] sm:$0xf]
      %v536 = vld [vmem:[%s271 + $0x21c] sm:$0xf]
      %v537 = vld [vmem:[%s271 + $0x220] sm:$0xf]
      %v538 = vld [vmem:[%s271 + $0x224] sm:$0xf]
      %v539 = vld [vmem:[%s271 + $0x228] sm:$0xf]
      %v540 = vld [vmem:[%s271 + $0x22c] sm:$0xf]
      %v541 = vld [vmem:[%s271 + $0x230] sm:$0xf]
      %v542 = vld [vmem:[%s271 + $0x234] sm:$0xf]
      %v543 = vld [vmem:[%s271 + $0x238] sm:$0xf]
      %v544 = vld [vmem:[%s271 + $0x23c] sm:$0xf]
      %v545 = vld [vmem:[%s271 + $0x240] sm:$0xf]
      %v546 = vld [vmem:[%s271 + $0x244] sm:$0xf]
      %v547 = vld [vmem:[%s271 + $0x248] sm:$0xf]
      %v548 = vld [vmem:[%s271 + $0x24c] sm:$0xf]
      %v549 = vld [vmem:[%s271 + $0x250] sm:$0xf]
      %v550 = vld [vmem:[%s271 + $0x254] sm:$0xf]
      %v551 = vld [vmem:[%s271 + $0x258] sm:$0xf]
      %v552 = vld [vmem:[%s271 + $0x25c] sm:$0xf]
      %v553 = vld [vmem:[%s271 + $0x260] sm:$0xf]
      %v554 = vld [vmem:[%s271 + $0x264] sm:$0xf]
      %v555 = vld [vmem:[%s271 + $0x268] sm:$0xf]
      %v556 = vld [vmem:[%s271 + $0x26c] sm:$0xf]
      %v557 = vld [vmem:[%s271 + $0x270] sm:$0xf]
      %v558 = vld [vmem:[%s271 + $0x274] sm:$0xf]
      %v559 = vld [vmem:[%s271 + $0x278] sm:$0xf]
      %v560 = vld [vmem:[%s271 + $0x27c] sm:$0xf]
      %v561 = vld [vmem:[%s271 + $0x280] sm:$0xf]
      %v562 = vld [vmem:[%s271 + $0x284] sm:$0xf]
      %v563 = vld [vmem:[%s271 + $0x288] sm:$0xf]
      %v564 = vld [vmem:[%s271 + $0x28c] sm:$0xf]
      %v565 = vld [vmem:[%s271 + $0x290] sm:$0xf]
      %v566 = vld [vmem:[%s271 + $0x294] sm:$0xf]
      %v567 = vld [vmem:[%s271 + $0x298] sm:$0xf]
      %v568 = vld [vmem:[%s271 + $0x29c] sm:$0xf]
      %v569 = vld [vmem:[%s271 + $0x2a0] sm:$0xf]
      %v570 = vld [vmem:[%s271 + $0x2a4] sm:$0xf]
      %v571 = vld [vmem:[%s271 + $0x2a8] sm:$0xf]
      %v572 = vld [vmem:[%s271 + $0x2ac] sm:$0xf]
      %v573 = vld [vmem:[%s271 + $0x2b0] sm:$0xf]
      %v574 = vld [vmem:[%s271 + $0x2b4] sm:$0xf]
      %v575 = vld [vmem:[%s271 + $0x2b8] sm:$0xf]
      %v576 = vld [vmem:[%s271 + $0x2bc] sm:$0xf]
      %v577 = vld [vmem:[%s271 + $0x2c0] sm:$0xf]
      %v578 = vld [vmem:[%s271 + $0x2c4] sm:$0xf]
      %v579 = vld [vmem:[%s271 + $0x2c8] sm:$0xf]
      %v580 = vld [vmem:[%s271 + $0x2cc] sm:$0xf]
      %v581 = vld [vmem:[%s271 + $0x2d0] sm:$0xf]
      %v582 = vld [vmem:[%s271 + $0x2d4] sm:$0xf]
      %v583 = vld [vmem:[%s271 + $0x2d8] sm:$0xf]
      %v584 = vld [vmem:[%s271 + $0x2dc] sm:$0xf]
      %v585 = vld [vmem:[%s271 + $0x2e0] sm:$0xf]
      %v586 = vld [vmem:[%s271 + $0x2e4] sm:$0xf]
      %v587 = vld [vmem:[%s271 + $0x2e8] sm:$0xf]
      %v588 = vld [vmem:[%s271 + $0x2ec] sm:$0xf]
      %v589 = vld [vmem:[%s271 + $0x2f0] sm:$0xf]
      %v590 = vld [vmem:[%s271 + $0x2f4] sm:$0xf]
      %v591 = vld [vmem:[%s271 + $0x2f8] sm:$0xf]
      %v592 = vld [vmem:[%s271 + $0x2fc] sm:$0xf]
      %v593 = vld [vmem:[%s271 + $0x300] sm:$0xf]
      %v594 = vld [vmem:[%s271 + $0x304] sm:$0xf]
      %v595 = vld [vmem:[%s271 + $0x308] sm:$0xf]
      %v596 = vld [vmem:[%s271 + $0x30c] sm:$0xf]
      %v709 = vunpack.c.l.b16 %v289
      %v710 = vunpack.c.h.b16 %v289
      %v711 = vunpack.c.l.b16 %v290
      %v712 = vunpack.c.h.b16 %v290
      %v713 = vunpack.c.l.b16 %v291
      %v714 = vunpack.c.h.b16 %v291
      %v715 = vunpack.c.l.b16 %v292
      %v716 = vunpack.c.h.b16 %v292
      %v717 = vunpack.c.l.b16 %v293
      %v718 = vunpack.c.h.b16 %v293
      %v719 = vunpack.c.l.b16 %v294
      %v720 = vunpack.c.h.b16 %v294
      %v721 = vunpack.c.l.b16 %v295
      %v722 = vunpack.c.l.b16 %v296
      %v723 = vunpack.c.h.b16 %v296
      %v724 = vunpack.c.l.b16 %v297
      %v725 = vunpack.c.h.b16 %v297
      %v726 = vunpack.c.l.b16 %v298
      %v727 = vunpack.c.h.b16 %v298
      %v728 = vunpack.c.l.b16 %v299
      %v729 = vunpack.c.h.b16 %v299
      %v730 = vunpack.c.l.b16 %v300
      %v731 = vunpack.c.h.b16 %v300
      %v732 = vunpack.c.l.b16 %v301
      %v733 = vunpack.c.h.b16 %v301
      %v734 = vunpack.c.l.b16 %v302
      %v735 = vunpack.c.l.b16 %v303
      %v736 = vunpack.c.h.b16 %v303
      %v737 = vunpack.c.l.b16 %v304
      %v738 = vunpack.c.h.b16 %v304
      %v739 = vunpack.c.l.b16 %v305
      %v740 = vunpack.c.h.b16 %v305
      %v741 = vunpack.c.l.b16 %v306
      %v742 = vunpack.c.h.b16 %v306
      %v743 = vunpack.c.l.b16 %v307
      %v744 = vunpack.c.h.b16 %v307
      %v745 = vunpack.c.l.b16 %v308
      %v746 = vunpack.c.h.b16 %v308
      %v747 = vunpack.c.l.b16 %v309
      %v748 = vunpack.c.l.b16 %v310
      %v749 = vunpack.c.h.b16 %v310
      %v750 = vunpack.c.l.b16 %v311
      %v751 = vunpack.c.h.b16 %v311
      %v752 = vunpack.c.l.b16 %v312
      %v753 = vunpack.c.h.b16 %v312
      %v754 = vunpack.c.l.b16 %v313
      %v755 = vunpack.c.h.b16 %v313
      %v756 = vunpack.c.l.b16 %v314
      %v757 = vunpack.c.h.b16 %v314
      %v758 = vunpack.c.l.b16 %v315
      %v759 = vunpack.c.h.b16 %v315
      %v760 = vunpack.c.l.b16 %v316
      %v761 = vunpack.c.l.b16 %v317
      %v762 = vunpack.c.h.b16 %v317
      %v763 = vunpack.c.l.b16 %v318
      %v764 = vunpack.c.h.b16 %v318
      %v765 = vunpack.c.l.b16 %v319
      %v766 = vunpack.c.h.b16 %v319
      %v767 = vunpack.c.l.b16 %v320
      %v768 = vunpack.c.h.b16 %v320
      %v769 = vunpack.c.l.b16 %v321
      %v770 = vunpack.c.h.b16 %v321
      %v771 = vunpack.c.l.b16 %v322
      %v772 = vunpack.c.h.b16 %v322
      %v773 = vunpack.c.l.b16 %v323
      %v774 = vunpack.c.l.b16 %v324
      %v775 = vunpack.c.h.b16 %v324
      %v776 = vunpack.c.l.b16 %v325
      %v777 = vunpack.c.h.b16 %v325
      %v778 = vunpack.c.l.b16 %v326
      %v779 = vunpack.c.h.b16 %v326
      %v780 = vunpack.c.l.b16 %v327
      %v781 = vunpack.c.h.b16 %v327
      %v782 = vunpack.c.l.b16 %v328
      %v783 = vunpack.c.h.b16 %v328
      %v784 = vunpack.c.l.b16 %v329
      %v785 = vunpack.c.h.b16 %v329
      %v786 = vunpack.c.l.b16 %v330
      %v787 = vunpack.c.l.b16 %v331
      %v788 = vunpack.c.h.b16 %v331
      %v789 = vunpack.c.l.b16 %v332
      %v790 = vunpack.c.h.b16 %v332
      %v791 = vunpack.c.l.b16 %v333
      %v792 = vunpack.c.h.b16 %v333
      %v793 = vunpack.c.l.b16 %v334
      %v794 = vunpack.c.h.b16 %v334
      %v795 = vunpack.c.l.b16 %v335
      %v796 = vunpack.c.h.b16 %v335
      %v797 = vunpack.c.l.b16 %v336
      %v798 = vunpack.c.h.b16 %v336
      %v799 = vunpack.c.l.b16 %v337
      %v800 = vunpack.c.l.b16 %v338
      %v801 = vunpack.c.h.b16 %v338
      %v802 = vunpack.c.l.b16 %v339
      %v803 = vunpack.c.h.b16 %v339
      %v804 = vunpack.c.l.b16 %v340
      %v805 = vunpack.c.h.b16 %v340
      %v806 = vunpack.c.l.b16 %v341
      %v807 = vunpack.c.h.b16 %v341
      %v808 = vunpack.c.l.b16 %v342
      %v809 = vunpack.c.h.b16 %v342
      %v810 = vunpack.c.l.b16 %v343
      %v811 = vunpack.c.h.b16 %v343
      %v812 = vunpack.c.l.b16 %v344
      %v813 = vunpack.c.l.b16 %v345
      %v814 = vunpack.c.h.b16 %v345
      %v815 = vunpack.c.l.b16 %v346
      %v816 = vunpack.c.h.b16 %v346
      %v817 = vunpack.c.l.b16 %v347
      %v818 = vunpack.c.h.b16 %v347
      %v819 = vunpack.c.l.b16 %v348
      %v820 = vunpack.c.h.b16 %v348
      %v821 = vunpack.c.l.b16 %v349
      %v822 = vunpack.c.h.b16 %v349
      %v823 = vunpack.c.l.b16 %v350
      %v824 = vunpack.c.h.b16 %v350
      %v825 = vunpack.c.l.b16 %v351
      %v826 = vunpack.c.l.b16 %v352
      %v827 = vunpack.c.h.b16 %v352
      %v828 = vunpack.c.l.b16 %v353
      %v829 = vunpack.c.h.b16 %v353
      %v830 = vunpack.c.l.b16 %v354
      %v831 = vunpack.c.h.b16 %v354
      %v832 = vunpack.c.l.b16 %v355
      %v833 = vunpack.c.h.b16 %v355
      %v834 = vunpack.c.l.b16 %v356
      %v835 = vunpack.c.h.b16 %v356
      %v836 = vunpack.c.l.b16 %v357
      %v837 = vunpack.c.h.b16 %v357
      %v838 = vunpack.c.l.b16 %v358
      %v839 = vunpack.c.l.b16 %v359
      %v840 = vunpack.c.h.b16 %v359
      %v841 = vunpack.c.l.b16 %v360
      %v842 = vunpack.c.h.b16 %v360
      %v843 = vunpack.c.l.b16 %v361
      %v844 = vunpack.c.h.b16 %v361
      %v845 = vunpack.c.l.b16 %v362
      %v846 = vunpack.c.h.b16 %v362
      %v847 = vunpack.c.l.b16 %v363
      %v848 = vunpack.c.h.b16 %v363
      %v849 = vunpack.c.l.b16 %v364
      %v850 = vunpack.c.h.b16 %v364
      %v851 = vunpack.c.l.b16 %v365
      %v852 = vunpack.c.l.b16 %v366
      %v853 = vunpack.c.h.b16 %v366
      %v854 = vunpack.c.l.b16 %v367
      %v855 = vunpack.c.h.b16 %v367
      %v856 = vunpack.c.l.b16 %v368
      %v857 = vunpack.c.h.b16 %v368
      %v858 = vunpack.c.l.b16 %v369
      %v859 = vunpack.c.h.b16 %v369
      %v860 = vunpack.c.l.b16 %v370
      %v861 = vunpack.c.h.b16 %v370
      %v862 = vunpack.c.l.b16 %v371
      %v863 = vunpack.c.h.b16 %v371
      %v864 = vunpack.c.l.b16 %v372
      %v865 = vunpack.c.l.b16 %v373
      %v866 = vunpack.c.h.b16 %v373
      %v867 = vunpack.c.l.b16 %v374
      %v868 = vunpack.c.h.b16 %v374
      %v869 = vunpack.c.l.b16 %v375
      %v870 = vunpack.c.h.b16 %v375
      %v871 = vunpack.c.l.b16 %v376
      %v872 = vunpack.c.h.b16 %v376
      %v873 = vunpack.c.l.b16 %v377
      %v874 = vunpack.c.h.b16 %v377
      %v875 = vunpack.c.l.b16 %v378
      %v876 = vunpack.c.h.b16 %v378
      %v877 = vunpack.c.l.b16 %v379
      %v878 = vunpack.c.l.b16 %v380
      %v879 = vunpack.c.h.b16 %v380
      %v880 = vunpack.c.l.b16 %v381
      %v881 = vunpack.c.h.b16 %v381
      %v882 = vunpack.c.l.b16 %v382
      %v883 = vunpack.c.h.b16 %v382
      %v884 = vunpack.c.l.b16 %v383
      %v885 = vunpack.c.h.b16 %v383
      %v886 = vunpack.c.l.b16 %v384
      %v887 = vunpack.c.h.b16 %v384
      %v888 = vunpack.c.l.b16 %v385
      %v889 = vunpack.c.h.b16 %v385
      %v890 = vunpack.c.l.b16 %v386
      %v891 = vunpack.c.l.b16 %v387
      %v892 = vunpack.c.h.b16 %v387
      %v893 = vunpack.c.l.b16 %v388
      %v894 = vunpack.c.h.b16 %v388
      %v895 = vunpack.c.l.b16 %v389
      %v896 = vunpack.c.h.b16 %v389
      %v897 = vunpack.c.l.b16 %v390
      %v898 = vunpack.c.h.b16 %v390
      %v899 = vunpack.c.l.b16 %v391
      %v900 = vunpack.c.h.b16 %v391
      %v901 = vunpack.c.l.b16 %v392
      %v902 = vunpack.c.h.b16 %v392
      %v903 = vunpack.c.l.b16 %v393
      %v904 = vunpack.c.l.b16 %v394
      %v905 = vunpack.c.h.b16 %v394
      %v906 = vunpack.c.l.b16 %v395
      %v907 = vunpack.c.h.b16 %v395
      %v908 = vunpack.c.l.b16 %v396
      %v909 = vunpack.c.h.b16 %v396
      %v910 = vunpack.c.l.b16 %v397
      %v911 = vunpack.c.h.b16 %v397
      %v912 = vunpack.c.l.b16 %v398
      %v913 = vunpack.c.h.b16 %v398
      %v914 = vunpack.c.l.b16 %v399
      %v915 = vunpack.c.h.b16 %v399
      %v916 = vunpack.c.l.b16 %v400
      %v917 = vpack.c.b16 %v722, %v709
      %v918 = vpack.c.b16 %v723, %v710
      %v919 = vpack.c.b16 %v724, %v711
      %v920 = vpack.c.b16 %v725, %v712
      %v921 = vpack.c.b16 %v726, %v713
      %v922 = vpack.c.b16 %v727, %v714
      %v923 = vpack.c.b16 %v728, %v715
      %v924 = vpack.c.b16 %v729, %v716
      %v925 = vpack.c.b16 %v730, %v717
      %v926 = vpack.c.b16 %v731, %v718
      %v927 = vpack.c.b16 %v732, %v719
      %v928 = vpack.c.b16 %v733, %v720
      %v929 = vpack.c.b16 %v734, %v721
      %v930 = vpack.c.b16 %v748, %v735
      %v931 = vpack.c.b16 %v749, %v736
      %v932 = vpack.c.b16 %v750, %v737
      %v933 = vpack.c.b16 %v751, %v738
      %v934 = vpack.c.b16 %v752, %v739
      %v935 = vpack.c.b16 %v753, %v740
      %v936 = vpack.c.b16 %v754, %v741
      %v937 = vpack.c.b16 %v755, %v742
      %v938 = vpack.c.b16 %v756, %v743
      %v939 = vpack.c.b16 %v757, %v744
      %v940 = vpack.c.b16 %v758, %v745
      %v941 = vpack.c.b16 %v759, %v746
      %v942 = vpack.c.b16 %v760, %v747
      %v943 = vpack.c.b16 %v774, %v761
      %v944 = vpack.c.b16 %v775, %v762
      %v945 = vpack.c.b16 %v776, %v763
      %v946 = vpack.c.b16 %v777, %v764
      %v947 = vpack.c.b16 %v778, %v765
      %v948 = vpack.c.b16 %v779, %v766
      %v949 = vpack.c.b16 %v780, %v767
      %v950 = vpack.c.b16 %v781, %v768
      %v951 = vpack.c.b16 %v782, %v769
      %v952 = vpack.c.b16 %v783, %v770
      %v953 = vpack.c.b16 %v784, %v771
      %v954 = vpack.c.b16 %v785, %v772
      %v955 = vpack.c.b16 %v786, %v773
      %v956 = vpack.c.b16 %v800, %v787
      %v957 = vpack.c.b16 %v801, %v788
      %v958 = vpack.c.b16 %v802, %v789
      %v959 = vpack.c.b16 %v803, %v790
      %v960 = vpack.c.b16 %v804, %v791
      %v961 = vpack.c.b16 %v805, %v792
      %v962 = vpack.c.b16 %v806, %v793
      %v963 = vpack.c.b16 %v807, %v794
      %v964 = vpack.c.b16 %v808, %v795
      %v965 = vpack.c.b16 %v809, %v796
      %v966 = vpack.c.b16 %v810, %v797
      %v967 = vpack.c.b16 %v811, %v798
      %v968 = vpack.c.b16 %v812, %v799
      %v969 = vpack.c.b16 %v826, %v813
      %v970 = vpack.c.b16 %v827, %v814
      %v971 = vpack.c.b16 %v828, %v815
      %v972 = vpack.c.b16 %v829, %v816
      %v973 = vpack.c.b16 %v830, %v817
      %v974 = vpack.c.b16 %v831, %v818
      %v975 = vpack.c.b16 %v832, %v819
      %v976 = vpack.c.b16 %v833, %v820
      %v977 = vpack.c.b16 %v834, %v821
      %v978 = vpack.c.b16 %v835, %v822
      %v979 = vpack.c.b16 %v836, %v823
      %v980 = vpack.c.b16 %v837, %v824
      %v981 = vpack.c.b16 %v838, %v825
      %v982 = vpack.c.b16 %v852, %v839
      %v983 = vpack.c.b16 %v853, %v840
      %v984 = vpack.c.b16 %v854, %v841
      %v985 = vpack.c.b16 %v855, %v842
      %v986 = vpack.c.b16 %v856, %v843
      %v987 = vpack.c.b16 %v857, %v844
      %v988 = vpack.c.b16 %v858, %v845
      %v989 = vpack.c.b16 %v859, %v846
      %v990 = vpack.c.b16 %v860, %v847
      %v991 = vpack.c.b16 %v861, %v848
      %v992 = vpack.c.b16 %v862, %v849
      %v993 = vpack.c.b16 %v863, %v850
      %v994 = vpack.c.b16 %v864, %v851
      %v995 = vpack.c.b16 %v878, %v865
      %v996 = vpack.c.b16 %v879, %v866
      %v997 = vpack.c.b16 %v880, %v867
      %v998 = vpack.c.b16 %v881, %v868
      %v999 = vpack.c.b16 %v882, %v869
      %v1000 = vpack.c.b16 %v883, %v870
      %v1001 = vpack.c.b16 %v884, %v871
      %v1002 = vpack.c.b16 %v885, %v872
      %v1003 = vpack.c.b16 %v886, %v873
      %v1004 = vpack.c.b16 %v887, %v874
      %v1005 = vpack.c.b16 %v888, %v875
      %v1006 = vpack.c.b16 %v889, %v876
      %v1007 = vpack.c.b16 %v890, %v877
      %v1008 = vpack.c.b16 %v904, %v891
      %v1009 = vpack.c.b16 %v905, %v892
      %v1010 = vpack.c.b16 %v906, %v893
      %v1011 = vpack.c.b16 %v907, %v894
      %v1012 = vpack.c.b16 %v908, %v895
      %v1013 = vpack.c.b16 %v909, %v896
      %v1014 = vpack.c.b16 %v910, %v897
      %v1015 = vpack.c.b16 %v911, %v898
      %v1016 = vpack.c.b16 %v912, %v899
      %v1017 = vpack.c.b16 %v913, %v900
      %v1018 = vpack.c.b16 %v914, %v901
      %v1019 = vpack.c.b16 %v915, %v902
      %v1020 = vpack.c.b16 %v916, %v903
      %v1313 = vunpack.c.l.b16 %v401
      %v1314 = vunpack.c.l.b16 %v402
      %v1315 = vunpack.c.l.b16 %v403
      %v1316 = vunpack.c.l.b16 %v404
      %v1317 = vunpack.c.l.b16 %v405
      %v1318 = vunpack.c.l.b16 %v406
      %v1319 = vunpack.c.l.b16 %v407
      %v1320 = vunpack.c.l.b16 %v408
      %v1321 = vunpack.c.l.b16 %v409
      %v1322 = vunpack.c.l.b16 %v410
      %v1323 = vunpack.c.l.b16 %v411
      %v1324 = vunpack.c.l.b16 %v412
      %v1325 = vunpack.c.l.b16 %v413
      %v1326 = vunpack.c.l.b16 %v414
      %v1327 = vunpack.c.l.b16 %v415
      %v1328 = vunpack.c.l.b16 %v416
      %v1329 = vunpack.c.l.b16 %v417
      %v1330 = vunpack.c.l.b16 %v418
      %v1331 = vunpack.c.l.b16 %v419
      %v1332 = vunpack.c.l.b16 %v420
      %v1333 = vunpack.c.l.b16 %v421
      %v1334 = vunpack.c.l.b16 %v422
      %v1335 = vunpack.c.l.b16 %v423
      %v1336 = vunpack.c.l.b16 %v424
      %v1337 = vunpack.c.l.b16 %v425
      %v1338 = vunpack.c.l.b16 %v426
      %v1339 = vunpack.c.l.b16 %v427
      %v1340 = vunpack.c.l.b16 %v428
      %v1341 = vunpack.c.l.b16 %v429
      %v1342 = vunpack.c.l.b16 %v430
      %v1343 = vunpack.c.l.b16 %v431
      %v1344 = vunpack.c.l.b16 %v432
      %v1345 = vunpack.c.l.b16 %v433
      %v1346 = vunpack.c.l.b16 %v434
      %v1347 = vunpack.c.l.b16 %v435
      %v1348 = vunpack.c.l.b16 %v436
      %v1349 = vunpack.c.l.b16 %v437
      %v1350 = vunpack.c.l.b16 %v438
      %v1351 = vunpack.c.l.b16 %v439
      %v1352 = vunpack.c.l.b16 %v440
      %v1353 = vunpack.c.l.b16 %v441
      %v1354 = vunpack.c.l.b16 %v442
      %v1355 = vunpack.c.l.b16 %v443
      %v1356 = vunpack.c.l.b16 %v444
      %v1357 = vunpack.c.l.b16 %v445
      %v1358 = vunpack.c.l.b16 %v446
      %v1359 = vunpack.c.l.b16 %v447
      %v1360 = vunpack.c.l.b16 %v448
      %v1361 = vunpack.c.l.b16 %v449
      %v1362 = vunpack.c.l.b16 %v450
      %v1363 = vunpack.c.l.b16 %v451
      %v1364 = vunpack.c.l.b16 %v452
      %v1365 = vunpack.c.l.b16 %v453
      %v1366 = vunpack.c.l.b16 %v454
      %v1367 = vunpack.c.l.b16 %v455
      %v1368 = vunpack.c.l.b16 %v456
      %v1369 = vunpack.c.l.b16 %v457
      %v1370 = vunpack.c.l.b16 %v458
      %v1371 = vunpack.c.l.b16 %v459
      %v1372 = vunpack.c.l.b16 %v460
      %v1373 = vunpack.c.l.b16 %v461
      %v1374 = vunpack.c.l.b16 %v462
      %v1375 = vunpack.c.l.b16 %v463
      %v1376 = vunpack.c.l.b16 %v464
      %v1377 = vunpack.c.l.b16 %v465
      %v1378 = vunpack.c.l.b16 %v466
      %v1379 = vunpack.c.l.b16 %v467
      %v1380 = vunpack.c.l.b16 %v468
      %v1381 = vunpack.c.l.b16 %v469
      %v1382 = vunpack.c.l.b16 %v470
      %v1383 = vunpack.c.l.b16 %v471
      %v1384 = vunpack.c.l.b16 %v472
      %v1385 = vunpack.c.l.b16 %v473
      %v1386 = vunpack.c.l.b16 %v474
      %v1387 = vunpack.c.l.b16 %v475
      %v1388 = vunpack.c.l.b16 %v476
      %v1389 = vunpack.c.l.b16 %v477
      %v1390 = vunpack.c.l.b16 %v478
      %v1391 = vunpack.c.l.b16 %v479
      %v1392 = vunpack.c.l.b16 %v480
      %v1393 = vunpack.c.l.b16 %v481
      %v1394 = vunpack.c.l.b16 %v482
      %v1395 = vunpack.c.l.b16 %v483
      %v1396 = vunpack.c.l.b16 %v484
      %v1397 = vunpack.c.l.b16 %v485
      %v1398 = vunpack.c.l.b16 %v486
      %v1399 = vunpack.c.l.b16 %v487
      %v1400 = vunpack.c.l.b16 %v488
      %v1401 = vunpack.c.l.b16 %v489
      %v1402 = vunpack.c.l.b16 %v490
      %v1403 = vunpack.c.l.b16 %v491
      %v1404 = vunpack.c.l.b16 %v492
      %v1405 = vunpack.c.l.b16 %v493
      %v1406 = vunpack.c.l.b16 %v494
      %v1407 = vunpack.c.l.b16 %v495
      %v1408 = vunpack.c.l.b16 %v496
      %v1409 = vunpack.c.l.b16 %v497
      %v1410 = vunpack.c.l.b16 %v498
      %v1411 = vunpack.c.l.b16 %v499
      %v1412 = vunpack.c.l.b16 %v500
      %v1413 = vunpack.c.l.b16 %v501
      %v1414 = vunpack.c.l.b16 %v502
      %v1415 = vunpack.c.l.b16 %v503
      %v1416 = vunpack.c.l.b16 %v504
      %v1417 = vunpack.c.l.b16 %v505
      %v1418 = vunpack.c.l.b16 %v506
      %v1419 = vunpack.c.l.b16 %v507
      %v1420 = vunpack.c.l.b16 %v508
      %v1421 = vunpack.c.l.b16 %v509
      %v1422 = vunpack.c.l.b16 %v510
      %v1423 = vunpack.c.l.b16 %v511
      %v1424 = vunpack.c.l.b16 %v512
      %v1425 = vunpack.c.l.b16 %v513
      %v1426 = vunpack.c.l.b16 %v514
      %v1427 = vunpack.c.l.b16 %v515
      %v1428 = vunpack.c.l.b16 %v516
      %v1429 = vunpack.c.l.b16 %v517
      %v1430 = vunpack.c.l.b16 %v518
      %v1431 = vunpack.c.l.b16 %v519
      %v1432 = vunpack.c.l.b16 %v520
      %v1433 = vunpack.c.l.b16 %v521
      %v1434 = vunpack.c.l.b16 %v522
      %v1435 = vunpack.c.l.b16 %v523
      %v1436 = vunpack.c.l.b16 %v524
      %v1437 = vunpack.c.l.b16 %v525
      %v1438 = vunpack.c.l.b16 %v526
      %v1439 = vunpack.c.l.b16 %v527
      %v1440 = vunpack.c.l.b16 %v528
      %v1441 = vunpack.c.l.b16 %v529
      %v1442 = vunpack.c.l.b16 %v530
      %v1443 = vunpack.c.l.b16 %v531
      %v1444 = vunpack.c.l.b16 %v532
      %v1445 = vunpack.c.l.b16 %v533
      %v1446 = vunpack.c.l.b16 %v534
      %v1447 = vunpack.c.l.b16 %v535
      %v1448 = vunpack.c.l.b16 %v536
      %v1449 = vunpack.c.l.b16 %v537
      %v1450 = vunpack.c.l.b16 %v538
      %v1451 = vunpack.c.l.b16 %v539
      %v1452 = vunpack.c.l.b16 %v540
      %v1453 = vunpack.c.l.b16 %v541
      %v1454 = vunpack.c.l.b16 %v542
      %v1455 = vunpack.c.l.b16 %v543
      %v1456 = vunpack.c.l.b16 %v544
      %v1457 = vunpack.c.l.b16 %v545
      %v1458 = vunpack.c.l.b16 %v546
      %v1459 = vunpack.c.l.b16 %v547
      %v1460 = vunpack.c.l.b16 %v548
      %v1461 = vunpack.c.l.b16 %v549
      %v1462 = vunpack.c.l.b16 %v550
      %v1463 = vunpack.c.l.b16 %v551
      %v1464 = vunpack.c.l.b16 %v552
      %v1465 = vunpack.c.l.b16 %v553
      %v1466 = vunpack.c.l.b16 %v554
      %v1467 = vunpack.c.l.b16 %v555
      %v1468 = vunpack.c.l.b16 %v556
      %v1469 = vunpack.c.l.b16 %v557
      %v1470 = vunpack.c.l.b16 %v558
      %v1471 = vunpack.c.l.b16 %v559
      %v1472 = vunpack.c.l.b16 %v560
      %v1473 = vunpack.c.l.b16 %v561
      %v1474 = vunpack.c.l.b16 %v562
      %v1475 = vunpack.c.l.b16 %v563
      %v1476 = vunpack.c.l.b16 %v564
      %v1477 = vunpack.c.l.b16 %v565
      %v1478 = vunpack.c.l.b16 %v566
      %v1479 = vunpack.c.l.b16 %v567
      %v1480 = vunpack.c.l.b16 %v568
      %v1481 = vunpack.c.l.b16 %v569
      %v1482 = vunpack.c.l.b16 %v570
      %v1483 = vunpack.c.l.b16 %v571
      %v1484 = vunpack.c.l.b16 %v572
      %v1485 = vunpack.c.l.b16 %v573
      %v1486 = vunpack.c.l.b16 %v574
      %v1487 = vunpack.c.l.b16 %v575
      %v1488 = vunpack.c.l.b16 %v576
      %v1489 = vunpack.c.l.b16 %v577
      %v1490 = vunpack.c.l.b16 %v578
      %v1491 = vunpack.c.l.b16 %v579
      %v1492 = vunpack.c.l.b16 %v580
      %v1493 = vunpack.c.l.b16 %v581
      %v1494 = vunpack.c.l.b16 %v582
      %v1495 = vunpack.c.l.b16 %v583
      %v1496 = vunpack.c.l.b16 %v584
      %v1497 = vunpack.c.l.b16 %v585
      %v1498 = vunpack.c.l.b16 %v586
      %v1499 = vunpack.c.l.b16 %v587
      %v1500 = vunpack.c.l.b16 %v588
      %v1501 = vunpack.c.l.b16 %v589
      %v1502 = vunpack.c.l.b16 %v590
      %v1503 = vunpack.c.l.b16 %v591
      %v1504 = vunpack.c.l.b16 %v592
      %v1505 = vunpack.c.l.b16 %v593
      %v1506 = vunpack.c.l.b16 %v594
      %v1507 = vunpack.c.l.b16 %v595
      %v1508 = vunpack.c.l.b16 %v596
      %v1509 = vpack.c.b16 %v1314, %v1313
      %v1510 = vpack.c.b16 %v1316, %v1315
      %v1511 = vpack.c.b16 %v1318, %v1317
      %v1512 = vpack.c.b16 %v1320, %v1319
      %v1513 = vpack.c.b16 %v1322, %v1321
      %v1514 = vpack.c.b16 %v1324, %v1323
      %v1515 = vpack.c.b16 %v1326, %v1325
      %v1516 = vpack.c.b16 %v1328, %v1327
      %v1517 = vpack.c.b16 %v1330, %v1329
      %v1518 = vpack.c.b16 %v1332, %v1331
      %v1519 = vpack.c.b16 %v1334, %v1333
      %v1520 = vpack.c.b16 %v1336, %v1335
      %v1521 = vpack.c.b16 %v1338, %v1337
      %v1522 = vpack.c.b16 %v1340, %v1339
      %v1523 = vpack.c.b16 %v1342, %v1341
      %v1524 = vpack.c.b16 %v1344, %v1343
      %v1525 = vpack.c.b16 %v1346, %v1345
      %v1526 = vpack.c.b16 %v1348, %v1347
      %v1527 = vpack.c.b16 %v1350, %v1349
      %v1528 = vpack.c.b16 %v1352, %v1351
      %v1529 = vpack.c.b16 %v1354, %v1353
      %v1530 = vpack.c.b16 %v1356, %v1355
      %v1531 = vpack.c.b16 %v1358, %v1357
      %v1532 = vpack.c.b16 %v1360, %v1359
      %v1533 = vpack.c.b16 %v1362, %v1361
      %v1534 = vpack.c.b16 %v1364, %v1363
      %v1535 = vpack.c.b16 %v1366, %v1365
      %v1536 = vpack.c.b16 %v1368, %v1367
      %v1537 = vpack.c.b16 %v1370, %v1369
      %v1538 = vpack.c.b16 %v1372, %v1371
      %v1539 = vpack.c.b16 %v1374, %v1373
      %v1540 = vpack.c.b16 %v1376, %v1375
      %v1541 = vpack.c.b16 %v1378, %v1377
      %v1542 = vpack.c.b16 %v1380, %v1379
      %v1543 = vpack.c.b16 %v1382, %v1381
      %v1544 = vpack.c.b16 %v1384, %v1383
      %v1545 = vpack.c.b16 %v1386, %v1385
      %v1546 = vpack.c.b16 %v1388, %v1387
      %v1547 = vpack.c.b16 %v1390, %v1389
      %v1548 = vpack.c.b16 %v1392, %v1391
      %v1549 = vpack.c.b16 %v1394, %v1393
      %v1550 = vpack.c.b16 %v1396, %v1395
      %v1551 = vpack.c.b16 %v1398, %v1397
      %v1552 = vpack.c.b16 %v1400, %v1399
      %v1553 = vpack.c.b16 %v1402, %v1401
      %v1554 = vpack.c.b16 %v1404, %v1403
      %v1555 = vpack.c.b16 %v1406, %v1405
      %v1556 = vpack.c.b16 %v1408, %v1407
      %v1557 = vpack.c.b16 %v1410, %v1409
      %v1558 = vpack.c.b16 %v1412, %v1411
      %v1559 = vpack.c.b16 %v1414, %v1413
      %v1560 = vpack.c.b16 %v1416, %v1415
      %v1561 = vpack.c.b16 %v1418, %v1417
      %v1562 = vpack.c.b16 %v1420, %v1419
      %v1563 = vpack.c.b16 %v1422, %v1421
      %v1564 = vpack.c.b16 %v1424, %v1423
      %v1565 = vpack.c.b16 %v1426, %v1425
      %v1566 = vpack.c.b16 %v1428, %v1427
      %v1567 = vpack.c.b16 %v1430, %v1429
      %v1568 = vpack.c.b16 %v1432, %v1431
      %v1569 = vpack.c.b16 %v1434, %v1433
      %v1570 = vpack.c.b16 %v1436, %v1435
      %v1571 = vpack.c.b16 %v1438, %v1437
      %v1572 = vpack.c.b16 %v1440, %v1439
      %v1573 = vpack.c.b16 %v1442, %v1441
      %v1574 = vpack.c.b16 %v1444, %v1443
      %v1575 = vpack.c.b16 %v1446, %v1445
      %v1576 = vpack.c.b16 %v1448, %v1447
      %v1577 = vpack.c.b16 %v1450, %v1449
      %v1578 = vpack.c.b16 %v1452, %v1451
      %v1579 = vpack.c.b16 %v1454, %v1453
      %v1580 = vpack.c.b16 %v1456, %v1455
      %v1581 = vpack.c.b16 %v1458, %v1457
      %v1582 = vpack.c.b16 %v1460, %v1459
      %v1583 = vpack.c.b16 %v1462, %v1461
      %v1584 = vpack.c.b16 %v1464, %v1463
      %v1585 = vpack.c.b16 %v1466, %v1465
      %v1586 = vpack.c.b16 %v1468, %v1467
      %v1587 = vpack.c.b16 %v1470, %v1469
      %v1588 = vpack.c.b16 %v1472, %v1471
      %v1589 = vpack.c.b16 %v1474, %v1473
      %v1590 = vpack.c.b16 %v1476, %v1475
      %v1591 = vpack.c.b16 %v1478, %v1477
      %v1592 = vpack.c.b16 %v1480, %v1479
      %v1593 = vpack.c.b16 %v1482, %v1481
      %v1594 = vpack.c.b16 %v1484, %v1483
      %v1595 = vpack.c.b16 %v1486, %v1485
      %v1596 = vpack.c.b16 %v1488, %v1487
      %v1597 = vpack.c.b16 %v1490, %v1489
      %v1598 = vpack.c.b16 %v1492, %v1491
      %v1599 = vpack.c.b16 %v1494, %v1493
      %v1600 = vpack.c.b16 %v1496, %v1495
      %v1601 = vpack.c.b16 %v1498, %v1497
      %v1602 = vpack.c.b16 %v1500, %v1499
      %v1603 = vpack.c.b16 %v1502, %v1501
      %v1604 = vpack.c.b16 %v1504, %v1503
      %v1605 = vpack.c.b16 %v1506, %v1505
      %v1606 = vpack.c.b16 %v1508, %v1507
      %vm1705 = vcmask 261120
      %v1707 = vsel %vm1705, %v929, 0
      %v1710 = vsel %vm1705, %v942, 0
      %v1713 = vsel %vm1705, %v955, 0
      %v1716 = vsel %vm1705, %v968, 0
      %v1719 = vsel %vm1705, %v981, 0
      %v1722 = vsel %vm1705, %v994, 0
      %v1725 = vsel %vm1705, %v1007, 0
      %v1728 = vsel %vm1705, %v1020, 0
      %1730 = vmatprep.subr.bf16.mxu0 0
      %1731 = vmatpush1.bf16.msra.mxu0 %v1516
      %1732 = vmatprep.subr.bf16.mxu0 0
      %1733 = vmatpush1.bf16.msra.mxu0 %v1515
      %1734 = vmatprep.subr.bf16.mxu0 0
      %1735 = vmatpush1.bf16.msra.mxu0 %v1514
      %1736 = vmatprep.subr.bf16.mxu0 0
      %1737 = vmatpush1.bf16.msra.mxu0 %v1513
      %1738 = vmatprep.subr.bf16.mxu0 0
      %1739 = vmatpush1.bf16.msra.mxu0 %v1512
      %1740 = vmatprep.subr.bf16.mxu0 0
      %1741 = vmatpush1.bf16.msra.mxu0 %v1511
      %1742 = vmatprep.subr.bf16.mxu0 0
      %1743 = vmatpush1.bf16.msra.mxu0 %v1510
      %1744 = vmatprep.subr.bf16.mxu0 0
      %1745 = vmatpush1.bf16.msra.mxu0 %v1509
      %1746 = vmatprep.subr.bf16.mxu0 0
      %1747 = vmatpush2.bf16.msra.mxu0 %v1524
      %1748 = vmatprep.subr.bf16.mxu0 0
      %1749 = vmatpush2.bf16.msra.mxu0 %v1523
      %1750 = vmatprep.subr.bf16.mxu0 0
      %1751 = vmatpush2.bf16.msra.mxu0 %v1522
      %1752 = vmatprep.subr.bf16.mxu0 0
      %1753 = vmatpush2.bf16.msra.mxu0 %v1521
      %1754 = vmatprep.subr.bf16.mxu0 0
      %1755 = vmatpush2.bf16.msra.mxu0 %v1520
      %1756 = vmatprep.subr.bf16.mxu0 0
      %1757 = vmatpush2.bf16.msra.mxu0 %v1519
      %1758 = vmatprep.subr.bf16.mxu0 0
      %1759 = vmatpush2.bf16.msra.mxu0 %v1518
      %1760 = vmatprep.subr.bf16.mxu0 0
      %1761 = vmatpush2.bf16.msra.mxu0 %v1517
      %1762 = vmatprep.mubr.bf16.mxu0 %v918
      %1763 = vmatmul.mubr.bf16.gmra.mxu0 %v917
      %v1764 = vpop.f32.mrf.mxu0
      %v1765 = vadd.f32 0.0, %v1764
      %v1766 = vpop.f32.mrf.mxu0
      %v1767 = vpop.f32.mrf.mxu0
      %v1768 = vadd.f32 0.0, %v1767
      %v1769 = vpop.f32.mrf.mxu0
      %1770 = vmatprep.mubr.bf16.mxu0 %v931
      %1771 = vmatmul.mubr.bf16.gmra.mxu0 %v930
      %v1772 = vpop.f32.mrf.mxu0
      %v1773 = vadd.f32 0.0, %v1772
      %v1774 = vpop.f32.mrf.mxu0
      %v1775 = vpop.f32.mrf.mxu0
      %v1776 = vadd.f32 0.0, %v1775
      %v1777 = vpop.f32.mrf.mxu0
      %1778 = vmatprep.mubr.bf16.mxu0 %v944
      %1779 = vmatmul.mubr.bf16.gmra.mxu0 %v943
      %v1780 = vpop.f32.mrf.mxu0
      %v1781 = vadd.f32 0.0, %v1780
      %v1782 = vpop.f32.mrf.mxu0
      %v1783 = vpop.f32.mrf.mxu0
      %v1784 = vadd.f32 0.0, %v1783
      %v1785 = vpop.f32.mrf.mxu0
      %1786 = vmatprep.mubr.bf16.mxu0 %v957
      %1787 = vmatmul.mubr.bf16.gmra.mxu0 %v956
      %v1788 = vpop.f32.mrf.mxu0
      %v1789 = vadd.f32 0.0, %v1788
      %v1790 = vpop.f32.mrf.mxu0
      %v1791 = vpop.f32.mrf.mxu0
      %v1792 = vadd.f32 0.0, %v1791
      %v1793 = vpop.f32.mrf.mxu0
      %1794 = vmatprep.mubr.bf16.mxu0 %v970
      %1795 = vmatmul.mubr.bf16.gmra.mxu0 %v969
      %v1796 = vpop.f32.mrf.mxu0
      %v1797 = vadd.f32 0.0, %v1796
      %v1798 = vpop.f32.mrf.mxu0
      %v1799 = vpop.f32.mrf.mxu0
      %v1800 = vadd.f32 0.0, %v1799
      %v1801 = vpop.f32.mrf.mxu0
      %1802 = vmatprep.mubr.bf16.mxu0 %v983
      %1803 = vmatmul.mubr.bf16.gmra.mxu0 %v982
      %v1804 = vpop.f32.mrf.mxu0
      %v1805 = vadd.f32 0.0, %v1804
      %v1806 = vpop.f32.mrf.mxu0
      %v1807 = vpop.f32.mrf.mxu0
      %v1808 = vadd.f32 0.0, %v1807
      %v1809 = vpop.f32.mrf.mxu0
      %1810 = vmatprep.mubr.bf16.mxu0 %v996
      %1811 = vmatmul.mubr.bf16.gmra.mxu0 %v995
      %v1812 = vpop.f32.mrf.mxu0
      %v1813 = vadd.f32 0.0, %v1812
      %v1814 = vpop.f32.mrf.mxu0
      %v1815 = vpop.f32.mrf.mxu0
      %v1816 = vadd.f32 0.0, %v1815
      %v1817 = vpop.f32.mrf.mxu0
      %1818 = vmatprep.mubr.bf16.mxu0 %v1009
      %1819 = vmatmul.mubr.bf16.gmra.mxu0 %v1008
      %v1820 = vpop.f32.mrf.mxu0
      %v1821 = vadd.f32 0.0, %v1820
      %v1822 = vpop.f32.mrf.mxu0
      %v1823 = vpop.f32.mrf.mxu0
      %v1824 = vadd.f32 0.0, %v1823
      %v1825 = vpop.f32.mrf.mxu0
      %1826 = vdwg.mxu0
      %1827 = vmatprep.subr.bf16.mxu0 0
      %1828 = vmatpush1.bf16.msra.mxu0 %v1532
      %1829 = vmatprep.subr.bf16.mxu0 0
      %1830 = vmatpush1.bf16.msra.mxu0 %v1531
      %1831 = vmatprep.subr.bf16.mxu0 0
      %1832 = vmatpush1.bf16.msra.mxu0 %v1530
      %1833 = vmatprep.subr.bf16.mxu0 0
      %1834 = vmatpush1.bf16.msra.mxu0 %v1529
      %1835 = vmatprep.subr.bf16.mxu0 0
      %1836 = vmatpush1.bf16.msra.mxu0 %v1528
      %1837 = vmatprep.subr.bf16.mxu0 0
      %1838 = vmatpush1.bf16.msra.mxu0 %v1527
      %1839 = vmatprep.subr.bf16.mxu0 0
      %1840 = vmatpush1.bf16.msra.mxu0 %v1526
      %1841 = vmatprep.subr.bf16.mxu0 0
      %1842 = vmatpush1.bf16.msra.mxu0 %v1525
      %1843 = vmatprep.subr.bf16.mxu0 0
      %1844 = vmatpush2.bf16.msra.mxu0 %v1540
      %1845 = vmatprep.subr.bf16.mxu0 0
      %1846 = vmatpush2.bf16.msra.mxu0 %v1539
      %1847 = vmatprep.subr.bf16.mxu0 0
      %1848 = vmatpush2.bf16.msra.mxu0 %v1538
      %1849 = vmatprep.subr.bf16.mxu0 0
      %1850 = vmatpush2.bf16.msra.mxu0 %v1537
      %1851 = vmatprep.subr.bf16.mxu0 0
      %1852 = vmatpush2.bf16.msra.mxu0 %v1536
      %1853 = vmatprep.subr.bf16.mxu0 0
      %1854 = vmatpush2.bf16.msra.mxu0 %v1535
      %1855 = vmatprep.subr.bf16.mxu0 0
      %1856 = vmatpush2.bf16.msra.mxu0 %v1534
      %1857 = vmatprep.subr.bf16.mxu0 0
      %1858 = vmatpush2.bf16.msra.mxu0 %v1533
      %1859 = vmatprep.mubr.bf16.mxu0 %v920
      %1860 = vmatmul.mubr.bf16.gmra.mxu0 %v919
      %v1861 = vpop.f32.mrf.mxu0
      %v1862 = vadd.f32 %v1765, %v1861
      %v1863 = vpop.f32.mrf.mxu0
      %v1864 = vpop.f32.mrf.mxu0
      %v1865 = vadd.f32 %v1768, %v1864
      %v1866 = vpop.f32.mrf.mxu0
      %1867 = vmatprep.mubr.bf16.mxu0 %v933
      %1868 = vmatmul.mubr.bf16.gmra.mxu0 %v932
      %v1869 = vpop.f32.mrf.mxu0
      %v1870 = vadd.f32 %v1773, %v1869
      %v1871 = vpop.f32.mrf.mxu0
      %v1872 = vpop.f32.mrf.mxu0
      %v1873 = vadd.f32 %v1776, %v1872
      %v1874 = vpop.f32.mrf.mxu0
      %1875 = vmatprep.mubr.bf16.mxu0 %v946
      %1876 = vmatmul.mubr.bf16.gmra.mxu0 %v945
      %v1877 = vpop.f32.mrf.mxu0
      %v1878 = vadd.f32 %v1781, %v1877
      %v1879 = vpop.f32.mrf.mxu0
      %v1880 = vpop.f32.mrf.mxu0
      %v1881 = vadd.f32 %v1784, %v1880
      %v1882 = vpop.f32.mrf.mxu0
      %1883 = vmatprep.mubr.bf16.mxu0 %v959
      %1884 = vmatmul.mubr.bf16.gmra.mxu0 %v958
      %v1885 = vpop.f32.mrf.mxu0
      %v1886 = vadd.f32 %v1789, %v1885
      %v1887 = vpop.f32.mrf.mxu0
      %v1888 = vpop.f32.mrf.mxu0
      %v1889 = vadd.f32 %v1792, %v1888
      %v1890 = vpop.f32.mrf.mxu0
      %1891 = vmatprep.mubr.bf16.mxu0 %v972
      %1892 = vmatmul.mubr.bf16.gmra.mxu0 %v971
      %v1893 = vpop.f32.mrf.mxu0
      %v1894 = vadd.f32 %v1797, %v1893
      %v1895 = vpop.f32.mrf.mxu0
      %v1896 = vpop.f32.mrf.mxu0
      %v1897 = vadd.f32 %v1800, %v1896
      %v1898 = vpop.f32.mrf.mxu0
      %1899 = vmatprep.mubr.bf16.mxu0 %v985
      %1900 = vmatmul.mubr.bf16.gmra.mxu0 %v984
      %v1901 = vpop.f32.mrf.mxu0
      %v1902 = vadd.f32 %v1805, %v1901
      %v1903 = vpop.f32.mrf.mxu0
      %v1904 = vpop.f32.mrf.mxu0
      %v1905 = vadd.f32 %v1808, %v1904
      %v1906 = vpop.f32.mrf.mxu0
      %1907 = vmatprep.mubr.bf16.mxu0 %v998
      %1908 = vmatmul.mubr.bf16.gmra.mxu0 %v997
      %v1909 = vpop.f32.mrf.mxu0
      %v1910 = vadd.f32 %v1813, %v1909
      %v1911 = vpop.f32.mrf.mxu0
      %v1912 = vpop.f32.mrf.mxu0
      %v1913 = vadd.f32 %v1816, %v1912
      %v1914 = vpop.f32.mrf.mxu0
      %1915 = vmatprep.mubr.bf16.mxu0 %v1011
      %1916 = vmatmul.mubr.bf16.gmra.mxu0 %v1010
      %v1917 = vpop.f32.mrf.mxu0
      %v1918 = vadd.f32 %v1821, %v1917
      %v1919 = vpop.f32.mrf.mxu0
      %v1920 = vpop.f32.mrf.mxu0
      %v1921 = vadd.f32 %v1824, %v1920
      %v1922 = vpop.f32.mrf.mxu0
      %1923 = vdwg.mxu0
      %1924 = vmatprep.subr.bf16.mxu0 0
      %1925 = vmatpush1.bf16.msra.mxu0 %v1548
      %1926 = vmatprep.subr.bf16.mxu0 0
      %1927 = vmatpush1.bf16.msra.mxu0 %v1547
      %1928 = vmatprep.subr.bf16.mxu0 0
      %1929 = vmatpush1.bf16.msra.mxu0 %v1546
      %1930 = vmatprep.subr.bf16.mxu0 0
      %1931 = vmatpush1.bf16.msra.mxu0 %v1545
      %1932 = vmatprep.subr.bf16.mxu0 0
      %1933 = vmatpush1.bf16.msra.mxu0 %v1544
      %1934 = vmatprep.subr.bf16.mxu0 0
      %1935 = vmatpush1.bf16.msra.mxu0 %v1543
      %1936 = vmatprep.subr.bf16.mxu0 0
      %1937 = vmatpush1.bf16.msra.mxu0 %v1542
      %1938 = vmatprep.subr.bf16.mxu0 0
      %1939 = vmatpush1.bf16.msra.mxu0 %v1541
      %1940 = vmatprep.subr.bf16.mxu0 0
      %1941 = vmatpush2.bf16.msra.mxu0 %v1556
      %1942 = vmatprep.subr.bf16.mxu0 0
      %1943 = vmatpush2.bf16.msra.mxu0 %v1555
      %1944 = vmatprep.subr.bf16.mxu0 0
      %1945 = vmatpush2.bf16.msra.mxu0 %v1554
      %1946 = vmatprep.subr.bf16.mxu0 0
      %1947 = vmatpush2.bf16.msra.mxu0 %v1553
      %1948 = vmatprep.subr.bf16.mxu0 0
      %1949 = vmatpush2.bf16.msra.mxu0 %v1552
      %1950 = vmatprep.subr.bf16.mxu0 0
      %1951 = vmatpush2.bf16.msra.mxu0 %v1551
      %1952 = vmatprep.subr.bf16.mxu0 0
      %1953 = vmatpush2.bf16.msra.mxu0 %v1550
      %1954 = vmatprep.subr.bf16.mxu0 0
      %1955 = vmatpush2.bf16.msra.mxu0 %v1549
      %1956 = vmatprep.mubr.bf16.mxu0 %v922
      %1957 = vmatmul.mubr.bf16.gmra.mxu0 %v921
      %v1958 = vpop.f32.mrf.mxu0
      %v1959 = vadd.f32 %v1862, %v1958
      %v1960 = vpop.f32.mrf.mxu0
      %v1961 = vpop.f32.mrf.mxu0
      %v1962 = vadd.f32 %v1865, %v1961
      %v1963 = vpop.f32.mrf.mxu0
      %1964 = vmatprep.mubr.bf16.mxu0 %v935
      %1965 = vmatmul.mubr.bf16.gmra.mxu0 %v934
      %v1966 = vpop.f32.mrf.mxu0
      %v1967 = vadd.f32 %v1870, %v1966
      %v1968 = vpop.f32.mrf.mxu0
      %v1969 = vpop.f32.mrf.mxu0
      %v1970 = vadd.f32 %v1873, %v1969
      %v1971 = vpop.f32.mrf.mxu0
      %1972 = vmatprep.mubr.bf16.mxu0 %v948
      %1973 = vmatmul.mubr.bf16.gmra.mxu0 %v947
      %v1974 = vpop.f32.mrf.mxu0
      %v1975 = vadd.f32 %v1878, %v1974
      %v1976 = vpop.f32.mrf.mxu0
      %v1977 = vpop.f32.mrf.mxu0
      %v1978 = vadd.f32 %v1881, %v1977
      %v1979 = vpop.f32.mrf.mxu0
      %1980 = vmatprep.mubr.bf16.mxu0 %v961
      %1981 = vmatmul.mubr.bf16.gmra.mxu0 %v960
      %v1982 = vpop.f32.mrf.mxu0
      %v1983 = vadd.f32 %v1886, %v1982
      %v1984 = vpop.f32.mrf.mxu0
      %v1985 = vpop.f32.mrf.mxu0
      %v1986 = vadd.f32 %v1889, %v1985
      %v1987 = vpop.f32.mrf.mxu0
      %1988 = vmatprep.mubr.bf16.mxu0 %v974
      %1989 = vmatmul.mubr.bf16.gmra.mxu0 %v973
      %v1990 = vpop.f32.mrf.mxu0
      %v1991 = vadd.f32 %v1894, %v1990
      %v1992 = vpop.f32.mrf.mxu0
      %v1993 = vpop.f32.mrf.mxu0
      %v1994 = vadd.f32 %v1897, %v1993
      %v1995 = vpop.f32.mrf.mxu0
      %1996 = vmatprep.mubr.bf16.mxu0 %v987
      %1997 = vmatmul.mubr.bf16.gmra.mxu0 %v986
      %v1998 = vpop.f32.mrf.mxu0
      %v1999 = vadd.f32 %v1902, %v1998
      %v2000 = vpop.f32.mrf.mxu0
      %v2001 = vpop.f32.mrf.mxu0
      %v2002 = vadd.f32 %v1905, %v2001
      %v2003 = vpop.f32.mrf.mxu0
      %2004 = vmatprep.mubr.bf16.mxu0 %v1000
      %2005 = vmatmul.mubr.bf16.gmra.mxu0 %v999
      %v2006 = vpop.f32.mrf.mxu0
      %v2007 = vadd.f32 %v1910, %v2006
      %v2008 = vpop.f32.mrf.mxu0
      %v2009 = vpop.f32.mrf.mxu0
      %v2010 = vadd.f32 %v1913, %v2009
      %v2011 = vpop.f32.mrf.mxu0
      %2012 = vmatprep.mubr.bf16.mxu0 %v1013
      %2013 = vmatmul.mubr.bf16.gmra.mxu0 %v1012
      %v2014 = vpop.f32.mrf.mxu0
      %v2015 = vadd.f32 %v1918, %v2014
      %v2016 = vpop.f32.mrf.mxu0
      %v2017 = vpop.f32.mrf.mxu0
      %v2018 = vadd.f32 %v1921, %v2017
      %v2019 = vpop.f32.mrf.mxu0
      %2020 = vdwg.mxu0
      %2021 = vmatprep.subr.bf16.mxu0 0
      %2022 = vmatpush1.bf16.msra.mxu0 %v1564
      %2023 = vmatprep.subr.bf16.mxu0 0
      %2024 = vmatpush1.bf16.msra.mxu0 %v1563
      %2025 = vmatprep.subr.bf16.mxu0 0
      %2026 = vmatpush1.bf16.msra.mxu0 %v1562
      %2027 = vmatprep.subr.bf16.mxu0 0
      %2028 = vmatpush1.bf16.msra.mxu0 %v1561
      %2029 = vmatprep.subr.bf16.mxu0 0
      %2030 = vmatpush1.bf16.msra.mxu0 %v1560
      %2031 = vmatprep.subr.bf16.mxu0 0
      %2032 = vmatpush1.bf16.msra.mxu0 %v1559
      %2033 = vmatprep.subr.bf16.mxu0 0
      %2034 = vmatpush1.bf16.msra.mxu0 %v1558
      %2035 = vmatprep.subr.bf16.mxu0 0
      %2036 = vmatpush1.bf16.msra.mxu0 %v1557
      %2037 = vmatprep.subr.bf16.mxu0 0
      %2038 = vmatpush2.bf16.msra.mxu0 %v1572
      %2039 = vmatprep.subr.bf16.mxu0 0
      %2040 = vmatpush2.bf16.msra.mxu0 %v1571
      %2041 = vmatprep.subr.bf16.mxu0 0
      %2042 = vmatpush2.bf16.msra.mxu0 %v1570
      %2043 = vmatprep.subr.bf16.mxu0 0
      %2044 = vmatpush2.bf16.msra.mxu0 %v1569
      %2045 = vmatprep.subr.bf16.mxu0 0
      %2046 = vmatpush2.bf16.msra.mxu0 %v1568
      %2047 = vmatprep.subr.bf16.mxu0 0
      %2048 = vmatpush2.bf16.msra.mxu0 %v1567
      %2049 = vmatprep.subr.bf16.mxu0 0
      %2050 = vmatpush2.bf16.msra.mxu0 %v1566
      %2051 = vmatprep.subr.bf16.mxu0 0
      %2052 = vmatpush2.bf16.msra.mxu0 %v1565
      %2053 = vmatprep.mubr.bf16.mxu0 %v924
      %2054 = vmatmul.mubr.bf16.gmra.mxu0 %v923
      %v2055 = vpop.f32.mrf.mxu0
      %v2056 = vadd.f32 %v1959, %v2055
      %v2057 = vpop.f32.mrf.mxu0
      %v2058 = vpop.f32.mrf.mxu0
      %v2059 = vadd.f32 %v1962, %v2058
      %v2060 = vpop.f32.mrf.mxu0
      %2061 = vmatprep.mubr.bf16.mxu0 %v937
      %2062 = vmatmul.mubr.bf16.gmra.mxu0 %v936
      %v2063 = vpop.f32.mrf.mxu0
      %v2064 = vadd.f32 %v1967, %v2063
      %v2065 = vpop.f32.mrf.mxu0
      %v2066 = vpop.f32.mrf.mxu0
      %v2067 = vadd.f32 %v1970, %v2066
      %v2068 = vpop.f32.mrf.mxu0
      %2069 = vmatprep.mubr.bf16.mxu0 %v950
      %2070 = vmatmul.mubr.bf16.gmra.mxu0 %v949
      %v2071 = vpop.f32.mrf.mxu0
      %v2072 = vadd.f32 %v1975, %v2071
      %v2073 = vpop.f32.mrf.mxu0
      %v2074 = vpop.f32.mrf.mxu0
      %v2075 = vadd.f32 %v1978, %v2074
      %v2076 = vpop.f32.mrf.mxu0
      %2077 = vmatprep.mubr.bf16.mxu0 %v963
      %2078 = vmatmul.mubr.bf16.gmra.mxu0 %v962
      %v2079 = vpop.f32.mrf.mxu0
      %v2080 = vadd.f32 %v1983, %v2079
      %v2081 = vpop.f32.mrf.mxu0
      %v2082 = vpop.f32.mrf.mxu0
      %v2083 = vadd.f32 %v1986, %v2082
      %v2084 = vpop.f32.mrf.mxu0
      %2085 = vmatprep.mubr.bf16.mxu0 %v976
      %2086 = vmatmul.mubr.bf16.gmra.mxu0 %v975
      %v2087 = vpop.f32.mrf.mxu0
      %v2088 = vadd.f32 %v1991, %v2087
      %v2089 = vpop.f32.mrf.mxu0
      %v2090 = vpop.f32.mrf.mxu0
      %v2091 = vadd.f32 %v1994, %v2090
      %v2092 = vpop.f32.mrf.mxu0
      %2093 = vmatprep.mubr.bf16.mxu0 %v989
      %2094 = vmatmul.mubr.bf16.gmra.mxu0 %v988
      %v2095 = vpop.f32.mrf.mxu0
      %v2096 = vadd.f32 %v1999, %v2095
      %v2097 = vpop.f32.mrf.mxu0
      %v2098 = vpop.f32.mrf.mxu0
      %v2099 = vadd.f32 %v2002, %v2098
      %v2100 = vpop.f32.mrf.mxu0
      %2101 = vmatprep.mubr.bf16.mxu0 %v1002
      %2102 = vmatmul.mubr.bf16.gmra.mxu0 %v1001
      %v2103 = vpop.f32.mrf.mxu0
      %v2104 = vadd.f32 %v2007, %v2103
      %v2105 = vpop.f32.mrf.mxu0
      %v2106 = vpop.f32.mrf.mxu0
      %v2107 = vadd.f32 %v2010, %v2106
      %v2108 = vpop.f32.mrf.mxu0
      %2109 = vmatprep.mubr.bf16.mxu0 %v1015
      %2110 = vmatmul.mubr.bf16.gmra.mxu0 %v1014
      %v2111 = vpop.f32.mrf.mxu0
      %v2112 = vadd.f32 %v2015, %v2111
      %v2113 = vpop.f32.mrf.mxu0
      %v2114 = vpop.f32.mrf.mxu0
      %v2115 = vadd.f32 %v2018, %v2114
      %v2116 = vpop.f32.mrf.mxu0
      %2117 = vdwg.mxu0
      %2118 = vmatprep.subr.bf16.mxu0 0
      %2119 = vmatpush1.bf16.msra.mxu0 %v1580
      %2120 = vmatprep.subr.bf16.mxu0 0
      %2121 = vmatpush1.bf16.msra.mxu0 %v1579
      %2122 = vmatprep.subr.bf16.mxu0 0
      %2123 = vmatpush1.bf16.msra.mxu0 %v1578
      %2124 = vmatprep.subr.bf16.mxu0 0
      %2125 = vmatpush1.bf16.msra.mxu0 %v1577
      %2126 = vmatprep.subr.bf16.mxu0 0
      %2127 = vmatpush1.bf16.msra.mxu0 %v1576
      %2128 = vmatprep.subr.bf16.mxu0 0
      %2129 = vmatpush1.bf16.msra.mxu0 %v1575
      %2130 = vmatprep.subr.bf16.mxu0 0
      %2131 = vmatpush1.bf16.msra.mxu0 %v1574
      %2132 = vmatprep.subr.bf16.mxu0 0
      %2133 = vmatpush1.bf16.msra.mxu0 %v1573
      %2134 = vmatprep.subr.bf16.mxu0 0
      %2135 = vmatpush2.bf16.msra.mxu0 %v1588
      %2136 = vmatprep.subr.bf16.mxu0 0
      %2137 = vmatpush2.bf16.msra.mxu0 %v1587
      %2138 = vmatprep.subr.bf16.mxu0 0
      %2139 = vmatpush2.bf16.msra.mxu0 %v1586
      %2140 = vmatprep.subr.bf16.mxu0 0
      %2141 = vmatpush2.bf16.msra.mxu0 %v1585
      %2142 = vmatprep.subr.bf16.mxu0 0
      %2143 = vmatpush2.bf16.msra.mxu0 %v1584
      %2144 = vmatprep.subr.bf16.mxu0 0
      %2145 = vmatpush2.bf16.msra.mxu0 %v1583
      %2146 = vmatprep.subr.bf16.mxu0 0
      %2147 = vmatpush2.bf16.msra.mxu0 %v1582
      %2148 = vmatprep.subr.bf16.mxu0 0
      %2149 = vmatpush2.bf16.msra.mxu0 %v1581
      %2150 = vmatprep.mubr.bf16.mxu0 %v926
      %2151 = vmatmul.mubr.bf16.gmra.mxu0 %v925
      %v2152 = vpop.f32.mrf.mxu0
      %v2153 = vadd.f32 %v2056, %v2152
      %v2154 = vpop.f32.mrf.mxu0
      %v2155 = vpop.f32.mrf.mxu0
      %v2156 = vadd.f32 %v2059, %v2155
      %v2157 = vpop.f32.mrf.mxu0
      %2158 = vmatprep.mubr.bf16.mxu0 %v939
      %2159 = vmatmul.mubr.bf16.gmra.mxu0 %v938
      %v2160 = vpop.f32.mrf.mxu0
      %v2161 = vadd.f32 %v2064, %v2160
      %v2162 = vpop.f32.mrf.mxu0
      %v2163 = vpop.f32.mrf.mxu0
      %v2164 = vadd.f32 %v2067, %v2163
      %v2165 = vpop.f32.mrf.mxu0
      %2166 = vmatprep.mubr.bf16.mxu0 %v952
      %2167 = vmatmul.mubr.bf16.gmra.mxu0 %v951
      %v2168 = vpop.f32.mrf.mxu0
      %v2169 = vadd.f32 %v2072, %v2168
      %v2170 = vpop.f32.mrf.mxu0
      %v2171 = vpop.f32.mrf.mxu0
      %v2172 = vadd.f32 %v2075, %v2171
      %v2173 = vpop.f32.mrf.mxu0
      %2174 = vmatprep.mubr.bf16.mxu0 %v965
      %2175 = vmatmul.mubr.bf16.gmra.mxu0 %v964
      %v2176 = vpop.f32.mrf.mxu0
      %v2177 = vadd.f32 %v2080, %v2176
      %v2178 = vpop.f32.mrf.mxu0
      %v2179 = vpop.f32.mrf.mxu0
      %v2180 = vadd.f32 %v2083, %v2179
      %v2181 = vpop.f32.mrf.mxu0
      %2182 = vmatprep.mubr.bf16.mxu0 %v978
      %2183 = vmatmul.mubr.bf16.gmra.mxu0 %v977
      %v2184 = vpop.f32.mrf.mxu0
      %v2185 = vadd.f32 %v2088, %v2184
      %v2186 = vpop.f32.mrf.mxu0
      %v2187 = vpop.f32.mrf.mxu0
      %v2188 = vadd.f32 %v2091, %v2187
      %v2189 = vpop.f32.mrf.mxu0
      %2190 = vmatprep.mubr.bf16.mxu0 %v991
      %2191 = vmatmul.mubr.bf16.gmra.mxu0 %v990
      %v2192 = vpop.f32.mrf.mxu0
      %v2193 = vadd.f32 %v2096, %v2192
      %v2194 = vpop.f32.mrf.mxu0
      %v2195 = vpop.f32.mrf.mxu0
      %v2196 = vadd.f32 %v2099, %v2195
      %v2197 = vpop.f32.mrf.mxu0
      %2198 = vmatprep.mubr.bf16.mxu0 %v1004
      %2199 = vmatmul.mubr.bf16.gmra.mxu0 %v1003
      %v2200 = vpop.f32.mrf.mxu0
      %v2201 = vadd.f32 %v2104, %v2200
      %v2202 = vpop.f32.mrf.mxu0
      %v2203 = vpop.f32.mrf.mxu0
      %v2204 = vadd.f32 %v2107, %v2203
      %v2205 = vpop.f32.mrf.mxu0
      %2206 = vmatprep.mubr.bf16.mxu0 %v1017
      %2207 = vmatmul.mubr.bf16.gmra.mxu0 %v1016
      %v2208 = vpop.f32.mrf.mxu0
      %v2209 = vadd.f32 %v2112, %v2208
      %v2210 = vpop.f32.mrf.mxu0
      %v2211 = vpop.f32.mrf.mxu0
      %v2212 = vadd.f32 %v2115, %v2211
      %v2213 = vpop.f32.mrf.mxu0
      %2214 = vdwg.mxu0
      %2215 = vmatprep.subr.bf16.mxu0 0
      %2216 = vmatpush1.bf16.msra.mxu0 %v1596
      %2217 = vmatprep.subr.bf16.mxu0 0
      %2218 = vmatpush1.bf16.msra.mxu0 %v1595
      %2219 = vmatprep.subr.bf16.mxu0 0
      %2220 = vmatpush1.bf16.msra.mxu0 %v1594
      %2221 = vmatprep.subr.bf16.mxu0 0
      %2222 = vmatpush1.bf16.msra.mxu0 %v1593
      %2223 = vmatprep.subr.bf16.mxu0 0
      %2224 = vmatpush1.bf16.msra.mxu0 %v1592
      %2225 = vmatprep.subr.bf16.mxu0 0
      %2226 = vmatpush1.bf16.msra.mxu0 %v1591
      %2227 = vmatprep.subr.bf16.mxu0 0
      %2228 = vmatpush1.bf16.msra.mxu0 %v1590
      %2229 = vmatprep.subr.bf16.mxu0 0
      %2230 = vmatpush1.bf16.msra.mxu0 %v1589
      %2231 = vmatprep.subr.bf16.mxu0 0
      %2232 = vmatpush2.bf16.msra.mxu0 %v1604
      %2233 = vmatprep.subr.bf16.mxu0 0
      %2234 = vmatpush2.bf16.msra.mxu0 %v1603
      %2235 = vmatprep.subr.bf16.mxu0 0
      %2236 = vmatpush2.bf16.msra.mxu0 %v1602
      %2237 = vmatprep.subr.bf16.mxu0 0
      %2238 = vmatpush2.bf16.msra.mxu0 %v1601
      %2239 = vmatprep.subr.bf16.mxu0 0
      %2240 = vmatpush2.bf16.msra.mxu0 %v1600
      %2241 = vmatprep.subr.bf16.mxu0 0
      %2242 = vmatpush2.bf16.msra.mxu0 %v1599
      %2243 = vmatprep.subr.bf16.mxu0 0
      %2244 = vmatpush2.bf16.msra.mxu0 %v1598
      %2245 = vmatprep.subr.bf16.mxu0 0
      %2246 = vmatpush2.bf16.msra.mxu0 %v1597
      %2247 = vmatprep.mubr.bf16.mxu0 %v928
      %2248 = vmatmul.mubr.bf16.gmra.mxu0 %v927
      %v2249 = vpop.f32.mrf.mxu0
      %v2250 = vadd.f32 %v2153, %v2249
      %v2251 = vpop.f32.mrf.mxu0
      %v2252 = vpop.f32.mrf.mxu0
      %v2253 = vadd.f32 %v2156, %v2252
      %v2254 = vpop.f32.mrf.mxu0
      %2255 = vmatprep.mubr.bf16.mxu0 %v941
      %2256 = vmatmul.mubr.bf16.gmra.mxu0 %v940
      %v2257 = vpop.f32.mrf.mxu0
      %v2258 = vadd.f32 %v2161, %v2257
      %v2259 = vpop.f32.mrf.mxu0
      %v2260 = vpop.f32.mrf.mxu0
      %v2261 = vadd.f32 %v2164, %v2260
      %v2262 = vpop.f32.mrf.mxu0
      %2263 = vmatprep.mubr.bf16.mxu0 %v954
      %2264 = vmatmul.mubr.bf16.gmra.mxu0 %v953
      %v2265 = vpop.f32.mrf.mxu0
      %v2266 = vadd.f32 %v2169, %v2265
      %v2267 = vpop.f32.mrf.mxu0
      %v2268 = vpop.f32.mrf.mxu0
      %v2269 = vadd.f32 %v2172, %v2268
      %v2270 = vpop.f32.mrf.mxu0
      %2271 = vmatprep.mubr.bf16.mxu0 %v967
      %2272 = vmatmul.mubr.bf16.gmra.mxu0 %v966
      %v2273 = vpop.f32.mrf.mxu0
      %v2274 = vadd.f32 %v2177, %v2273
      %v2275 = vpop.f32.mrf.mxu0
      %v2276 = vpop.f32.mrf.mxu0
      %v2277 = vadd.f32 %v2180, %v2276
      %v2278 = vpop.f32.mrf.mxu0
      %2279 = vmatprep.mubr.bf16.mxu0 %v980
      %2280 = vmatmul.mubr.bf16.gmra.mxu0 %v979
      %v2281 = vpop.f32.mrf.mxu0
      %v2282 = vadd.f32 %v2185, %v2281
      %v2283 = vpop.f32.mrf.mxu0
      %v2284 = vpop.f32.mrf.mxu0
      %v2285 = vadd.f32 %v2188, %v2284
      %v2286 = vpop.f32.mrf.mxu0
      %2287 = vmatprep.mubr.bf16.mxu0 %v993
      %2288 = vmatmul.mubr.bf16.gmra.mxu0 %v992
      %v2289 = vpop.f32.mrf.mxu0
      %v2290 = vadd.f32 %v2193, %v2289
      %v2291 = vpop.f32.mrf.mxu0
      %v2292 = vpop.f32.mrf.mxu0
      %v2293 = vadd.f32 %v2196, %v2292
      %v2294 = vpop.f32.mrf.mxu0
      %2295 = vmatprep.mubr.bf16.mxu0 %v1006
      %2296 = vmatmul.mubr.bf16.gmra.mxu0 %v1005
      %v2297 = vpop.f32.mrf.mxu0
      %v2298 = vadd.f32 %v2201, %v2297
      %v2299 = vpop.f32.mrf.mxu0
      %v2300 = vpop.f32.mrf.mxu0
      %v2301 = vadd.f32 %v2204, %v2300
      %v2302 = vpop.f32.mrf.mxu0
      %2303 = vmatprep.mubr.bf16.mxu0 %v1019
      %2304 = vmatmul.mubr.bf16.gmra.mxu0 %v1018
      %v2305 = vpop.f32.mrf.mxu0
      %v2306 = vadd.f32 %v2209, %v2305
      %v2307 = vpop.f32.mrf.mxu0
      %v2308 = vpop.f32.mrf.mxu0
      %v2309 = vadd.f32 %v2212, %v2308
      %v2310 = vpop.f32.mrf.mxu0
      %2311 = vdwg.mxu0
      %2312 = vmatprep.subr.bf16.mxu0 0
      %2313 = vmatpush1.bf16.msra.mxu0 0
      %2314 = vmatprep.subr.bf16.mxu0 0
      %2315 = vmatpush1.bf16.msra.mxu0 0
      %2316 = vmatprep.subr.bf16.mxu0 0
      %2317 = vmatpush1.bf16.msra.mxu0 0
      %2318 = vmatprep.subr.bf16.mxu0 0
      %2319 = vmatpush1.bf16.msra.mxu0 0
      %2320 = vmatprep.subr.bf16.mxu0 0
      %2321 = vmatpush1.bf16.msra.mxu0 0
      %2322 = vmatprep.subr.bf16.mxu0 0
      %2323 = vmatpush1.bf16.msra.mxu0 0
      %2324 = vmatprep.subr.bf16.mxu0 0
      %2325 = vmatpush1.bf16.msra.mxu0 %v1606
      %2326 = vmatprep.subr.bf16.mxu0 0
      %2327 = vmatpush1.bf16.msra.mxu0 %v1605
      %2328 = vmatprep.subr.bf16.mxu0 0
      %2329 = vmatpush2.bf16.msra.mxu0 0
      %2330 = vmatprep.subr.bf16.mxu0 0
      %2331 = vmatpush2.bf16.msra.mxu0 0
      %2332 = vmatprep.subr.bf16.mxu0 0
      %2333 = vmatpush2.bf16.msra.mxu0 0
      %2334 = vmatprep.subr.bf16.mxu0 0
      %2335 = vmatpush2.bf16.msra.mxu0 0
      %2336 = vmatprep.subr.bf16.mxu0 0
      %2337 = vmatpush2.bf16.msra.mxu0 0
      %2338 = vmatprep.subr.bf16.mxu0 0
      %2339 = vmatpush2.bf16.msra.mxu0 0
      %2340 = vmatprep.subr.bf16.mxu0 0
      %2341 = vmatpush2.bf16.msra.mxu0 0
      %2342 = vmatprep.subr.bf16.mxu0 0
      %2343 = vmatpush2.bf16.msra.mxu0 0
      %2344 = vmatprep.mubr.bf16.mxu0 0
      %2345 = vmatmul.mubr.bf16.gmra.mxu0 %v1707
      %v2346 = vpop.f32.mrf.mxu0
      %v2347 = vadd.f32 %v2250, %v2346
      %v2348 = vpop.f32.mrf.mxu0
      %v2349 = vpop.f32.mrf.mxu0
      %v2350 = vadd.f32 %v2253, %v2349
      %v2351 = vpop.f32.mrf.mxu0
      %2352 = vmatprep.mubr.bf16.mxu0 0
      %2353 = vmatmul.mubr.bf16.gmra.mxu0 %v1710
      %v2354 = vpop.f32.mrf.mxu0
      %v2355 = vadd.f32 %v2258, %v2354
      %v2356 = vpop.f32.mrf.mxu0
      %v2357 = vpop.f32.mrf.mxu0
      %v2358 = vadd.f32 %v2261, %v2357
      %v2359 = vpop.f32.mrf.mxu0
      %2360 = vmatprep.mubr.bf16.mxu0 0
      %2361 = vmatmul.mubr.bf16.gmra.mxu0 %v1713
      %v2362 = vpop.f32.mrf.mxu0
      %v2363 = vadd.f32 %v2266, %v2362
      %v2364 = vpop.f32.mrf.mxu0
      %v2365 = vpop.f32.mrf.mxu0
      %v2366 = vadd.f32 %v2269, %v2365
      %v2367 = vpop.f32.mrf.mxu0
      %2368 = vmatprep.mubr.bf16.mxu0 0
      %2369 = vmatmul.mubr.bf16.gmra.mxu0 %v1716
      %v2370 = vpop.f32.mrf.mxu0
      %v2371 = vadd.f32 %v2274, %v2370
      %v2372 = vpop.f32.mrf.mxu0
      %v2373 = vpop.f32.mrf.mxu0
      %v2374 = vadd.f32 %v2277, %v2373
      %v2375 = vpop.f32.mrf.mxu0
      %2376 = vmatprep.mubr.bf16.mxu0 0
      %2377 = vmatmul.mubr.bf16.gmra.mxu0 %v1719
      %v2378 = vpop.f32.mrf.mxu0
      %v2379 = vadd.f32 %v2282, %v2378
      %v2380 = vpop.f32.mrf.mxu0
      %v2381 = vpop.f32.mrf.mxu0
      %v2382 = vadd.f32 %v2285, %v2381
      %v2383 = vpop.f32.mrf.mxu0
      %2384 = vmatprep.mubr.bf16.mxu0 0
      %2385 = vmatmul.mubr.bf16.gmra.mxu0 %v1722
      %v2386 = vpop.f32.mrf.mxu0
      %v2387 = vadd.f32 %v2290, %v2386
      %v2388 = vpop.f32.mrf.mxu0
      %v2389 = vpop.f32.mrf.mxu0
      %v2390 = vadd.f32 %v2293, %v2389
      %v2391 = vpop.f32.mrf.mxu0
      %2392 = vmatprep.mubr.bf16.mxu0 0
      %2393 = vmatmul.mubr.bf16.gmra.mxu0 %v1725
      %v2394 = vpop.f32.mrf.mxu0
      %v2395 = vadd.f32 %v2298, %v2394
      %v2396 = vpop.f32.mrf.mxu0
      %v2397 = vpop.f32.mrf.mxu0
      %v2398 = vadd.f32 %v2301, %v2397
      %v2399 = vpop.f32.mrf.mxu0
      %2400 = vmatprep.mubr.bf16.mxu0 0
      %2401 = vmatmul.mubr.bf16.gmra.mxu0 %v1728
      %v2402 = vpop.f32.mrf.mxu0
      %v2403 = vadd.f32 %v2306, %v2402
      %v2404 = vpop.f32.mrf.mxu0
      %v2405 = vpop.f32.mrf.mxu0
      %v2406 = vadd.f32 %v2309, %v2405
      %v2407 = vpop.f32.mrf.mxu0
      %2408 = vdwg.mxu0
      %v2409 = vmax.f32 %v2347, %v2363
      %v2410 = vmax.f32 %v2350, %v2366
      %v2411 = vmax.f32 %v2355, %v2371
      %v2412 = vmax.f32 %v2358, %v2374
      %v2413 = vmax.f32 %v2379, %v2395
      %v2414 = vmax.f32 %v2382, %v2398
      %v2415 = vmax.f32 %v2387, %v2403
      %v2416 = vmax.f32 %v2390, %v2406
      %v2417 = vmax.f32 %v2409, %v2413
      %v2418 = vmax.f32 %v2410, %v2414
      %v2419 = vmax.f32 %v2411, %v2415
      %v2420 = vmax.f32 %v2412, %v2416
      %v2421 = vld [vmem:[%s274] sm:$0x1]
      %v2423 = vlaneseq
      %v2424 = vshrl.u32 %v2423, 7
      %v2425 = vsub.s32 0, %v2424
      %v2426 = vrot.slane %v2421, %v2425
      %v2428 = vmul.f32 %v2417, %v2426
      %v2429 = vmul.f32 %v2418, %v2426
      %v2430 = vmul.f32 %v2419, %v2426
      %v2431 = vmul.f32 %v2420, %v2426
      %v2432 = vld [vmem:[%s277] sm:$0x1]
      %v2434 = vlaneseq
      %v2435 = vshrl.u32 %v2434, 7
      %v2436 = vsub.s32 0, %v2435
      %v2437 = vrot.slane %v2432, %v2436
      %v2439 = vadd.f32 %v2428, %v2437
      %v2440 = vadd.f32 %v2429, %v2437
      %v2441 = vadd.f32 %v2430, %v2437
      %v2442 = vadd.f32 %v2431, %v2437
      %v2443 = vmax.f32 %v2439, 0.0
      %v2444 = vmax.f32 %v2440, 0.0
      %v2445 = vmax.f32 %v2441, 0.0
      %v2446 = vmax.f32 %v2442, 0.0
      %v2447 = vpack.c.bf16 %v2444, %v2443
      %v2448 = vpack.c.bf16 %v2446, %v2445
      %v2451 = vunpack.c.l.b16 %v2447
      %v2452 = vunpack.c.h.b16 %v2447
      %v2453 = vunpack.c.l.b16 %v2448
      %v2454 = vunpack.c.h.b16 %v2448
      %v2455 = vpack.c.b16 %v2451, %v2451
      %v2456 = vpack.c.b16 %v2452, %v2452
      %v2457 = vpack.c.b16 %v2453, %v2453
      %v2458 = vpack.c.b16 %v2454, %v2454
      %vm2463 = vcmask 519168
      %2464 = vst.msk [vmem:[%s286] sm:$0xf] %vm2463, %v2455
      %2465 = vst.msk [vmem:[%s286 + $0x4] sm:$0xf] %vm2463, %v2456
      %2466 = vst.msk [vmem:[%s286 + $0x8] sm:$0xf] %vm2463, %v2457
      %2467 = vst.msk [vmem:[%s286 + $0xc] sm:$0xf] %vm2463, %v2458
      %s2468 = smul.u32 4, %s20
      %p2469 = scmp.lt.s32.totalorder %s19, 2
      %s2470 = scalar_select %p2469, %s19, 2
      %p2471 = scmp.lt.s32.totalorder %s2468, 3
      %s2472 = scalar_select %p2471, %s2468, 3
      %s2473 = smul.addr %s2470, 4
      %s2474 = sadd.s32 %s2472, %s2473
      %s2475 = smul.addr %s2474, 4
      %s2476 = scalar_lea.vmem %s4, %s2475
      // Predicated region
      $region37: #{model_forward.6} parent=35 // pred_check
        %p2477 = pneg %p153
      $region38: #{model_forward.6} parent=35 // pred_check_branch
        %2479 = sbr.rel (%p2477) target = $region40
      $region39: #{model_forward.6} parent=35 // pred_region
        %s2480 = smul.u32 4, %s20
      $region40: #{model_forward.6} parent=35 // pred_fallthru
        _
    $region36: #{model_forward.6} parent=5 // pred_fallthru
      _
    %p2481 = scmp.le.s32.totalorder 2, %s10
    // Predicated region
    $region41: #{model_forward.6} parent=5 // pred_check
      %p2482 = pneg %p2481
    $region42: #{model_forward.6} parent=5 // pred_check_branch
      %2484 = sbr.rel (%p2482) target = $region44
    $region43: #{model_forward.6} parent=5 // pred_region
      %s2485 = ssub.s32 %s10, 2
      // Predicated region
      $region45: #{model_forward.6} parent=43 // pred_check
        %p2486 = pneg %p159
      $region46: #{model_forward.6} parent=43 // pred_check_branch
        %2488 = sbr.rel (%p2486) target = $region48
      $region47: #{model_forward.6} parent=43 // pred_region
        %s2489 = smul.u32 4, %s22
        %p2490 = scmp.lt.s32.totalorder %s21, 2
        %s2491 = scalar_select %p2490, %s21, 2
        %p2492 = scmp.lt.s32.totalorder %s2489, 3
        %s2493 = scalar_select %p2492, %s2489, 3
        %s2494 = smul.addr %s2491, 4
        %s2495 = sadd.s32 %s2493, %s2494
        %s2496 = smul.addr %s2495, 4
        %s2497 = scalar_lea.vmem %s4, %s2496
      $region48: #{model_forward.6} parent=43 // pred_fallthru
        _
    $region44: #{model_forward.6} parent=5 // pred_fallthru
      _
  $region6: #{model_forward.6} parent=0 // loop_footer
    %s14 = sadd.s32 1, %s10
  $region7: #{model_forward.6} parent=0 // loop_footer_branch
    %9 = sbr.rel target = $region3
  $region8: #{model_forward.6} parent=0 // loop_exit
    _

// kernel: model_forward.7
$region0: #{model_forward.7}
  #allocation0 [shape = 'u32[]', space=smem, size = 0x4, offset = 0x4, fixed_abs, tag = 'smem constant byte address 0x4 - core index']
  #allocation1 [shape = 'u32[144,128]{1,0:T(1,128)}', space=vmem, size = 0x12000, scoped, tag = 'internal scratch']
  %s0 = inlined_call_operand.vmem [shape: bf16[3,4,16,576], index: 0, kind: input, shape index: {}]
  %s1 = inlined_call_operand.vmem [shape: bf16[3,576,128], index: 1, kind: input, shape index: {}]
  %s2 = inlined_call_operand.vmem [shape: f32[3,1,128], index: 2, kind: input, shape index: {}]
  %s3 = inlined_call_operand.vmem [shape: f32[3,1,128], index: 3, kind: input, shape index: {}]
  %s4 = inlined_call_operand.vmem [shape: bf16[3,16,128], index: 4, kind: output, shape index: {}]
  %s5 = sld [smem:[#allocation0]]
  $region49: #{model_forward.7} parent=0
    _
  %s7 = ssub.s32 1, %s5
  %s8 = scalar_select 0, %s7, %s5
  loop: start=0, step=1, limit=5
  $region2: #{model_forward.7} parent=0 // loop_pre_header
    _
  $region3: #{model_forward.7} parent=0 // loop_header
    %s10 = sphi 0, %s14
    %p11 = scmp.ge.s32.totalorder %s10, 5
    %s17 = sphi 0, %s29
    %s18 = sphi 0, %s25
    %s19 = sphi 0, %s17
    %s20 = sphi 0, %s18
    %s21 = sphi 0, %s19
    %s22 = sphi 0, %s20
    %s34 = sphi 0, %s36
    %s37 = sphi 0, %s34
    %s38 = sphi 0, %s37
    %s54 = sphi 0, %s38
    %s60 = sphi 0, %s62
    %s63 = sphi 0, %s60
    %s64 = sphi 0, %s63
    %s80 = sphi 0, %s64
    %s86 = sphi 0, %s88
    %s89 = sphi 0, %s86
    %s90 = sphi 0, %s89
    %s106 = sphi 0, %s90
    %s112 = sphi 0, %s114
    %s115 = sphi 0, %s112
    %s116 = sphi 0, %s115
    %s132 = sphi 0, %s116
    %s140 = sphi 0, %s142
    %s143 = sphi 0, %s140
    %s144 = sphi 0, %s143
    %s160 = sphi 0, %s144
  $region4: #{model_forward.7} parent=0 // loop_header_branch
    %13 = sbr.rel (%p11) target = $region8
  $region5: #{model_forward.7} parent=0 // loop_body
    %s15 = ssub.s32 %s10, 1
    %s16 = ssub.s32 %s10, 2
    %s23 = sadd.s32 1, %s18
    %p24 = scmp.ge.s32.totalorder %s23, 1
    %s25 = scalar_select %p24, 0, %s23
    %s26 = sadd.s32 1, %s17
    %s27 = scalar_select %p24, %s26, %s17
    %p28 = scmp.ge.s32.totalorder %s27, 3
    %s29 = scalar_select %p28, 0, %s27
    %s30 = ssub.s32 %s17, %s29
    %s31 = ssub.s32 %s18, %s25
    %s32 = sor.u32 %s30, %s31
    %p33 = scmp.eq.s32.totalorder %s32, 0
    %s35 = sadd.s32 %s34, 1
    %s36 = scalar_select %p33, %s34, %s35
    %p39 = pneg %p33
    %p40 = scmp.eq.s32.totalorder %s10, 2
    %p41 = por %p39, %p40
    %p42 = scmp.ne.s32.totalorder %s34, %s37
    %p43 = scmp.eq.s32.totalorder %s10, 0
    %p44 = por %p42, %p43
    %p45 = scmp.ne.s32.totalorder %s34, %s37
    %p46 = scmp.eq.s32.totalorder %s15, 2
    %p47 = por %p45, %p46
    %p48 = scmp.ne.s32.totalorder %s37, %s38
    %p49 = scmp.eq.s32.totalorder %s15, 0
    %p50 = por %p48, %p49
    %p51 = scmp.ne.s32.totalorder %s37, %s38
    %p52 = scmp.eq.s32.totalorder %s16, 2
    %p53 = por %p51, %p52
    %p55 = scmp.ne.s32.totalorder %s38, %s54
    %p56 = scmp.eq.s32.totalorder %s16, 0
    %p57 = por %p55, %p56
    %s58 = ssub.s32 %s17, %s29
    %p59 = scmp.eq.s32.totalorder %s58, 0
    %s61 = sadd.s32 %s60, 1
    %s62 = scalar_select %p59, %s60, %s61
    %p65 = pneg %p59
    %p66 = scmp.eq.s32.totalorder %s10, 2
    %p67 = por %p65, %p66
    %p68 = scmp.ne.s32.totalorder %s60, %s63
    %p69 = scmp.eq.s32.totalorder %s10, 0
    %p70 = por %p68, %p69
    %p71 = scmp.ne.s32.totalorder %s60, %s63
    %p72 = scmp.eq.s32.totalorder %s15, 2
    %p73 = por %p71, %p72
    %p74 = scmp.ne.s32.totalorder %s63, %s64
    %p75 = scmp.eq.s32.totalorder %s15, 0
    %p76 = por %p74, %p75
    %p77 = scmp.ne.s32.totalorder %s63, %s64
    %p78 = scmp.eq.s32.totalorder %s16, 2
    %p79 = por %p77, %p78
    %p81 = scmp.ne.s32.totalorder %s64, %s80
    %p82 = scmp.eq.s32.totalorder %s16, 0
    %p83 = por %p81, %p82
    %s84 = ssub.s32 %s17, %s29
    %p85 = scmp.eq.s32.totalorder %s84, 0
    %s87 = sadd.s32 %s86, 1
    %s88 = scalar_select %p85, %s86, %s87
    %p91 = pneg %p85
    %p92 = scmp.eq.s32.totalorder %s10, 2
    %p93 = por %p91, %p92
    %p94 = scmp.ne.s32.totalorder %s86, %s89
    %p95 = scmp.eq.s32.totalorder %s10, 0
    %p96 = por %p94, %p95
    %p97 = scmp.ne.s32.totalorder %s86, %s89
    %p98 = scmp.eq.s32.totalorder %s15, 2
    %p99 = por %p97, %p98
    %p100 = scmp.ne.s32.totalorder %s89, %s90
    %p101 = scmp.eq.s32.totalorder %s15, 0
    %p102 = por %p100, %p101
    %p103 = scmp.ne.s32.totalorder %s89, %s90
    %p104 = scmp.eq.s32.totalorder %s16, 2
    %p105 = por %p103, %p104
    %p107 = scmp.ne.s32.totalorder %s90, %s106
    %p108 = scmp.eq.s32.totalorder %s16, 0
    %p109 = por %p107, %p108
    %s110 = ssub.s32 %s17, %s29
    %p111 = scmp.eq.s32.totalorder %s110, 0
    %s113 = sadd.s32 %s112, 1
    %s114 = scalar_select %p111, %s112, %s113
    %p117 = pneg %p111
    %p118 = scmp.eq.s32.totalorder %s10, 2
    %p119 = por %p117, %p118
    %p120 = scmp.ne.s32.totalorder %s112, %s115
    %p121 = scmp.eq.s32.totalorder %s10, 0
    %p122 = por %p120, %p121
    %p123 = scmp.ne.s32.totalorder %s112, %s115
    %p124 = scmp.eq.s32.totalorder %s15, 2
    %p125 = por %p123, %p124
    %p126 = scmp.ne.s32.totalorder %s115, %s116
    %p127 = scmp.eq.s32.totalorder %s15, 0
    %p128 = por %p126, %p127
    %p129 = scmp.ne.s32.totalorder %s115, %s116
    %p130 = scmp.eq.s32.totalorder %s16, 2
    %p131 = por %p129, %p130
    %p133 = scmp.ne.s32.totalorder %s116, %s132
    %p134 = scmp.eq.s32.totalorder %s16, 0
    %p135 = por %p133, %p134
    %s136 = ssub.s32 %s17, %s29
    %s137 = ssub.s32 %s18, %s25
    %s138 = sor.u32 %s136, %s137
    %p139 = scmp.eq.s32.totalorder %s138, 0
    %s141 = sadd.s32 %s140, 1
    %s142 = scalar_select %p139, %s140, %s141
    %p145 = pneg %p139
    %p146 = scmp.eq.s32.totalorder %s10, 2
    %p147 = por %p145, %p146
    %p148 = scmp.ne.s32.totalorder %s140, %s143
    %p149 = scmp.eq.s32.totalorder %s10, 0
    %p150 = por %p148, %p149
    %p151 = scmp.ne.s32.totalorder %s140, %s143
    %p152 = scmp.eq.s32.totalorder %s15, 2
    %p153 = por %p151, %p152
    %p154 = scmp.ne.s32.totalorder %s143, %s144
    %p155 = scmp.eq.s32.totalorder %s15, 0
    %p156 = por %p154, %p155
    %p157 = scmp.ne.s32.totalorder %s143, %s144
    %p158 = scmp.eq.s32.totalorder %s16, 2
    %p159 = por %p157, %p158
    %p161 = scmp.ne.s32.totalorder %s144, %s160
    %p162 = scmp.eq.s32.totalorder %s16, 0
    %p163 = por %p161, %p162
    %p164 = scmp.le.s32.totalorder 1, %s10
    %p165 = scmp.lt.s32.totalorder %s10, 4
    %p166 = pnand %p164, %p165
    %p167 = pneg %p166
    // Predicated region
    $region9: #{model_forward.7} parent=5 // pred_check
      _
    $region10: #{model_forward.7} parent=5 // pred_check_branch
      %169 = sbr.rel (%p166) target = $region12
    $region11: #{model_forward.7} parent=5 // pred_region
      %s170 = ssub.s32 %s10, 1
    $region12: #{model_forward.7} parent=5 // pred_fallthru
      _
    %p171 = scmp.lt.s32.totalorder %s10, 3
    // Predicated region
    $region13: #{model_forward.7} parent=5 // pred_check
      %p172 = pneg %p171
    $region14: #{model_forward.7} parent=5 // pred_check_branch
      %174 = sbr.rel (%p172) target = $region16
    $region15: #{model_forward.7} parent=5 // pred_region
      // Predicated region
      $region17: #{model_forward.7} parent=15 // pred_check
        %p175 = pneg %p44
      $region18: #{model_forward.7} parent=15 // pred_check_branch
        %177 = sbr.rel (%p175) target = $region20
      $region19: #{model_forward.7} parent=15 // pred_region
        %s178 = smul.u32 2, %s18
        %p179 = scmp.lt.s32.totalorder %s17, 2
        %s180 = scalar_select %p179, %s17, 2
        %p181 = scmp.lt.s32.totalorder %s178, 1
        %s182 = scalar_select %p181, %s178, 1
        %s183 = smul.addr %s182, 5
        %s184 = smul.addr %s180, 40
        %s185 = sadd.s32 %s183, %s184
        %s186 = smul.addr %s185, 4
        %s187 = scalar_lea.vmem %s0, %s186
        %s188 = smul.u32 2, %s18
      $region20: #{model_forward.7} parent=15 // pred_fallthru
        _
      // Predicated region
      $region21: #{model_forward.7} parent=15 // pred_check
        %p189 = pneg %p70
      $region22: #{model_forward.7} parent=15 // pred_check_branch
        %191 = sbr.rel (%p189) target = $region24
      $region23: #{model_forward.7} parent=15 // pred_region
        %p192 = scmp.lt.s32.totalorder %s17, 2
        %s193 = scalar_select %p192, %s17, 2
        %s194 = smul.addr %s193, 72
        %s195 = smul.addr %s194, 4
        %s196 = scalar_lea.vmem %s1, %s195
      $region24: #{model_forward.7} parent=15 // pred_fallthru
        _
      // Predicated region
      $region25: #{model_forward.7} parent=15 // pred_check
        %p197 = pneg %p96
      $region26: #{model_forward.7} parent=15 // pred_check_branch
        %199 = sbr.rel (%p197) target = $region28
      $region27: #{model_forward.7} parent=15 // pred_region
        %p200 = scmp.lt.s32.totalorder %s17, 2
        %s201 = scalar_select %p200, %s17, 2
        %s202 = scalar_lea.vmem %s2, %s201
      $region28: #{model_forward.7} parent=15 // pred_fallthru
        _
      // Predicated region
      $region29: #{model_forward.7} parent=15 // pred_check
        %p203 = pneg %p122
      $region30: #{model_forward.7} parent=15 // pred_check_branch
        %205 = sbr.rel (%p203) target = $region32
      $region31: #{model_forward.7} parent=15 // pred_region
        %p206 = scmp.lt.s32.totalorder %s17, 2
        %s207 = scalar_select %p206, %s17, 2
        %s208 = scalar_lea.vmem %s3, %s207
      $region32: #{model_forward.7} parent=15 // pred_fallthru
        _
    $region16: #{model_forward.7} parent=5 // pred_fallthru
      _
    %p209 = scmp.le.s32.totalorder 1, %s10
    %p210 = scmp.lt.s32.totalorder %s10, 4
    %p211 = pnand %p209, %p210
    %p212 = pneg %p211
    // Predicated region
    $region33: #{model_forward.7} parent=5 // pred_check
      _
    $region34: #{model_forward.7} parent=5 // pred_check_branch
      %214 = sbr.rel (%p211) target = $region36
    $region35: #{model_forward.7} parent=5 // pred_region
      %s215 = ssub.s32 %s10, 1
      %s216 = smul.u32 2, %s20
      %p217 = scmp.lt.s32.totalorder %s19, 2
      %s218 = scalar_select %p217, %s19, 2
      %p219 = scmp.lt.s32.totalorder %s216, 1
      %s220 = scalar_select %p219, %s216, 1
      %s221 = smul.addr %s220, 5
      %s222 = smul.addr %s218, 40
      %s223 = sadd.s32 %s221, %s222
      %s224 = smul.addr %s223, 4
      %s225 = scalar_lea.vmem %s0, %s224
      %p226 = pneg %p50
      %p227 = pneg %p47
      %p228 = scmp.lt.s32.totalorder %s19, 2
      %s229 = scalar_select %p228, %s19, 2
      %s230 = smul.addr %s229, 72
      %s231 = smul.addr %s230, 4
      %s232 = scalar_lea.vmem %s1, %s231
      %p233 = pneg %p76
      %p234 = pneg %p73
      %p235 = scmp.lt.s32.totalorder %s19, 2
      %s236 = scalar_select %p235, %s19, 2
      %s237 = scalar_lea.vmem %s2, %s236
      %p238 = pneg %p102
      %p239 = pneg %p99
      %p240 = scmp.lt.s32.totalorder %s19, 2
      %s241 = scalar_select %p240, %s19, 2
      %s242 = scalar_lea.vmem %s3, %s241
      %p243 = pneg %p128
      %p244 = pneg %p125
      %p245 = pneg %p156
      %p246 = pneg %p153
      %s247 = smul.u32 2, %s20
      %p248 = scmp.lt.s32.totalorder %s19, 2
      %s249 = scalar_select %p248, %s19, 2
      %p250 = scmp.lt.s32.totalorder %s247, 1
      %s251 = scalar_select %p250, %s247, 1
      %s252 = smul.addr %s249, 2
      %s253 = sadd.s32 %s251, %s252
      %s254 = smul.addr %s253, 4
      %s255 = scalar_lea.vmem %s4, %s254
      %s256 = smul.u32 2, %s20
      %p257 = scmp.lt.s32.totalorder %s19, 2
      %s258 = scalar_select %p257, %s19, 2
      %p259 = scmp.lt.s32.totalorder %s256, 1
      %s260 = scalar_select %p259, %s256, 1
      %s261 = smul.addr %s260, 5
      %s262 = smul.addr %s258, 40
      %s263 = sadd.s32 %s261, %s262
      %s264 = smul.addr %s263, 4
      %s265 = scalar_lea.vmem %s0, %s264
      %s266 = smul.u32 2, %s20
      %p267 = scmp.lt.s32.totalorder %s19, 2
      %s268 = scalar_select %p267, %s19, 2
      %s269 = smul.addr %s268, 72
      %s270 = smul.addr %s269, 4
      %s271 = scalar_lea.vmem %s1, %s270
      %p272 = scmp.lt.s32.totalorder %s19, 2
      %s273 = scalar_select %p272, %s19, 2
      %s274 = scalar_lea.vmem %s2, %s273
      %p275 = scmp.lt.s32.totalorder %s19, 2
      %s276 = scalar_select %p275, %s19, 2
      %s277 = scalar_lea.vmem %s3, %s276
      %s278 = smul.u32 2, %s20
      %p279 = scmp.lt.s32.totalorder %s19, 2
      %s280 = scalar_select %p279, %s19, 2
      %p281 = scmp.lt.s32.totalorder %s278, 1
      %s282 = scalar_select %p281, %s278, 1
      %s283 = smul.addr %s280, 2
      %s284 = sadd.s32 %s282, %s283
      %s285 = smul.addr %s284, 4
      %s286 = scalar_lea.vmem %s4, %s285
      %s287 = smul.u32 2, %s20
      %v289 = vld [vmem:[%s265] sm:$0xff]
      %v290 = vld [vmem:[%s265 + $0x8] sm:$0xff]
      %v291 = vld [vmem:[%s265 + $0x10] sm:$0xf]
      %v292 = vld [vmem:[%s265 + $0x14] sm:$0xff]
      %v293 = vld [vmem:[%s265 + $0x1c] sm:$0xff]
      %v294 = vld [vmem:[%s265 + $0x24] sm:$0xf]
      %v295 = vld [vmem:[%s265 + $0x28] sm:$0xff]
      %v296 = vld [vmem:[%s265 + $0x30] sm:$0xff]
      %v297 = vld [vmem:[%s265 + $0x38] sm:$0xf]
      %v298 = vld [vmem:[%s265 + $0x3c] sm:$0xff]
      %v299 = vld [vmem:[%s265 + $0x44] sm:$0xff]
      %v300 = vld [vmem:[%s265 + $0x4c] sm:$0xf]
      %v301 = vld [vmem:[%s265 + $0x50] sm:$0xff]
      %v302 = vld [vmem:[%s265 + $0x58] sm:$0xff]
      %v303 = vld [vmem:[%s265 + $0x60] sm:$0xf]
      %v304 = vld [vmem:[%s265 + $0x64] sm:$0xff]
      %v305 = vld [vmem:[%s265 + $0x6c] sm:$0xff]
      %v306 = vld [vmem:[%s265 + $0x74] sm:$0xf]
      %v307 = vld [vmem:[%s265 + $0x78] sm:$0xff]
      %v308 = vld [vmem:[%s265 + $0x80] sm:$0xff]
      %v309 = vld [vmem:[%s265 + $0x88] sm:$0xf]
      %v310 = vld [vmem:[%s265 + $0x8c] sm:$0xff]
      %v311 = vld [vmem:[%s265 + $0x94] sm:$0xff]
      %v312 = vld [vmem:[%s265 + $0x9c] sm:$0xf]
      %v313 = vld [vmem:[%s271] sm:$0xf]
      %v314 = vld [vmem:[%s271 + $0x4] sm:$0xf]
      %v315 = vld [vmem:[%s271 + $0x8] sm:$0xf]
      %v316 = vld [vmem:[%s271 + $0xc] sm:$0xf]
      %v317 = vld [vmem:[%s271 + $0x10] sm:$0xf]
      %v318 = vld [vmem:[%s271 + $0x14] sm:$0xf]
      %v319 = vld [vmem:[%s271 + $0x18] sm:$0xf]
      %v320 = vld [vmem:[%s271 + $0x1c] sm:$0xf]
      %v321 = vld [vmem:[%s271 + $0x20] sm:$0xf]
      %v322 = vld [vmem:[%s271 + $0x24] sm:$0xf]
      %v323 = vld [vmem:[%s271 + $0x28] sm:$0xf]
      %v324 = vld [vmem:[%s271 + $0x2c] sm:$0xf]
      %v325 = vld [vmem:[%s271 + $0x30] sm:$0xf]
      %v326 = vld [vmem:[%s271 + $0x34] sm:$0xf]
      %v327 = vld [vmem:[%s271 + $0x38] sm:$0xf]
      %v328 = vld [vmem:[%s271 + $0x3c] sm:$0xf]
      %v329 = vld [vmem:[%s271 + $0x40] sm:$0xf]
      %v330 = vld [vmem:[%s271 + $0x44] sm:$0xf]
      %v331 = vld [vmem:[%s271 + $0x48] sm:$0xf]
      %v332 = vld [vmem:[%s271 + $0x4c] sm:$0xf]
      %v333 = vld [vmem:[%s271 + $0x50] sm:$0xf]
      %v334 = vld [vmem:[%s271 + $0x54] sm:$0xf]
      %v335 = vld [vmem:[%s271 + $0x58] sm:$0xf]
      %v336 = vld [vmem:[%s271 + $0x5c] sm:$0xf]
      %v337 = vld [vmem:[%s271 + $0x60] sm:$0xf]
      %v338 = vld [vmem:[%s271 + $0x64] sm:$0xf]
      %v339 = vld [vmem:[%s271 + $0x68] sm:$0xf]
      %v340 = vld [vmem:[%s271 + $0x6c] sm:$0xf]
      %v341 = vld [vmem:[%s271 + $0x70] sm:$0xf]
      %v342 = vld [vmem:[%s271 + $0x74] sm:$0xf]
      %v343 = vld [vmem:[%s271 + $0x78] sm:$0xf]
      %v344 = vld [vmem:[%s271 + $0x7c] sm:$0xf]
      %v345 = vld [vmem:[%s271 + $0x80] sm:$0xf]
      %v346 = vld [vmem:[%s271 + $0x84] sm:$0xf]
      %v347 = vld [vmem:[%s271 + $0x88] sm:$0xf]
      %v348 = vld [vmem:[%s271 + $0x8c] sm:$0xf]
      %v349 = vld [vmem:[%s271 + $0x90] sm:$0xf]
      %v350 = vld [vmem:[%s271 + $0x94] sm:$0xf]
      %v351 = vld [vmem:[%s271 + $0x98] sm:$0xf]
      %v352 = vld [vmem:[%s271 + $0x9c] sm:$0xf]
      %v353 = vld [vmem:[%s271 + $0xa0] sm:$0xf]
      %v354 = vld [vmem:[%s271 + $0xa4] sm:$0xf]
      %v355 = vld [vmem:[%s271 + $0xa8] sm:$0xf]
      %v356 = vld [vmem:[%s271 + $0xac] sm:$0xf]
      %v357 = vld [vmem:[%s271 + $0xb0] sm:$0xf]
      %v358 = vld [vmem:[%s271 + $0xb4] sm:$0xf]
      %v359 = vld [vmem:[%s271 + $0xb8] sm:$0xf]
      %v360 = vld [vmem:[%s271 + $0xbc] sm:$0xf]
      %v361 = vld [vmem:[%s271 + $0xc0] sm:$0xf]
      %v362 = vld [vmem:[%s271 + $0xc4] sm:$0xf]
      %v363 = vld [vmem:[%s271 + $0xc8] sm:$0xf]
      %v364 = vld [vmem:[%s271 + $0xcc] sm:$0xf]
      %v365 = vld [vmem:[%s271 + $0xd0] sm:$0xf]
      %v366 = vld [vmem:[%s271 + $0xd4] sm:$0xf]
      %v367 = vld [vmem:[%s271 + $0xd8] sm:$0xf]
      %v368 = vld [vmem:[%s271 + $0xdc] sm:$0xf]
      %v369 = vld [vmem:[%s271 + $0xe0] sm:$0xf]
      %v370 = vld [vmem:[%s271 + $0xe4] sm:$0xf]
      %v371 = vld [vmem:[%s271 + $0xe8] sm:$0xf]
      %v372 = vld [vmem:[%s271 + $0xec] sm:$0xf]
      %v373 = vld [vmem:[%s271 + $0xf0] sm:$0xf]
      %v374 = vld [vmem:[%s271 + $0xf4] sm:$0xf]
      %v375 = vld [vmem:[%s271 + $0xf8] sm:$0xf]
      %v376 = vld [vmem:[%s271 + $0xfc] sm:$0xf]
      %v377 = vld [vmem:[%s271 + $0x100] sm:$0xf]
      %v378 = vld [vmem:[%s271 + $0x104] sm:$0xf]
      %v379 = vld [vmem:[%s271 + $0x108] sm:$0xf]
      %v380 = vld [vmem:[%s271 + $0x10c] sm:$0xf]
      %v381 = vld [vmem:[%s271 + $0x110] sm:$0xf]
      %v382 = vld [vmem:[%s271 + $0x114] sm:$0xf]
      %v383 = vld [vmem:[%s271 + $0x118] sm:$0xf]
      %v384 = vld [vmem:[%s271 + $0x11c] sm:$0xf]
      %v409 = vunpack.c.l.b16 %v289
      %v410 = vunpack.c.h.b16 %v289
      %v411 = vunpack.c.l.b16 %v290
      %v412 = vunpack.c.h.b16 %v290
      %v413 = vunpack.c.l.b16 %v291
      %v414 = vunpack.c.l.b16 %v292
      %v415 = vunpack.c.h.b16 %v292
      %v416 = vunpack.c.l.b16 %v293
      %v417 = vunpack.c.h.b16 %v293
      %v418 = vunpack.c.l.b16 %v294
      %v419 = vunpack.c.l.b16 %v295
      %v420 = vunpack.c.h.b16 %v295
      %v421 = vunpack.c.l.b16 %v296
      %v422 = vunpack.c.h.b16 %v296
      %v423 = vunpack.c.l.b16 %v297
      %v424 = vunpack.c.l.b16 %v298
      %v425 = vunpack.c.h.b16 %v298
      %v426 = vunpack.c.l.b16 %v299
      %v427 = vunpack.c.h.b16 %v299
      %v428 = vunpack.c.l.b16 %v300
      %v429 = vunpack.c.l.b16 %v301
      %v430 = vunpack.c.h.b16 %v301
      %v431 = vunpack.c.l.b16 %v302
      %v432 = vunpack.c.h.b16 %v302
      %v433 = vunpack.c.l.b16 %v303
      %v434 = vunpack.c.l.b16 %v304
      %v435 = vunpack.c.h.b16 %v304
      %v436 = vunpack.c.l.b16 %v305
      %v437 = vunpack.c.h.b16 %v305
      %v438 = vunpack.c.l.b16 %v306
      %v439 = vunpack.c.l.b16 %v307
      %v440 = vunpack.c.h.b16 %v307
      %v441 = vunpack.c.l.b16 %v308
      %v442 = vunpack.c.h.b16 %v308
      %v443 = vunpack.c.l.b16 %v309
      %v444 = vunpack.c.l.b16 %v310
      %v445 = vunpack.c.h.b16 %v310
      %v446 = vunpack.c.l.b16 %v311
      %v447 = vunpack.c.h.b16 %v311
      %v448 = vunpack.c.l.b16 %v312
      %v449 = vpack.c.b16 %v414, %v409
      %v450 = vpack.c.b16 %v415, %v410
      %v451 = vpack.c.b16 %v416, %v411
      %v452 = vpack.c.b16 %v417, %v412
      %v453 = vpack.c.b16 %v418, %v413
      %v454 = vpack.c.b16 %v424, %v419
      %v455 = vpack.c.b16 %v425, %v420
      %v456 = vpack.c.b16 %v426, %v421
      %v457 = vpack.c.b16 %v427, %v422
      %v458 = vpack.c.b16 %v428, %v423
      %v459 = vpack.c.b16 %v434, %v429
      %v460 = vpack.c.b16 %v435, %v430
      %v461 = vpack.c.b16 %v436, %v431
      %v462 = vpack.c.b16 %v437, %v432
      %v463 = vpack.c.b16 %v438, %v433
      %v464 = vpack.c.b16 %v444, %v439
      %v465 = vpack.c.b16 %v445, %v440
      %v466 = vpack.c.b16 %v446, %v441
      %v467 = vpack.c.b16 %v447, %v442
      %v468 = vpack.c.b16 %v448, %v443
      %v557 = vunpack.c.l.b16 %v313
      %v558 = vunpack.c.l.b16 %v314
      %v559 = vunpack.c.l.b16 %v315
      %v560 = vunpack.c.l.b16 %v316
      %v561 = vunpack.c.l.b16 %v317
      %v562 = vunpack.c.l.b16 %v318
      %v563 = vunpack.c.l.b16 %v319
      %v564 = vunpack.c.l.b16 %v320
      %v565 = vunpack.c.l.b16 %v321
      %v566 = vunpack.c.l.b16 %v322
      %v567 = vunpack.c.l.b16 %v323
      %v568 = vunpack.c.l.b16 %v324
      %v569 = vunpack.c.l.b16 %v325
      %v570 = vunpack.c.l.b16 %v326
      %v571 = vunpack.c.l.b16 %v327
      %v572 = vunpack.c.l.b16 %v328
      %v573 = vunpack.c.l.b16 %v329
      %v574 = vunpack.c.l.b16 %v330
      %v575 = vunpack.c.l.b16 %v331
      %v576 = vunpack.c.l.b16 %v332
      %v577 = vunpack.c.l.b16 %v333
      %v578 = vunpack.c.l.b16 %v334
      %v579 = vunpack.c.l.b16 %v335
      %v580 = vunpack.c.l.b16 %v336
      %v581 = vunpack.c.l.b16 %v337
      %v582 = vunpack.c.l.b16 %v338
      %v583 = vunpack.c.l.b16 %v339
      %v584 = vunpack.c.l.b16 %v340
      %v585 = vunpack.c.l.b16 %v341
      %v586 = vunpack.c.l.b16 %v342
      %v587 = vunpack.c.l.b16 %v343
      %v588 = vunpack.c.l.b16 %v344
      %v589 = vunpack.c.l.b16 %v345
      %v590 = vunpack.c.l.b16 %v346
      %v591 = vunpack.c.l.b16 %v347
      %v592 = vunpack.c.l.b16 %v348
      %v593 = vunpack.c.l.b16 %v349
      %v594 = vunpack.c.l.b16 %v350
      %v595 = vunpack.c.l.b16 %v351
      %v596 = vunpack.c.l.b16 %v352
      %v597 = vunpack.c.l.b16 %v353
      %v598 = vunpack.c.l.b16 %v354
      %v599 = vunpack.c.l.b16 %v355
      %v600 = vunpack.c.l.b16 %v356
      %v601 = vunpack.c.l.b16 %v357
      %v602 = vunpack.c.l.b16 %v358
      %v603 = vunpack.c.l.b16 %v359
      %v604 = vunpack.c.l.b16 %v360
      %v605 = vunpack.c.l.b16 %v361
      %v606 = vunpack.c.l.b16 %v362
      %v607 = vunpack.c.l.b16 %v363
      %v608 = vunpack.c.l.b16 %v364
      %v609 = vunpack.c.l.b16 %v365
      %v610 = vunpack.c.l.b16 %v366
      %v611 = vunpack.c.l.b16 %v367
      %v612 = vunpack.c.l.b16 %v368
      %v613 = vunpack.c.l.b16 %v369
      %v614 = vunpack.c.l.b16 %v370
      %v615 = vunpack.c.l.b16 %v371
      %v616 = vunpack.c.l.b16 %v372
      %v617 = vunpack.c.l.b16 %v373
      %v618 = vunpack.c.l.b16 %v374
      %v619 = vunpack.c.l.b16 %v375
      %v620 = vunpack.c.l.b16 %v376
      %v621 = vunpack.c.l.b16 %v377
      %v622 = vunpack.c.l.b16 %v378
      %v623 = vunpack.c.l.b16 %v379
      %v624 = vunpack.c.l.b16 %v380
      %v625 = vunpack.c.l.b16 %v381
      %v626 = vunpack.c.l.b16 %v382
      %v627 = vunpack.c.l.b16 %v383
      %v628 = vunpack.c.l.b16 %v384
      %v629 = vpack.c.b16 %v558, %v557
      %v630 = vpack.c.b16 %v560, %v559
      %v631 = vpack.c.b16 %v562, %v561
      %v632 = vpack.c.b16 %v564, %v563
      %v633 = vpack.c.b16 %v566, %v565
      %v634 = vpack.c.b16 %v568, %v567
      %v635 = vpack.c.b16 %v570, %v569
      %v636 = vpack.c.b16 %v572, %v571
      %v637 = vpack.c.b16 %v574, %v573
      %v638 = vpack.c.b16 %v576, %v575
      %v639 = vpack.c.b16 %v578, %v577
      %v640 = vpack.c.b16 %v580, %v579
      %v641 = vpack.c.b16 %v582, %v581
      %v642 = vpack.c.b16 %v584, %v583
      %v643 = vpack.c.b16 %v586, %v585
      %v644 = vpack.c.b16 %v588, %v587
      %v645 = vpack.c.b16 %v590, %v589
      %v646 = vpack.c.b16 %v592, %v591
      %v647 = vpack.c.b16 %v594, %v593
      %v648 = vpack.c.b16 %v596, %v595
      %v649 = vpack.c.b16 %v598, %v597
      %v650 = vpack.c.b16 %v600, %v599
      %v651 = vpack.c.b16 %v602, %v601
      %v652 = vpack.c.b16 %v604, %v603
      %v653 = vpack.c.b16 %v606, %v605
      %v654 = vpack.c.b16 %v608, %v607
      %v655 = vpack.c.b16 %v610, %v609
      %v656 = vpack.c.b16 %v612, %v611
      %v657 = vpack.c.b16 %v614, %v613
      %v658 = vpack.c.b16 %v616, %v615
      %v659 = vpack.c.b16 %v618, %v617
      %v660 = vpack.c.b16 %v620, %v619
      %v661 = vpack.c.b16 %v622, %v621
      %v662 = vpack.c.b16 %v624, %v623
      %v663 = vpack.c.b16 %v626, %v625
      %v664 = vpack.c.b16 %v628, %v627
      %vm701 = vcmask 523264
      %v703 = vsel %vm701, %v453, 0
      %v706 = vsel %vm701, %v458, 0
      %v709 = vsel %vm701, %v463, 0
      %v712 = vsel %vm701, %v468, 0
      %714 = vmatprep.subr.bf16.mxu0 0
      %715 = vmatpush1.bf16.msra.mxu0 %v636
      %716 = vmatprep.subr.bf16.mxu0 0
      %717 = vmatpush1.bf16.msra.mxu0 %v635
      %718 = vmatprep.subr.bf16.mxu0 0
      %719 = vmatpush1.bf16.msra.mxu0 %v634
      %720 = vmatprep.subr.bf16.mxu0 0
      %721 = vmatpush1.bf16.msra.mxu0 %v633
      %722 = vmatprep.subr.bf16.mxu0 0
      %723 = vmatpush1.bf16.msra.mxu0 %v632
      %724 = vmatprep.subr.bf16.mxu0 0
      %725 = vmatpush1.bf16.msra.mxu0 %v631
      %726 = vmatprep.subr.bf16.mxu0 0
      %727 = vmatpush1.bf16.msra.mxu0 %v630
      %728 = vmatprep.subr.bf16.mxu0 0
      %729 = vmatpush1.bf16.msra.mxu0 %v629
      %730 = vmatprep.subr.bf16.mxu0 0
      %731 = vmatpush2.bf16.msra.mxu0 %v644
      %732 = vmatprep.subr.bf16.mxu0 0
      %733 = vmatpush2.bf16.msra.mxu0 %v643
      %734 = vmatprep.subr.bf16.mxu0 0
      %735 = vmatpush2.bf16.msra.mxu0 %v642
      %736 = vmatprep.subr.bf16.mxu0 0
      %737 = vmatpush2.bf16.msra.mxu0 %v641
      %738 = vmatprep.subr.bf16.mxu0 0
      %739 = vmatpush2.bf16.msra.mxu0 %v640
      %740 = vmatprep.subr.bf16.mxu0 0
      %741 = vmatpush2.bf16.msra.mxu0 %v639
      %742 = vmatprep.subr.bf16.mxu0 0
      %743 = vmatpush2.bf16.msra.mxu0 %v638
      %744 = vmatprep.subr.bf16.mxu0 0
      %745 = vmatpush2.bf16.msra.mxu0 %v637
      %746 = vmatprep.mubr.bf16.mxu0 %v450
      %747 = vmatmul.mubr.bf16.gmra.mxu0 %v449
      %v748 = vpop.f32.mrf.mxu0
      %v749 = vadd.f32 0.0, %v748
      %v750 = vpop.f32.mrf.mxu0
      %v751 = vpop.f32.mrf.mxu0
      %v752 = vadd.f32 0.0, %v751
      %v753 = vpop.f32.mrf.mxu0
      %754 = vmatprep.mubr.bf16.mxu0 %v455
      %755 = vmatmul.mubr.bf16.gmra.mxu0 %v454
      %v756 = vpop.f32.mrf.mxu0
      %v757 = vadd.f32 0.0, %v756
      %v758 = vpop.f32.mrf.mxu0
      %v759 = vpop.f32.mrf.mxu0
      %v760 = vadd.f32 0.0, %v759
      %v761 = vpop.f32.mrf.mxu0
      %762 = vmatprep.mubr.bf16.mxu0 %v460
      %763 = vmatmul.mubr.bf16.gmra.mxu0 %v459
      %v764 = vpop.f32.mrf.mxu0
      %v765 = vadd.f32 0.0, %v764
      %v766 = vpop.f32.mrf.mxu0
      %v767 = vpop.f32.mrf.mxu0
      %v768 = vadd.f32 0.0, %v767
      %v769 = vpop.f32.mrf.mxu0
      %770 = vmatprep.mubr.bf16.mxu0 %v465
      %771 = vmatmul.mubr.bf16.gmra.mxu0 %v464
      %v772 = vpop.f32.mrf.mxu0
      %v773 = vadd.f32 0.0, %v772
      %v774 = vpop.f32.mrf.mxu0
      %v775 = vpop.f32.mrf.mxu0
      %v776 = vadd.f32 0.0, %v775
      %v777 = vpop.f32.mrf.mxu0
      %778 = vdwg.mxu0
      %779 = vmatprep.subr.bf16.mxu0 0
      %780 = vmatpush1.bf16.msra.mxu0 %v652
      %781 = vmatprep.subr.bf16.mxu0 0
      %782 = vmatpush1.bf16.msra.mxu0 %v651
      %783 = vmatprep.subr.bf16.mxu0 0
      %784 = vmatpush1.bf16.msra.mxu0 %v650
      %785 = vmatprep.subr.bf16.mxu0 0
      %786 = vmatpush1.bf16.msra.mxu0 %v649
      %787 = vmatprep.subr.bf16.mxu0 0
      %788 = vmatpush1.bf16.msra.mxu0 %v648
      %789 = vmatprep.subr.bf16.mxu0 0
      %790 = vmatpush1.bf16.msra.mxu0 %v647
      %791 = vmatprep.subr.bf16.mxu0 0
      %792 = vmatpush1.bf16.msra.mxu0 %v646
      %793 = vmatprep.subr.bf16.mxu0 0
      %794 = vmatpush1.bf16.msra.mxu0 %v645
      %795 = vmatprep.subr.bf16.mxu0 0
      %796 = vmatpush2.bf16.msra.mxu0 %v660
      %797 = vmatprep.subr.bf16.mxu0 0
      %798 = vmatpush2.bf16.msra.mxu0 %v659
      %799 = vmatprep.subr.bf16.mxu0 0
      %800 = vmatpush2.bf16.msra.mxu0 %v658
      %801 = vmatprep.subr.bf16.mxu0 0
      %802 = vmatpush2.bf16.msra.mxu0 %v657
      %803 = vmatprep.subr.bf16.mxu0 0
      %804 = vmatpush2.bf16.msra.mxu0 %v656
      %805 = vmatprep.subr.bf16.mxu0 0
      %806 = vmatpush2.bf16.msra.mxu0 %v655
      %807 = vmatprep.subr.bf16.mxu0 0
      %808 = vmatpush2.bf16.msra.mxu0 %v654
      %809 = vmatprep.subr.bf16.mxu0 0
      %810 = vmatpush2.bf16.msra.mxu0 %v653
      %811 = vmatprep.mubr.bf16.mxu0 %v452
      %812 = vmatmul.mubr.bf16.gmra.mxu0 %v451
      %v813 = vpop.f32.mrf.mxu0
      %v814 = vadd.f32 %v749, %v813
      %v815 = vpop.f32.mrf.mxu0
      %v816 = vpop.f32.mrf.mxu0
      %v817 = vadd.f32 %v752, %v816
      %v818 = vpop.f32.mrf.mxu0
      %819 = vmatprep.mubr.bf16.mxu0 %v457
      %820 = vmatmul.mubr.bf16.gmra.mxu0 %v456
      %v821 = vpop.f32.mrf.mxu0
      %v822 = vadd.f32 %v757, %v821
      %v823 = vpop.f32.mrf.mxu0
      %v824 = vpop.f32.mrf.mxu0
      %v825 = vadd.f32 %v760, %v824
      %v826 = vpop.f32.mrf.mxu0
      %827 = vmatprep.mubr.bf16.mxu0 %v462
      %828 = vmatmul.mubr.bf16.gmra.mxu0 %v461
      %v829 = vpop.f32.mrf.mxu0
      %v830 = vadd.f32 %v765, %v829
      %v831 = vpop.f32.mrf.mxu0
      %v832 = vpop.f32.mrf.mxu0
      %v833 = vadd.f32 %v768, %v832
      %v834 = vpop.f32.mrf.mxu0
      %835 = vmatprep.mubr.bf16.mxu0 %v467
      %836 = vmatmul.mubr.bf16.gmra.mxu0 %v466
      %v837 = vpop.f32.mrf.mxu0
      %v838 = vadd.f32 %v773, %v837
      %v839 = vpop.f32.mrf.mxu0
      %v840 = vpop.f32.mrf.mxu0
      %v841 = vadd.f32 %v776, %v840
      %v842 = vpop.f32.mrf.mxu0
      %843 = vdwg.mxu0
      %844 = vmatprep.subr.bf16.mxu0 0
      %845 = vmatpush1.bf16.msra.mxu0 0
      %846 = vmatprep.subr.bf16.mxu0 0
      %847 = vmatpush1.bf16.msra.mxu0 0
      %848 = vmatprep.subr.bf16.mxu0 0
      %849 = vmatpush1.bf16.msra.mxu0 0
      %850 = vmatprep.subr.bf16.mxu0 0
      %851 = vmatpush1.bf16.msra.mxu0 0
      %852 = vmatprep.subr.bf16.mxu0 0
      %853 = vmatpush1.bf16.msra.mxu0 %v664
      %854 = vmatprep.subr.bf16.mxu0 0
      %855 = vmatpush1.bf16.msra.mxu0 %v663
      %856 = vmatprep.subr.bf16.mxu0 0
      %857 = vmatpush1.bf16.msra.mxu0 %v662
      %858 = vmatprep.subr.bf16.mxu0 0
      %859 = vmatpush1.bf16.msra.mxu0 %v661
      %860 = vmatprep.subr.bf16.mxu0 0
      %861 = vmatpush2.bf16.msra.mxu0 0
      %862 = vmatprep.subr.bf16.mxu0 0
      %863 = vmatpush2.bf16.msra.mxu0 0
      %864 = vmatprep.subr.bf16.mxu0 0
      %865 = vmatpush2.bf16.msra.mxu0 0
      %866 = vmatprep.subr.bf16.mxu0 0
      %867 = vmatpush2.bf16.msra.mxu0 0
      %868 = vmatprep.subr.bf16.mxu0 0
      %869 = vmatpush2.bf16.msra.mxu0 0
      %870 = vmatprep.subr.bf16.mxu0 0
      %871 = vmatpush2.bf16.msra.mxu0 0
      %872 = vmatprep.subr.bf16.mxu0 0
      %873 = vmatpush2.bf16.msra.mxu0 0
      %874 = vmatprep.subr.bf16.mxu0 0
      %875 = vmatpush2.bf16.msra.mxu0 0
      %876 = vmatprep.mubr.bf16.mxu0 0
      %877 = vmatmul.mubr.bf16.gmra.mxu0 %v703
      %v878 = vpop.f32.mrf.mxu0
      %v879 = vadd.f32 %v814, %v878
      %v880 = vpop.f32.mrf.mxu0
      %v881 = vpop.f32.mrf.mxu0
      %v882 = vadd.f32 %v817, %v881
      %v883 = vpop.f32.mrf.mxu0
      %884 = vmatprep.mubr.bf16.mxu0 0
      %885 = vmatmul.mubr.bf16.gmra.mxu0 %v706
      %v886 = vpop.f32.mrf.mxu0
      %v887 = vadd.f32 %v822, %v886
      %v888 = vpop.f32.mrf.mxu0
      %v889 = vpop.f32.mrf.mxu0
      %v890 = vadd.f32 %v825, %v889
      %v891 = vpop.f32.mrf.mxu0
      %892 = vmatprep.mubr.bf16.mxu0 0
      %893 = vmatmul.mubr.bf16.gmra.mxu0 %v709
      %v894 = vpop.f32.mrf.mxu0
      %v895 = vadd.f32 %v830, %v894
      %v896 = vpop.f32.mrf.mxu0
      %v897 = vpop.f32.mrf.mxu0
      %v898 = vadd.f32 %v833, %v897
      %v899 = vpop.f32.mrf.mxu0
      %900 = vmatprep.mubr.bf16.mxu0 0
      %901 = vmatmul.mubr.bf16.gmra.mxu0 %v712
      %v902 = vpop.f32.mrf.mxu0
      %v903 = vadd.f32 %v838, %v902
      %v904 = vpop.f32.mrf.mxu0
      %v905 = vpop.f32.mrf.mxu0
      %v906 = vadd.f32 %v841, %v905
      %v907 = vpop.f32.mrf.mxu0
      %908 = vdwg.mxu0
      %v909 = vmax.f32 %v879, %v887
      %v910 = vmax.f32 %v882, %v890
      %v911 = vmax.f32 %v895, %v903
      %v912 = vmax.f32 %v898, %v906
      %v913 = vmax.f32 %v909, %v911
      %v914 = vmax.f32 %v910, %v912
      %v915 = vld [vmem:[%s274] sm:$0x1]
      %v917 = vlaneseq
      %v918 = vshrl.u32 %v917, 7
      %v919 = vsub.s32 0, %v918
      %v920 = vrot.slane %v915, %v919
      %v922 = vmul.f32 %v913, %v920
      %v923 = vmul.f32 %v914, %v920
      %v924 = vld [vmem:[%s277] sm:$0x1]
      %v926 = vlaneseq
      %v927 = vshrl.u32 %v926, 7
      %v928 = vsub.s32 0, %v927
      %v929 = vrot.slane %v924, %v928
      %v931 = vadd.f32 %v922, %v929
      %v932 = vadd.f32 %v923, %v929
      %v933 = vmax.f32 %v931, 0.0
      %v934 = vmax.f32 %v932, 0.0
      %v935 = vpack.c.bf16 %v934, %v933
      %v937 = vunpack.c.l.b16 %v935
      %v938 = vunpack.c.h.b16 %v935
      %v939 = vpack.c.b16 %v937, %v937
      %v940 = vpack.c.b16 %v938, %v938
      %943 = vst [vmem:[%s286] sm:$0xf] %v939
      %944 = vst [vmem:[%s286 + $0x4] sm:$0xf] %v940
      %s945 = smul.u32 2, %s20
      %p946 = scmp.lt.s32.totalorder %s19, 2
      %s947 = scalar_select %p946, %s19, 2
      %p948 = scmp.lt.s32.totalorder %s945, 1
      %s949 = scalar_select %p948, %s945, 1
      %s950 = smul.addr %s947, 2
      %s951 = sadd.s32 %s949, %s950
      %s952 = smul.addr %s951, 4
      %s953 = scalar_lea.vmem %s4, %s952
      // Predicated region
      $region37: #{model_forward.7} parent=35 // pred_check
        %p954 = pneg %p153
      $region38: #{model_forward.7} parent=35 // pred_check_branch
        %956 = sbr.rel (%p954) target = $region40
      $region39: #{model_forward.7} parent=35 // pred_region
        %s957 = smul.u32 2, %s20
      $region40: #{model_forward.7} parent=35 // pred_fallthru
        _
    $region36: #{model_forward.7} parent=5 // pred_fallthru
      _
    %p958 = scmp.le.s32.totalorder 2, %s10
    // Predicated region
    $region41: #{model_forward.7} parent=5 // pred_check
      %p959 = pneg %p958
    $region42: #{model_forward.7} parent=5 // pred_check_branch
      %961 = sbr.rel (%p959) target = $region44
    $region43: #{model_forward.7} parent=5 // pred_region
      %s962 = ssub.s32 %s10, 2
      // Predicated region
      $region45: #{model_forward.7} parent=43 // pred_check
        %p963 = pneg %p159
      $region46: #{model_forward.7} parent=43 // pred_check_branch
        %965 = sbr.rel (%p963) target = $region48
      $region47: #{model_forward.7} parent=43 // pred_region
        %s966 = smul.u32 2, %s22
        %p967 = scmp.lt.s32.totalorder %s21, 2
        %s968 = scalar_select %p967, %s21, 2
        %p969 = scmp.lt.s32.totalorder %s966, 1
        %s970 = scalar_select %p969, %s966, 1
        %s971 = smul.addr %s968, 2
        %s972 = sadd.s32 %s970, %s971
        %s973 = smul.addr %s972, 4
        %s974 = scalar_lea.vmem %s4, %s973
      $region48: #{model_forward.7} parent=43 // pred_fallthru
        _
    $region44: #{model_forward.7} parent=5 // pred_fallthru
      _
  $region6: #{model_forward.7} parent=0 // loop_footer
    %s14 = sadd.s32 1, %s10
  $region7: #{model_forward.7} parent=0 // loop_footer_branch
    %9 = sbr.rel target = $region3
  $region8: #{model_forward.7} parent=0 // loop_exit
    _

// kernel: model_forward.8
$region0: #{model_forward.8}
  #allocation0 [shape = 'u32[]', space=smem, size = 0x4, offset = 0x4, fixed_abs, tag = 'smem constant byte address 0x4 - core index']
  #allocation1 [shape = 'u32[144,128]{1,0:T(1,128)}', space=vmem, size = 0x12000, scoped, tag = 'internal scratch']
  %s0 = inlined_call_operand.vmem [shape: bf16[3,4,16,1152], index: 0, kind: input, shape index: {}]
  %s1 = inlined_call_operand.vmem [shape: bf16[3,1152,256], index: 1, kind: input, shape index: {}]
  %s2 = inlined_call_operand.vmem [shape: f32[3,1,256], index: 2, kind: input, shape index: {}]
  %s3 = inlined_call_operand.vmem [shape: f32[3,1,256], index: 3, kind: input, shape index: {}]
  %s4 = inlined_call_operand.vmem [shape: bf16[3,16,256], index: 4, kind: output, shape index: {}]
  %s5 = sld [smem:[#allocation0]]
  $region49: #{model_forward.8} parent=0
    _
  %s7 = ssub.s32 1, %s5
  %s8 = scalar_select 0, %s7, %s5
  loop: start=0, step=1, limit=5
  $region2: #{model_forward.8} parent=0 // loop_pre_header
    _
  $region3: #{model_forward.8} parent=0 // loop_header
    %s10 = sphi 0, %s14
    %p11 = scmp.ge.s32.totalorder %s10, 5
    %s17 = sphi 0, %s29
    %s18 = sphi 0, %s25
    %s19 = sphi 0, %s17
    %s20 = sphi 0, %s18
    %s21 = sphi 0, %s19
    %s22 = sphi 0, %s20
    %s34 = sphi 0, %s36
    %s37 = sphi 0, %s34
    %s38 = sphi 0, %s37
    %s54 = sphi 0, %s38
    %s60 = sphi 0, %s62
    %s63 = sphi 0, %s60
    %s64 = sphi 0, %s63
    %s80 = sphi 0, %s64
    %s86 = sphi 0, %s88
    %s89 = sphi 0, %s86
    %s90 = sphi 0, %s89
    %s106 = sphi 0, %s90
    %s112 = sphi 0, %s114
    %s115 = sphi 0, %s112
    %s116 = sphi 0, %s115
    %s132 = sphi 0, %s116
    %s140 = sphi 0, %s142
    %s143 = sphi 0, %s140
    %s144 = sphi 0, %s143
    %s160 = sphi 0, %s144
  $region4: #{model_forward.8} parent=0 // loop_header_branch
    %13 = sbr.rel (%p11) target = $region8
  $region5: #{model_forward.8} parent=0 // loop_body
    %s15 = ssub.s32 %s10, 1
    %s16 = ssub.s32 %s10, 2
    %s23 = sadd.s32 1, %s18
    %p24 = scmp.ge.s32.totalorder %s23, 1
    %s25 = scalar_select %p24, 0, %s23
    %s26 = sadd.s32 1, %s17
    %s27 = scalar_select %p24, %s26, %s17
    %p28 = scmp.ge.s32.totalorder %s27, 3
    %s29 = scalar_select %p28, 0, %s27
    %s30 = ssub.s32 %s17, %s29
    %s31 = ssub.s32 %s18, %s25
    %s32 = sor.u32 %s30, %s31
    %p33 = scmp.eq.s32.totalorder %s32, 0
    %s35 = sadd.s32 %s34, 1
    %s36 = scalar_select %p33, %s34, %s35
    %p39 = pneg %p33
    %p40 = scmp.eq.s32.totalorder %s10, 2
    %p41 = por %p39, %p40
    %p42 = scmp.ne.s32.totalorder %s34, %s37
    %p43 = scmp.eq.s32.totalorder %s10, 0
    %p44 = por %p42, %p43
    %p45 = scmp.ne.s32.totalorder %s34, %s37
    %p46 = scmp.eq.s32.totalorder %s15, 2
    %p47 = por %p45, %p46
    %p48 = scmp.ne.s32.totalorder %s37, %s38
    %p49 = scmp.eq.s32.totalorder %s15, 0
    %p50 = por %p48, %p49
    %p51 = scmp.ne.s32.totalorder %s37, %s38
    %p52 = scmp.eq.s32.totalorder %s16, 2
    %p53 = por %p51, %p52
    %p55 = scmp.ne.s32.totalorder %s38, %s54
    %p56 = scmp.eq.s32.totalorder %s16, 0
    %p57 = por %p55, %p56
    %s58 = ssub.s32 %s17, %s29
    %p59 = scmp.eq.s32.totalorder %s58, 0
    %s61 = sadd.s32 %s60, 1
    %s62 = scalar_select %p59, %s60, %s61
    %p65 = pneg %p59
    %p66 = scmp.eq.s32.totalorder %s10, 2
    %p67 = por %p65, %p66
    %p68 = scmp.ne.s32.totalorder %s60, %s63
    %p69 = scmp.eq.s32.totalorder %s10, 0
    %p70 = por %p68, %p69
    %p71 = scmp.ne.s32.totalorder %s60, %s63
    %p72 = scmp.eq.s32.totalorder %s15, 2
    %p73 = por %p71, %p72
    %p74 = scmp.ne.s32.totalorder %s63, %s64
    %p75 = scmp.eq.s32.totalorder %s15, 0
    %p76 = por %p74, %p75
    %p77 = scmp.ne.s32.totalorder %s63, %s64
    %p78 = scmp.eq.s32.totalorder %s16, 2
    %p79 = por %p77, %p78
    %p81 = scmp.ne.s32.totalorder %s64, %s80
    %p82 = scmp.eq.s32.totalorder %s16, 0
    %p83 = por %p81, %p82
    %s84 = ssub.s32 %s17, %s29
    %p85 = scmp.eq.s32.totalorder %s84, 0
    %s87 = sadd.s32 %s86, 1
    %s88 = scalar_select %p85, %s86, %s87
    %p91 = pneg %p85
    %p92 = scmp.eq.s32.totalorder %s10, 2
    %p93 = por %p91, %p92
    %p94 = scmp.ne.s32.totalorder %s86, %s89
    %p95 = scmp.eq.s32.totalorder %s10, 0
    %p96 = por %p94, %p95
    %p97 = scmp.ne.s32.totalorder %s86, %s89
    %p98 = scmp.eq.s32.totalorder %s15, 2
    %p99 = por %p97, %p98
    %p100 = scmp.ne.s32.totalorder %s89, %s90
    %p101 = scmp.eq.s32.totalorder %s15, 0
    %p102 = por %p100, %p101
    %p103 = scmp.ne.s32.totalorder %s89, %s90
    %p104 = scmp.eq.s32.totalorder %s16, 2
    %p105 = por %p103, %p104
    %p107 = scmp.ne.s32.totalorder %s90, %s106
    %p108 = scmp.eq.s32.totalorder %s16, 0
    %p109 = por %p107, %p108
    %s110 = ssub.s32 %s17, %s29
    %p111 = scmp.eq.s32.totalorder %s110, 0
    %s113 = sadd.s32 %s112, 1
    %s114 = scalar_select %p111, %s112, %s113
    %p117 = pneg %p111
    %p118 = scmp.eq.s32.totalorder %s10, 2
    %p119 = por %p117, %p118
    %p120 = scmp.ne.s32.totalorder %s112, %s115
    %p121 = scmp.eq.s32.totalorder %s10, 0
    %p122 = por %p120, %p121
    %p123 = scmp.ne.s32.totalorder %s112, %s115
    %p124 = scmp.eq.s32.totalorder %s15, 2
    %p125 = por %p123, %p124
    %p126 = scmp.ne.s32.totalorder %s115, %s116
    %p127 = scmp.eq.s32.totalorder %s15, 0
    %p128 = por %p126, %p127
    %p129 = scmp.ne.s32.totalorder %s115, %s116
    %p130 = scmp.eq.s32.totalorder %s16, 2
    %p131 = por %p129, %p130
    %p133 = scmp.ne.s32.totalorder %s116, %s132
    %p134 = scmp.eq.s32.totalorder %s16, 0
    %p135 = por %p133, %p134
    %s136 = ssub.s32 %s17, %s29
    %s137 = ssub.s32 %s18, %s25
    %s138 = sor.u32 %s136, %s137
    %p139 = scmp.eq.s32.totalorder %s138, 0
    %s141 = sadd.s32 %s140, 1
    %s142 = scalar_select %p139, %s140, %s141
    %p145 = pneg %p139
    %p146 = scmp.eq.s32.totalorder %s10, 2
    %p147 = por %p145, %p146
    %p148 = scmp.ne.s32.totalorder %s140, %s143
    %p149 = scmp.eq.s32.totalorder %s10, 0
    %p150 = por %p148, %p149
    %p151 = scmp.ne.s32.totalorder %s140, %s143
    %p152 = scmp.eq.s32.totalorder %s15, 2
    %p153 = por %p151, %p152
    %p154 = scmp.ne.s32.totalorder %s143, %s144
    %p155 = scmp.eq.s32.totalorder %s15, 0
    %p156 = por %p154, %p155
    %p157 = scmp.ne.s32.totalorder %s143, %s144
    %p158 = scmp.eq.s32.totalorder %s16, 2
    %p159 = por %p157, %p158
    %p161 = scmp.ne.s32.totalorder %s144, %s160
    %p162 = scmp.eq.s32.totalorder %s16, 0
    %p163 = por %p161, %p162
    %p164 = scmp.le.s32.totalorder 1, %s10
    %p165 = scmp.lt.s32.totalorder %s10, 4
    %p166 = pnand %p164, %p165
    %p167 = pneg %p166
    // Predicated region
    $region9: #{model_forward.8} parent=5 // pred_check
      _
    $region10: #{model_forward.8} parent=5 // pred_check_branch
      %169 = sbr.rel (%p166) target = $region12
    $region11: #{model_forward.8} parent=5 // pred_region
      %s170 = ssub.s32 %s10, 1
    $region12: #{model_forward.8} parent=5 // pred_fallthru
      _
    %p171 = scmp.lt.s32.totalorder %s10, 3
    // Predicated region
    $region13: #{model_forward.8} parent=5 // pred_check
      %p172 = pneg %p171
    $region14: #{model_forward.8} parent=5 // pred_check_branch
      %174 = sbr.rel (%p172) target = $region16
    $region15: #{model_forward.8} parent=5 // pred_region
      // Predicated region
      $region17: #{model_forward.8} parent=15 // pred_check
        %p175 = pneg %p44
      $region18: #{model_forward.8} parent=15 // pred_check_branch
        %177 = sbr.rel (%p175) target = $region20
      $region19: #{model_forward.8} parent=15 // pred_region
        %s178 = smul.u32 2, %s18
        %p179 = scmp.lt.s32.totalorder %s17, 2
        %s180 = scalar_select %p179, %s17, 2
        %p181 = scmp.lt.s32.totalorder %s178, 1
        %s182 = scalar_select %p181, %s178, 1
        %s183 = smul.addr %s182, 9
        %s184 = smul.addr %s180, 72
        %s185 = sadd.s32 %s183, %s184
        %s186 = smul.addr %s185, 4
        %s187 = scalar_lea.vmem %s0, %s186
        %s188 = smul.u32 2, %s18
      $region20: #{model_forward.8} parent=15 // pred_fallthru
        _
      // Predicated region
      $region21: #{model_forward.8} parent=15 // pred_check
        %p189 = pneg %p70
      $region22: #{model_forward.8} parent=15 // pred_check_branch
        %191 = sbr.rel (%p189) target = $region24
      $region23: #{model_forward.8} parent=15 // pred_region
        %p192 = scmp.lt.s32.totalorder %s17, 2
        %s193 = scalar_select %p192, %s17, 2
        %s194 = smul.addr %s193, 288
        %s195 = smul.addr %s194, 4
        %s196 = scalar_lea.vmem %s1, %s195
      $region24: #{model_forward.8} parent=15 // pred_fallthru
        _
      // Predicated region
      $region25: #{model_forward.8} parent=15 // pred_check
        %p197 = pneg %p96
      $region26: #{model_forward.8} parent=15 // pred_check_branch
        %199 = sbr.rel (%p197) target = $region28
      $region27: #{model_forward.8} parent=15 // pred_region
        %p200 = scmp.lt.s32.totalorder %s17, 2
        %s201 = scalar_select %p200, %s17, 2
        %s202 = smul.addr %s201, 2
        %s203 = scalar_lea.vmem %s2, %s202
      $region28: #{model_forward.8} parent=15 // pred_fallthru
        _
      // Predicated region
      $region29: #{model_forward.8} parent=15 // pred_check
        %p204 = pneg %p122
      $region30: #{model_forward.8} parent=15 // pred_check_branch
        %206 = sbr.rel (%p204) target = $region32
      $region31: #{model_forward.8} parent=15 // pred_region
        %p207 = scmp.lt.s32.totalorder %s17, 2
        %s208 = scalar_select %p207, %s17, 2
        %s209 = smul.addr %s208, 2
        %s210 = scalar_lea.vmem %s3, %s209
      $region32: #{model_forward.8} parent=15 // pred_fallthru
        _
    $region16: #{model_forward.8} parent=5 // pred_fallthru
      _
    %p211 = scmp.le.s32.totalorder 1, %s10
    %p212 = scmp.lt.s32.totalorder %s10, 4
    %p213 = pnand %p211, %p212
    %p214 = pneg %p213
    // Predicated region
    $region33: #{model_forward.8} parent=5 // pred_check
      _
    $region34: #{model_forward.8} parent=5 // pred_check_branch
      %216 = sbr.rel (%p213) target = $region36
    $region35: #{model_forward.8} parent=5 // pred_region
      %s217 = ssub.s32 %s10, 1
      %s218 = smul.u32 2, %s20
      %p219 = scmp.lt.s32.totalorder %s19, 2
      %s220 = scalar_select %p219, %s19, 2
      %p221 = scmp.lt.s32.totalorder %s218, 1
      %s222 = scalar_select %p221, %s218, 1
      %s223 = smul.addr %s222, 9
      %s224 = smul.addr %s220, 72
      %s225 = sadd.s32 %s223, %s224
      %s226 = smul.addr %s225, 4
      %s227 = scalar_lea.vmem %s0, %s226
      %p228 = pneg %p50
      %p229 = pneg %p47
      %p230 = scmp.lt.s32.totalorder %s19, 2
      %s231 = scalar_select %p230, %s19, 2
      %s232 = smul.addr %s231, 288
      %s233 = smul.addr %s232, 4
      %s234 = scalar_lea.vmem %s1, %s233
      %p235 = pneg %p76
      %p236 = pneg %p73
      %p237 = scmp.lt.s32.totalorder %s19, 2
      %s238 = scalar_select %p237, %s19, 2
      %s239 = smul.addr %s238, 2
      %s240 = scalar_lea.vmem %s2, %s239
      %p241 = pneg %p102
      %p242 = pneg %p99
      %p243 = scmp.lt.s32.totalorder %s19, 2
      %s244 = scalar_select %p243, %s19, 2
      %s245 = smul.addr %s244, 2
      %s246 = scalar_lea.vmem %s3, %s245
      %p247 = pneg %p128
      %p248 = pneg %p125
      %p249 = pneg %p156
      %p250 = pneg %p153
      %s251 = smul.u32 2, %s20
      %p252 = scmp.lt.s32.totalorder %s19, 2
      %s253 = scalar_select %p252, %s19, 2
      %p254 = scmp.lt.s32.totalorder %s251, 1
      %s255 = scalar_select %p254, %s251, 1
      %s256 = smul.addr %s255, 2
      %s257 = smul.addr %s253, 4
      %s258 = sadd.s32 %s256, %s257
      %s259 = smul.addr %s258, 4
      %s260 = scalar_lea.vmem %s4, %s259
      %s261 = smul.u32 2, %s20
      %p262 = scmp.lt.s32.totalorder %s19, 2
      %s263 = scalar_select %p262, %s19, 2
      %p264 = scmp.lt.s32.totalorder %s261, 1
      %s265 = scalar_select %p264, %s261, 1
      %s266 = smul.addr %s265, 9
      %s267 = smul.addr %s263, 72
      %s268 = sadd.s32 %s266, %s267
      %s269 = smul.addr %s268, 4
      %s270 = scalar_lea.vmem %s0, %s269
      %s271 = smul.u32 2, %s20
      %p272 = scmp.lt.s32.totalorder %s19, 2
      %s273 = scalar_select %p272, %s19, 2
      %s274 = smul.addr %s273, 288
      %s275 = smul.addr %s274, 4
      %s276 = scalar_lea.vmem %s1, %s275
      %p277 = scmp.lt.s32.totalorder %s19, 2
      %s278 = scalar_select %p277, %s19, 2
      %s279 = smul.addr %s278, 2
      %s280 = scalar_lea.vmem %s2, %s279
      %p281 = scmp.lt.s32.totalorder %s19, 2
      %s282 = scalar_select %p281, %s19, 2
      %s283 = smul.addr %s282, 2
      %s284 = scalar_lea.vmem %s3, %s283
      %s285 = smul.u32 2, %s20
      %p286 = scmp.lt.s32.totalorder %s19, 2
      %s287 = scalar_select %p286, %s19, 2
      %p288 = scmp.lt.s32.totalorder %s285, 1
      %s289 = scalar_select %p288, %s285, 1
      %s290 = smul.addr %s289, 2
      %s291 = smul.addr %s287, 4
      %s292 = sadd.s32 %s290, %s291
      %s293 = smul.addr %s292, 4
      %s294 = scalar_lea.vmem %s4, %s293
      %s295 = smul.u32 2, %s20
      %v297 = vld [vmem:[%s270] sm:$0xff]
      %v298 = vld [vmem:[%s270 + $0x8] sm:$0xff]
      %v299 = vld [vmem:[%s270 + $0x10] sm:$0xff]
      %v300 = vld [vmem:[%s270 + $0x18] sm:$0xff]
      %v301 = vld [vmem:[%s270 + $0x20] sm:$0xf]
      %v302 = vld [vmem:[%s270 + $0x24] sm:$0xff]
      %v303 = vld [vmem:[%s270 + $0x2c] sm:$0xff]
      %v304 = vld [vmem:[%s270 + $0x34] sm:$0xff]
      %v305 = vld [vmem:[%s270 + $0x3c] sm:$0xff]
      %v306 = vld [vmem:[%s270 + $0x44] sm:$0xf]
      %v307 = vld [vmem:[%s270 + $0x48] sm:$0xff]
      %v308 = vld [vmem:[%s270 + $0x50] sm:$0xff]
      %v309 = vld [vmem:[%s270 + $0x58] sm:$0xff]
      %v310 = vld [vmem:[%s270 + $0x60] sm:$0xff]
      %v311 = vld [vmem:[%s270 + $0x68] sm:$0xf]
      %v312 = vld [vmem:[%s270 + $0x6c] sm:$0xff]
      %v313 = vld [vmem:[%s270 + $0x74] sm:$0xff]
      %v314 = vld [vmem:[%s270 + $0x7c] sm:$0xff]
      %v315 = vld [vmem:[%s270 + $0x84] sm:$0xff]
      %v316 = vld [vmem:[%s270 + $0x8c] sm:$0xf]
      %v317 = vld [vmem:[%s270 + $0x90] sm:$0xff]
      %v318 = vld [vmem:[%s270 + $0x98] sm:$0xff]
      %v319 = vld [vmem:[%s270 + $0xa0] sm:$0xff]
      %v320 = vld [vmem:[%s270 + $0xa8] sm:$0xff]
      %v321 = vld [vmem:[%s270 + $0xb0] sm:$0xf]
      %v322 = vld [vmem:[%s270 + $0xb4] sm:$0xff]
      %v323 = vld [vmem:[%s270 + $0xbc] sm:$0xff]
      %v324 = vld [vmem:[%s270 + $0xc4] sm:$0xff]
      %v325 = vld [vmem:[%s270 + $0xcc] sm:$0xff]
      %v326 = vld [vmem:[%s270 + $0xd4] sm:$0xf]
      %v327 = vld [vmem:[%s270 + $0xd8] sm:$0xff]
      %v328 = vld [vmem:[%s270 + $0xe0] sm:$0xff]
      %v329 = vld [vmem:[%s270 + $0xe8] sm:$0xff]
      %v330 = vld [vmem:[%s270 + $0xf0] sm:$0xff]
      %v331 = vld [vmem:[%s270 + $0xf8] sm:$0xf]
      %v332 = vld [vmem:[%s270 + $0xfc] sm:$0xff]
      %v333 = vld [vmem:[%s270 + $0x104] sm:$0xff]
      %v334 = vld [vmem:[%s270 + $0x10c] sm:$0xff]
      %v335 = vld [vmem:[%s270 + $0x114] sm:$0xff]
      %v336 = vld [vmem:[%s270 + $0x11c] sm:$0xf]
      %v337 = vld [vmem:[%s276] sm:$0xff]
      %v338 = vld [vmem:[%s276 + $0x8] sm:$0xff]
      %v339 = vld [vmem:[%s276 + $0x10] sm:$0xff]
      %v340 = vld [vmem:[%s276 + $0x18] sm:$0xff]
      %v341 = vld [vmem:[%s276 + $0x20] sm:$0xff]
      %v342 = vld [vmem:[%s276 + $0x28] sm:$0xff]
      %v343 = vld [vmem:[%s276 + $0x30] sm:$0xff]
      %v344 = vld [vmem:[%s276 + $0x38] sm:$0xff]
      %v345 = vld [vmem:[%s276 + $0x40] sm:$0xff]
      %v346 = vld [vmem:[%s276 + $0x48] sm:$0xff]
      %v347 = vld [vmem:[%s276 + $0x50] sm:$0xff]
      %v348 = vld [vmem:[%s276 + $0x58] sm:$0xff]
      %v349 = vld [vmem:[%s276 + $0x60] sm:$0xff]
      %v350 = vld [vmem:[%s276 + $0x68] sm:$0xff]
      %v351 = vld [vmem:[%s276 + $0x70] sm:$0xff]
      %v352 = vld [vmem:[%s276 + $0x78] sm:$0xff]
      %v353 = vld [vmem:[%s276 + $0x80] sm:$0xff]
      %v354 = vld [vmem:[%s276 + $0x88] sm:$0xff]
      %v355 = vld [vmem:[%s276 + $0x90] sm:$0xff]
      %v356 = vld [vmem:[%s276 + $0x98] sm:$0xff]
      %v357 = vld [vmem:[%s276 + $0xa0] sm:$0xff]
      %v358 = vld [vmem:[%s276 + $0xa8] sm:$0xff]
      %v359 = vld [vmem:[%s276 + $0xb0] sm:$0xff]
      %v360 = vld [vmem:[%s276 + $0xb8] sm:$0xff]
      %v361 = vld [vmem:[%s276 + $0xc0] sm:$0xff]
      %v362 = vld [vmem:[%s276 + $0xc8] sm:$0xff]
      %v363 = vld [vmem:[%s276 + $0xd0] sm:$0xff]
      %v364 = vld [vmem:[%s276 + $0xd8] sm:$0xff]
      %v365 = vld [vmem:[%s276 + $0xe0] sm:$0xff]
      %v366 = vld [vmem:[%s276 + $0xe8] sm:$0xff]
      %v367 = vld [vmem:[%s276 + $0xf0] sm:$0xff]
      %v368 = vld [vmem:[%s276 + $0xf8] sm:$0xff]
      %v369 = vld [vmem:[%s276 + $0x100] sm:$0xff]
      %v370 = vld [vmem:[%s276 + $0x108] sm:$0xff]
      %v371 = vld [vmem:[%s276 + $0x110] sm:$0xff]
      %v372 = vld [vmem:[%s276 + $0x118] sm:$0xff]
      %v373 = vld [vmem:[%s276 + $0x120] sm:$0xff]
      %v374 = vld [vmem:[%s276 + $0x128] sm:$0xff]
      %v375 = vld [vmem:[%s276 + $0x130] sm:$0xff]
      %v376 = vld [vmem:[%s276 + $0x138] sm:$0xff]
      %v377 = vld [vmem:[%s276 + $0x140] sm:$0xff]
      %v378 = vld [vmem:[%s276 + $0x148] sm:$0xff]
      %v379 = vld [vmem:[%s276 + $0x150] sm:$0xff]
      %v380 = vld [vmem:[%s276 + $0x158] sm:$0xff]
      %v381 = vld [vmem:[%s276 + $0x160] sm:$0xff]
      %v382 = vld [vmem:[%s276 + $0x168] sm:$0xff]
      %v383 = vld [vmem:[%s276 + $0x170] sm:$0xff]
      %v384 = vld [vmem:[%s276 + $0x178] sm:$0xff]
      %v385 = vld [vmem:[%s276 + $0x180] sm:$0xff]
      %v386 = vld [vmem:[%s276 + $0x188] sm:$0xff]
      %v387 = vld [vmem:[%s276 + $0x190] sm:$0xff]
      %v388 = vld [vmem:[%s276 + $0x198] sm:$0xff]
      %v389 = vld [vmem:[%s276 + $0x1a0] sm:$0xff]
      %v390 = vld [vmem:[%s276 + $0x1a8] sm:$0xff]
      %v391 = vld [vmem:[%s276 + $0x1b0] sm:$0xff]
      %v392 = vld [vmem:[%s276 + $0x1b8] sm:$0xff]
      %v393 = vld [vmem:[%s276 + $0x1c0] sm:$0xff]
      %v394 = vld [vmem:[%s276 + $0x1c8] sm:$0xff]
      %v395 = vld [vmem:[%s276 + $0x1d0] sm:$0xff]
      %v396 = vld [vmem:[%s276 + $0x1d8] sm:$0xff]
      %v397 = vld [vmem:[%s276 + $0x1e0] sm:$0xff]
      %v398 = vld [vmem:[%s276 + $0x1e8] sm:$0xff]
      %v399 = vld [vmem:[%s276 + $0x1f0] sm:$0xff]
      %v400 = vld [vmem:[%s276 + $0x1f8] sm:$0xff]
      %v401 = vld [vmem:[%s276 + $0x200] sm:$0xff]
      %v402 = vld [vmem:[%s276 + $0x208] sm:$0xff]
      %v403 = vld [vmem:[%s276 + $0x210] sm:$0xff]
      %v404 = vld [vmem:[%s276 + $0x218] sm:$0xff]
      %v405 = vld [vmem:[%s276 + $0x220] sm:$0xff]
      %v406 = vld [vmem:[%s276 + $0x228] sm:$0xff]
      %v407 = vld [vmem:[%s276 + $0x230] sm:$0xff]
      %v408 = vld [vmem:[%s276 + $0x238] sm:$0xff]
      %v409 = vld [vmem:[%s276 + $0x240] sm:$0xff]
      %v410 = vld [vmem:[%s276 + $0x248] sm:$0xff]
      %v411 = vld [vmem:[%s276 + $0x250] sm:$0xff]
      %v412 = vld [vmem:[%s276 + $0x258] sm:$0xff]
      %v413 = vld [vmem:[%s276 + $0x260] sm:$0xff]
      %v414 = vld [vmem:[%s276 + $0x268] sm:$0xff]
      %v415 = vld [vmem:[%s276 + $0x270] sm:$0xff]
      %v416 = vld [vmem:[%s276 + $0x278] sm:$0xff]
      %v417 = vld [vmem:[%s276 + $0x280] sm:$0xff]
      %v418 = vld [vmem:[%s276 + $0x288] sm:$0xff]
      %v419 = vld [vmem:[%s276 + $0x290] sm:$0xff]
      %v420 = vld [vmem:[%s276 + $0x298] sm:$0xff]
      %v421 = vld [vmem:[%s276 + $0x2a0] sm:$0xff]
      %v422 = vld [vmem:[%s276 + $0x2a8] sm:$0xff]
      %v423 = vld [vmem:[%s276 + $0x2b0] sm:$0xff]
      %v424 = vld [vmem:[%s276 + $0x2b8] sm:$0xff]
      %v425 = vld [vmem:[%s276 + $0x2c0] sm:$0xff]
      %v426 = vld [vmem:[%s276 + $0x2c8] sm:$0xff]
      %v427 = vld [vmem:[%s276 + $0x2d0] sm:$0xff]
      %v428 = vld [vmem:[%s276 + $0x2d8] sm:$0xff]
      %v429 = vld [vmem:[%s276 + $0x2e0] sm:$0xff]
      %v430 = vld [vmem:[%s276 + $0x2e8] sm:$0xff]
      %v431 = vld [vmem:[%s276 + $0x2f0] sm:$0xff]
      %v432 = vld [vmem:[%s276 + $0x2f8] sm:$0xff]
      %v433 = vld [vmem:[%s276 + $0x300] sm:$0xff]
      %v434 = vld [vmem:[%s276 + $0x308] sm:$0xff]
      %v435 = vld [vmem:[%s276 + $0x310] sm:$0xff]
      %v436 = vld [vmem:[%s276 + $0x318] sm:$0xff]
      %v437 = vld [vmem:[%s276 + $0x320] sm:$0xff]
      %v438 = vld [vmem:[%s276 + $0x328] sm:$0xff]
      %v439 = vld [vmem:[%s276 + $0x330] sm:$0xff]
      %v440 = vld [vmem:[%s276 + $0x338] sm:$0xff]
      %v441 = vld [vmem:[%s276 + $0x340] sm:$0xff]
      %v442 = vld [vmem:[%s276 + $0x348] sm:$0xff]
      %v443 = vld [vmem:[%s276 + $0x350] sm:$0xff]
      %v444 = vld [vmem:[%s276 + $0x358] sm:$0xff]
      %v445 = vld [vmem:[%s276 + $0x360] sm:$0xff]
      %v446 = vld [vmem:[%s276 + $0x368] sm:$0xff]
      %v447 = vld [vmem:[%s276 + $0x370] sm:$0xff]
      %v448 = vld [vmem:[%s276 + $0x378] sm:$0xff]
      %v449 = vld [vmem:[%s276 + $0x380] sm:$0xff]
      %v450 = vld [vmem:[%s276 + $0x388] sm:$0xff]
      %v451 = vld [vmem:[%s276 + $0x390] sm:$0xff]
      %v452 = vld [vmem:[%s276 + $0x398] sm:$0xff]
      %v453 = vld [vmem:[%s276 + $0x3a0] sm:$0xff]
      %v454 = vld [vmem:[%s276 + $0x3a8] sm:$0xff]
      %v455 = vld [vmem:[%s276 + $0x3b0] sm:$0xff]
      %v456 = vld [vmem:[%s276 + $0x3b8] sm:$0xff]
      %v457 = vld [vmem:[%s276 + $0x3c0] sm:$0xff]
      %v458 = vld [vmem:[%s276 + $0x3c8] sm:$0xff]
      %v459 = vld [vmem:[%s276 + $0x3d0] sm:$0xff]
      %v460 = vld [vmem:[%s276 + $0x3d8] sm:$0xff]
      %v461 = vld [vmem:[%s276 + $0x3e0] sm:$0xff]
      %v462 = vld [vmem:[%s276 + $0x3e8] sm:$0xff]
      %v463 = vld [vmem:[%s276 + $0x3f0] sm:$0xff]
      %v464 = vld [vmem:[%s276 + $0x3f8] sm:$0xff]
      %v465 = vld [vmem:[%s276 + $0x400] sm:$0xff]
      %v466 = vld [vmem:[%s276 + $0x408] sm:$0xff]
      %v467 = vld [vmem:[%s276 + $0x410] sm:$0xff]
      %v468 = vld [vmem:[%s276 + $0x418] sm:$0xff]
      %v469 = vld [vmem:[%s276 + $0x420] sm:$0xff]
      %v470 = vld [vmem:[%s276 + $0x428] sm:$0xff]
      %v471 = vld [vmem:[%s276 + $0x430] sm:$0xff]
      %v472 = vld [vmem:[%s276 + $0x438] sm:$0xff]
      %v473 = vld [vmem:[%s276 + $0x440] sm:$0xff]
      %v474 = vld [vmem:[%s276 + $0x448] sm:$0xff]
      %v475 = vld [vmem:[%s276 + $0x450] sm:$0xff]
      %v476 = vld [vmem:[%s276 + $0x458] sm:$0xff]
      %v477 = vld [vmem:[%s276 + $0x460] sm:$0xff]
      %v478 = vld [vmem:[%s276 + $0x468] sm:$0xff]
      %v479 = vld [vmem:[%s276 + $0x470] sm:$0xff]
      %v480 = vld [vmem:[%s276 + $0x478] sm:$0xff]
      %v521 = vunpack.c.l.b16 %v297
      %v522 = vunpack.c.h.b16 %v297
      %v523 = vunpack.c.l.b16 %v298
      %v524 = vunpack.c.h.b16 %v298
      %v525 = vunpack.c.l.b16 %v299
      %v526 = vunpack.c.h.b16 %v299
      %v527 = vunpack.c.l.b16 %v300
      %v528 = vunpack.c.h.b16 %v300
      %v529 = vunpack.c.l.b16 %v301
      %v530 = vunpack.c.l.b16 %v302
      %v531 = vunpack.c.h.b16 %v302
      %v532 = vunpack.c.l.b16 %v303
      %v533 = vunpack.c.h.b16 %v303
      %v534 = vunpack.c.l.b16 %v304
      %v535 = vunpack.c.h.b16 %v304
      %v536 = vunpack.c.l.b16 %v305
      %v537 = vunpack.c.h.b16 %v305
      %v538 = vunpack.c.l.b16 %v306
      %v539 = vunpack.c.l.b16 %v307
      %v540 = vunpack.c.h.b16 %v307
      %v541 = vunpack.c.l.b16 %v308
      %v542 = vunpack.c.h.b16 %v308
      %v543 = vunpack.c.l.b16 %v309
      %v544 = vunpack.c.h.b16 %v309
      %v545 = vunpack.c.l.b16 %v310
      %v546 = vunpack.c.h.b16 %v310
      %v547 = vunpack.c.l.b16 %v311
      %v548 = vunpack.c.l.b16 %v312
      %v549 = vunpack.c.h.b16 %v312
      %v550 = vunpack.c.l.b16 %v313
      %v551 = vunpack.c.h.b16 %v313
      %v552 = vunpack.c.l.b16 %v314
      %v553 = vunpack.c.h.b16 %v314
      %v554 = vunpack.c.l.b16 %v315
      %v555 = vunpack.c.h.b16 %v315
      %v556 = vunpack.c.l.b16 %v316
      %v557 = vunpack.c.l.b16 %v317
      %v558 = vunpack.c.h.b16 %v317
      %v559 = vunpack.c.l.b16 %v318
      %v560 = vunpack.c.h.b16 %v318
      %v561 = vunpack.c.l.b16 %v319
      %v562 = vunpack.c.h.b16 %v319
      %v563 = vunpack.c.l.b16 %v320
      %v564 = vunpack.c.h.b16 %v320
      %v565 = vunpack.c.l.b16 %v321
      %v566 = vunpack.c.l.b16 %v322
      %v567 = vunpack.c.h.b16 %v322
      %v568 = vunpack.c.l.b16 %v323
      %v569 = vunpack.c.h.b16 %v323
      %v570 = vunpack.c.l.b16 %v324
      %v571 = vunpack.c.h.b16 %v324
      %v572 = vunpack.c.l.b16 %v325
      %v573 = vunpack.c.h.b16 %v325
      %v574 = vunpack.c.l.b16 %v326
      %v575 = vunpack.c.l.b16 %v327
      %v576 = vunpack.c.h.b16 %v327
      %v577 = vunpack.c.l.b16 %v328
      %v578 = vunpack.c.h.b16 %v328
      %v579 = vunpack.c.l.b16 %v329
      %v580 = vunpack.c.h.b16 %v329
      %v581 = vunpack.c.l.b16 %v330
      %v582 = vunpack.c.h.b16 %v330
      %v583 = vunpack.c.l.b16 %v331
      %v584 = vunpack.c.l.b16 %v332
      %v585 = vunpack.c.h.b16 %v332
      %v586 = vunpack.c.l.b16 %v333
      %v587 = vunpack.c.h.b16 %v333
      %v588 = vunpack.c.l.b16 %v334
      %v589 = vunpack.c.h.b16 %v334
      %v590 = vunpack.c.l.b16 %v335
      %v591 = vunpack.c.h.b16 %v335
      %v592 = vunpack.c.l.b16 %v336
      %v593 = vpack.c.b16 %v530, %v521
      %v594 = vpack.c.b16 %v531, %v522
      %v595 = vpack.c.b16 %v532, %v523
      %v596 = vpack.c.b16 %v533, %v524
      %v597 = vpack.c.b16 %v534, %v525
      %v598 = vpack.c.b16 %v535, %v526
      %v599 = vpack.c.b16 %v536, %v527
      %v600 = vpack.c.b16 %v537, %v528
      %v601 = vpack.c.b16 %v538, %v529
      %v602 = vpack.c.b16 %v548, %v539
      %v603 = vpack.c.b16 %v549, %v540
      %v604 = vpack.c.b16 %v550, %v541
      %v605 = vpack.c.b16 %v551, %v542
      %v606 = vpack.c.b16 %v552, %v543
      %v607 = vpack.c.b16 %v553, %v544
      %v608 = vpack.c.b16 %v554, %v545
      %v609 = vpack.c.b16 %v555, %v546
      %v610 = vpack.c.b16 %v556, %v547
      %v611 = vpack.c.b16 %v566, %v557
      %v612 = vpack.c.b16 %v567, %v558
      %v613 = vpack.c.b16 %v568, %v559
      %v614 = vpack.c.b16 %v569, %v560
      %v615 = vpack.c.b16 %v570, %v561
      %v616 = vpack.c.b16 %v571, %v562
      %v617 = vpack.c.b16 %v572, %v563
      %v618 = vpack.c.b16 %v573, %v564
      %v619 = vpack.c.b16 %v574, %v565
      %v620 = vpack.c.b16 %v584, %v575
      %v621 = vpack.c.b16 %v585, %v576
      %v622 = vpack.c.b16 %v586, %v577
      %v623 = vpack.c.b16 %v587, %v578
      %v624 = vpack.c.b16 %v588, %v579
      %v625 = vpack.c.b16 %v589, %v580
      %v626 = vpack.c.b16 %v590, %v581
      %v627 = vpack.c.b16 %v591, %v582
      %v628 = vpack.c.b16 %v592, %v583
      %v809 = vunpack.c.l.b16 %v337
      %v810 = vunpack.c.h.b16 %v337
      %v811 = vunpack.c.l.b16 %v338
      %v812 = vunpack.c.h.b16 %v338
      %v813 = vunpack.c.l.b16 %v339
      %v814 = vunpack.c.h.b16 %v339
      %v815 = vunpack.c.l.b16 %v340
      %v816 = vunpack.c.h.b16 %v340
      %v817 = vunpack.c.l.b16 %v341
      %v818 = vunpack.c.h.b16 %v341
      %v819 = vunpack.c.l.b16 %v342
      %v820 = vunpack.c.h.b16 %v342
      %v821 = vunpack.c.l.b16 %v343
      %v822 = vunpack.c.h.b16 %v343
      %v823 = vunpack.c.l.b16 %v344
      %v824 = vunpack.c.h.b16 %v344
      %v825 = vunpack.c.l.b16 %v345
      %v826 = vunpack.c.h.b16 %v345
      %v827 = vunpack.c.l.b16 %v346
      %v828 = vunpack.c.h.b16 %v346
      %v829 = vunpack.c.l.b16 %v347
      %v830 = vunpack.c.h.b16 %v347
      %v831 = vunpack.c.l.b16 %v348
      %v832 = vunpack.c.h.b16 %v348
      %v833 = vunpack.c.l.b16 %v349
      %v834 = vunpack.c.h.b16 %v349
      %v835 = vunpack.c.l.b16 %v350
      %v836 = vunpack.c.h.b16 %v350
      %v837 = vunpack.c.l.b16 %v351
      %v838 = vunpack.c.h.b16 %v351
      %v839 = vunpack.c.l.b16 %v352
      %v840 = vunpack.c.h.b16 %v352
      %v841 = vunpack.c.l.b16 %v353
      %v842 = vunpack.c.h.b16 %v353
      %v843 = vunpack.c.l.b16 %v354
      %v844 = vunpack.c.h.b16 %v354
      %v845 = vunpack.c.l.b16 %v355
      %v846 = vunpack.c.h.b16 %v355
      %v847 = vunpack.c.l.b16 %v356
      %v848 = vunpack.c.h.b16 %v356
      %v849 = vunpack.c.l.b16 %v357
      %v850 = vunpack.c.h.b16 %v357
      %v851 = vunpack.c.l.b16 %v358
      %v852 = vunpack.c.h.b16 %v358
      %v853 = vunpack.c.l.b16 %v359
      %v854 = vunpack.c.h.b16 %v359
      %v855 = vunpack.c.l.b16 %v360
      %v856 = vunpack.c.h.b16 %v360
      %v857 = vunpack.c.l.b16 %v361
      %v858 = vunpack.c.h.b16 %v361
      %v859 = vunpack.c.l.b16 %v362
      %v860 = vunpack.c.h.b16 %v362
      %v861 = vunpack.c.l.b16 %v363
      %v862 = vunpack.c.h.b16 %v363
      %v863 = vunpack.c.l.b16 %v364
      %v864 = vunpack.c.h.b16 %v364
      %v865 = vunpack.c.l.b16 %v365
      %v866 = vunpack.c.h.b16 %v365
      %v867 = vunpack.c.l.b16 %v366
      %v868 = vunpack.c.h.b16 %v366
      %v869 = vunpack.c.l.b16 %v367
      %v870 = vunpack.c.h.b16 %v367
      %v871 = vunpack.c.l.b16 %v368
      %v872 = vunpack.c.h.b16 %v368
      %v873 = vunpack.c.l.b16 %v369
      %v874 = vunpack.c.h.b16 %v369
      %v875 = vunpack.c.l.b16 %v370
      %v876 = vunpack.c.h.b16 %v370
      %v877 = vunpack.c.l.b16 %v371
      %v878 = vunpack.c.h.b16 %v371
      %v879 = vunpack.c.l.b16 %v372
      %v880 = vunpack.c.h.b16 %v372
      %v881 = vunpack.c.l.b16 %v373
      %v882 = vunpack.c.h.b16 %v373
      %v883 = vunpack.c.l.b16 %v374
      %v884 = vunpack.c.h.b16 %v374
      %v885 = vunpack.c.l.b16 %v375
      %v886 = vunpack.c.h.b16 %v375
      %v887 = vunpack.c.l.b16 %v376
      %v888 = vunpack.c.h.b16 %v376
      %v889 = vunpack.c.l.b16 %v377
      %v890 = vunpack.c.h.b16 %v377
      %v891 = vunpack.c.l.b16 %v378
      %v892 = vunpack.c.h.b16 %v378
      %v893 = vunpack.c.l.b16 %v379
      %v894 = vunpack.c.h.b16 %v379
      %v895 = vunpack.c.l.b16 %v380
      %v896 = vunpack.c.h.b16 %v380
      %v897 = vunpack.c.l.b16 %v381
      %v898 = vunpack.c.h.b16 %v381
      %v899 = vunpack.c.l.b16 %v382
      %v900 = vunpack.c.h.b16 %v382
      %v901 = vunpack.c.l.b16 %v383
      %v902 = vunpack.c.h.b16 %v383
      %v903 = vunpack.c.l.b16 %v384
      %v904 = vunpack.c.h.b16 %v384
      %v905 = vunpack.c.l.b16 %v385
      %v906 = vunpack.c.h.b16 %v385
      %v907 = vunpack.c.l.b16 %v386
      %v908 = vunpack.c.h.b16 %v386
      %v909 = vunpack.c.l.b16 %v387
      %v910 = vunpack.c.h.b16 %v387
      %v911 = vunpack.c.l.b16 %v388
      %v912 = vunpack.c.h.b16 %v388
      %v913 = vunpack.c.l.b16 %v389
      %v914 = vunpack.c.h.b16 %v389
      %v915 = vunpack.c.l.b16 %v390
      %v916 = vunpack.c.h.b16 %v390
      %v917 = vunpack.c.l.b16 %v391
      %v918 = vunpack.c.h.b16 %v391
      %v919 = vunpack.c.l.b16 %v392
      %v920 = vunpack.c.h.b16 %v392
      %v921 = vunpack.c.l.b16 %v393
      %v922 = vunpack.c.h.b16 %v393
      %v923 = vunpack.c.l.b16 %v394
      %v924 = vunpack.c.h.b16 %v394
      %v925 = vunpack.c.l.b16 %v395
      %v926 = vunpack.c.h.b16 %v395
      %v927 = vunpack.c.l.b16 %v396
      %v928 = vunpack.c.h.b16 %v396
      %v929 = vunpack.c.l.b16 %v397
      %v930 = vunpack.c.h.b16 %v397
      %v931 = vunpack.c.l.b16 %v398
      %v932 = vunpack.c.h.b16 %v398
      %v933 = vunpack.c.l.b16 %v399
      %v934 = vunpack.c.h.b16 %v399
      %v935 = vunpack.c.l.b16 %v400
      %v936 = vunpack.c.h.b16 %v400
      %v937 = vunpack.c.l.b16 %v401
      %v938 = vunpack.c.h.b16 %v401
      %v939 = vunpack.c.l.b16 %v402
      %v940 = vunpack.c.h.b16 %v402
      %v941 = vunpack.c.l.b16 %v403
      %v942 = vunpack.c.h.b16 %v403
      %v943 = vunpack.c.l.b16 %v404
      %v944 = vunpack.c.h.b16 %v404
      %v945 = vunpack.c.l.b16 %v405
      %v946 = vunpack.c.h.b16 %v405
      %v947 = vunpack.c.l.b16 %v406
      %v948 = vunpack.c.h.b16 %v406
      %v949 = vunpack.c.l.b16 %v407
      %v950 = vunpack.c.h.b16 %v407
      %v951 = vunpack.c.l.b16 %v408
      %v952 = vunpack.c.h.b16 %v408
      %v953 = vunpack.c.l.b16 %v409
      %v954 = vunpack.c.h.b16 %v409
      %v955 = vunpack.c.l.b16 %v410
      %v956 = vunpack.c.h.b16 %v410
      %v957 = vunpack.c.l.b16 %v411
      %v958 = vunpack.c.h.b16 %v411
      %v959 = vunpack.c.l.b16 %v412
      %v960 = vunpack.c.h.b16 %v412
      %v961 = vunpack.c.l.b16 %v413
      %v962 = vunpack.c.h.b16 %v413
      %v963 = vunpack.c.l.b16 %v414
      %v964 = vunpack.c.h.b16 %v414
      %v965 = vunpack.c.l.b16 %v415
      %v966 = vunpack.c.h.b16 %v415
      %v967 = vunpack.c.l.b16 %v416
      %v968 = vunpack.c.h.b16 %v416
      %v969 = vunpack.c.l.b16 %v417
      %v970 = vunpack.c.h.b16 %v417
      %v971 = vunpack.c.l.b16 %v418
      %v972 = vunpack.c.h.b16 %v418
      %v973 = vunpack.c.l.b16 %v419
      %v974 = vunpack.c.h.b16 %v419
      %v975 = vunpack.c.l.b16 %v420
      %v976 = vunpack.c.h.b16 %v420
      %v977 = vunpack.c.l.b16 %v421
      %v978 = vunpack.c.h.b16 %v421
      %v979 = vunpack.c.l.b16 %v422
      %v980 = vunpack.c.h.b16 %v422
      %v981 = vunpack.c.l.b16 %v423
      %v982 = vunpack.c.h.b16 %v423
      %v983 = vunpack.c.l.b16 %v424
      %v984 = vunpack.c.h.b16 %v424
      %v985 = vunpack.c.l.b16 %v425
      %v986 = vunpack.c.h.b16 %v425
      %v987 = vunpack.c.l.b16 %v426
      %v988 = vunpack.c.h.b16 %v426
      %v989 = vunpack.c.l.b16 %v427
      %v990 = vunpack.c.h.b16 %v427
      %v991 = vunpack.c.l.b16 %v428
      %v992 = vunpack.c.h.b16 %v428
      %v993 = vunpack.c.l.b16 %v429
      %v994 = vunpack.c.h.b16 %v429
      %v995 = vunpack.c.l.b16 %v430
      %v996 = vunpack.c.h.b16 %v430
      %v997 = vunpack.c.l.b16 %v431
      %v998 = vunpack.c.h.b16 %v431
      %v999 = vunpack.c.l.b16 %v432
      %v1000 = vunpack.c.h.b16 %v432
      %v1001 = vunpack.c.l.b16 %v433
      %v1002 = vunpack.c.h.b16 %v433
      %v1003 = vunpack.c.l.b16 %v434
      %v1004 = vunpack.c.h.b16 %v434
      %v1005 = vunpack.c.l.b16 %v435
      %v1006 = vunpack.c.h.b16 %v435
      %v1007 = vunpack.c.l.b16 %v436
      %v1008 = vunpack.c.h.b16 %v436
      %v1009 = vunpack.c.l.b16 %v437
      %v1010 = vunpack.c.h.b16 %v437
      %v1011 = vunpack.c.l.b16 %v438
      %v1012 = vunpack.c.h.b16 %v438
      %v1013 = vunpack.c.l.b16 %v439
      %v1014 = vunpack.c.h.b16 %v439
      %v1015 = vunpack.c.l.b16 %v440
      %v1016 = vunpack.c.h.b16 %v440
      %v1017 = vunpack.c.l.b16 %v441
      %v1018 = vunpack.c.h.b16 %v441
      %v1019 = vunpack.c.l.b16 %v442
      %v1020 = vunpack.c.h.b16 %v442
      %v1021 = vunpack.c.l.b16 %v443
      %v1022 = vunpack.c.h.b16 %v443
      %v1023 = vunpack.c.l.b16 %v444
      %v1024 = vunpack.c.h.b16 %v444
      %v1025 = vunpack.c.l.b16 %v445
      %v1026 = vunpack.c.h.b16 %v445
      %v1027 = vunpack.c.l.b16 %v446
      %v1028 = vunpack.c.h.b16 %v446
      %v1029 = vunpack.c.l.b16 %v447
      %v1030 = vunpack.c.h.b16 %v447
      %v1031 = vunpack.c.l.b16 %v448
      %v1032 = vunpack.c.h.b16 %v448
      %v1033 = vunpack.c.l.b16 %v449
      %v1034 = vunpack.c.h.b16 %v449
      %v1035 = vunpack.c.l.b16 %v450
      %v1036 = vunpack.c.h.b16 %v450
      %v1037 = vunpack.c.l.b16 %v451
      %v1038 = vunpack.c.h.b16 %v451
      %v1039 = vunpack.c.l.b16 %v452
      %v1040 = vunpack.c.h.b16 %v452
      %v1041 = vunpack.c.l.b16 %v453
      %v1042 = vunpack.c.h.b16 %v453
      %v1043 = vunpack.c.l.b16 %v454
      %v1044 = vunpack.c.h.b16 %v454
      %v1045 = vunpack.c.l.b16 %v455
      %v1046 = vunpack.c.h.b16 %v455
      %v1047 = vunpack.c.l.b16 %v456
      %v1048 = vunpack.c.h.b16 %v456
      %v1049 = vunpack.c.l.b16 %v457
      %v1050 = vunpack.c.h.b16 %v457
      %v1051 = vunpack.c.l.b16 %v458
      %v1052 = vunpack.c.h.b16 %v458
      %v1053 = vunpack.c.l.b16 %v459
      %v1054 = vunpack.c.h.b16 %v459
      %v1055 = vunpack.c.l.b16 %v460
      %v1056 = vunpack.c.h.b16 %v460
      %v1057 = vunpack.c.l.b16 %v461
      %v1058 = vunpack.c.h.b16 %v461
      %v1059 = vunpack.c.l.b16 %v462
      %v1060 = vunpack.c.h.b16 %v462
      %v1061 = vunpack.c.l.b16 %v463
      %v1062 = vunpack.c.h.b16 %v463
      %v1063 = vunpack.c.l.b16 %v464
      %v1064 = vunpack.c.h.b16 %v464
      %v1065 = vunpack.c.l.b16 %v465
      %v1066 = vunpack.c.h.b16 %v465
      %v1067 = vunpack.c.l.b16 %v466
      %v1068 = vunpack.c.h.b16 %v466
      %v1069 = vunpack.c.l.b16 %v467
      %v1070 = vunpack.c.h.b16 %v467
      %v1071 = vunpack.c.l.b16 %v468
      %v1072 = vunpack.c.h.b16 %v468
      %v1073 = vunpack.c.l.b16 %v469
      %v1074 = vunpack.c.h.b16 %v469
      %v1075 = vunpack.c.l.b16 %v470
      %v1076 = vunpack.c.h.b16 %v470
      %v1077 = vunpack.c.l.b16 %v471
      %v1078 = vunpack.c.h.b16 %v471
      %v1079 = vunpack.c.l.b16 %v472
      %v1080 = vunpack.c.h.b16 %v472
      %v1081 = vunpack.c.l.b16 %v473
      %v1082 = vunpack.c.h.b16 %v473
      %v1083 = vunpack.c.l.b16 %v474
      %v1084 = vunpack.c.h.b16 %v474
      %v1085 = vunpack.c.l.b16 %v475
      %v1086 = vunpack.c.h.b16 %v475
      %v1087 = vunpack.c.l.b16 %v476
      %v1088 = vunpack.c.h.b16 %v476
      %v1089 = vunpack.c.l.b16 %v477
      %v1090 = vunpack.c.h.b16 %v477
      %v1091 = vunpack.c.l.b16 %v478
      %v1092 = vunpack.c.h.b16 %v478
      %v1093 = vunpack.c.l.b16 %v479
      %v1094 = vunpack.c.h.b16 %v479
      %v1095 = vunpack.c.l.b16 %v480
      %v1096 = vunpack.c.h.b16 %v480
      %v1097 = vpack.c.b16 %v811, %v809
      %v1098 = vpack.c.b16 %v812, %v810
      %v1099 = vpack.c.b16 %v815, %v813
      %v1100 = vpack.c.b16 %v816, %v814
      %v1101 = vpack.c.b16 %v819, %v817
      %v1102 = vpack.c.b16 %v820, %v818
      %v1103 = vpack.c.b16 %v823, %v821
      %v1104 = vpack.c.b16 %v824, %v822
      %v1105 = vpack.c.b16 %v827, %v825
      %v1106 = vpack.c.b16 %v828, %v826
      %v1107 = vpack.c.b16 %v831, %v829
      %v1108 = vpack.c.b16 %v832, %v830
      %v1109 = vpack.c.b16 %v835, %v833
      %v1110 = vpack.c.b16 %v836, %v834
      %v1111 = vpack.c.b16 %v839, %v837
      %v1112 = vpack.c.b16 %v840, %v838
      %v1113 = vpack.c.b16 %v843, %v841
      %v1114 = vpack.c.b16 %v844, %v842
      %v1115 = vpack.c.b16 %v847, %v845
      %v1116 = vpack.c.b16 %v848, %v846
      %v1117 = vpack.c.b16 %v851, %v849
      %v1118 = vpack.c.b16 %v852, %v850
      %v1119 = vpack.c.b16 %v855, %v853
      %v1120 = vpack.c.b16 %v856, %v854
      %v1121 = vpack.c.b16 %v859, %v857
      %v1122 = vpack.c.b16 %v860, %v858
      %v1123 = vpack.c.b16 %v863, %v861
      %v1124 = vpack.c.b16 %v864, %v862
      %v1125 = vpack.c.b16 %v867, %v865
      %v1126 = vpack.c.b16 %v868, %v866
      %v1127 = vpack.c.b16 %v871, %v869
      %v1128 = vpack.c.b16 %v872, %v870
      %v1129 = vpack.c.b16 %v875, %v873
      %v1130 = vpack.c.b16 %v876, %v874
      %v1131 = vpack.c.b16 %v879, %v877
      %v1132 = vpack.c.b16 %v880, %v878
      %v1133 = vpack.c.b16 %v883, %v881
      %v1134 = vpack.c.b16 %v884, %v882
      %v1135 = vpack.c.b16 %v887, %v885
      %v1136 = vpack.c.b16 %v888, %v886
      %v1137 = vpack.c.b16 %v891, %v889
      %v1138 = vpack.c.b16 %v892, %v890
      %v1139 = vpack.c.b16 %v895, %v893
      %v1140 = vpack.c.b16 %v896, %v894
      %v1141 = vpack.c.b16 %v899, %v897
      %v1142 = vpack.c.b16 %v900, %v898
      %v1143 = vpack.c.b16 %v903, %v901
      %v1144 = vpack.c.b16 %v904, %v902
      %v1145 = vpack.c.b16 %v907, %v905
      %v1146 = vpack.c.b16 %v908, %v906
      %v1147 = vpack.c.b16 %v911, %v909
      %v1148 = vpack.c.b16 %v912, %v910
      %v1149 = vpack.c.b16 %v915, %v913
      %v1150 = vpack.c.b16 %v916, %v914
      %v1151 = vpack.c.b16 %v919, %v917
      %v1152 = vpack.c.b16 %v920, %v918
      %v1153 = vpack.c.b16 %v923, %v921
      %v1154 = vpack.c.b16 %v924, %v922
      %v1155 = vpack.c.b16 %v927, %v925
      %v1156 = vpack.c.b16 %v928, %v926
      %v1157 = vpack.c.b16 %v931, %v929
      %v1158 = vpack.c.b16 %v932, %v930
      %v1159 = vpack.c.b16 %v935, %v933
      %v1160 = vpack.c.b16 %v936, %v934
      %v1161 = vpack.c.b16 %v939, %v937
      %v1162 = vpack.c.b16 %v940, %v938
      %v1163 = vpack.c.b16 %v943, %v941
      %v1164 = vpack.c.b16 %v944, %v942
      %v1165 = vpack.c.b16 %v947, %v945
      %v1166 = vpack.c.b16 %v948, %v946
      %v1167 = vpack.c.b16 %v951, %v949
      %v1168 = vpack.c.b16 %v952, %v950
      %v1169 = vpack.c.b16 %v955, %v953
      %v1170 = vpack.c.b16 %v956, %v954
      %v1171 = vpack.c.b16 %v959, %v957
      %v1172 = vpack.c.b16 %v960, %v958
      %v1173 = vpack.c.b16 %v963, %v961
      %v1174 = vpack.c.b16 %v964, %v962
      %v1175 = vpack.c.b16 %v967, %v965
      %v1176 = vpack.c.b16 %v968, %v966
      %v1177 = vpack.c.b16 %v971, %v969
      %v1178 = vpack.c.b16 %v972, %v970
      %v1179 = vpack.c.b16 %v975, %v973
      %v1180 = vpack.c.b16 %v976, %v974
      %v1181 = vpack.c.b16 %v979, %v977
      %v1182 = vpack.c.b16 %v980, %v978
      %v1183 = vpack.c.b16 %v983, %v981
      %v1184 = vpack.c.b16 %v984, %v982
      %v1185 = vpack.c.b16 %v987, %v985
      %v1186 = vpack.c.b16 %v988, %v986
      %v1187 = vpack.c.b16 %v991, %v989
      %v1188 = vpack.c.b16 %v992, %v990
      %v1189 = vpack.c.b16 %v995, %v993
      %v1190 = vpack.c.b16 %v996, %v994
      %v1191 = vpack.c.b16 %v999, %v997
      %v1192 = vpack.c.b16 %v1000, %v998
      %v1193 = vpack.c.b16 %v1003, %v1001
      %v1194 = vpack.c.b16 %v1004, %v1002
      %v1195 = vpack.c.b16 %v1007, %v1005
      %v1196 = vpack.c.b16 %v1008, %v1006
      %v1197 = vpack.c.b16 %v1011, %v1009
      %v1198 = vpack.c.b16 %v1012, %v1010
      %v1199 = vpack.c.b16 %v1015, %v1013
      %v1200 = vpack.c.b16 %v1016, %v1014
      %v1201 = vpack.c.b16 %v1019, %v1017
      %v1202 = vpack.c.b16 %v1020, %v1018
      %v1203 = vpack.c.b16 %v1023, %v1021
      %v1204 = vpack.c.b16 %v1024, %v1022
      %v1205 = vpack.c.b16 %v1027, %v1025
      %v1206 = vpack.c.b16 %v1028, %v1026
      %v1207 = vpack.c.b16 %v1031, %v1029
      %v1208 = vpack.c.b16 %v1032, %v1030
      %v1209 = vpack.c.b16 %v1035, %v1033
      %v1210 = vpack.c.b16 %v1036, %v1034
      %v1211 = vpack.c.b16 %v1039, %v1037
      %v1212 = vpack.c.b16 %v1040, %v1038
      %v1213 = vpack.c.b16 %v1043, %v1041
      %v1214 = vpack.c.b16 %v1044, %v1042
      %v1215 = vpack.c.b16 %v1047, %v1045
      %v1216 = vpack.c.b16 %v1048, %v1046
      %v1217 = vpack.c.b16 %v1051, %v1049
      %v1218 = vpack.c.b16 %v1052, %v1050
      %v1219 = vpack.c.b16 %v1055, %v1053
      %v1220 = vpack.c.b16 %v1056, %v1054
      %v1221 = vpack.c.b16 %v1059, %v1057
      %v1222 = vpack.c.b16 %v1060, %v1058
      %v1223 = vpack.c.b16 %v1063, %v1061
      %v1224 = vpack.c.b16 %v1064, %v1062
      %v1225 = vpack.c.b16 %v1067, %v1065
      %v1226 = vpack.c.b16 %v1068, %v1066
      %v1227 = vpack.c.b16 %v1071, %v1069
      %v1228 = vpack.c.b16 %v1072, %v1070
      %v1229 = vpack.c.b16 %v1075, %v1073
      %v1230 = vpack.c.b16 %v1076, %v1074
      %v1231 = vpack.c.b16 %v1079, %v1077
      %v1232 = vpack.c.b16 %v1080, %v1078
      %v1233 = vpack.c.b16 %v1083, %v1081
      %v1234 = vpack.c.b16 %v1084, %v1082
      %v1235 = vpack.c.b16 %v1087, %v1085
      %v1236 = vpack.c.b16 %v1088, %v1086
      %v1237 = vpack.c.b16 %v1091, %v1089
      %v1238 = vpack.c.b16 %v1092, %v1090
      %v1239 = vpack.c.b16 %v1095, %v1093
      %v1240 = vpack.c.b16 %v1096, %v1094
      %1385 = vmatprep.subr.bf16.mxu0 %v1112
      %1386 = vmatpush1.bf16.msra.mxu0 %v1111
      %1387 = vmatprep.subr.bf16.mxu0 %v1110
      %1388 = vmatpush1.bf16.msra.mxu0 %v1109
      %1389 = vmatprep.subr.bf16.mxu0 %v1108
      %1390 = vmatpush1.bf16.msra.mxu0 %v1107
      %1391 = vmatprep.subr.bf16.mxu0 %v1106
      %1392 = vmatpush1.bf16.msra.mxu0 %v1105
      %1393 = vmatprep.subr.bf16.mxu0 %v1104
      %1394 = vmatpush1.bf16.msra.mxu0 %v1103
      %1395 = vmatprep.subr.bf16.mxu0 %v1102
      %1396 = vmatpush1.bf16.msra.mxu0 %v1101
      %1397 = vmatprep.subr.bf16.mxu0 %v1100
      %1398 = vmatpush1.bf16.msra.mxu0 %v1099
      %1399 = vmatprep.subr.bf16.mxu0 %v1098
      %1400 = vmatpush1.bf16.msra.mxu0 %v1097
      %1401 = vmatprep.subr.bf16.mxu0 %v1128
      %1402 = vmatpush2.bf16.msra.mxu0 %v1127
      %1403 = vmatprep.subr.bf16.mxu0 %v1126
      %1404 = vmatpush2.bf16.msra.mxu0 %v1125
      %1405 = vmatprep.subr.bf16.mxu0 %v1124
      %1406 = vmatpush2.bf16.msra.mxu0 %v1123
      %1407 = vmatprep.subr.bf16.mxu0 %v1122
      %1408 = vmatpush2.bf16.msra.mxu0 %v1121
      %1409 = vmatprep.subr.bf16.mxu0 %v1120
      %1410 = vmatpush2.bf16.msra.mxu0 %v1119
      %1411 = vmatprep.subr.bf16.mxu0 %v1118
      %1412 = vmatpush2.bf16.msra.mxu0 %v1117
      %1413 = vmatprep.subr.bf16.mxu0 %v1116
      %1414 = vmatpush2.bf16.msra.mxu0 %v1115
      %1415 = vmatprep.subr.bf16.mxu0 %v1114
      %1416 = vmatpush2.bf16.msra.mxu0 %v1113
      %1417 = vmatprep.mubr.bf16.mxu0 %v594
      %1418 = vmatmul.mubr.bf16.gmra.mxu0 %v593
      %v1419 = vpop.f32.mrf.mxu0
      %v1420 = vadd.f32 0.0, %v1419
      %v1421 = vpop.f32.mrf.mxu0
      %v1422 = vadd.f32 0.0, %v1421
      %v1423 = vpop.f32.mrf.mxu0
      %v1424 = vadd.f32 0.0, %v1423
      %v1425 = vpop.f32.mrf.mxu0
      %v1426 = vadd.f32 0.0, %v1425
      %1427 = vmatprep.mubr.bf16.mxu0 %v603
      %1428 = vmatmul.mubr.bf16.gmra.mxu0 %v602
      %v1429 = vpop.f32.mrf.mxu0
      %v1430 = vadd.f32 0.0, %v1429
      %v1431 = vpop.f32.mrf.mxu0
      %v1432 = vadd.f32 0.0, %v1431
      %v1433 = vpop.f32.mrf.mxu0
      %v1434 = vadd.f32 0.0, %v1433
      %v1435 = vpop.f32.mrf.mxu0
      %v1436 = vadd.f32 0.0, %v1435
      %1437 = vmatprep.mubr.bf16.mxu0 %v612
      %1438 = vmatmul.mubr.bf16.gmra.mxu0 %v611
      %v1439 = vpop.f32.mrf.mxu0
      %v1440 = vadd.f32 0.0, %v1439
      %v1441 = vpop.f32.mrf.mxu0
      %v1442 = vadd.f32 0.0, %v1441
      %v1443 = vpop.f32.mrf.mxu0
      %v1444 = vadd.f32 0.0, %v1443
      %v1445 = vpop.f32.mrf.mxu0
      %v1446 = vadd.f32 0.0, %v1445
      %1447 = vmatprep.mubr.bf16.mxu0 %v621
      %1448 = vmatmul.mubr.bf16.gmra.mxu0 %v620
      %v1449 = vpop.f32.mrf.mxu0
      %v1450 = vadd.f32 0.0, %v1449
      %v1451 = vpop.f32.mrf.mxu0
      %v1452 = vadd.f32 0.0, %v1451
      %v1453 = vpop.f32.mrf.mxu0
      %v1454 = vadd.f32 0.0, %v1453
      %v1455 = vpop.f32.mrf.mxu0
      %v1456 = vadd.f32 0.0, %v1455
      %1457 = vdwg.mxu0
      %1458 = vmatprep.subr.bf16.mxu0 %v1144
      %1459 = vmatpush1.bf16.msra.mxu0 %v1143
      %1460 = vmatprep.subr.bf16.mxu0 %v1142
      %1461 = vmatpush1.bf16.msra.mxu0 %v1141
      %1462 = vmatprep.subr.bf16.mxu0 %v1140
      %1463 = vmatpush1.bf16.msra.mxu0 %v1139
      %1464 = vmatprep.subr.bf16.mxu0 %v1138
      %1465 = vmatpush1.bf16.msra.mxu0 %v1137
      %1466 = vmatprep.subr.bf16.mxu0 %v1136
      %1467 = vmatpush1.bf16.msra.mxu0 %v1135
      %1468 = vmatprep.subr.bf16.mxu0 %v1134
      %1469 = vmatpush1.bf16.msra.mxu0 %v1133
      %1470 = vmatprep.subr.bf16.mxu0 %v1132
      %1471 = vmatpush1.bf16.msra.mxu0 %v1131
      %1472 = vmatprep.subr.bf16.mxu0 %v1130
      %1473 = vmatpush1.bf16.msra.mxu0 %v1129
      %1474 = vmatprep.subr.bf16.mxu0 %v1160
      %1475 = vmatpush2.bf16.msra.mxu0 %v1159
      %1476 = vmatprep.subr.bf16.mxu0 %v1158
      %1477 = vmatpush2.bf16.msra.mxu0 %v1157
      %1478 = vmatprep.subr.bf16.mxu0 %v1156
      %1479 = vmatpush2.bf16.msra.mxu0 %v1155
      %1480 = vmatprep.subr.bf16.mxu0 %v1154
      %1481 = vmatpush2.bf16.msra.mxu0 %v1153
      %1482 = vmatprep.subr.bf16.mxu0 %v1152
      %1483 = vmatpush2.bf16.msra.mxu0 %v1151
      %1484 = vmatprep.subr.bf16.mxu0 %v1150
      %1485 = vmatpush2.bf16.msra.mxu0 %v1149
      %1486 = vmatprep.subr.bf16.mxu0 %v1148
      %1487 = vmatpush2.bf16.msra.mxu0 %v1147
      %1488 = vmatprep.subr.bf16.mxu0 %v1146
      %1489 = vmatpush2.bf16.msra.mxu0 %v1145
      %1490 = vmatprep.mubr.bf16.mxu0 %v596
      %1491 = vmatmul.mubr.bf16.gmra.mxu0 %v595
      %v1492 = vpop.f32.mrf.mxu0
      %v1493 = vadd.f32 %v1420, %v1492
      %v1494 = vpop.f32.mrf.mxu0
      %v1495 = vadd.f32 %v1422, %v1494
      %v1496 = vpop.f32.mrf.mxu0
      %v1497 = vadd.f32 %v1424, %v1496
      %v1498 = vpop.f32.mrf.mxu0
      %v1499 = vadd.f32 %v1426, %v1498
      %1500 = vmatprep.mubr.bf16.mxu0 %v605
      %1501 = vmatmul.mubr.bf16.gmra.mxu0 %v604
      %v1502 = vpop.f32.mrf.mxu0
      %v1503 = vadd.f32 %v1430, %v1502
      %v1504 = vpop.f32.mrf.mxu0
      %v1505 = vadd.f32 %v1432, %v1504
      %v1506 = vpop.f32.mrf.mxu0
      %v1507 = vadd.f32 %v1434, %v1506
      %v1508 = vpop.f32.mrf.mxu0
      %v1509 = vadd.f32 %v1436, %v1508
      %1510 = vmatprep.mubr.bf16.mxu0 %v614
      %1511 = vmatmul.mubr.bf16.gmra.mxu0 %v613
      %v1512 = vpop.f32.mrf.mxu0
      %v1513 = vadd.f32 %v1440, %v1512
      %v1514 = vpop.f32.mrf.mxu0
      %v1515 = vadd.f32 %v1442, %v1514
      %v1516 = vpop.f32.mrf.mxu0
      %v1517 = vadd.f32 %v1444, %v1516
      %v1518 = vpop.f32.mrf.mxu0
      %v1519 = vadd.f32 %v1446, %v1518
      %1520 = vmatprep.mubr.bf16.mxu0 %v623
      %1521 = vmatmul.mubr.bf16.gmra.mxu0 %v622
      %v1522 = vpop.f32.mrf.mxu0
      %v1523 = vadd.f32 %v1450, %v1522
      %v1524 = vpop.f32.mrf.mxu0
      %v1525 = vadd.f32 %v1452, %v1524
      %v1526 = vpop.f32.mrf.mxu0
      %v1527 = vadd.f32 %v1454, %v1526
      %v1528 = vpop.f32.mrf.mxu0
      %v1529 = vadd.f32 %v1456, %v1528
      %1530 = vdwg.mxu0
      %1531 = vmatprep.subr.bf16.mxu0 %v1176
      %1532 = vmatpush1.bf16.msra.mxu0 %v1175
      %1533 = vmatprep.subr.bf16.mxu0 %v1174
      %1534 = vmatpush1.bf16.msra.mxu0 %v1173
      %1535 = vmatprep.subr.bf16.mxu0 %v1172
      %1536 = vmatpush1.bf16.msra.mxu0 %v1171
      %1537 = vmatprep.subr.bf16.mxu0 %v1170
      %1538 = vmatpush1.bf16.msra.mxu0 %v1169
      %1539 = vmatprep.subr.bf16.mxu0 %v1168
      %1540 = vmatpush1.bf16.msra.mxu0 %v1167
      %1541 = vmatprep.subr.bf16.mxu0 %v1166
      %1542 = vmatpush1.bf16.msra.mxu0 %v1165
      %1543 = vmatprep.subr.bf16.mxu0 %v1164
      %1544 = vmatpush1.bf16.msra.mxu0 %v1163
      %1545 = vmatprep.subr.bf16.mxu0 %v1162
      %1546 = vmatpush1.bf16.msra.mxu0 %v1161
      %1547 = vmatprep.subr.bf16.mxu0 %v1192
      %1548 = vmatpush2.bf16.msra.mxu0 %v1191
      %1549 = vmatprep.subr.bf16.mxu0 %v1190
      %1550 = vmatpush2.bf16.msra.mxu0 %v1189
      %1551 = vmatprep.subr.bf16.mxu0 %v1188
      %1552 = vmatpush2.bf16.msra.mxu0 %v1187
      %1553 = vmatprep.subr.bf16.mxu0 %v1186
      %1554 = vmatpush2.bf16.msra.mxu0 %v1185
      %1555 = vmatprep.subr.bf16.mxu0 %v1184
      %1556 = vmatpush2.bf16.msra.mxu0 %v1183
      %1557 = vmatprep.subr.bf16.mxu0 %v1182
      %1558 = vmatpush2.bf16.msra.mxu0 %v1181
      %1559 = vmatprep.subr.bf16.mxu0 %v1180
      %1560 = vmatpush2.bf16.msra.mxu0 %v1179
      %1561 = vmatprep.subr.bf16.mxu0 %v1178
      %1562 = vmatpush2.bf16.msra.mxu0 %v1177
      %1563 = vmatprep.mubr.bf16.mxu0 %v598
      %1564 = vmatmul.mubr.bf16.gmra.mxu0 %v597
      %v1565 = vpop.f32.mrf.mxu0
      %v1566 = vadd.f32 %v1493, %v1565
      %v1567 = vpop.f32.mrf.mxu0
      %v1568 = vadd.f32 %v1495, %v1567
      %v1569 = vpop.f32.mrf.mxu0
      %v1570 = vadd.f32 %v1497, %v1569
      %v1571 = vpop.f32.mrf.mxu0
      %v1572 = vadd.f32 %v1499, %v1571
      %1573 = vmatprep.mubr.bf16.mxu0 %v607
      %1574 = vmatmul.mubr.bf16.gmra.mxu0 %v606
      %v1575 = vpop.f32.mrf.mxu0
      %v1576 = vadd.f32 %v1503, %v1575
      %v1577 = vpop.f32.mrf.mxu0
      %v1578 = vadd.f32 %v1505, %v1577
      %v1579 = vpop.f32.mrf.mxu0
      %v1580 = vadd.f32 %v1507, %v1579
      %v1581 = vpop.f32.mrf.mxu0
      %v1582 = vadd.f32 %v1509, %v1581
      %1583 = vmatprep.mubr.bf16.mxu0 %v616
      %1584 = vmatmul.mubr.bf16.gmra.mxu0 %v615
      %v1585 = vpop.f32.mrf.mxu0
      %v1586 = vadd.f32 %v1513, %v1585
      %v1587 = vpop.f32.mrf.mxu0
      %v1588 = vadd.f32 %v1515, %v1587
      %v1589 = vpop.f32.mrf.mxu0
      %v1590 = vadd.f32 %v1517, %v1589
      %v1591 = vpop.f32.mrf.mxu0
      %v1592 = vadd.f32 %v1519, %v1591
      %1593 = vmatprep.mubr.bf16.mxu0 %v625
      %1594 = vmatmul.mubr.bf16.gmra.mxu0 %v624
      %v1595 = vpop.f32.mrf.mxu0
      %v1596 = vadd.f32 %v1523, %v1595
      %v1597 = vpop.f32.mrf.mxu0
      %v1598 = vadd.f32 %v1525, %v1597
      %v1599 = vpop.f32.mrf.mxu0
      %v1600 = vadd.f32 %v1527, %v1599
      %v1601 = vpop.f32.mrf.mxu0
      %v1602 = vadd.f32 %v1529, %v1601
      %1603 = vdwg.mxu0
      %1604 = vmatprep.subr.bf16.mxu0 %v1208
      %1605 = vmatpush1.bf16.msra.mxu0 %v1207
      %1606 = vmatprep.subr.bf16.mxu0 %v1206
      %1607 = vmatpush1.bf16.msra.mxu0 %v1205
      %1608 = vmatprep.subr.bf16.mxu0 %v1204
      %1609 = vmatpush1.bf16.msra.mxu0 %v1203
      %1610 = vmatprep.subr.bf16.mxu0 %v1202
      %1611 = vmatpush1.bf16.msra.mxu0 %v1201
      %1612 = vmatprep.subr.bf16.mxu0 %v1200
      %1613 = vmatpush1.bf16.msra.mxu0 %v1199
      %1614 = vmatprep.subr.bf16.mxu0 %v1198
      %1615 = vmatpush1.bf16.msra.mxu0 %v1197
      %1616 = vmatprep.subr.bf16.mxu0 %v1196
      %1617 = vmatpush1.bf16.msra.mxu0 %v1195
      %1618 = vmatprep.subr.bf16.mxu0 %v1194
      %1619 = vmatpush1.bf16.msra.mxu0 %v1193
      %1620 = vmatprep.subr.bf16.mxu0 %v1224
      %1621 = vmatpush2.bf16.msra.mxu0 %v1223
      %1622 = vmatprep.subr.bf16.mxu0 %v1222
      %1623 = vmatpush2.bf16.msra.mxu0 %v1221
      %1624 = vmatprep.subr.bf16.mxu0 %v1220
      %1625 = vmatpush2.bf16.msra.mxu0 %v1219
      %1626 = vmatprep.subr.bf16.mxu0 %v1218
      %1627 = vmatpush2.bf16.msra.mxu0 %v1217
      %1628 = vmatprep.subr.bf16.mxu0 %v1216
      %1629 = vmatpush2.bf16.msra.mxu0 %v1215
      %1630 = vmatprep.subr.bf16.mxu0 %v1214
      %1631 = vmatpush2.bf16.msra.mxu0 %v1213
      %1632 = vmatprep.subr.bf16.mxu0 %v1212
      %1633 = vmatpush2.bf16.msra.mxu0 %v1211
      %1634 = vmatprep.subr.bf16.mxu0 %v1210
      %1635 = vmatpush2.bf16.msra.mxu0 %v1209
      %1636 = vmatprep.mubr.bf16.mxu0 %v600
      %1637 = vmatmul.mubr.bf16.gmra.mxu0 %v599
      %v1638 = vpop.f32.mrf.mxu0
      %v1639 = vadd.f32 %v1566, %v1638
      %v1640 = vpop.f32.mrf.mxu0
      %v1641 = vadd.f32 %v1568, %v1640
      %v1642 = vpop.f32.mrf.mxu0
      %v1643 = vadd.f32 %v1570, %v1642
      %v1644 = vpop.f32.mrf.mxu0
      %v1645 = vadd.f32 %v1572, %v1644
      %1646 = vmatprep.mubr.bf16.mxu0 %v609
      %1647 = vmatmul.mubr.bf16.gmra.mxu0 %v608
      %v1648 = vpop.f32.mrf.mxu0
      %v1649 = vadd.f32 %v1576, %v1648
      %v1650 = vpop.f32.mrf.mxu0
      %v1651 = vadd.f32 %v1578, %v1650
      %v1652 = vpop.f32.mrf.mxu0
      %v1653 = vadd.f32 %v1580, %v1652
      %v1654 = vpop.f32.mrf.mxu0
      %v1655 = vadd.f32 %v1582, %v1654
      %1656 = vmatprep.mubr.bf16.mxu0 %v618
      %1657 = vmatmul.mubr.bf16.gmra.mxu0 %v617
      %v1658 = vpop.f32.mrf.mxu0
      %v1659 = vadd.f32 %v1586, %v1658
      %v1660 = vpop.f32.mrf.mxu0
      %v1661 = vadd.f32 %v1588, %v1660
      %v1662 = vpop.f32.mrf.mxu0
      %v1663 = vadd.f32 %v1590, %v1662
      %v1664 = vpop.f32.mrf.mxu0
      %v1665 = vadd.f32 %v1592, %v1664
      %1666 = vmatprep.mubr.bf16.mxu0 %v627
      %1667 = vmatmul.mubr.bf16.gmra.mxu0 %v626
      %v1668 = vpop.f32.mrf.mxu0
      %v1669 = vadd.f32 %v1596, %v1668
      %v1670 = vpop.f32.mrf.mxu0
      %v1671 = vadd.f32 %v1598, %v1670
      %v1672 = vpop.f32.mrf.mxu0
      %v1673 = vadd.f32 %v1600, %v1672
      %v1674 = vpop.f32.mrf.mxu0
      %v1675 = vadd.f32 %v1602, %v1674
      %1676 = vdwg.mxu0
      %1677 = vmatprep.subr.bf16.mxu0 %v1240
      %1678 = vmatpush1.bf16.msra.mxu0 %v1239
      %1679 = vmatprep.subr.bf16.mxu0 %v1238
      %1680 = vmatpush1.bf16.msra.mxu0 %v1237
      %1681 = vmatprep.subr.bf16.mxu0 %v1236
      %1682 = vmatpush1.bf16.msra.mxu0 %v1235
      %1683 = vmatprep.subr.bf16.mxu0 %v1234
      %1684 = vmatpush1.bf16.msra.mxu0 %v1233
      %1685 = vmatprep.subr.bf16.mxu0 %v1232
      %1686 = vmatpush1.bf16.msra.mxu0 %v1231
      %1687 = vmatprep.subr.bf16.mxu0 %v1230
      %1688 = vmatpush1.bf16.msra.mxu0 %v1229
      %1689 = vmatprep.subr.bf16.mxu0 %v1228
      %1690 = vmatpush1.bf16.msra.mxu0 %v1227
      %1691 = vmatprep.subr.bf16.mxu0 %v1226
      %1692 = vmatpush1.bf16.msra.mxu0 %v1225
      %1693 = vmatprep.subr.bf16.mxu0 0
      %1694 = vmatpush2.bf16.msra.mxu0 0
      %1695 = vmatprep.subr.bf16.mxu0 0
      %1696 = vmatpush2.bf16.msra.mxu0 0
      %1697 = vmatprep.subr.bf16.mxu0 0
      %1698 = vmatpush2.bf16.msra.mxu0 0
      %1699 = vmatprep.subr.bf16.mxu0 0
      %1700 = vmatpush2.bf16.msra.mxu0 0
      %1701 = vmatprep.subr.bf16.mxu0 0
      %1702 = vmatpush2.bf16.msra.mxu0 0
      %1703 = vmatprep.subr.bf16.mxu0 0
      %1704 = vmatpush2.bf16.msra.mxu0 0
      %1705 = vmatprep.subr.bf16.mxu0 0
      %1706 = vmatpush2.bf16.msra.mxu0 0
      %1707 = vmatprep.subr.bf16.mxu0 0
      %1708 = vmatpush2.bf16.msra.mxu0 0
      %1709 = vmatprep.mubr.bf16.mxu0 0
      %1710 = vmatmul.mubr.bf16.gmra.mxu0 %v601
      %v1711 = vpop.f32.mrf.mxu0
      %v1712 = vadd.f32 %v1639, %v1711
      %v1713 = vpop.f32.mrf.mxu0
      %v1714 = vadd.f32 %v1641, %v1713
      %v1715 = vpop.f32.mrf.mxu0
      %v1716 = vadd.f32 %v1643, %v1715
      %v1717 = vpop.f32.mrf.mxu0
      %v1718 = vadd.f32 %v1645, %v1717
      %1719 = vmatprep.mubr.bf16.mxu0 0
      %1720 = vmatmul.mubr.bf16.gmra.mxu0 %v610
      %v1721 = vpop.f32.mrf.mxu0
      %v1722 = vadd.f32 %v1649, %v1721
      %v1723 = vpop.f32.mrf.mxu0
      %v1724 = vadd.f32 %v1651, %v1723
      %v1725 = vpop.f32.mrf.mxu0
      %v1726 = vadd.f32 %v1653, %v1725
      %v1727 = vpop.f32.mrf.mxu0
      %v1728 = vadd.f32 %v1655, %v1727
      %1729 = vmatprep.mubr.bf16.mxu0 0
      %1730 = vmatmul.mubr.bf16.gmra.mxu0 %v619
      %v1731 = vpop.f32.mrf.mxu0
      %v1732 = vadd.f32 %v1659, %v1731
      %v1733 = vpop.f32.mrf.mxu0
      %v1734 = vadd.f32 %v1661, %v1733
      %v1735 = vpop.f32.mrf.mxu0
      %v1736 = vadd.f32 %v1663, %v1735
      %v1737 = vpop.f32.mrf.mxu0
      %v1738 = vadd.f32 %v1665, %v1737
      %1739 = vmatprep.mubr.bf16.mxu0 0
      %1740 = vmatmul.mubr.bf16.gmra.mxu0 %v628
      %v1741 = vpop.f32.mrf.mxu0
      %v1742 = vadd.f32 %v1669, %v1741
      %v1743 = vpop.f32.mrf.mxu0
      %v1744 = vadd.f32 %v1671, %v1743
      %v1745 = vpop.f32.mrf.mxu0
      %v1746 = vadd.f32 %v1673, %v1745
      %v1747 = vpop.f32.mrf.mxu0
      %v1748 = vadd.f32 %v1675, %v1747
      %1749 = vdwg.mxu0
      %v1750 = vmax.f32 %v1712, %v1722
      %v1751 = vmax.f32 %v1714, %v1724
      %v1752 = vmax.f32 %v1716, %v1726
      %v1753 = vmax.f32 %v1718, %v1728
      %v1754 = vmax.f32 %v1732, %v1742
      %v1755 = vmax.f32 %v1734, %v1744
      %v1756 = vmax.f32 %v1736, %v1746
      %v1757 = vmax.f32 %v1738, %v1748
      %v1758 = vmax.f32 %v1750, %v1754
      %v1759 = vmax.f32 %v1751, %v1755
      %v1760 = vmax.f32 %v1752, %v1756
      %v1761 = vmax.f32 %v1753, %v1757
      %v1762 = vld [vmem:[%s280] sm:$0x3]
      %v1764 = vlaneseq
      %v1765 = vshrl.u32 %v1764, 7
      %v1766 = vsub.s32 0, %v1765
      %v1767 = vrot.slane %v1762, %v1766
      %v1768 = vlaneseq
      %v1769 = vshrl.u32 %v1768, 7
      %v1770 = vsub.s32 1, %v1769
      %v1771 = vrot.slane %v1762, %v1770
      %v1774 = vmul.f32 %v1758, %v1767
      %v1775 = vmul.f32 %v1759, %v1771
      %v1776 = vmul.f32 %v1760, %v1767
      %v1777 = vmul.f32 %v1761, %v1771
      %v1778 = vld [vmem:[%s284] sm:$0x3]
      %v1780 = vlaneseq
      %v1781 = vshrl.u32 %v1780, 7
      %v1782 = vsub.s32 0, %v1781
      %v1783 = vrot.slane %v1778, %v1782
      %v1784 = vlaneseq
      %v1785 = vshrl.u32 %v1784, 7
      %v1786 = vsub.s32 1, %v1785
      %v1787 = vrot.slane %v1778, %v1786
      %v1790 = vadd.f32 %v1774, %v1783
      %v1791 = vadd.f32 %v1775, %v1787
      %v1792 = vadd.f32 %v1776, %v1783
      %v1793 = vadd.f32 %v1777, %v1787
      %v1794 = vmax.f32 %v1790, 0.0
      %v1795 = vmax.f32 %v1791, 0.0
      %v1796 = vmax.f32 %v1792, 0.0
      %v1797 = vmax.f32 %v1793, 0.0
      %v1798 = vpack.c.bf16 %v1796, %v1794
      %v1799 = vpack.c.bf16 %v1797, %v1795
      %v1802 = vunpack.c.l.b16 %v1798
      %v1803 = vunpack.c.l.b16 %v1799
      %v1804 = vunpack.c.h.b16 %v1798
      %v1805 = vunpack.c.h.b16 %v1799
      %v1806 = vpack.c.b16 %v1803, %v1802
      %v1807 = vpack.c.b16 %v1805, %v1804
      %1810 = vst [vmem:[%s294] sm:$0xff] %v1806
      %1811 = vst [vmem:[%s294 + $0x8] sm:$0xff] %v1807
      %s1812 = smul.u32 2, %s20
      %p1813 = scmp.lt.s32.totalorder %s19, 2
      %s1814 = scalar_select %p1813, %s19, 2
      %p1815 = scmp.lt.s32.totalorder %s1812, 1
      %s1816 = scalar_select %p1815, %s1812, 1
      %s1817 = smul.addr %s1816, 2
      %s1818 = smul.addr %s1814, 4
      %s1819 = sadd.s32 %s1817, %s1818
      %s1820 = smul.addr %s1819, 4
      %s1821 = scalar_lea.vmem %s4, %s1820
      // Predicated region
      $region37: #{model_forward.8} parent=35 // pred_check
        %p1822 = pneg %p153
      $region38: #{model_forward.8} parent=35 // pred_check_branch
        %1824 = sbr.rel (%p1822) target = $region40
      $region39: #{model_forward.8} parent=35 // pred_region
        %s1825 = smul.u32 2, %s20
      $region40: #{model_forward.8} parent=35 // pred_fallthru
        _
    $region36: #{model_forward.8} parent=5 // pred_fallthru
      _
    %p1826 = scmp.le.s32.totalorder 2, %s10
    // Predicated region
    $region41: #{model_forward.8} parent=5 // pred_check
      %p1827 = pneg %p1826
    $region42: #{model_forward.8} parent=5 // pred_check_branch
      %1829 = sbr.rel (%p1827) target = $region44
    $region43: #{model_forward.8} parent=5 // pred_region
      %s1830 = ssub.s32 %s10, 2
      // Predicated region
      $region45: #{model_forward.8} parent=43 // pred_check
        %p1831 = pneg %p159
      $region46: #{model_forward.8} parent=43 // pred_check_branch
        %1833 = sbr.rel (%p1831) target = $region48
      $region47: #{model_forward.8} parent=43 // pred_region
        %s1834 = smul.u32 2, %s22
        %p1835 = scmp.lt.s32.totalorder %s21, 2
        %s1836 = scalar_select %p1835, %s21, 2
        %p1837 = scmp.lt.s32.totalorder %s1834, 1
        %s1838 = scalar_select %p1837, %s1834, 1
        %s1839 = smul.addr %s1838, 2
        %s1840 = smul.addr %s1836, 4
        %s1841 = sadd.s32 %s1839, %s1840
        %s1842 = smul.addr %s1841, 4
        %s1843 = scalar_lea.vmem %s4, %s1842
      $region48: #{model_forward.8} parent=43 // pred_fallthru
        _
    $region44: #{model_forward.8} parent=5 // pred_fallthru
      _
  $region6: #{model_forward.8} parent=0 // loop_footer
    %s14 = sadd.s32 1, %s10
  $region7: #{model_forward.8} parent=0 // loop_footer_branch
    %9 = sbr.rel target = $region3
  $region8: #{model_forward.8} parent=0 // loop_exit
    _

// kernel: model_forward.9
$region0: #{model_forward.9}
  #allocation0 [shape = 'u32[]', space=smem, size = 0x4, offset = 0x4, fixed_abs, tag = 'smem constant byte address 0x4 - core index']
  #allocation1 [shape = 'u32[144,128]{1,0:T(1,128)}', space=vmem, size = 0x12000, scoped, tag = 'internal scratch']
  %s0 = inlined_call_operand.vmem [shape: bf16[16,768], index: 0, kind: input, shape index: {}]
  %s1 = inlined_call_operand.vmem [shape: bf16[768,512], index: 1, kind: input, shape index: {}]
  %s2 = inlined_call_operand.vmem [shape: f32[1,512], index: 2, kind: input, shape index: {}]
  %s3 = inlined_call_operand.vmem [shape: bf16[512,128], index: 3, kind: input, shape index: {}]
  %s4 = inlined_call_operand.vmem [shape: f32[1,128], index: 4, kind: input, shape index: {}]
  %s5 = inlined_call_operand.vmem [shape: f32[16,128], index: 5, kind: output, shape index: {}]
  %s6 = sld [smem:[#allocation0]]
  $region30: #{model_forward.9} parent=0
    _
  %s8 = ssub.s32 1, %s6
  %s9 = scalar_select 0, %s8, %s6
  // Predicated region
  $region2: #{model_forward.9} parent=0 // pred_check
    _
  $region3: #{model_forward.9} parent=0 // pred_check_branch
    %11 = sbr.rel (0) target = $region5
  $region4: #{model_forward.9} parent=0 // pred_region
    _
  $region5: #{model_forward.9} parent=0 // pred_fallthru
    _
  // Predicated region
  $region6: #{model_forward.9} parent=0 // pred_check
    _
  $region7: #{model_forward.9} parent=0 // pred_check_branch
    %13 = sbr.rel (0) target = $region9
  $region8: #{model_forward.9} parent=0 // pred_region
    _
  $region9: #{model_forward.9} parent=0 // pred_fallthru
    _
  // Predicated region
  $region10: #{model_forward.9} parent=0 // pred_check
    _
  $region11: #{model_forward.9} parent=0 // pred_check_branch
    %15 = sbr.rel (0) target = $region13
  $region12: #{model_forward.9} parent=0 // pred_region
    _
  $region13: #{model_forward.9} parent=0 // pred_fallthru
    _
  // Predicated region
  $region14: #{model_forward.9} parent=0 // pred_check
    _
  $region15: #{model_forward.9} parent=0 // pred_check_branch
    %17 = sbr.rel (0) target = $region17
  $region16: #{model_forward.9} parent=0 // pred_region
    _
  $region17: #{model_forward.9} parent=0 // pred_fallthru
    _
  // Predicated region
  $region18: #{model_forward.9} parent=0 // pred_check
    _
  $region19: #{model_forward.9} parent=0 // pred_check_branch
    %19 = sbr.rel (0) target = $region21
  $region20: #{model_forward.9} parent=0 // pred_region
    _
  $region21: #{model_forward.9} parent=0 // pred_fallthru
    _
  %v21 = vld [vmem:[%s0] sm:$0xff]
  %v22 = vld [vmem:[%s0 + $0x8] sm:$0xff]
  %v23 = vld [vmem:[%s0 + $0x10] sm:$0xff]
  %v24 = vld [vmem:[%s0 + $0x18] sm:$0xff]
  %v25 = vld [vmem:[%s0 + $0x20] sm:$0xff]
  %v26 = vld [vmem:[%s0 + $0x28] sm:$0xff]
  %v27 = vld [vmem:[%s1] sm:$0xff]
  %v28 = vld [vmem:[%s1 + $0x8] sm:$0xff]
  %v29 = vld [vmem:[%s1 + $0x10] sm:$0xff]
  %v30 = vld [vmem:[%s1 + $0x18] sm:$0xff]
  %v31 = vld [vmem:[%s1 + $0x20] sm:$0xff]
  %v32 = vld [vmem:[%s1 + $0x28] sm:$0xff]
  %v33 = vld [vmem:[%s1 + $0x30] sm:$0xff]
  %v34 = vld [vmem:[%s1 + $0x38] sm:$0xff]
  %v35 = vld [vmem:[%s1 + $0x40] sm:$0xff]
  %v36 = vld [vmem:[%s1 + $0x48] sm:$0xff]
  %v37 = vld [vmem:[%s1 + $0x50] sm:$0xff]
  %v38 = vld [vmem:[%s1 + $0x58] sm:$0xff]
  %v39 = vld [vmem:[%s1 + $0x60] sm:$0xff]
  %v40 = vld [vmem:[%s1 + $0x68] sm:$0xff]
  %v41 = vld [vmem:[%s1 + $0x70] sm:$0xff]
  %v42 = vld [vmem:[%s1 + $0x78] sm:$0xff]
  %v43 = vld [vmem:[%s1 + $0x80] sm:$0xff]
  %v44 = vld [vmem:[%s1 + $0x88] sm:$0xff]
  %v45 = vld [vmem:[%s1 + $0x90] sm:$0xff]
  %v46 = vld [vmem:[%s1 + $0x98] sm:$0xff]
  %v47 = vld [vmem:[%s1 + $0xa0] sm:$0xff]
  %v48 = vld [vmem:[%s1 + $0xa8] sm:$0xff]
  %v49 = vld [vmem:[%s1 + $0xb0] sm:$0xff]
  %v50 = vld [vmem:[%s1 + $0xb8] sm:$0xff]
  %v51 = vld [vmem:[%s1 + $0xc0] sm:$0xff]
  %v52 = vld [vmem:[%s1 + $0xc8] sm:$0xff]
  %v53 = vld [vmem:[%s1 + $0xd0] sm:$0xff]
  %v54 = vld [vmem:[%s1 + $0xd8] sm:$0xff]
  %v55 = vld [vmem:[%s1 + $0xe0] sm:$0xff]
  %v56 = vld [vmem:[%s1 + $0xe8] sm:$0xff]
  %v57 = vld [vmem:[%s1 + $0xf0] sm:$0xff]
  %v58 = vld [vmem:[%s1 + $0xf8] sm:$0xff]
  %v59 = vld [vmem:[%s1 + $0x100] sm:$0xff]
  %v60 = vld [vmem:[%s1 + $0x108] sm:$0xff]
  %v61 = vld [vmem:[%s1 + $0x110] sm:$0xff]
  %v62 = vld [vmem:[%s1 + $0x118] sm:$0xff]
  %v63 = vld [vmem:[%s1 + $0x120] sm:$0xff]
  %v64 = vld [vmem:[%s1 + $0x128] sm:$0xff]
  %v65 = vld [vmem:[%s1 + $0x130] sm:$0xff]
  %v66 = vld [vmem:[%s1 + $0x138] sm:$0xff]
  %v67 = vld [vmem:[%s1 + $0x140] sm:$0xff]
  %v68 = vld [vmem:[%s1 + $0x148] sm:$0xff]
  %v69 = vld [vmem:[%s1 + $0x150] sm:$0xff]
  %v70 = vld [vmem:[%s1 + $0x158] sm:$0xff]
  %v71 = vld [vmem:[%s1 + $0x160] sm:$0xff]
  %v72 = vld [vmem:[%s1 + $0x168] sm:$0xff]
  %v73 = vld [vmem:[%s1 + $0x170] sm:$0xff]
  %v74 = vld [vmem:[%s1 + $0x178] sm:$0xff]
  %v75 = vld [vmem:[%s1 + $0x180] sm:$0xff]
  %v76 = vld [vmem:[%s1 + $0x188] sm:$0xff]
  %v77 = vld [vmem:[%s1 + $0x190] sm:$0xff]
  %v78 = vld [vmem:[%s1 + $0x198] sm:$0xff]
  %v79 = vld [vmem:[%s1 + $0x1a0] sm:$0xff]
  %v80 = vld [vmem:[%s1 + $0x1a8] sm:$0xff]
  %v81 = vld [vmem:[%s1 + $0x1b0] sm:$0xff]
  %v82 = vld [vmem:[%s1 + $0x1b8] sm:$0xff]
  %v83 = vld [vmem:[%s1 + $0x1c0] sm:$0xff]
  %v84 = vld [vmem:[%s1 + $0x1c8] sm:$0xff]
  %v85 = vld [vmem:[%s1 + $0x1d0] sm:$0xff]
  %v86 = vld [vmem:[%s1 + $0x1d8] sm:$0xff]
  %v87 = vld [vmem:[%s1 + $0x1e0] sm:$0xff]
  %v88 = vld [vmem:[%s1 + $0x1e8] sm:$0xff]
  %v89 = vld [vmem:[%s1 + $0x1f0] sm:$0xff]
  %v90 = vld [vmem:[%s1 + $0x1f8] sm:$0xff]
  %v91 = vld [vmem:[%s1 + $0x200] sm:$0xff]
  %v92 = vld [vmem:[%s1 + $0x208] sm:$0xff]
  %v93 = vld [vmem:[%s1 + $0x210] sm:$0xff]
  %v94 = vld [vmem:[%s1 + $0x218] sm:$0xff]
  %v95 = vld [vmem:[%s1 + $0x220] sm:$0xff]
  %v96 = vld [vmem:[%s1 + $0x228] sm:$0xff]
  %v97 = vld [vmem:[%s1 + $0x230] sm:$0xff]
  %v98 = vld [vmem:[%s1 + $0x238] sm:$0xff]
  %v99 = vld [vmem:[%s1 + $0x240] sm:$0xff]
  %v100 = vld [vmem:[%s1 + $0x248] sm:$0xff]
  %v101 = vld [vmem:[%s1 + $0x250] sm:$0xff]
  %v102 = vld [vmem:[%s1 + $0x258] sm:$0xff]
  %v103 = vld [vmem:[%s1 + $0x260] sm:$0xff]
  %v104 = vld [vmem:[%s1 + $0x268] sm:$0xff]
  %v105 = vld [vmem:[%s1 + $0x270] sm:$0xff]
  %v106 = vld [vmem:[%s1 + $0x278] sm:$0xff]
  %v107 = vld [vmem:[%s1 + $0x280] sm:$0xff]
  %v108 = vld [vmem:[%s1 + $0x288] sm:$0xff]
  %v109 = vld [vmem:[%s1 + $0x290] sm:$0xff]
  %v110 = vld [vmem:[%s1 + $0x298] sm:$0xff]
  %v111 = vld [vmem:[%s1 + $0x2a0] sm:$0xff]
  %v112 = vld [vmem:[%s1 + $0x2a8] sm:$0xff]
  %v113 = vld [vmem:[%s1 + $0x2b0] sm:$0xff]
  %v114 = vld [vmem:[%s1 + $0x2b8] sm:$0xff]
  %v115 = vld [vmem:[%s1 + $0x2c0] sm:$0xff]
  %v116 = vld [vmem:[%s1 + $0x2c8] sm:$0xff]
  %v117 = vld [vmem:[%s1 + $0x2d0] sm:$0xff]
  %v118 = vld [vmem:[%s1 + $0x2d8] sm:$0xff]
  %v119 = vld [vmem:[%s1 + $0x2e0] sm:$0xff]
  %v120 = vld [vmem:[%s1 + $0x2e8] sm:$0xff]
  %v121 = vld [vmem:[%s1 + $0x2f0] sm:$0xff]
  %v122 = vld [vmem:[%s1 + $0x2f8] sm:$0xff]
  %v123 = vld [vmem:[%s1 + $0x300] sm:$0xff]
  %v124 = vld [vmem:[%s1 + $0x308] sm:$0xff]
  %v125 = vld [vmem:[%s1 + $0x310] sm:$0xff]
  %v126 = vld [vmem:[%s1 + $0x318] sm:$0xff]
  %v127 = vld [vmem:[%s1 + $0x320] sm:$0xff]
  %v128 = vld [vmem:[%s1 + $0x328] sm:$0xff]
  %v129 = vld [vmem:[%s1 + $0x330] sm:$0xff]
  %v130 = vld [vmem:[%s1 + $0x338] sm:$0xff]
  %v131 = vld [vmem:[%s1 + $0x340] sm:$0xff]
  %v132 = vld [vmem:[%s1 + $0x348] sm:$0xff]
  %v133 = vld [vmem:[%s1 + $0x350] sm:$0xff]
  %v134 = vld [vmem:[%s1 + $0x358] sm:$0xff]
  %v135 = vld [vmem:[%s1 + $0x360] sm:$0xff]
  %v136 = vld [vmem:[%s1 + $0x368] sm:$0xff]
  %v137 = vld [vmem:[%s1 + $0x370] sm:$0xff]
  %v138 = vld [vmem:[%s1 + $0x378] sm:$0xff]
  %v139 = vld [vmem:[%s1 + $0x380] sm:$0xff]
  %v140 = vld [vmem:[%s1 + $0x388] sm:$0xff]
  %v141 = vld [vmem:[%s1 + $0x390] sm:$0xff]
  %v142 = vld [vmem:[%s1 + $0x398] sm:$0xff]
  %v143 = vld [vmem:[%s1 + $0x3a0] sm:$0xff]
  %v144 = vld [vmem:[%s1 + $0x3a8] sm:$0xff]
  %v145 = vld [vmem:[%s1 + $0x3b0] sm:$0xff]
  %v146 = vld [vmem:[%s1 + $0x3b8] sm:$0xff]
  %v147 = vld [vmem:[%s1 + $0x3c0] sm:$0xff]
  %v148 = vld [vmem:[%s1 + $0x3c8] sm:$0xff]
  %v149 = vld [vmem:[%s1 + $0x3d0] sm:$0xff]
  %v150 = vld [vmem:[%s1 + $0x3d8] sm:$0xff]
  %v151 = vld [vmem:[%s1 + $0x3e0] sm:$0xff]
  %v152 = vld [vmem:[%s1 + $0x3e8] sm:$0xff]
  %v153 = vld [vmem:[%s1 + $0x3f0] sm:$0xff]
  %v154 = vld [vmem:[%s1 + $0x3f8] sm:$0xff]
  %v155 = vld [vmem:[%s1 + $0x400] sm:$0xff]
  %v156 = vld [vmem:[%s1 + $0x408] sm:$0xff]
  %v157 = vld [vmem:[%s1 + $0x410] sm:$0xff]
  %v158 = vld [vmem:[%s1 + $0x418] sm:$0xff]
  %v159 = vld [vmem:[%s1 + $0x420] sm:$0xff]
  %v160 = vld [vmem:[%s1 + $0x428] sm:$0xff]
  %v161 = vld [vmem:[%s1 + $0x430] sm:$0xff]
  %v162 = vld [vmem:[%s1 + $0x438] sm:$0xff]
  %v163 = vld [vmem:[%s1 + $0x440] sm:$0xff]
  %v164 = vld [vmem:[%s1 + $0x448] sm:$0xff]
  %v165 = vld [vmem:[%s1 + $0x450] sm:$0xff]
  %v166 = vld [vmem:[%s1 + $0x458] sm:$0xff]
  %v167 = vld [vmem:[%s1 + $0x460] sm:$0xff]
  %v168 = vld [vmem:[%s1 + $0x468] sm:$0xff]
  %v169 = vld [vmem:[%s1 + $0x470] sm:$0xff]
  %v170 = vld [vmem:[%s1 + $0x478] sm:$0xff]
  %v171 = vld [vmem:[%s1 + $0x480] sm:$0xff]
  %v172 = vld [vmem:[%s1 + $0x488] sm:$0xff]
  %v173 = vld [vmem:[%s1 + $0x490] sm:$0xff]
  %v174 = vld [vmem:[%s1 + $0x498] sm:$0xff]
  %v175 = vld [vmem:[%s1 + $0x4a0] sm:$0xff]
  %v176 = vld [vmem:[%s1 + $0x4a8] sm:$0xff]
  %v177 = vld [vmem:[%s1 + $0x4b0] sm:$0xff]
  %v178 = vld [vmem:[%s1 + $0x4b8] sm:$0xff]
  %v179 = vld [vmem:[%s1 + $0x4c0] sm:$0xff]
  %v180 = vld [vmem:[%s1 + $0x4c8] sm:$0xff]
  %v181 = vld [vmem:[%s1 + $0x4d0] sm:$0xff]
  %v182 = vld [vmem:[%s1 + $0x4d8] sm:$0xff]
  %v183 = vld [vmem:[%s1 + $0x4e0] sm:$0xff]
  %v184 = vld [vmem:[%s1 + $0x4e8] sm:$0xff]
  %v185 = vld [vmem:[%s1 + $0x4f0] sm:$0xff]
  %v186 = vld [vmem:[%s1 + $0x4f8] sm:$0xff]
  %v187 = vld [vmem:[%s1 + $0x500] sm:$0xff]
  %v188 = vld [vmem:[%s1 + $0x508] sm:$0xff]
  %v189 = vld [vmem:[%s1 + $0x510] sm:$0xff]
  %v190 = vld [vmem:[%s1 + $0x518] sm:$0xff]
  %v191 = vld [vmem:[%s1 + $0x520] sm:$0xff]
  %v192 = vld [vmem:[%s1 + $0x528] sm:$0xff]
  %v193 = vld [vmem:[%s1 + $0x530] sm:$0xff]
  %v194 = vld [vmem:[%s1 + $0x538] sm:$0xff]
  %v195 = vld [vmem:[%s1 + $0x540] sm:$0xff]
  %v196 = vld [vmem:[%s1 + $0x548] sm:$0xff]
  %v197 = vld [vmem:[%s1 + $0x550] sm:$0xff]
  %v198 = vld [vmem:[%s1 + $0x558] sm:$0xff]
  %v199 = vld [vmem:[%s1 + $0x560] sm:$0xff]
  %v200 = vld [vmem:[%s1 + $0x568] sm:$0xff]
  %v201 = vld [vmem:[%s1 + $0x570] sm:$0xff]
  %v202 = vld [vmem:[%s1 + $0x578] sm:$0xff]
  %v203 = vld [vmem:[%s1 + $0x580] sm:$0xff]
  %v204 = vld [vmem:[%s1 + $0x588] sm:$0xff]
  %v205 = vld [vmem:[%s1 + $0x590] sm:$0xff]
  %v206 = vld [vmem:[%s1 + $0x598] sm:$0xff]
  %v207 = vld [vmem:[%s1 + $0x5a0] sm:$0xff]
  %v208 = vld [vmem:[%s1 + $0x5a8] sm:$0xff]
  %v209 = vld [vmem:[%s1 + $0x5b0] sm:$0xff]
  %v210 = vld [vmem:[%s1 + $0x5b8] sm:$0xff]
  %v211 = vld [vmem:[%s1 + $0x5c0] sm:$0xff]
  %v212 = vld [vmem:[%s1 + $0x5c8] sm:$0xff]
  %v213 = vld [vmem:[%s1 + $0x5d0] sm:$0xff]
  %v214 = vld [vmem:[%s1 + $0x5d8] sm:$0xff]
  %v215 = vld [vmem:[%s1 + $0x5e0] sm:$0xff]
  %v216 = vld [vmem:[%s1 + $0x5e8] sm:$0xff]
  %v217 = vld [vmem:[%s1 + $0x5f0] sm:$0xff]
  %v218 = vld [vmem:[%s1 + $0x5f8] sm:$0xff]
  %v219 = vld [vmem:[%s2] sm:$0xf]
  %v221 = vlaneseq
  %v222 = vshrl.u32 %v221, 7
  %v223 = vsub.s32 0, %v222
  %v224 = vrot.slane %v219, %v223
  %v225 = vlaneseq
  %v226 = vshrl.u32 %v225, 7
  %v227 = vsub.s32 1, %v226
  %v228 = vrot.slane %v219, %v227
  %v229 = vlaneseq
  %v230 = vshrl.u32 %v229, 7
  %v231 = vsub.s32 2, %v230
  %v232 = vrot.slane %v219, %v231
  %v233 = vlaneseq
  %v234 = vshrl.u32 %v233, 7
  %v235 = vsub.s32 3, %v234
  %v236 = vrot.slane %v219, %v235
  %v247 = vunpack.c.l.b16 %v21
  %v248 = vunpack.c.h.b16 %v21
  %v249 = vunpack.c.l.b16 %v22
  %v250 = vunpack.c.h.b16 %v22
  %v251 = vunpack.c.l.b16 %v23
  %v252 = vunpack.c.h.b16 %v23
  %v253 = vunpack.c.l.b16 %v24
  %v254 = vunpack.c.h.b16 %v24
  %v255 = vunpack.c.l.b16 %v25
  %v256 = vunpack.c.h.b16 %v25
  %v257 = vunpack.c.l.b16 %v26
  %v258 = vunpack.c.h.b16 %v26
  %v259 = vpack.c.b16 %v253, %v247
  %v260 = vpack.c.b16 %v254, %v248
  %v261 = vpack.c.b16 %v255, %v249
  %v262 = vpack.c.b16 %v256, %v250
  %v263 = vpack.c.b16 %v257, %v251
  %v264 = vpack.c.b16 %v258, %v252
  %v463 = vunpack.c.l.b16 %v27
  %v464 = vunpack.c.h.b16 %v27
  %v465 = vunpack.c.l.b16 %v28
  %v466 = vunpack.c.h.b16 %v28
  %v467 = vunpack.c.l.b16 %v29
  %v468 = vunpack.c.h.b16 %v29
  %v469 = vunpack.c.l.b16 %v30
  %v470 = vunpack.c.h.b16 %v30
  %v471 = vunpack.c.l.b16 %v31
  %v472 = vunpack.c.h.b16 %v31
  %v473 = vunpack.c.l.b16 %v32
  %v474 = vunpack.c.h.b16 %v32
  %v475 = vunpack.c.l.b16 %v33
  %v476 = vunpack.c.h.b16 %v33
  %v477 = vunpack.c.l.b16 %v34
  %v478 = vunpack.c.h.b16 %v34
  %v479 = vunpack.c.l.b16 %v35
  %v480 = vunpack.c.h.b16 %v35
  %v481 = vunpack.c.l.b16 %v36
  %v482 = vunpack.c.h.b16 %v36
  %v483 = vunpack.c.l.b16 %v37
  %v484 = vunpack.c.h.b16 %v37
  %v485 = vunpack.c.l.b16 %v38
  %v486 = vunpack.c.h.b16 %v38
  %v487 = vunpack.c.l.b16 %v39
  %v488 = vunpack.c.h.b16 %v39
  %v489 = vunpack.c.l.b16 %v40
  %v490 = vunpack.c.h.b16 %v40
  %v491 = vunpack.c.l.b16 %v41
  %v492 = vunpack.c.h.b16 %v41
  %v493 = vunpack.c.l.b16 %v42
  %v494 = vunpack.c.h.b16 %v42
  %v495 = vunpack.c.l.b16 %v43
  %v496 = vunpack.c.h.b16 %v43
  %v497 = vunpack.c.l.b16 %v44
  %v498 = vunpack.c.h.b16 %v44
  %v499 = vunpack.c.l.b16 %v45
  %v500 = vunpack.c.h.b16 %v45
  %v501 = vunpack.c.l.b16 %v46
  %v502 = vunpack.c.h.b16 %v46
  %v503 = vunpack.c.l.b16 %v47
  %v504 = vunpack.c.h.b16 %v47
  %v505 = vunpack.c.l.b16 %v48
  %v506 = vunpack.c.h.b16 %v48
  %v507 = vunpack.c.l.b16 %v49
  %v508 = vunpack.c.h.b16 %v49
  %v509 = vunpack.c.l.b16 %v50
  %v510 = vunpack.c.h.b16 %v50
  %v511 = vunpack.c.l.b16 %v51
  %v512 = vunpack.c.h.b16 %v51
  %v513 = vunpack.c.l.b16 %v52
  %v514 = vunpack.c.h.b16 %v52
  %v515 = vunpack.c.l.b16 %v53
  %v516 = vunpack.c.h.b16 %v53
  %v517 = vunpack.c.l.b16 %v54
  %v518 = vunpack.c.h.b16 %v54
  %v519 = vunpack.c.l.b16 %v55
  %v520 = vunpack.c.h.b16 %v55
  %v521 = vunpack.c.l.b16 %v56
  %v522 = vunpack.c.h.b16 %v56
  %v523 = vunpack.c.l.b16 %v57
  %v524 = vunpack.c.h.b16 %v57
  %v525 = vunpack.c.l.b16 %v58
  %v526 = vunpack.c.h.b16 %v58
  %v527 = vunpack.c.l.b16 %v59
  %v528 = vunpack.c.h.b16 %v59
  %v529 = vunpack.c.l.b16 %v60
  %v530 = vunpack.c.h.b16 %v60
  %v531 = vunpack.c.l.b16 %v61
  %v532 = vunpack.c.h.b16 %v61
  %v533 = vunpack.c.l.b16 %v62
  %v534 = vunpack.c.h.b16 %v62
  %v535 = vunpack.c.l.b16 %v63
  %v536 = vunpack.c.h.b16 %v63
  %v537 = vunpack.c.l.b16 %v64
  %v538 = vunpack.c.h.b16 %v64
  %v539 = vunpack.c.l.b16 %v65
  %v540 = vunpack.c.h.b16 %v65
  %v541 = vunpack.c.l.b16 %v66
  %v542 = vunpack.c.h.b16 %v66
  %v543 = vunpack.c.l.b16 %v67
  %v544 = vunpack.c.h.b16 %v67
  %v545 = vunpack.c.l.b16 %v68
  %v546 = vunpack.c.h.b16 %v68
  %v547 = vunpack.c.l.b16 %v69
  %v548 = vunpack.c.h.b16 %v69
  %v549 = vunpack.c.l.b16 %v70
  %v550 = vunpack.c.h.b16 %v70
  %v551 = vunpack.c.l.b16 %v71
  %v552 = vunpack.c.h.b16 %v71
  %v553 = vunpack.c.l.b16 %v72
  %v554 = vunpack.c.h.b16 %v72
  %v555 = vunpack.c.l.b16 %v73
  %v556 = vunpack.c.h.b16 %v73
  %v557 = vunpack.c.l.b16 %v74
  %v558 = vunpack.c.h.b16 %v74
  %v559 = vunpack.c.l.b16 %v75
  %v560 = vunpack.c.h.b16 %v75
  %v561 = vunpack.c.l.b16 %v76
  %v562 = vunpack.c.h.b16 %v76
  %v563 = vunpack.c.l.b16 %v77
  %v564 = vunpack.c.h.b16 %v77
  %v565 = vunpack.c.l.b16 %v78
  %v566 = vunpack.c.h.b16 %v78
  %v567 = vunpack.c.l.b16 %v79
  %v568 = vunpack.c.h.b16 %v79
  %v569 = vunpack.c.l.b16 %v80
  %v570 = vunpack.c.h.b16 %v80
  %v571 = vunpack.c.l.b16 %v81
  %v572 = vunpack.c.h.b16 %v81
  %v573 = vunpack.c.l.b16 %v82
  %v574 = vunpack.c.h.b16 %v82
  %v575 = vunpack.c.l.b16 %v83
  %v576 = vunpack.c.h.b16 %v83
  %v577 = vunpack.c.l.b16 %v84
  %v578 = vunpack.c.h.b16 %v84
  %v579 = vunpack.c.l.b16 %v85
  %v580 = vunpack.c.h.b16 %v85
  %v581 = vunpack.c.l.b16 %v86
  %v582 = vunpack.c.h.b16 %v86
  %v583 = vunpack.c.l.b16 %v87
  %v584 = vunpack.c.h.b16 %v87
  %v585 = vunpack.c.l.b16 %v88
  %v586 = vunpack.c.h.b16 %v88
  %v587 = vunpack.c.l.b16 %v89
  %v588 = vunpack.c.h.b16 %v89
  %v589 = vunpack.c.l.b16 %v90
  %v590 = vunpack.c.h.b16 %v90
  %v591 = vunpack.c.l.b16 %v91
  %v592 = vunpack.c.h.b16 %v91
  %v593 = vunpack.c.l.b16 %v92
  %v594 = vunpack.c.h.b16 %v92
  %v595 = vunpack.c.l.b16 %v93
  %v596 = vunpack.c.h.b16 %v93
  %v597 = vunpack.c.l.b16 %v94
  %v598 = vunpack.c.h.b16 %v94
  %v599 = vunpack.c.l.b16 %v95
  %v600 = vunpack.c.h.b16 %v95
  %v601 = vunpack.c.l.b16 %v96
  %v602 = vunpack.c.h.b16 %v96
  %v603 = vunpack.c.l.b16 %v97
  %v604 = vunpack.c.h.b16 %v97
  %v605 = vunpack.c.l.b16 %v98
  %v606 = vunpack.c.h.b16 %v98
  %v607 = vunpack.c.l.b16 %v99
  %v608 = vunpack.c.h.b16 %v99
  %v609 = vunpack.c.l.b16 %v100
  %v610 = vunpack.c.h.b16 %v100
  %v611 = vunpack.c.l.b16 %v101
  %v612 = vunpack.c.h.b16 %v101
  %v613 = vunpack.c.l.b16 %v102
  %v614 = vunpack.c.h.b16 %v102
  %v615 = vunpack.c.l.b16 %v103
  %v616 = vunpack.c.h.b16 %v103
  %v617 = vunpack.c.l.b16 %v104
  %v618 = vunpack.c.h.b16 %v104
  %v619 = vunpack.c.l.b16 %v105
  %v620 = vunpack.c.h.b16 %v105
  %v621 = vunpack.c.l.b16 %v106
  %v622 = vunpack.c.h.b16 %v106
  %v623 = vunpack.c.l.b16 %v107
  %v624 = vunpack.c.h.b16 %v107
  %v625 = vunpack.c.l.b16 %v108
  %v626 = vunpack.c.h.b16 %v108
  %v627 = vunpack.c.l.b16 %v109
  %v628 = vunpack.c.h.b16 %v109
  %v629 = vunpack.c.l.b16 %v110
  %v630 = vunpack.c.h.b16 %v110
  %v631 = vunpack.c.l.b16 %v111
  %v632 = vunpack.c.h.b16 %v111
  %v633 = vunpack.c.l.b16 %v112
  %v634 = vunpack.c.h.b16 %v112
  %v635 = vunpack.c.l.b16 %v113
  %v636 = vunpack.c.h.b16 %v113
  %v637 = vunpack.c.l.b16 %v114
  %v638 = vunpack.c.h.b16 %v114
  %v639 = vunpack.c.l.b16 %v115
  %v640 = vunpack.c.h.b16 %v115
  %v641 = vunpack.c.l.b16 %v116
  %v642 = vunpack.c.h.b16 %v116
  %v643 = vunpack.c.l.b16 %v117
  %v644 = vunpack.c.h.b16 %v117
  %v645 = vunpack.c.l.b16 %v118
  %v646 = vunpack.c.h.b16 %v118
  %v647 = vunpack.c.l.b16 %v119
  %v648 = vunpack.c.h.b16 %v119
  %v649 = vunpack.c.l.b16 %v120
  %v650 = vunpack.c.h.b16 %v120
  %v651 = vunpack.c.l.b16 %v121
  %v652 = vunpack.c.h.b16 %v121
  %v653 = vunpack.c.l.b16 %v122
  %v654 = vunpack.c.h.b16 %v122
  %v655 = vunpack.c.l.b16 %v123
  %v656 = vunpack.c.h.b16 %v123
  %v657 = vunpack.c.l.b16 %v124
  %v658 = vunpack.c.h.b16 %v124
  %v659 = vunpack.c.l.b16 %v125
  %v660 = vunpack.c.h.b16 %v125
  %v661 = vunpack.c.l.b16 %v126
  %v662 = vunpack.c.h.b16 %v126
  %v663 = vunpack.c.l.b16 %v127
  %v664 = vunpack.c.h.b16 %v127
  %v665 = vunpack.c.l.b16 %v128
  %v666 = vunpack.c.h.b16 %v128
  %v667 = vunpack.c.l.b16 %v129
  %v668 = vunpack.c.h.b16 %v129
  %v669 = vunpack.c.l.b16 %v130
  %v670 = vunpack.c.h.b16 %v130
  %v671 = vunpack.c.l.b16 %v131
  %v672 = vunpack.c.h.b16 %v131
  %v673 = vunpack.c.l.b16 %v132
  %v674 = vunpack.c.h.b16 %v132
  %v675 = vunpack.c.l.b16 %v133
  %v676 = vunpack.c.h.b16 %v133
  %v677 = vunpack.c.l.b16 %v134
  %v678 = vunpack.c.h.b16 %v134
  %v679 = vunpack.c.l.b16 %v135
  %v680 = vunpack.c.h.b16 %v135
  %v681 = vunpack.c.l.b16 %v136
  %v682 = vunpack.c.h.b16 %v136
  %v683 = vunpack.c.l.b16 %v137
  %v684 = vunpack.c.h.b16 %v137
  %v685 = vunpack.c.l.b16 %v138
  %v686 = vunpack.c.h.b16 %v138
  %v687 = vunpack.c.l.b16 %v139
  %v688 = vunpack.c.h.b16 %v139
  %v689 = vunpack.c.l.b16 %v140
  %v690 = vunpack.c.h.b16 %v140
  %v691 = vunpack.c.l.b16 %v141
  %v692 = vunpack.c.h.b16 %v141
  %v693 = vunpack.c.l.b16 %v142
  %v694 = vunpack.c.h.b16 %v142
  %v695 = vunpack.c.l.b16 %v143
  %v696 = vunpack.c.h.b16 %v143
  %v697 = vunpack.c.l.b16 %v144
  %v698 = vunpack.c.h.b16 %v144
  %v699 = vunpack.c.l.b16 %v145
  %v700 = vunpack.c.h.b16 %v145
  %v701 = vunpack.c.l.b16 %v146
  %v702 = vunpack.c.h.b16 %v146
  %v703 = vunpack.c.l.b16 %v147
  %v704 = vunpack.c.h.b16 %v147
  %v705 = vunpack.c.l.b16 %v148
  %v706 = vunpack.c.h.b16 %v148
  %v707 = vunpack.c.l.b16 %v149
  %v708 = vunpack.c.h.b16 %v149
  %v709 = vunpack.c.l.b16 %v150
  %v710 = vunpack.c.h.b16 %v150
  %v711 = vunpack.c.l.b16 %v151
  %v712 = vunpack.c.h.b16 %v151
  %v713 = vunpack.c.l.b16 %v152
  %v714 = vunpack.c.h.b16 %v152
  %v715 = vunpack.c.l.b16 %v153
  %v716 = vunpack.c.h.b16 %v153
  %v717 = vunpack.c.l.b16 %v154
  %v718 = vunpack.c.h.b16 %v154
  %v719 = vunpack.c.l.b16 %v155
  %v720 = vunpack.c.h.b16 %v155
  %v721 = vunpack.c.l.b16 %v156
  %v722 = vunpack.c.h.b16 %v156
  %v723 = vunpack.c.l.b16 %v157
  %v724 = vunpack.c.h.b16 %v157
  %v725 = vunpack.c.l.b16 %v158
  %v726 = vunpack.c.h.b16 %v158
  %v727 = vunpack.c.l.b16 %v159
  %v728 = vunpack.c.h.b16 %v159
  %v729 = vunpack.c.l.b16 %v160
  %v730 = vunpack.c.h.b16 %v160
  %v731 = vunpack.c.l.b16 %v161
  %v732 = vunpack.c.h.b16 %v161
  %v733 = vunpack.c.l.b16 %v162
  %v734 = vunpack.c.h.b16 %v162
  %v735 = vunpack.c.l.b16 %v163
  %v736 = vunpack.c.h.b16 %v163
  %v737 = vunpack.c.l.b16 %v164
  %v738 = vunpack.c.h.b16 %v164
  %v739 = vunpack.c.l.b16 %v165
  %v740 = vunpack.c.h.b16 %v165
  %v741 = vunpack.c.l.b16 %v166
  %v742 = vunpack.c.h.b16 %v166
  %v743 = vunpack.c.l.b16 %v167
  %v744 = vunpack.c.h.b16 %v167
  %v745 = vunpack.c.l.b16 %v168
  %v746 = vunpack.c.h.b16 %v168
  %v747 = vunpack.c.l.b16 %v169
  %v748 = vunpack.c.h.b16 %v169
  %v749 = vunpack.c.l.b16 %v170
  %v750 = vunpack.c.h.b16 %v170
  %v751 = vunpack.c.l.b16 %v171
  %v752 = vunpack.c.h.b16 %v171
  %v753 = vunpack.c.l.b16 %v172
  %v754 = vunpack.c.h.b16 %v172
  %v755 = vunpack.c.l.b16 %v173
  %v756 = vunpack.c.h.b16 %v173
  %v757 = vunpack.c.l.b16 %v174
  %v758 = vunpack.c.h.b16 %v174
  %v759 = vunpack.c.l.b16 %v175
  %v760 = vunpack.c.h.b16 %v175
  %v761 = vunpack.c.l.b16 %v176
  %v762 = vunpack.c.h.b16 %v176
  %v763 = vunpack.c.l.b16 %v177
  %v764 = vunpack.c.h.b16 %v177
  %v765 = vunpack.c.l.b16 %v178
  %v766 = vunpack.c.h.b16 %v178
  %v767 = vunpack.c.l.b16 %v179
  %v768 = vunpack.c.h.b16 %v179
  %v769 = vunpack.c.l.b16 %v180
  %v770 = vunpack.c.h.b16 %v180
  %v771 = vunpack.c.l.b16 %v181
  %v772 = vunpack.c.h.b16 %v181
  %v773 = vunpack.c.l.b16 %v182
  %v774 = vunpack.c.h.b16 %v182
  %v775 = vunpack.c.l.b16 %v183
  %v776 = vunpack.c.h.b16 %v183
  %v777 = vunpack.c.l.b16 %v184
  %v778 = vunpack.c.h.b16 %v184
  %v779 = vunpack.c.l.b16 %v185
  %v780 = vunpack.c.h.b16 %v185
  %v781 = vunpack.c.l.b16 %v186
  %v782 = vunpack.c.h.b16 %v186
  %v783 = vunpack.c.l.b16 %v187
  %v784 = vunpack.c.h.b16 %v187
  %v785 = vunpack.c.l.b16 %v188
  %v786 = vunpack.c.h.b16 %v188
  %v787 = vunpack.c.l.b16 %v189
  %v788 = vunpack.c.h.b16 %v189
  %v789 = vunpack.c.l.b16 %v190
  %v790 = vunpack.c.h.b16 %v190
  %v791 = vunpack.c.l.b16 %v191
  %v792 = vunpack.c.h.b16 %v191
  %v793 = vunpack.c.l.b16 %v192
  %v794 = vunpack.c.h.b16 %v192
  %v795 = vunpack.c.l.b16 %v193
  %v796 = vunpack.c.h.b16 %v193
  %v797 = vunpack.c.l.b16 %v194
  %v798 = vunpack.c.h.b16 %v194
  %v799 = vunpack.c.l.b16 %v195
  %v800 = vunpack.c.h.b16 %v195
  %v801 = vunpack.c.l.b16 %v196
  %v802 = vunpack.c.h.b16 %v196
  %v803 = vunpack.c.l.b16 %v197
  %v804 = vunpack.c.h.b16 %v197
  %v805 = vunpack.c.l.b16 %v198
  %v806 = vunpack.c.h.b16 %v198
  %v807 = vunpack.c.l.b16 %v199
  %v808 = vunpack.c.h.b16 %v199
  %v809 = vunpack.c.l.b16 %v200
  %v810 = vunpack.c.h.b16 %v200
  %v811 = vunpack.c.l.b16 %v201
  %v812 = vunpack.c.h.b16 %v201
  %v813 = vunpack.c.l.b16 %v202
  %v814 = vunpack.c.h.b16 %v202
  %v815 = vunpack.c.l.b16 %v203
  %v816 = vunpack.c.h.b16 %v203
  %v817 = vunpack.c.l.b16 %v204
  %v818 = vunpack.c.h.b16 %v204
  %v819 = vunpack.c.l.b16 %v205
  %v820 = vunpack.c.h.b16 %v205
  %v821 = vunpack.c.l.b16 %v206
  %v822 = vunpack.c.h.b16 %v206
  %v823 = vunpack.c.l.b16 %v207
  %v824 = vunpack.c.h.b16 %v207
  %v825 = vunpack.c.l.b16 %v208
  %v826 = vunpack.c.h.b16 %v208
  %v827 = vunpack.c.l.b16 %v209
  %v828 = vunpack.c.h.b16 %v209
  %v829 = vunpack.c.l.b16 %v210
  %v830 = vunpack.c.h.b16 %v210
  %v831 = vunpack.c.l.b16 %v211
  %v832 = vunpack.c.h.b16 %v211
  %v833 = vunpack.c.l.b16 %v212
  %v834 = vunpack.c.h.b16 %v212
  %v835 = vunpack.c.l.b16 %v213
  %v836 = vunpack.c.h.b16 %v213
  %v837 = vunpack.c.l.b16 %v214
  %v838 = vunpack.c.h.b16 %v214
  %v839 = vunpack.c.l.b16 %v215
  %v840 = vunpack.c.h.b16 %v215
  %v841 = vunpack.c.l.b16 %v216
  %v842 = vunpack.c.h.b16 %v216
  %v843 = vunpack.c.l.b16 %v217
  %v844 = vunpack.c.h.b16 %v217
  %v845 = vunpack.c.l.b16 %v218
  %v846 = vunpack.c.h.b16 %v218
  %v847 = vpack.c.b16 %v467, %v463
  %v848 = vpack.c.b16 %v468, %v464
  %v849 = vpack.c.b16 %v469, %v465
  %v850 = vpack.c.b16 %v470, %v466
  %v851 = vpack.c.b16 %v475, %v471
  %v852 = vpack.c.b16 %v476, %v472
  %v853 = vpack.c.b16 %v477, %v473
  %v854 = vpack.c.b16 %v478, %v474
  %v855 = vpack.c.b16 %v483, %v479
  %v856 = vpack.c.b16 %v484, %v480
  %v857 = vpack.c.b16 %v485, %v481
  %v858 = vpack.c.b16 %v486, %v482
  %v859 = vpack.c.b16 %v491, %v487
  %v860 = vpack.c.b16 %v492, %v488
  %v861 = vpack.c.b16 %v493, %v489
  %v862 = vpack.c.b16 %v494, %v490
  %v863 = vpack.c.b16 %v499, %v495
  %v864 = vpack.c.b16 %v500, %v496
  %v865 = vpack.c.b16 %v501, %v497
  %v866 = vpack.c.b16 %v502, %v498
  %v867 = vpack.c.b16 %v507, %v503
  %v868 = vpack.c.b16 %v508, %v504
  %v869 = vpack.c.b16 %v509, %v505
  %v870 = vpack.c.b16 %v510, %v506
  %v871 = vpack.c.b16 %v515, %v511
  %v872 = vpack.c.b16 %v516, %v512
  %v873 = vpack.c.b16 %v517, %v513
  %v874 = vpack.c.b16 %v518, %v514
  %v875 = vpack.c.b16 %v523, %v519
  %v876 = vpack.c.b16 %v524, %v520
  %v877 = vpack.c.b16 %v525, %v521
  %v878 = vpack.c.b16 %v526, %v522
  %v879 = vpack.c.b16 %v531, %v527
  %v880 = vpack.c.b16 %v532, %v528
  %v881 = vpack.c.b16 %v533, %v529
  %v882 = vpack.c.b16 %v534, %v530
  %v883 = vpack.c.b16 %v539, %v535
  %v884 = vpack.c.b16 %v540, %v536
  %v885 = vpack.c.b16 %v541, %v537
  %v886 = vpack.c.b16 %v542, %v538
  %v887 = vpack.c.b16 %v547, %v543
  %v888 = vpack.c.b16 %v548, %v544
  %v889 = vpack.c.b16 %v549, %v545
  %v890 = vpack.c.b16 %v550, %v546
  %v891 = vpack.c.b16 %v555, %v551
  %v892 = vpack.c.b16 %v556, %v552
  %v893 = vpack.c.b16 %v557, %v553
  %v894 = vpack.c.b16 %v558, %v554
  %v895 = vpack.c.b16 %v563, %v559
  %v896 = vpack.c.b16 %v564, %v560
  %v897 = vpack.c.b16 %v565, %v561
  %v898 = vpack.c.b16 %v566, %v562
  %v899 = vpack.c.b16 %v571, %v567
  %v900 = vpack.c.b16 %v572, %v568
  %v901 = vpack.c.b16 %v573, %v569
  %v902 = vpack.c.b16 %v574, %v570
  %v903 = vpack.c.b16 %v579, %v575
  %v904 = vpack.c.b16 %v580, %v576
  %v905 = vpack.c.b16 %v581, %v577
  %v906 = vpack.c.b16 %v582, %v578
  %v907 = vpack.c.b16 %v587, %v583
  %v908 = vpack.c.b16 %v588, %v584
  %v909 = vpack.c.b16 %v589, %v585
  %v910 = vpack.c.b16 %v590, %v586
  %v911 = vpack.c.b16 %v595, %v591
  %v912 = vpack.c.b16 %v596, %v592
  %v913 = vpack.c.b16 %v597, %v593
  %v914 = vpack.c.b16 %v598, %v594
  %v915 = vpack.c.b16 %v603, %v599
  %v916 = vpack.c.b16 %v604, %v600
  %v917 = vpack.c.b16 %v605, %v601
  %v918 = vpack.c.b16 %v606, %v602
  %v919 = vpack.c.b16 %v611, %v607
  %v920 = vpack.c.b16 %v612, %v608
  %v921 = vpack.c.b16 %v613, %v609
  %v922 = vpack.c.b16 %v614, %v610
  %v923 = vpack.c.b16 %v619, %v615
  %v924 = vpack.c.b16 %v620, %v616
  %v925 = vpack.c.b16 %v621, %v617
  %v926 = vpack.c.b16 %v622, %v618
  %v927 = vpack.c.b16 %v627, %v623
  %v928 = vpack.c.b16 %v628, %v624
  %v929 = vpack.c.b16 %v629, %v625
  %v930 = vpack.c.b16 %v630, %v626
  %v931 = vpack.c.b16 %v635, %v631
  %v932 = vpack.c.b16 %v636, %v632
  %v933 = vpack.c.b16 %v637, %v633
  %v934 = vpack.c.b16 %v638, %v634
  %v935 = vpack.c.b16 %v643, %v639
  %v936 = vpack.c.b16 %v644, %v640
  %v937 = vpack.c.b16 %v645, %v641
  %v938 = vpack.c.b16 %v646, %v642
  %v939 = vpack.c.b16 %v651, %v647
  %v940 = vpack.c.b16 %v652, %v648
  %v941 = vpack.c.b16 %v653, %v649
  %v942 = vpack.c.b16 %v654, %v650
  %v943 = vpack.c.b16 %v659, %v655
  %v944 = vpack.c.b16 %v660, %v656
  %v945 = vpack.c.b16 %v661, %v657
  %v946 = vpack.c.b16 %v662, %v658
  %v947 = vpack.c.b16 %v667, %v663
  %v948 = vpack.c.b16 %v668, %v664
  %v949 = vpack.c.b16 %v669, %v665
  %v950 = vpack.c.b16 %v670, %v666
  %v951 = vpack.c.b16 %v675, %v671
  %v952 = vpack.c.b16 %v676, %v672
  %v953 = vpack.c.b16 %v677, %v673
  %v954 = vpack.c.b16 %v678, %v674
  %v955 = vpack.c.b16 %v683, %v679
  %v956 = vpack.c.b16 %v684, %v680
  %v957 = vpack.c.b16 %v685, %v681
  %v958 = vpack.c.b16 %v686, %v682
  %v959 = vpack.c.b16 %v691, %v687
  %v960 = vpack.c.b16 %v692, %v688
  %v961 = vpack.c.b16 %v693, %v689
  %v962 = vpack.c.b16 %v694, %v690
  %v963 = vpack.c.b16 %v699, %v695
  %v964 = vpack.c.b16 %v700, %v696
  %v965 = vpack.c.b16 %v701, %v697
  %v966 = vpack.c.b16 %v702, %v698
  %v967 = vpack.c.b16 %v707, %v703
  %v968 = vpack.c.b16 %v708, %v704
  %v969 = vpack.c.b16 %v709, %v705
  %v970 = vpack.c.b16 %v710, %v706
  %v971 = vpack.c.b16 %v715, %v711
  %v972 = vpack.c.b16 %v716, %v712
  %v973 = vpack.c.b16 %v717, %v713
  %v974 = vpack.c.b16 %v718, %v714
  %v975 = vpack.c.b16 %v723, %v719
  %v976 = vpack.c.b16 %v724, %v720
  %v977 = vpack.c.b16 %v725, %v721
  %v978 = vpack.c.b16 %v726, %v722
  %v979 = vpack.c.b16 %v731, %v727
  %v980 = vpack.c.b16 %v732, %v728
  %v981 = vpack.c.b16 %v733, %v729
  %v982 = vpack.c.b16 %v734, %v730
  %v983 = vpack.c.b16 %v739, %v735
  %v984 = vpack.c.b16 %v740, %v736
  %v985 = vpack.c.b16 %v741, %v737
  %v986 = vpack.c.b16 %v742, %v738
  %v987 = vpack.c.b16 %v747, %v743
  %v988 = vpack.c.b16 %v748, %v744
  %v989 = vpack.c.b16 %v749, %v745
  %v990 = vpack.c.b16 %v750, %v746
  %v991 = vpack.c.b16 %v755, %v751
  %v992 = vpack.c.b16 %v756, %v752
  %v993 = vpack.c.b16 %v757, %v753
  %v994 = vpack.c.b16 %v758, %v754
  %v995 = vpack.c.b16 %v763, %v759
  %v996 = vpack.c.b16 %v764, %v760
  %v997 = vpack.c.b16 %v765, %v761
  %v998 = vpack.c.b16 %v766, %v762
  %v999 = vpack.c.b16 %v771, %v767
  %v1000 = vpack.c.b16 %v772, %v768
  %v1001 = vpack.c.b16 %v773, %v769
  %v1002 = vpack.c.b16 %v774, %v770
  %v1003 = vpack.c.b16 %v779, %v775
  %v1004 = vpack.c.b16 %v780, %v776
  %v1005 = vpack.c.b16 %v781, %v777
  %v1006 = vpack.c.b16 %v782, %v778
  %v1007 = vpack.c.b16 %v787, %v783
  %v1008 = vpack.c.b16 %v788, %v784
  %v1009 = vpack.c.b16 %v789, %v785
  %v1010 = vpack.c.b16 %v790, %v786
  %v1011 = vpack.c.b16 %v795, %v791
  %v1012 = vpack.c.b16 %v796, %v792
  %v1013 = vpack.c.b16 %v797, %v793
  %v1014 = vpack.c.b16 %v798, %v794
  %v1015 = vpack.c.b16 %v803, %v799
  %v1016 = vpack.c.b16 %v804, %v800
  %v1017 = vpack.c.b16 %v805, %v801
  %v1018 = vpack.c.b16 %v806, %v802
  %v1019 = vpack.c.b16 %v811, %v807
  %v1020 = vpack.c.b16 %v812, %v808
  %v1021 = vpack.c.b16 %v813, %v809
  %v1022 = vpack.c.b16 %v814, %v810
  %v1023 = vpack.c.b16 %v819, %v815
  %v1024 = vpack.c.b16 %v820, %v816
  %v1025 = vpack.c.b16 %v821, %v817
  %v1026 = vpack.c.b16 %v822, %v818
  %v1027 = vpack.c.b16 %v827, %v823
  %v1028 = vpack.c.b16 %v828, %v824
  %v1029 = vpack.c.b16 %v829, %v825
  %v1030 = vpack.c.b16 %v830, %v826
  %v1031 = vpack.c.b16 %v835, %v831
  %v1032 = vpack.c.b16 %v836, %v832
  %v1033 = vpack.c.b16 %v837, %v833
  %v1034 = vpack.c.b16 %v838, %v834
  %v1035 = vpack.c.b16 %v843, %v839
  %v1036 = vpack.c.b16 %v844, %v840
  %v1037 = vpack.c.b16 %v845, %v841
  %v1038 = vpack.c.b16 %v846, %v842
  %1231 = vmatprep.subr.bf16.mxu0 %v876
  %1232 = vmatpush1.bf16.msra.mxu0 %v875
  %1233 = vmatprep.subr.bf16.mxu0 %v872
  %1234 = vmatpush1.bf16.msra.mxu0 %v871
  %1235 = vmatprep.subr.bf16.mxu0 %v868
  %1236 = vmatpush1.bf16.msra.mxu0 %v867
  %1237 = vmatprep.subr.bf16.mxu0 %v864
  %1238 = vmatpush1.bf16.msra.mxu0 %v863
  %1239 = vmatprep.subr.bf16.mxu0 %v860
  %1240 = vmatpush1.bf16.msra.mxu0 %v859
  %1241 = vmatprep.subr.bf16.mxu0 %v856
  %1242 = vmatpush1.bf16.msra.mxu0 %v855
  %1243 = vmatprep.subr.bf16.mxu0 %v852
  %1244 = vmatpush1.bf16.msra.mxu0 %v851
  %1245 = vmatprep.subr.bf16.mxu0 %v848
  %1246 = vmatpush1.bf16.msra.mxu0 %v847
  %1247 = vmatprep.subr.bf16.mxu0 %v908
  %1248 = vmatpush2.bf16.msra.mxu0 %v907
  %1249 = vmatprep.subr.bf16.mxu0 %v904
  %1250 = vmatpush2.bf16.msra.mxu0 %v903
  %1251 = vmatprep.subr.bf16.mxu0 %v900
  %1252 = vmatpush2.bf16.msra.mxu0 %v899
  %1253 = vmatprep.subr.bf16.mxu0 %v896
  %1254 = vmatpush2.bf16.msra.mxu0 %v895
  %1255 = vmatprep.subr.bf16.mxu0 %v892
  %1256 = vmatpush2.bf16.msra.mxu0 %v891
  %1257 = vmatprep.subr.bf16.mxu0 %v888
  %1258 = vmatpush2.bf16.msra.mxu0 %v887
  %1259 = vmatprep.subr.bf16.mxu0 %v884
  %1260 = vmatpush2.bf16.msra.mxu0 %v883
  %1261 = vmatprep.subr.bf16.mxu0 %v880
  %1262 = vmatpush2.bf16.msra.mxu0 %v879
  %1263 = vmatprep.mubr.bf16.mxu0 %v260
  %1264 = vmatmul.mubr.bf16.gmra.mxu0 %v259
  %v1265 = vpop.f32.mrf.mxu0
  %v1266 = vadd.f32 %v224, %v1265
  %v1267 = vpop.f32.mrf.mxu0
  %v1268 = vadd.f32 %v228, %v1267
  %v1269 = vpop.f32.mrf.mxu0
  %v1270 = vadd.f32 %v224, %v1269
  %v1271 = vpop.f32.mrf.mxu0
  %v1272 = vadd.f32 %v228, %v1271
  %1273 = vdwg.mxu0
  %1274 = vmatprep.subr.bf16.mxu0 %v940
  %1275 = vmatpush1.bf16.msra.mxu0 %v939
  %1276 = vmatprep.subr.bf16.mxu0 %v936
  %1277 = vmatpush1.bf16.msra.mxu0 %v935
  %1278 = vmatprep.subr.bf16.mxu0 %v932
  %1279 = vmatpush1.bf16.msra.mxu0 %v931
  %1280 = vmatprep.subr.bf16.mxu0 %v928
  %1281 = vmatpush1.bf16.msra.mxu0 %v927
  %1282 = vmatprep.subr.bf16.mxu0 %v924
  %1283 = vmatpush1.bf16.msra.mxu0 %v923
  %1284 = vmatprep.subr.bf16.mxu0 %v920
  %1285 = vmatpush1.bf16.msra.mxu0 %v919
  %1286 = vmatprep.subr.bf16.mxu0 %v916
  %1287 = vmatpush1.bf16.msra.mxu0 %v915
  %1288 = vmatprep.subr.bf16.mxu0 %v912
  %1289 = vmatpush1.bf16.msra.mxu0 %v911
  %1290 = vmatprep.subr.bf16.mxu0 %v972
  %1291 = vmatpush2.bf16.msra.mxu0 %v971
  %1292 = vmatprep.subr.bf16.mxu0 %v968
  %1293 = vmatpush2.bf16.msra.mxu0 %v967
  %1294 = vmatprep.subr.bf16.mxu0 %v964
  %1295 = vmatpush2.bf16.msra.mxu0 %v963
  %1296 = vmatprep.subr.bf16.mxu0 %v960
  %1297 = vmatpush2.bf16.msra.mxu0 %v959
  %1298 = vmatprep.subr.bf16.mxu0 %v956
  %1299 = vmatpush2.bf16.msra.mxu0 %v955
  %1300 = vmatprep.subr.bf16.mxu0 %v952
  %1301 = vmatpush2.bf16.msra.mxu0 %v951
  %1302 = vmatprep.subr.bf16.mxu0 %v948
  %1303 = vmatpush2.bf16.msra.mxu0 %v947
  %1304 = vmatprep.subr.bf16.mxu0 %v944
  %1305 = vmatpush2.bf16.msra.mxu0 %v943
  %1306 = vmatprep.mubr.bf16.mxu0 %v262
  %1307 = vmatmul.mubr.bf16.gmra.mxu0 %v261
  %v1308 = vpop.f32.mrf.mxu0
  %v1309 = vadd.f32 %v1266, %v1308
  %v1310 = vpop.f32.mrf.mxu0
  %v1311 = vadd.f32 %v1268, %v1310
  %v1312 = vpop.f32.mrf.mxu0
  %v1313 = vadd.f32 %v1270, %v1312
  %v1314 = vpop.f32.mrf.mxu0
  %v1315 = vadd.f32 %v1272, %v1314
  %1316 = vdwg.mxu0
  %1317 = vmatprep.subr.bf16.mxu0 %v1004
  %1318 = vmatpush1.bf16.msra.mxu0 %v1003
  %1319 = vmatprep.subr.bf16.mxu0 %v1000
  %1320 = vmatpush1.bf16.msra.mxu0 %v999
  %1321 = vmatprep.subr.bf16.mxu0 %v996
  %1322 = vmatpush1.bf16.msra.mxu0 %v995
  %1323 = vmatprep.subr.bf16.mxu0 %v992
  %1324 = vmatpush1.bf16.msra.mxu0 %v991
  %1325 = vmatprep.subr.bf16.mxu0 %v988
  %1326 = vmatpush1.bf16.msra.mxu0 %v987
  %1327 = vmatprep.subr.bf16.mxu0 %v984
  %1328 = vmatpush1.bf16.msra.mxu0 %v983
  %1329 = vmatprep.subr.bf16.mxu0 %v980
  %1330 = vmatpush1.bf16.msra.mxu0 %v979
  %1331 = vmatprep.subr.bf16.mxu0 %v976
  %1332 = vmatpush1.bf16.msra.mxu0 %v975
  %1333 = vmatprep.subr.bf16.mxu0 %v1036
  %1334 = vmatpush2.bf16.msra.mxu0 %v1035
  %1335 = vmatprep.subr.bf16.mxu0 %v1032
  %1336 = vmatpush2.bf16.msra.mxu0 %v1031
  %1337 = vmatprep.subr.bf16.mxu0 %v1028
  %1338 = vmatpush2.bf16.msra.mxu0 %v1027
  %1339 = vmatprep.subr.bf16.mxu0 %v1024
  %1340 = vmatpush2.bf16.msra.mxu0 %v1023
  %1341 = vmatprep.subr.bf16.mxu0 %v1020
  %1342 = vmatpush2.bf16.msra.mxu0 %v1019
  %1343 = vmatprep.subr.bf16.mxu0 %v1016
  %1344 = vmatpush2.bf16.msra.mxu0 %v1015
  %1345 = vmatprep.subr.bf16.mxu0 %v1012
  %1346 = vmatpush2.bf16.msra.mxu0 %v1011
  %1347 = vmatprep.subr.bf16.mxu0 %v1008
  %1348 = vmatpush2.bf16.msra.mxu0 %v1007
  %1349 = vmatprep.mubr.bf16.mxu0 %v264
  %1350 = vmatmul.mubr.bf16.gmra.mxu0 %v263
  %v1351 = vpop.f32.mrf.mxu0
  %v1352 = vadd.f32 %v1309, %v1351
  %v1353 = vpop.f32.mrf.mxu0
  %v1354 = vadd.f32 %v1311, %v1353
  %v1355 = vpop.f32.mrf.mxu0
  %v1356 = vadd.f32 %v1313, %v1355
  %v1357 = vpop.f32.mrf.mxu0
  %v1358 = vadd.f32 %v1315, %v1357
  %1359 = vdwg.mxu0
  %1360 = vmatprep.subr.bf16.mxu0 %v878
  %1361 = vmatpush1.bf16.msra.mxu0 %v877
  %1362 = vmatprep.subr.bf16.mxu0 %v874
  %1363 = vmatpush1.bf16.msra.mxu0 %v873
  %1364 = vmatprep.subr.bf16.mxu0 %v870
  %1365 = vmatpush1.bf16.msra.mxu0 %v869
  %1366 = vmatprep.subr.bf16.mxu0 %v866
  %1367 = vmatpush1.bf16.msra.mxu0 %v865
  %1368 = vmatprep.subr.bf16.mxu0 %v862
  %1369 = vmatpush1.bf16.msra.mxu0 %v861
  %1370 = vmatprep.subr.bf16.mxu0 %v858
  %1371 = vmatpush1.bf16.msra.mxu0 %v857
  %1372 = vmatprep.subr.bf16.mxu0 %v854
  %1373 = vmatpush1.bf16.msra.mxu0 %v853
  %1374 = vmatprep.subr.bf16.mxu0 %v850
  %1375 = vmatpush1.bf16.msra.mxu0 %v849
  %1376 = vmatprep.subr.bf16.mxu0 %v910
  %1377 = vmatpush2.bf16.msra.mxu0 %v909
  %1378 = vmatprep.subr.bf16.mxu0 %v906
  %1379 = vmatpush2.bf16.msra.mxu0 %v905
  %1380 = vmatprep.subr.bf16.mxu0 %v902
  %1381 = vmatpush2.bf16.msra.mxu0 %v901
  %1382 = vmatprep.subr.bf16.mxu0 %v898
  %1383 = vmatpush2.bf16.msra.mxu0 %v897
  %1384 = vmatprep.subr.bf16.mxu0 %v894
  %1385 = vmatpush2.bf16.msra.mxu0 %v893
  %1386 = vmatprep.subr.bf16.mxu0 %v890
  %1387 = vmatpush2.bf16.msra.mxu0 %v889
  %1388 = vmatprep.subr.bf16.mxu0 %v886
  %1389 = vmatpush2.bf16.msra.mxu0 %v885
  %1390 = vmatprep.subr.bf16.mxu0 %v882
  %1391 = vmatpush2.bf16.msra.mxu0 %v881
  %1392 = vmatprep.mubr.bf16.mxu0 %v260
  %1393 = vmatmul.mubr.bf16.gmra.mxu0 %v259
  %v1394 = vpop.f32.mrf.mxu0
  %v1395 = vadd.f32 %v232, %v1394
  %v1396 = vpop.f32.mrf.mxu0
  %v1397 = vadd.f32 %v236, %v1396
  %v1398 = vpop.f32.mrf.mxu0
  %v1399 = vadd.f32 %v232, %v1398
  %v1400 = vpop.f32.mrf.mxu0
  %v1401 = vadd.f32 %v236, %v1400
  %1402 = vdwg.mxu0
  %1403 = vmatprep.subr.bf16.mxu0 %v942
  %1404 = vmatpush1.bf16.msra.mxu0 %v941
  %1405 = vmatprep.subr.bf16.mxu0 %v938
  %1406 = vmatpush1.bf16.msra.mxu0 %v937
  %1407 = vmatprep.subr.bf16.mxu0 %v934
  %1408 = vmatpush1.bf16.msra.mxu0 %v933
  %1409 = vmatprep.subr.bf16.mxu0 %v930
  %1410 = vmatpush1.bf16.msra.mxu0 %v929
  %1411 = vmatprep.subr.bf16.mxu0 %v926
  %1412 = vmatpush1.bf16.msra.mxu0 %v925
  %1413 = vmatprep.subr.bf16.mxu0 %v922
  %1414 = vmatpush1.bf16.msra.mxu0 %v921
  %1415 = vmatprep.subr.bf16.mxu0 %v918
  %1416 = vmatpush1.bf16.msra.mxu0 %v917
  %1417 = vmatprep.subr.bf16.mxu0 %v914
  %1418 = vmatpush1.bf16.msra.mxu0 %v913
  %1419 = vmatprep.subr.bf16.mxu0 %v974
  %1420 = vmatpush2.bf16.msra.mxu0 %v973
  %1421 = vmatprep.subr.bf16.mxu0 %v970
  %1422 = vmatpush2.bf16.msra.mxu0 %v969
  %1423 = vmatprep.subr.bf16.mxu0 %v966
  %1424 = vmatpush2.bf16.msra.mxu0 %v965
  %1425 = vmatprep.subr.bf16.mxu0 %v962
  %1426 = vmatpush2.bf16.msra.mxu0 %v961
  %1427 = vmatprep.subr.bf16.mxu0 %v958
  %1428 = vmatpush2.bf16.msra.mxu0 %v957
  %1429 = vmatprep.subr.bf16.mxu0 %v954
  %1430 = vmatpush2.bf16.msra.mxu0 %v953
  %1431 = vmatprep.subr.bf16.mxu0 %v950
  %1432 = vmatpush2.bf16.msra.mxu0 %v949
  %1433 = vmatprep.subr.bf16.mxu0 %v946
  %1434 = vmatpush2.bf16.msra.mxu0 %v945
  %1435 = vmatprep.mubr.bf16.mxu0 %v262
  %1436 = vmatmul.mubr.bf16.gmra.mxu0 %v261
  %v1437 = vpop.f32.mrf.mxu0
  %v1438 = vadd.f32 %v1395, %v1437
  %v1439 = vpop.f32.mrf.mxu0
  %v1440 = vadd.f32 %v1397, %v1439
  %v1441 = vpop.f32.mrf.mxu0
  %v1442 = vadd.f32 %v1399, %v1441
  %v1443 = vpop.f32.mrf.mxu0
  %v1444 = vadd.f32 %v1401, %v1443
  %1445 = vdwg.mxu0
  %1446 = vmatprep.subr.bf16.mxu0 %v1006
  %1447 = vmatpush1.bf16.msra.mxu0 %v1005
  %1448 = vmatprep.subr.bf16.mxu0 %v1002
  %1449 = vmatpush1.bf16.msra.mxu0 %v1001
  %1450 = vmatprep.subr.bf16.mxu0 %v998
  %1451 = vmatpush1.bf16.msra.mxu0 %v997
  %1452 = vmatprep.subr.bf16.mxu0 %v994
  %1453 = vmatpush1.bf16.msra.mxu0 %v993
  %1454 = vmatprep.subr.bf16.mxu0 %v990
  %1455 = vmatpush1.bf16.msra.mxu0 %v989
  %1456 = vmatprep.subr.bf16.mxu0 %v986
  %1457 = vmatpush1.bf16.msra.mxu0 %v985
  %1458 = vmatprep.subr.bf16.mxu0 %v982
  %1459 = vmatpush1.bf16.msra.mxu0 %v981
  %1460 = vmatprep.subr.bf16.mxu0 %v978
  %1461 = vmatpush1.bf16.msra.mxu0 %v977
  %1462 = vmatprep.subr.bf16.mxu0 %v1038
  %1463 = vmatpush2.bf16.msra.mxu0 %v1037
  %1464 = vmatprep.subr.bf16.mxu0 %v1034
  %1465 = vmatpush2.bf16.msra.mxu0 %v1033
  %1466 = vmatprep.subr.bf16.mxu0 %v1030
  %1467 = vmatpush2.bf16.msra.mxu0 %v1029
  %1468 = vmatprep.subr.bf16.mxu0 %v1026
  %1469 = vmatpush2.bf16.msra.mxu0 %v1025
  %1470 = vmatprep.subr.bf16.mxu0 %v1022
  %1471 = vmatpush2.bf16.msra.mxu0 %v1021
  %1472 = vmatprep.subr.bf16.mxu0 %v1018
  %1473 = vmatpush2.bf16.msra.mxu0 %v1017
  %1474 = vmatprep.subr.bf16.mxu0 %v1014
  %1475 = vmatpush2.bf16.msra.mxu0 %v1013
  %1476 = vmatprep.subr.bf16.mxu0 %v1010
  %1477 = vmatpush2.bf16.msra.mxu0 %v1009
  %1478 = vmatprep.mubr.bf16.mxu0 %v264
  %1479 = vmatmul.mubr.bf16.gmra.mxu0 %v263
  %v1480 = vpop.f32.mrf.mxu0
  %v1481 = vadd.f32 %v1438, %v1480
  %v1482 = vpop.f32.mrf.mxu0
  %v1483 = vadd.f32 %v1440, %v1482
  %v1484 = vpop.f32.mrf.mxu0
  %v1485 = vadd.f32 %v1442, %v1484
  %v1486 = vpop.f32.mrf.mxu0
  %v1487 = vadd.f32 %v1444, %v1486
  %1488 = vdwg.mxu0
  %v1489 = vmax.f32 %v1352, 0.0
  %v1490 = vmax.f32 %v1354, 0.0
  %v1491 = vmax.f32 %v1481, 0.0
  %v1492 = vmax.f32 %v1483, 0.0
  %v1493 = vmax.f32 %v1356, 0.0
  %v1494 = vmax.f32 %v1358, 0.0
  %v1495 = vmax.f32 %v1485, 0.0
  %v1496 = vmax.f32 %v1487, 0.0
  %v1497 = vpack.c.bf16 %v1493, %v1489
  %v1498 = vpack.c.bf16 %v1494, %v1490
  %v1499 = vpack.c.bf16 %v1495, %v1491
  %v1500 = vpack.c.bf16 %v1496, %v1492
  %v1501 = vld [vmem:[%s3] sm:$0xf]
  %v1502 = vld [vmem:[%s3 + $0x4] sm:$0xf]
  %v1503 = vld [vmem:[%s3 + $0x8] sm:$0xf]
  %v1504 = vld [vmem:[%s3 + $0xc] sm:$0xf]
  %v1505 = vld [vmem:[%s3 + $0x10] sm:$0xf]
  %v1506 = vld [vmem:[%s3 + $0x14] sm:$0xf]
  %v1507 = vld [vmem:[%s3 + $0x18] sm:$0xf]
  %v1508 = vld [vmem:[%s3 + $0x1c] sm:$0xf]
  %v1509 = vld [vmem:[%s3 + $0x20] sm:$0xf]
  %v1510 = vld [vmem:[%s3 + $0x24] sm:$0xf]
  %v1511 = vld [vmem:[%s3 + $0x28] sm:$0xf]
  %v1512 = vld [vmem:[%s3 + $0x2c] sm:$0xf]
  %v1513 = vld [vmem:[%s3 + $0x30] sm:$0xf]
  %v1514 = vld [vmem:[%s3 + $0x34] sm:$0xf]
  %v1515 = vld [vmem:[%s3 + $0x38] sm:$0xf]
  %v1516 = vld [vmem:[%s3 + $0x3c] sm:$0xf]
  %v1517 = vld [vmem:[%s3 + $0x40] sm:$0xf]
  %v1518 = vld [vmem:[%s3 + $0x44] sm:$0xf]
  %v1519 = vld [vmem:[%s3 + $0x48] sm:$0xf]
  %v1520 = vld [vmem:[%s3 + $0x4c] sm:$0xf]
  %v1521 = vld [vmem:[%s3 + $0x50] sm:$0xf]
  %v1522 = vld [vmem:[%s3 + $0x54] sm:$0xf]
  %v1523 = vld [vmem:[%s3 + $0x58] sm:$0xf]
  %v1524 = vld [vmem:[%s3 + $0x5c] sm:$0xf]
  %v1525 = vld [vmem:[%s3 + $0x60] sm:$0xf]
  %v1526 = vld [vmem:[%s3 + $0x64] sm:$0xf]
  %v1527 = vld [vmem:[%s3 + $0x68] sm:$0xf]
  %v1528 = vld [vmem:[%s3 + $0x6c] sm:$0xf]
  %v1529 = vld [vmem:[%s3 + $0x70] sm:$0xf]
  %v1530 = vld [vmem:[%s3 + $0x74] sm:$0xf]
  %v1531 = vld [vmem:[%s3 + $0x78] sm:$0xf]
  %v1532 = vld [vmem:[%s3 + $0x7c] sm:$0xf]
  %v1533 = vld [vmem:[%s3 + $0x80] sm:$0xf]
  %v1534 = vld [vmem:[%s3 + $0x84] sm:$0xf]
  %v1535 = vld [vmem:[%s3 + $0x88] sm:$0xf]
  %v1536 = vld [vmem:[%s3 + $0x8c] sm:$0xf]
  %v1537 = vld [vmem:[%s3 + $0x90] sm:$0xf]
  %v1538 = vld [vmem:[%s3 + $0x94] sm:$0xf]
  %v1539 = vld [vmem:[%s3 + $0x98] sm:$0xf]
  %v1540 = vld [vmem:[%s3 + $0x9c] sm:$0xf]
  %v1541 = vld [vmem:[%s3 + $0xa0] sm:$0xf]
  %v1542 = vld [vmem:[%s3 + $0xa4] sm:$0xf]
  %v1543 = vld [vmem:[%s3 + $0xa8] sm:$0xf]
  %v1544 = vld [vmem:[%s3 + $0xac] sm:$0xf]
  %v1545 = vld [vmem:[%s3 + $0xb0] sm:$0xf]
  %v1546 = vld [vmem:[%s3 + $0xb4] sm:$0xf]
  %v1547 = vld [vmem:[%s3 + $0xb8] sm:$0xf]
  %v1548 = vld [vmem:[%s3 + $0xbc] sm:$0xf]
  %v1549 = vld [vmem:[%s3 + $0xc0] sm:$0xf]
  %v1550 = vld [vmem:[%s3 + $0xc4] sm:$0xf]
  %v1551 = vld [vmem:[%s3 + $0xc8] sm:$0xf]
  %v1552 = vld [vmem:[%s3 + $0xcc] sm:$0xf]
  %v1553 = vld [vmem:[%s3 + $0xd0] sm:$0xf]
  %v1554 = vld [vmem:[%s3 + $0xd4] sm:$0xf]
  %v1555 = vld [vmem:[%s3 + $0xd8] sm:$0xf]
  %v1556 = vld [vmem:[%s3 + $0xdc] sm:$0xf]
  %v1557 = vld [vmem:[%s3 + $0xe0] sm:$0xf]
  %v1558 = vld [vmem:[%s3 + $0xe4] sm:$0xf]
  %v1559 = vld [vmem:[%s3 + $0xe8] sm:$0xf]
  %v1560 = vld [vmem:[%s3 + $0xec] sm:$0xf]
  %v1561 = vld [vmem:[%s3 + $0xf0] sm:$0xf]
  %v1562 = vld [vmem:[%s3 + $0xf4] sm:$0xf]
  %v1563 = vld [vmem:[%s3 + $0xf8] sm:$0xf]
  %v1564 = vld [vmem:[%s3 + $0xfc] sm:$0xf]
  %v1565 = vld [vmem:[%s4] sm:$0x1]
  %v1567 = vlaneseq
  %v1568 = vshrl.u32 %v1567, 7
  %v1569 = vsub.s32 0, %v1568
  %v1570 = vrot.slane %v1565, %v1569
  %v1636 = vunpack.c.l.b16 %v1501
  %v1637 = vunpack.c.l.b16 %v1502
  %v1638 = vunpack.c.l.b16 %v1503
  %v1639 = vunpack.c.l.b16 %v1504
  %v1640 = vunpack.c.l.b16 %v1505
  %v1641 = vunpack.c.l.b16 %v1506
  %v1642 = vunpack.c.l.b16 %v1507
  %v1643 = vunpack.c.l.b16 %v1508
  %v1644 = vunpack.c.l.b16 %v1509
  %v1645 = vunpack.c.l.b16 %v1510
  %v1646 = vunpack.c.l.b16 %v1511
  %v1647 = vunpack.c.l.b16 %v1512
  %v1648 = vunpack.c.l.b16 %v1513
  %v1649 = vunpack.c.l.b16 %v1514
  %v1650 = vunpack.c.l.b16 %v1515
  %v1651 = vunpack.c.l.b16 %v1516
  %v1652 = vunpack.c.l.b16 %v1517
  %v1653 = vunpack.c.l.b16 %v1518
  %v1654 = vunpack.c.l.b16 %v1519
  %v1655 = vunpack.c.l.b16 %v1520
  %v1656 = vunpack.c.l.b16 %v1521
  %v1657 = vunpack.c.l.b16 %v1522
  %v1658 = vunpack.c.l.b16 %v1523
  %v1659 = vunpack.c.l.b16 %v1524
  %v1660 = vunpack.c.l.b16 %v1525
  %v1661 = vunpack.c.l.b16 %v1526
  %v1662 = vunpack.c.l.b16 %v1527
  %v1663 = vunpack.c.l.b16 %v1528
  %v1664 = vunpack.c.l.b16 %v1529
  %v1665 = vunpack.c.l.b16 %v1530
  %v1666 = vunpack.c.l.b16 %v1531
  %v1667 = vunpack.c.l.b16 %v1532
  %v1668 = vunpack.c.l.b16 %v1533
  %v1669 = vunpack.c.l.b16 %v1534
  %v1670 = vunpack.c.l.b16 %v1535
  %v1671 = vunpack.c.l.b16 %v1536
  %v1672 = vunpack.c.l.b16 %v1537
  %v1673 = vunpack.c.l.b16 %v1538
  %v1674 = vunpack.c.l.b16 %v1539
  %v1675 = vunpack.c.l.b16 %v1540
  %v1676 = vunpack.c.l.b16 %v1541
  %v1677 = vunpack.c.l.b16 %v1542
  %v1678 = vunpack.c.l.b16 %v1543
  %v1679 = vunpack.c.l.b16 %v1544
  %v1680 = vunpack.c.l.b16 %v1545
  %v1681 = vunpack.c.l.b16 %v1546
  %v1682 = vunpack.c.l.b16 %v1547
  %v1683 = vunpack.c.l.b16 %v1548
  %v1684 = vunpack.c.l.b16 %v1549
  %v1685 = vunpack.c.l.b16 %v1550
  %v1686 = vunpack.c.l.b16 %v1551
  %v1687 = vunpack.c.l.b16 %v1552
  %v1688 = vunpack.c.l.b16 %v1553
  %v1689 = vunpack.c.l.b16 %v1554
  %v1690 = vunpack.c.l.b16 %v1555
  %v1691 = vunpack.c.l.b16 %v1556
  %v1692 = vunpack.c.l.b16 %v1557
  %v1693 = vunpack.c.l.b16 %v1558
  %v1694 = vunpack.c.l.b16 %v1559
  %v1695 = vunpack.c.l.b16 %v1560
  %v1696 = vunpack.c.l.b16 %v1561
  %v1697 = vunpack.c.l.b16 %v1562
  %v1698 = vunpack.c.l.b16 %v1563
  %v1699 = vunpack.c.l.b16 %v1564
  %v1700 = vpack.c.b16 %v1637, %v1636
  %v1701 = vpack.c.b16 %v1639, %v1638
  %v1702 = vpack.c.b16 %v1641, %v1640
  %v1703 = vpack.c.b16 %v1643, %v1642
  %v1704 = vpack.c.b16 %v1645, %v1644
  %v1705 = vpack.c.b16 %v1647, %v1646
  %v1706 = vpack.c.b16 %v1649, %v1648
  %v1707 = vpack.c.b16 %v1651, %v1650
  %v1708 = vpack.c.b16 %v1653, %v1652
  %v1709 = vpack.c.b16 %v1655, %v1654
  %v1710 = vpack.c.b16 %v1657, %v1656
  %v1711 = vpack.c.b16 %v1659, %v1658
  %v1712 = vpack.c.b16 %v1661, %v1660
  %v1713 = vpack.c.b16 %v1663, %v1662
  %v1714 = vpack.c.b16 %v1665, %v1664
  %v1715 = vpack.c.b16 %v1667, %v1666
  %v1716 = vpack.c.b16 %v1669, %v1668
  %v1717 = vpack.c.b16 %v1671, %v1670
  %v1718 = vpack.c.b16 %v1673, %v1672
  %v1719 = vpack.c.b16 %v1675, %v1674
  %v1720 = vpack.c.b16 %v1677, %v1676
  %v1721 = vpack.c.b16 %v1679, %v1678
  %v1722 = vpack.c.b16 %v1681, %v1680
  %v1723 = vpack.c.b16 %v1683, %v1682
  %v1724 = vpack.c.b16 %v1685, %v1684
  %v1725 = vpack.c.b16 %v1687, %v1686
  %v1726 = vpack.c.b16 %v1689, %v1688
  %v1727 = vpack.c.b16 %v1691, %v1690
  %v1728 = vpack.c.b16 %v1693, %v1692
  %v1729 = vpack.c.b16 %v1695, %v1694
  %v1730 = vpack.c.b16 %v1697, %v1696
  %v1731 = vpack.c.b16 %v1699, %v1698
  %1764 = vmatprep.subr.bf16.mxu0 0
  %1765 = vmatpush1.bf16.msra.mxu0 %v1707
  %1766 = vmatprep.subr.bf16.mxu0 0
  %1767 = vmatpush1.bf16.msra.mxu0 %v1706
  %1768 = vmatprep.subr.bf16.mxu0 0
  %1769 = vmatpush1.bf16.msra.mxu0 %v1705
  %1770 = vmatprep.subr.bf16.mxu0 0
  %1771 = vmatpush1.bf16.msra.mxu0 %v1704
  %1772 = vmatprep.subr.bf16.mxu0 0
  %1773 = vmatpush1.bf16.msra.mxu0 %v1703
  %1774 = vmatprep.subr.bf16.mxu0 0
  %1775 = vmatpush1.bf16.msra.mxu0 %v1702
  %1776 = vmatprep.subr.bf16.mxu0 0
  %1777 = vmatpush1.bf16.msra.mxu0 %v1701
  %1778 = vmatprep.subr.bf16.mxu0 0
  %1779 = vmatpush1.bf16.msra.mxu0 %v1700
  %1780 = vmatprep.subr.bf16.mxu0 0
  %1781 = vmatpush2.bf16.msra.mxu0 %v1715
  %1782 = vmatprep.subr.bf16.mxu0 0
  %1783 = vmatpush2.bf16.msra.mxu0 %v1714
  %1784 = vmatprep.subr.bf16.mxu0 0
  %1785 = vmatpush2.bf16.msra.mxu0 %v1713
  %1786 = vmatprep.subr.bf16.mxu0 0
  %1787 = vmatpush2.bf16.msra.mxu0 %v1712
  %1788 = vmatprep.subr.bf16.mxu0 0
  %1789 = vmatpush2.bf16.msra.mxu0 %v1711
  %1790 = vmatprep.subr.bf16.mxu0 0
  %1791 = vmatpush2.bf16.msra.mxu0 %v1710
  %1792 = vmatprep.subr.bf16.mxu0 0
  %1793 = vmatpush2.bf16.msra.mxu0 %v1709
  %1794 = vmatprep.subr.bf16.mxu0 0
  %1795 = vmatpush2.bf16.msra.mxu0 %v1708
  %1796 = vmatprep.mubr.bf16.mxu0 %v1498
  %1797 = vmatmul.mubr.bf16.gmra.mxu0 %v1497
  %v1798 = vpop.f32.mrf.mxu0
  %v1799 = vadd.f32 %v1570, %v1798
  %v1800 = vpop.f32.mrf.mxu0
  %v1801 = vpop.f32.mrf.mxu0
  %v1802 = vadd.f32 %v1570, %v1801
  %v1803 = vpop.f32.mrf.mxu0
  %1804 = vdwg.mxu0
  %1805 = vmatprep.subr.bf16.mxu0 0
  %1806 = vmatpush1.bf16.msra.mxu0 %v1723
  %1807 = vmatprep.subr.bf16.mxu0 0
  %1808 = vmatpush1.bf16.msra.mxu0 %v1722
  %1809 = vmatprep.subr.bf16.mxu0 0
  %1810 = vmatpush1.bf16.msra.mxu0 %v1721
  %1811 = vmatprep.subr.bf16.mxu0 0
  %1812 = vmatpush1.bf16.msra.mxu0 %v1720
  %1813 = vmatprep.subr.bf16.mxu0 0
  %1814 = vmatpush1.bf16.msra.mxu0 %v1719
  %1815 = vmatprep.subr.bf16.mxu0 0
  %1816 = vmatpush1.bf16.msra.mxu0 %v1718
  %1817 = vmatprep.subr.bf16.mxu0 0
  %1818 = vmatpush1.bf16.msra.mxu0 %v1717
  %1819 = vmatprep.subr.bf16.mxu0 0
  %1820 = vmatpush1.bf16.msra.mxu0 %v1716
  %1821 = vmatprep.subr.bf16.mxu0 0
  %1822 = vmatpush2.bf16.msra.mxu0 %v1731
  %1823 = vmatprep.subr.bf16.mxu0 0
  %1824 = vmatpush2.bf16.msra.mxu0 %v1730
  %1825 = vmatprep.subr.bf16.mxu0 0
  %1826 = vmatpush2.bf16.msra.mxu0 %v1729
  %1827 = vmatprep.subr.bf16.mxu0 0
  %1828 = vmatpush2.bf16.msra.mxu0 %v1728
  %1829 = vmatprep.subr.bf16.mxu0 0
  %1830 = vmatpush2.bf16.msra.mxu0 %v1727
  %1831 = vmatprep.subr.bf16.mxu0 0
  %1832 = vmatpush2.bf16.msra.mxu0 %v1726
  %1833 = vmatprep.subr.bf16.mxu0 0
  %1834 = vmatpush2.bf16.msra.mxu0 %v1725
  %1835 = vmatprep.subr.bf16.mxu0 0
  %1836 = vmatpush2.bf16.msra.mxu0 %v1724
  %1837 = vmatprep.mubr.bf16.mxu0 %v1500
  %1838 = vmatmul.mubr.bf16.gmra.mxu0 %v1499
  %v1839 = vpop.f32.mrf.mxu0
  %v1840 = vadd.f32 %v1799, %v1839
  %v1841 = vpop.f32.mrf.mxu0
  %v1842 = vpop.f32.mrf.mxu0
  %v1843 = vadd.f32 %v1802, %v1842
  %v1844 = vpop.f32.mrf.mxu0
  %1845 = vdwg.mxu0
  %1846 = vst [vmem:[%s5] sm:$0xff] %v1840
  %1847 = vst [vmem:[%s5 + $0x8] sm:$0xff] %v1843
  // Predicated region
  $region22: #{model_forward.9} parent=0 // pred_check
    _
  $region23: #{model_forward.9} parent=0 // pred_check_branch
    %1849 = sbr.rel (0) target = $region25
  $region24: #{model_forward.9} parent=0 // pred_region
    _
  $region25: #{model_forward.9} parent=0 // pred_fallthru
    _
  // Predicated region
  $region26: #{model_forward.9} parent=0 // pred_check
    _
  $region27: #{model_forward.9} parent=0 // pred_check_branch
    %1851 = sbr.rel (0) target = $region29
  $region28: #{model_forward.9} parent=0 // pred_region
    _
  $region29: #{model_forward.9} parent=0 // pred_fallthru
    _

</llo_original>
